<compile_context>
chip_gen: v7x
topology: tpu7x:2x2x1
jax: 0.10.0
libtpu: 0.0.40
codegen_flags: <defaults>
</compile_context>

<pallas_src>
import functools

import jax
import jax.numpy as jnp
from jax.experimental import pallas as pl
from jax.experimental.pallas import tpu as pltpu


def _round_up(x, m):
    return (x + m - 1) // m * m


def _se_block_kernel(x_ref, w1_ref, b1_ref, w2_ref, b2_ref,
                     sw1_ref, sb1_ref, sw2_ref, sb2_ref,
                     o_ref, pad_ref, *, ksize, pad, enable):
    B, H, W, Cp = x_ref.shape
    Hp, Wp = H + 2 * pad, W + 2 * pad
    HW = H * W
    mxu_dtype = w1_ref.dtype                      # bf16 conv operands

    # ---- zero the halo border of the persistent padded scratch ---------------
    # Scratch is uninitialized; only the border needs zeroing (the interior is
    # rewritten before every read).  Re-zeroing every step is cheap and is safe
    # under megacore grid sharding (no reliance on program_id == 0).
    if pad > 0:
        pad_ref[:, 0:pad, :, :] = jnp.zeros((B, pad, Wp, Cp), jnp.float32)
        pad_ref[:, H + pad:Hp, :, :] = jnp.zeros((B, pad, Wp, Cp), jnp.float32)
        pad_ref[:, :, 0:pad, :] = jnp.zeros((B, Hp, pad, Cp), jnp.float32)
        pad_ref[:, :, W + pad:Wp, :] = jnp.zeros((B, Hp, pad, Cp), jnp.float32)

    def conv_same(inp_f32, w_ref, b_ref):
        """K x K stride-1 'same' conv: write interior into the padded scratch,
        then accumulate K*K shifted (B*HW, Cp) @ (Cp, Cp) bf16 MXU matmuls."""
        pad_ref[:, pad:pad + H, pad:pad + W, :] = inp_f32       # (B,H,W,Cp) f32
        acc = None
        for dy in range(ksize):
            for dx in range(ksize):
                win = pad_ref[:, dy:dy + H, dx:dx + W, :]        # (B,H,W,Cp)
                patch = win.astype(mxu_dtype).reshape(B * HW, Cp)
                part = jnp.dot(patch, w_ref[dy * ksize + dx],
                               preferred_element_type=jnp.float32)
                acc = part if acc is None else acc + part
        acc = acc + b_ref[...]                                   # (1, Cp) broadcast
        return acc.reshape(B, HW, Cp)

    def instance_norm(y, eps=1e-5):
        # PyTorch InstanceNorm2d: per-(n, c) mean / biased variance over H*W,
        # affine=False, eps=1e-5.
        mean = jnp.mean(y, axis=1, keepdims=True)
        var = jnp.mean(jnp.square(y - mean), axis=1, keepdims=True)
        return (y - mean) * jax.lax.rsqrt(var + eps)

    xin = x_ref[...]                                             # (B,H,W,Cp) f32

    h = conv_same(xin, w1_ref, b1_ref)                           # (B,HW,Cp) f32
    h = jnp.maximum(instance_norm(h), 0.0)
    h = conv_same(h.reshape(B, H, W, Cp), w2_ref, b2_ref)
    h = instance_norm(h)

    if enable:
        # F.avg_pool2d(output, H) on a square map == global average pool.
        pooled = jnp.mean(h, axis=1)                             # (B, Cp)
        # Squeeze (r = C//16, tiny): VPU broadcast-multiply + lane reduce
        # instead of a sub-vreg MXU matmul.  Padded rows/cols are zero.
        prod = pooled[:, None, :] * sw1_ref[...][None, :, :]     # (B, rp, Cp)
        hid = jnp.maximum(jnp.sum(prod, axis=-1) + sb1_ref[...], 0.0)   # (B, rp)
        # Excite: broadcast-multiply + sublane reduce.
        g = jnp.sum(hid[:, :, None] * sw2_ref[...][None, :, :], axis=1)  # (B, Cp)
        gate = jax.nn.sigmoid(g + sb2_ref[...])
        h = h * gate[:, None, :]

    out = jnp.maximum(h + xin.reshape(B, HW, Cp), 0.0)
    o_ref[...] = out.reshape(B, H, W, Cp).astype(o_ref.dtype)


def _pick_block_n(N, H, W, Cp, pad, vmem_budget_bytes=8 * 1024 * 1024):
    """Images per grid step: as many as fit a small VMEM budget while keeping
    >= 2 grid steps (so both v7x TensorCores get work)."""
    Hp, Wp = H + 2 * pad, W + 2 * pad
    # rough per-image residency: double-buffered f32 in/out blocks, f32 padded
    # scratch, plus a few f32 temporaries in the body.
    per_img = 4 * (H * W * Cp * 4) + (Hp * Wp * Cp * 4) + 4 * (H * W * Cp * 4)
    bmax = max(1, vmem_budget_bytes // per_img)
    target = max(1, min(int(bmax), N // 2))
    for b in range(target, 0, -1):
        if N % b == 0:
            return b
    return 1


def se_block_conv_forward(x_nchw, params, *, kernel, stride, padding, enable,
                          block_n=None):
    # Residual `output += x` requires output spatial == input spatial.
    assert stride == 1 and 2 * padding == kernel - 1, \
        "only stride-1 'same' configuration is supported (needed for residual add)"
    N, C, H, W = x_nchw.shape
    assert H == W, "F.avg_pool2d(output, output.size(2)) assumes a square map"
    assert W % 8 == 0, "W must be a multiple of 8 for layout-free reshapes"
    r = C // 16
    assert r >= 1, "channel must be >= 16 (channel // 16 squeeze width)"

    Cp = _round_up(C, 128)        # lane-dense channels + full-width MXU matmuls
    rp = _round_up(r, 8)
    kk = kernel * kernel

    # NCHW -> NHWC + channel zero-pad (fused by XLA into one relayout).
    # TODO(synk): keep the surrounding model in NHWC to drop this transpose —
    # it is a full HBM round-trip comparable to the kernel's own traffic.
    x = jnp.transpose(x_nchw, (0, 2, 3, 1)).astype(jnp.float32)
    if Cp != C:
        x = jnp.pad(x, ((0, 0), (0, 0), (0, 0), (0, Cp - C)))

    # Conv2d weights (Cout, Cin, kH, kW) -> (kH*kW, Cin_p, Cout_p), bf16 for MXU.
    def conv_w(w_oihw):
        w = jnp.transpose(w_oihw, (2, 3, 1, 0)).reshape(kk, C, C)
        w = jnp.pad(w, ((0, 0), (0, Cp - C), (0, Cp - C)))
        return w.astype(jnp.bfloat16)

    def pad_row(v, n):            # (k,) -> (1, n) f32, zero-padded
        v = v.reshape(1, -1).astype(jnp.float32)
        return jnp.pad(v, ((0, 0), (0, n - v.shape[1])))

    w1 = conv_w(params["w1"]); b1 = pad_row(params["b1"], Cp)
    w2 = conv_w(params["w2"]); b2 = pad_row(params["b2"], Cp)
    sw1 = jnp.pad(params["se_w1"].reshape(r, C).astype(jnp.float32),
                  ((0, rp - r), (0, Cp - C)))                          # (rp, Cp)
    sb1 = pad_row(params["se_b1"], rp)                                 # (1, rp)
    sw2 = jnp.pad(jnp.transpose(params["se_w2"].reshape(C, r), (1, 0))
                  .astype(jnp.float32), ((0, rp - r), (0, Cp - C)))    # (rp, Cp)
    sb2 = pad_row(params["se_b2"], Cp)                                 # (1, Cp)

    if block_n is None:
        block_n = _pick_block_n(N, H, W, Cp, padding)
    assert N % block_n == 0
    grid = (N // block_n,)

    kern = functools.partial(_se_block_kernel, ksize=kernel, pad=padding,
                             enable=enable)

    # TODO(synk): mark the constant weight/bias blocks pipeline_mode=pl.Buffered(1)
    # once single-buffering of constant-index blocks is verified on the target
    # jax version (saves their double-buffer VMEM footprint at large C).
    out = pl.pallas_call(
        kern,
        out_shape=jax.ShapeDtypeStruct((N, H, W, Cp), jnp.float32),
        grid_spec=pltpu.PrefetchScalarGridSpec(
            num_scalar_prefetch=0,
            grid=grid,
            in_specs=[
                pl.BlockSpec((block_n, H, W, Cp), lambda n: (n, 0, 0, 0)),  # x
                pl.BlockSpec((kk, Cp, Cp), lambda n: (0, 0, 0)),            # w1
                pl.BlockSpec((1, Cp), lambda n: (0, 0)),                    # b1
                pl.BlockSpec((kk, Cp, Cp), lambda n: (0, 0, 0)),            # w2
                pl.BlockSpec((1, Cp), lambda n: (0, 0)),                    # b2
                pl.BlockSpec((rp, Cp), lambda n: (0, 0)),                   # se_w1
                pl.BlockSpec((1, rp), lambda n: (0, 0)),                    # se_b1
                pl.BlockSpec((rp, Cp), lambda n: (0, 0)),                   # se_w2
                pl.BlockSpec((1, Cp), lambda n: (0, 0)),                    # se_b2
            ],
            out_specs=pl.BlockSpec((block_n, H, W, Cp), lambda n: (n, 0, 0, 0)),
            scratch_shapes=[
                pltpu.VMEM((block_n, H + 2 * padding, W + 2 * padding, Cp),
                           jnp.float32),                 # persistent padded halo
            ],
        ),
        compiler_params=pltpu.CompilerParams(
            dimension_semantics=("parallel",),
            vmem_limit_bytes=32 * 1024 * 1024),
    )(x, w1, b1, w2, b2, sw1, sb1, sw2, sb2)

    out = out[..., :C]                                     # drop channel padding
    return jnp.transpose(out, (0, 3, 1, 2))                # NHWC -> NCHW


if __name__ == "__main__":
    # Small deterministic configuration consistent with the module:
    # channel=32 (so channel // 16 = 2), kernel=3, stride=1, padding=1, enable=True.
    N, C, H, W = 2, 32, 16, 16
    kernel, stride, padding, enable = 3, 1, 1, True
    r = C // 16

    key = jax.random.PRNGKey(0)
    k = jax.random.split(key, 5)
    params = {
        # normal_init(mean=0, std=0.02)-style conv weights, zero conv biases.
        "w1": 0.02 * jax.random.normal(k[0], (C, C, kernel, kernel), jnp.float32),
        "b1": jnp.zeros((C,), jnp.float32),
        "w2": 0.02 * jax.random.normal(k[1], (C, C, kernel, kernel), jnp.float32),
        "b2": jnp.zeros((C,), jnp.float32),
        "se_w1": 0.1 * jax.random.normal(k[2], (r, C, 1, 1), jnp.float32),
        "se_b1": jnp.zeros((r,), jnp.float32),
        "se_w2": 0.1 * jax.random.normal(k[3], (C, r, 1, 1), jnp.float32),
        "se_b2": jnp.zeros((C,), jnp.float32),
    }
    x = jax.random.normal(k[4], (N, C, H, W), jnp.float32)

    fwd = jax.jit(functools.partial(se_block_conv_forward, kernel=kernel,
                                    stride=stride, padding=padding,
                                    enable=enable))
    y = fwd(x, params)
    jax.block_until_ready(y)
    assert y.shape == (N, C, H, W)
    assert bool(jnp.all(jnp.isfinite(y)))
    print("KERNEL_OK")
</pallas_src>

<mosaic_0001>
module attributes {stable_mosaic.version = 11 : i64} {
  func.func @_se_block_kernel(%arg0: i32, %arg1: memref<1x16x16x128xf32, #tpu.memory_space<vmem>>, %arg2: memref<9x128x128xbf16, #tpu.memory_space<vmem>>, %arg3: memref<1x128xf32, #tpu.memory_space<vmem>>, %arg4: memref<9x128x128xbf16, #tpu.memory_space<vmem>>, %arg5: memref<1x128xf32, #tpu.memory_space<vmem>>, %arg6: memref<8x128xf32, #tpu.memory_space<vmem>>, %arg7: memref<1x8xf32, #tpu.memory_space<vmem>>, %arg8: memref<8x128xf32, #tpu.memory_space<vmem>>, %arg9: memref<1x128xf32, #tpu.memory_space<vmem>>, %arg10: memref<1x16x16x128xf32, #tpu.memory_space<vmem>>, %arg11: memref<1x18x18x128xf32, #tpu.memory_space<vmem>>) attributes {dimension_semantics = [#tpu.dimension_semantics<parallel>], iteration_bounds = array<i64: 2>, scalar_prefetch = 0 : i64, scratch_operands = 1 : i64, tpu.core_type = #tpu.core_type<tc>, window_params = [{transform_indices = @transform_0, window_bounds = array<i64: 1, 16, 16, 128>}, {pipeline_mode = #tpu.pipeline_mode<synchronous>, transform_indices = @transform_1, window_bounds = array<i64: 9, 128, 128>}, {pipeline_mode = #tpu.pipeline_mode<synchronous>, transform_indices = @transform_2, window_bounds = array<i64: 1, 128>}, {pipeline_mode = #tpu.pipeline_mode<synchronous>, transform_indices = @transform_3, window_bounds = array<i64: 9, 128, 128>}, {pipeline_mode = #tpu.pipeline_mode<synchronous>, transform_indices = @transform_4, window_bounds = array<i64: 1, 128>}, {pipeline_mode = #tpu.pipeline_mode<synchronous>, transform_indices = @transform_5, window_bounds = array<i64: 8, 128>}, {pipeline_mode = #tpu.pipeline_mode<synchronous>, transform_indices = @transform_6, window_bounds = array<i64: 1, 8>}, {pipeline_mode = #tpu.pipeline_mode<synchronous>, transform_indices = @transform_7, window_bounds = array<i64: 8, 128>}, {pipeline_mode = #tpu.pipeline_mode<synchronous>, transform_indices = @transform_8, window_bounds = array<i64: 1, 128>}, {transform_indices = @transform_9, window_bounds = array<i64: 1, 16, 16, 128>}]} {
    %cst = arith.constant 0.000000e+00 : f32
    %0 = vector.broadcast %cst : f32 to vector<1x1x18x128xf32>
    %c0 = arith.constant 0 : index
    %c0_0 = arith.constant 0 : index
    %c0_1 = arith.constant 0 : index
    %c0_2 = arith.constant 0 : index
    %1 = vector.load %arg11[%c0, %c0_0, %c0_1, %c0_2] : memref<1x18x18x128xf32, #tpu.memory_space<vmem>>, vector<1x1x18x128xf32>
    tpu.vector_store %arg11[%c0, %c0_0, %c0_1, %c0_2], %0 {strides = array<i32>} : memref<1x18x18x128xf32, #tpu.memory_space<vmem>>, vector<1x1x18x128xf32>,
    %cst_3 = arith.constant 0.000000e+00 : f32
    %2 = vector.broadcast %cst_3 : f32 to vector<1x1x18x128xf32>
    %c0_4 = arith.constant 0 : index
    %c17 = arith.constant 17 : index
    %c0_5 = arith.constant 0 : index
    %c0_6 = arith.constant 0 : index
    %3 = vector.load %arg11[%c0_4, %c17, %c0_5, %c0_6] : memref<1x18x18x128xf32, #tpu.memory_space<vmem>>, vector<1x1x18x128xf32>
    tpu.vector_store %arg11[%c0_4, %c17, %c0_5, %c0_6], %2 {strides = array<i32>} : memref<1x18x18x128xf32, #tpu.memory_space<vmem>>, vector<1x1x18x128xf32>,
    %cst_7 = arith.constant 0.000000e+00 : f32
    %4 = vector.broadcast %cst_7 : f32 to vector<1x18x1x128xf32>
    %c0_8 = arith.constant 0 : index
    %c0_9 = arith.constant 0 : index
    %c0_10 = arith.constant 0 : index
    %c0_11 = arith.constant 0 : index
    %5 = vector.load %arg11[%c0_8, %c0_9, %c0_10, %c0_11] : memref<1x18x18x128xf32, #tpu.memory_space<vmem>>, vector<1x18x1x128xf32>
    tpu.vector_store %arg11[%c0_8, %c0_9, %c0_10, %c0_11], %4 {strides = array<i32>} : memref<1x18x18x128xf32, #tpu.memory_space<vmem>>, vector<1x18x1x128xf32>,
    %cst_12 = arith.constant 0.000000e+00 : f32
    %6 = vector.broadcast %cst_12 : f32 to vector<1x18x1x128xf32>
    %c0_13 = arith.constant 0 : index
    %c0_14 = arith.constant 0 : index
    %c17_15 = arith.constant 17 : index
    %c0_16 = arith.constant 0 : index
    %7 = vector.load %arg11[%c0_13, %c0_14, %c17_15, %c0_16] : memref<1x18x18x128xf32, #tpu.memory_space<vmem>>, vector<1x18x1x128xf32>
    tpu.vector_store %arg11[%c0_13, %c0_14, %c17_15, %c0_16], %6 {strides = array<i32>} : memref<1x18x18x128xf32, #tpu.memory_space<vmem>>, vector<1x18x1x128xf32>,
    %c0_17 = arith.constant 0 : index
    %c0_18 = arith.constant 0 : index
    %c0_19 = arith.constant 0 : index
    %c0_20 = arith.constant 0 : index
    %8 = vector.load %arg1[%c0_17, %c0_18, %c0_19, %c0_20] : memref<1x16x16x128xf32, #tpu.memory_space<vmem>>, vector<1x16x16x128xf32>
    %c0_21 = arith.constant 0 : index
    %c1 = arith.constant 1 : index
    %c1_22 = arith.constant 1 : index
    %c0_23 = arith.constant 0 : index
    %9 = vector.load %arg11[%c0_21, %c1, %c1_22, %c0_23] : memref<1x18x18x128xf32, #tpu.memory_space<vmem>>, vector<1x16x16x128xf32>
    tpu.vector_store %arg11[%c0_21, %c1, %c1_22, %c0_23], %8 {strides = array<i32>} : memref<1x18x18x128xf32, #tpu.memory_space<vmem>>, vector<1x16x16x128xf32>,
    %c0_24 = arith.constant 0 : index
    %c0_25 = arith.constant 0 : index
    %c0_26 = arith.constant 0 : index
    %c0_27 = arith.constant 0 : index
    %10 = vector.load %arg11[%c0_24, %c0_25, %c0_26, %c0_27] : memref<1x18x18x128xf32, #tpu.memory_space<vmem>>, vector<1x16x16x128xf32>
    %11 = arith.truncf %10 : vector<1x16x16x128xf32> to vector<1x16x16x128xbf16>
    %12 = vector.shape_cast %11 : vector<1x16x16x128xbf16> to vector<256x128xbf16>
    %c0_28 = arith.constant 0 : index
    %c0_29 = arith.constant 0 : index
    %c0_30 = arith.constant 0 : index
    %13 = vector.load %arg2[%c0_28, %c0_29, %c0_30] : memref<9x128x128xbf16, #tpu.memory_space<vmem>>, vector<1x128x128xbf16>
    %14 = vector.shape_cast %13 : vector<1x128x128xbf16> to vector<128x128xbf16>
    %cst_31 = arith.constant dense<0.000000e+00> : vector<256x128xf32>
    %15 = tpu.matmul %12, %14, %cst_31 {dimension_numbers = #tpu.dot_dimension_numbers<[1], [0], [0], [1], [0, 0, 1, 1], [], []>} : vector<256x128xbf16>, vector<128x128xbf16>, vector<256x128xf32> -> vector<256x128xf32>
    %c0_32 = arith.constant 0 : index
    %c0_33 = arith.constant 0 : index
    %c1_34 = arith.constant 1 : index
    %c0_35 = arith.constant 0 : index
    %16 = vector.load %arg11[%c0_32, %c0_33, %c1_34, %c0_35] : memref<1x18x18x128xf32, #tpu.memory_space<vmem>>, vector<1x16x16x128xf32>
    %17 = arith.truncf %16 : vector<1x16x16x128xf32> to vector<1x16x16x128xbf16>
    %18 = vector.shape_cast %17 : vector<1x16x16x128xbf16> to vector<256x128xbf16>
    %c1_36 = arith.constant 1 : index
    %c0_37 = arith.constant 0 : index
    %c0_38 = arith.constant 0 : index
    %19 = vector.load %arg2[%c1_36, %c0_37, %c0_38] : memref<9x128x128xbf16, #tpu.memory_space<vmem>>, vector<1x128x128xbf16>
    %20 = vector.shape_cast %19 : vector<1x128x128xbf16> to vector<128x128xbf16>
    %cst_39 = arith.constant dense<0.000000e+00> : vector<256x128xf32>
    %21 = tpu.matmul %18, %20, %cst_39 {dimension_numbers = #tpu.dot_dimension_numbers<[1], [0], [0], [1], [0, 0, 1, 1], [], []>} : vector<256x128xbf16>, vector<128x128xbf16>, vector<256x128xf32> -> vector<256x128xf32>
    %22 = arith.addf %15, %21 : vector<256x128xf32>
    %c0_40 = arith.constant 0 : index
    %c0_41 = arith.constant 0 : index
    %c2 = arith.constant 2 : index
    %c0_42 = arith.constant 0 : index
    %23 = vector.load %arg11[%c0_40, %c0_41, %c2, %c0_42] : memref<1x18x18x128xf32, #tpu.memory_space<vmem>>, vector<1x16x16x128xf32>
    %24 = arith.truncf %23 : vector<1x16x16x128xf32> to vector<1x16x16x128xbf16>
    %25 = vector.shape_cast %24 : vector<1x16x16x128xbf16> to vector<256x128xbf16>
    %c2_43 = arith.constant 2 : index
    %c0_44 = arith.constant 0 : index
    %c0_45 = arith.constant 0 : index
    %26 = vector.load %arg2[%c2_43, %c0_44, %c0_45] : memref<9x128x128xbf16, #tpu.memory_space<vmem>>, vector<1x128x128xbf16>
    %27 = vector.shape_cast %26 : vector<1x128x128xbf16> to vector<128x128xbf16>
    %cst_46 = arith.constant dense<0.000000e+00> : vector<256x128xf32>
    %28 = tpu.matmul %25, %27, %cst_46 {dimension_numbers = #tpu.dot_dimension_numbers<[1], [0], [0], [1], [0, 0, 1, 1], [], []>} : vector<256x128xbf16>, vector<128x128xbf16>, vector<256x128xf32> -> vector<256x128xf32>
    %29 = arith.addf %22, %28 : vector<256x128xf32>
    %c0_47 = arith.constant 0 : index
    %c1_48 = arith.constant 1 : index
    %c0_49 = arith.constant 0 : index
    %c0_50 = arith.constant 0 : index
    %30 = vector.load %arg11[%c0_47, %c1_48, %c0_49, %c0_50] : memref<1x18x18x128xf32, #tpu.memory_space<vmem>>, vector<1x16x16x128xf32>
    %31 = arith.truncf %30 : vector<1x16x16x128xf32> to vector<1x16x16x128xbf16>
    %32 = vector.shape_cast %31 : vector<1x16x16x128xbf16> to vector<256x128xbf16>
    %c3 = arith.constant 3 : index
    %c0_51 = arith.constant 0 : index
    %c0_52 = arith.constant 0 : index
    %33 = vector.load %arg2[%c3, %c0_51, %c0_52] : memref<9x128x128xbf16, #tpu.memory_space<vmem>>, vector<1x128x128xbf16>
    %34 = vector.shape_cast %33 : vector<1x128x128xbf16> to vector<128x128xbf16>
    %cst_53 = arith.constant dense<0.000000e+00> : vector<256x128xf32>
    %35 = tpu.matmul %32, %34, %cst_53 {dimension_numbers = #tpu.dot_dimension_numbers<[1], [0], [0], [1], [0, 0, 1, 1], [], []>} : vector<256x128xbf16>, vector<128x128xbf16>, vector<256x128xf32> -> vector<256x128xf32>
    %36 = arith.addf %29, %35 : vector<256x128xf32>
    %c0_54 = arith.constant 0 : index
    %c1_55 = arith.constant 1 : index
    %c1_56 = arith.constant 1 : index
    %c0_57 = arith.constant 0 : index
    %37 = vector.load %arg11[%c0_54, %c1_55, %c1_56, %c0_57] : memref<1x18x18x128xf32, #tpu.memory_space<vmem>>, vector<1x16x16x128xf32>
    %38 = arith.truncf %37 : vector<1x16x16x128xf32> to vector<1x16x16x128xbf16>
    %39 = vector.shape_cast %38 : vector<1x16x16x128xbf16> to vector<256x128xbf16>
    %c4 = arith.constant 4 : index
    %c0_58 = arith.constant 0 : index
    %c0_59 = arith.constant 0 : index
    %40 = vector.load %arg2[%c4, %c0_58, %c0_59] : memref<9x128x128xbf16, #tpu.memory_space<vmem>>, vector<1x128x128xbf16>
    %41 = vector.shape_cast %40 : vector<1x128x128xbf16> to vector<128x128xbf16>
    %cst_60 = arith.constant dense<0.000000e+00> : vector<256x128xf32>
    %42 = tpu.matmul %39, %41, %cst_60 {dimension_numbers = #tpu.dot_dimension_numbers<[1], [0], [0], [1], [0, 0, 1, 1], [], []>} : vector<256x128xbf16>, vector<128x128xbf16>, vector<256x128xf32> -> vector<256x128xf32>
    %43 = arith.addf %36, %42 : vector<256x128xf32>
    %c0_61 = arith.constant 0 : index
    %c1_62 = arith.constant 1 : index
    %c2_63 = arith.constant 2 : index
    %c0_64 = arith.constant 0 : index
    %44 = vector.load %arg11[%c0_61, %c1_62, %c2_63, %c0_64] : memref<1x18x18x128xf32, #tpu.memory_space<vmem>>, vector<1x16x16x128xf32>
    %45 = arith.truncf %44 : vector<1x16x16x128xf32> to vector<1x16x16x128xbf16>
    %46 = vector.shape_cast %45 : vector<1x16x16x128xbf16> to vector<256x128xbf16>
    %c5 = arith.constant 5 : index
    %c0_65 = arith.constant 0 : index
    %c0_66 = arith.constant 0 : index
    %47 = vector.load %arg2[%c5, %c0_65, %c0_66] : memref<9x128x128xbf16, #tpu.memory_space<vmem>>, vector<1x128x128xbf16>
    %48 = vector.shape_cast %47 : vector<1x128x128xbf16> to vector<128x128xbf16>
    %cst_67 = arith.constant dense<0.000000e+00> : vector<256x128xf32>
    %49 = tpu.matmul %46, %48, %cst_67 {dimension_numbers = #tpu.dot_dimension_numbers<[1], [0], [0], [1], [0, 0, 1, 1], [], []>} : vector<256x128xbf16>, vector<128x128xbf16>, vector<256x128xf32> -> vector<256x128xf32>
    %50 = arith.addf %43, %49 : vector<256x128xf32>
    %c0_68 = arith.constant 0 : index
    %c2_69 = arith.constant 2 : index
    %c0_70 = arith.constant 0 : index
    %c0_71 = arith.constant 0 : index
    %51 = vector.load %arg11[%c0_68, %c2_69, %c0_70, %c0_71] : memref<1x18x18x128xf32, #tpu.memory_space<vmem>>, vector<1x16x16x128xf32>
    %52 = arith.truncf %51 : vector<1x16x16x128xf32> to vector<1x16x16x128xbf16>
    %53 = vector.shape_cast %52 : vector<1x16x16x128xbf16> to vector<256x128xbf16>
    %c6 = arith.constant 6 : index
    %c0_72 = arith.constant 0 : index
    %c0_73 = arith.constant 0 : index
    %54 = vector.load %arg2[%c6, %c0_72, %c0_73] : memref<9x128x128xbf16, #tpu.memory_space<vmem>>, vector<1x128x128xbf16>
    %55 = vector.shape_cast %54 : vector<1x128x128xbf16> to vector<128x128xbf16>
    %cst_74 = arith.constant dense<0.000000e+00> : vector<256x128xf32>
    %56 = tpu.matmul %53, %55, %cst_74 {dimension_numbers = #tpu.dot_dimension_numbers<[1], [0], [0], [1], [0, 0, 1, 1], [], []>} : vector<256x128xbf16>, vector<128x128xbf16>, vector<256x128xf32> -> vector<256x128xf32>
    %57 = arith.addf %50, %56 : vector<256x128xf32>
    %c0_75 = arith.constant 0 : index
    %c2_76 = arith.constant 2 : index
    %c1_77 = arith.constant 1 : index
    %c0_78 = arith.constant 0 : index
    %58 = vector.load %arg11[%c0_75, %c2_76, %c1_77, %c0_78] : memref<1x18x18x128xf32, #tpu.memory_space<vmem>>, vector<1x16x16x128xf32>
    %59 = arith.truncf %58 : vector<1x16x16x128xf32> to vector<1x16x16x128xbf16>
    %60 = vector.shape_cast %59 : vector<1x16x16x128xbf16> to vector<256x128xbf16>
    %c7 = arith.constant 7 : index
    %c0_79 = arith.constant 0 : index
    %c0_80 = arith.constant 0 : index
    %61 = vector.load %arg2[%c7, %c0_79, %c0_80] : memref<9x128x128xbf16, #tpu.memory_space<vmem>>, vector<1x128x128xbf16>
    %62 = vector.shape_cast %61 : vector<1x128x128xbf16> to vector<128x128xbf16>
    %cst_81 = arith.constant dense<0.000000e+00> : vector<256x128xf32>
    %63 = tpu.matmul %60, %62, %cst_81 {dimension_numbers = #tpu.dot_dimension_numbers<[1], [0], [0], [1], [0, 0, 1, 1], [], []>} : vector<256x128xbf16>, vector<128x128xbf16>, vector<256x128xf32> -> vector<256x128xf32>
    %64 = arith.addf %57, %63 : vector<256x128xf32>
    %c0_82 = arith.constant 0 : index
    %c2_83 = arith.constant 2 : index
    %c2_84 = arith.constant 2 : index
    %c0_85 = arith.constant 0 : index
    %65 = vector.load %arg11[%c0_82, %c2_83, %c2_84, %c0_85] : memref<1x18x18x128xf32, #tpu.memory_space<vmem>>, vector<1x16x16x128xf32>
    %66 = arith.truncf %65 : vector<1x16x16x128xf32> to vector<1x16x16x128xbf16>
    %67 = vector.shape_cast %66 : vector<1x16x16x128xbf16> to vector<256x128xbf16>
    %c8 = arith.constant 8 : index
    %c0_86 = arith.constant 0 : index
    %c0_87 = arith.constant 0 : index
    %68 = vector.load %arg2[%c8, %c0_86, %c0_87] : memref<9x128x128xbf16, #tpu.memory_space<vmem>>, vector<1x128x128xbf16>
    %69 = vector.shape_cast %68 : vector<1x128x128xbf16> to vector<128x128xbf16>
    %cst_88 = arith.constant dense<0.000000e+00> : vector<256x128xf32>
    %70 = tpu.matmul %67, %69, %cst_88 {dimension_numbers = #tpu.dot_dimension_numbers<[1], [0], [0], [1], [0, 0, 1, 1], [], []>} : vector<256x128xbf16>, vector<128x128xbf16>, vector<256x128xf32> -> vector<256x128xf32>
    %71 = arith.addf %64, %70 : vector<256x128xf32>
    %c0_89 = arith.constant 0 : index
    %c0_90 = arith.constant 0 : index
    %72 = vector.load %arg3[%c0_89, %c0_90] : memref<1x128xf32, #tpu.memory_space<vmem>>, vector<1x128xf32>
    %73 = vector.broadcast %72 : vector<1x128xf32> to vector<256x128xf32>
    %74 = arith.addf %71, %73 : vector<256x128xf32>
    %75 = vector.shape_cast %74 : vector<256x128xf32> to vector<1x256x128xf32>
    %cst_91 = arith.constant dense<0.000000e+00> : vector<1x128xf32>
    %76 = vector.multi_reduction <add>, %75, %cst_91 [1] : vector<1x256x128xf32> to vector<1x128xf32>
    %77 = vector.shape_cast %76 : vector<1x128xf32> to vector<1x1x128xf32>
    %cst_92 = arith.constant 2.560000e+02 : f32
    %78 = vector.broadcast %cst_92 : f32 to vector<1x1x128xf32>
    %79 = arith.divf %77, %78 : vector<1x1x128xf32>
    %80 = vector.broadcast %79 : vector<1x1x128xf32> to vector<1x256x128xf32>
    %81 = arith.subf %75, %80 : vector<1x256x128xf32>
    %82 = arith.mulf %81, %81 : vector<1x256x128xf32>
    %cst_93 = arith.constant dense<0.000000e+00> : vector<1x128xf32>
    %83 = vector.multi_reduction <add>, %82, %cst_93 [1] : vector<1x256x128xf32> to vector<1x128xf32>
    %84 = vector.shape_cast %83 : vector<1x128xf32> to vector<1x1x128xf32>
    %cst_94 = arith.constant 2.560000e+02 : f32
    %85 = vector.broadcast %cst_94 : f32 to vector<1x1x128xf32>
    %86 = arith.divf %84, %85 : vector<1x1x128xf32>
    %87 = vector.broadcast %79 : vector<1x1x128xf32> to vector<1x256x128xf32>
    %88 = arith.subf %75, %87 : vector<1x256x128xf32>
    %cst_95 = arith.constant 9.99999974E-6 : f32
    %89 = vector.broadcast %cst_95 : f32 to vector<1x1x128xf32>
    %90 = arith.addf %86, %89 : vector<1x1x128xf32>
    %91 = math.rsqrt %90 : vector<1x1x128xf32>
    %92 = vector.broadcast %91 : vector<1x1x128xf32> to vector<1x256x128xf32>
    %93 = arith.mulf %88, %92 : vector<1x256x128xf32>
    %cst_96 = arith.constant 0.000000e+00 : f32
    %94 = vector.broadcast %cst_96 : f32 to vector<1x256x128xf32>
    %95 = arith.maximumf %93, %94 : vector<1x256x128xf32>
    %96 = vector.shape_cast %95 : vector<1x256x128xf32> to vector<1x16x16x128xf32>
    %c0_97 = arith.constant 0 : index
    %c1_98 = arith.constant 1 : index
    %c1_99 = arith.constant 1 : index
    %c0_100 = arith.constant 0 : index
    %97 = vector.load %arg11[%c0_97, %c1_98, %c1_99, %c0_100] : memref<1x18x18x128xf32, #tpu.memory_space<vmem>>, vector<1x16x16x128xf32>
    tpu.vector_store %arg11[%c0_97, %c1_98, %c1_99, %c0_100], %96 {strides = array<i32>} : memref<1x18x18x128xf32, #tpu.memory_space<vmem>>, vector<1x16x16x128xf32>,
    %c0_101 = arith.constant 0 : index
    %c0_102 = arith.constant 0 : index
    %c0_103 = arith.constant 0 : index
    %c0_104 = arith.constant 0 : index
    %98 = vector.load %arg11[%c0_101, %c0_102, %c0_103, %c0_104] : memref<1x18x18x128xf32, #tpu.memory_space<vmem>>, vector<1x16x16x128xf32>
    %99 = arith.truncf %98 : vector<1x16x16x128xf32> to vector<1x16x16x128xbf16>
    %100 = vector.shape_cast %99 : vector<1x16x16x128xbf16> to vector<256x128xbf16>
    %c0_105 = arith.constant 0 : index
    %c0_106 = arith.constant 0 : index
    %c0_107 = arith.constant 0 : index
    %101 = vector.load %arg4[%c0_105, %c0_106, %c0_107] : memref<9x128x128xbf16, #tpu.memory_space<vmem>>, vector<1x128x128xbf16>
    %102 = vector.shape_cast %101 : vector<1x128x128xbf16> to vector<128x128xbf16>
    %cst_108 = arith.constant dense<0.000000e+00> : vector<256x128xf32>
    %103 = tpu.matmul %100, %102, %cst_108 {dimension_numbers = #tpu.dot_dimension_numbers<[1], [0], [0], [1], [0, 0, 1, 1], [], []>} : vector<256x128xbf16>, vector<128x128xbf16>, vector<256x128xf32> -> vector<256x128xf32>
    %c0_109 = arith.constant 0 : index
    %c0_110 = arith.constant 0 : index
    %c1_111 = arith.constant 1 : index
    %c0_112 = arith.constant 0 : index
    %104 = vector.load %arg11[%c0_109, %c0_110, %c1_111, %c0_112] : memref<1x18x18x128xf32, #tpu.memory_space<vmem>>, vector<1x16x16x128xf32>
    %105 = arith.truncf %104 : vector<1x16x16x128xf32> to vector<1x16x16x128xbf16>
    %106 = vector.shape_cast %105 : vector<1x16x16x128xbf16> to vector<256x128xbf16>
    %c1_113 = arith.constant 1 : index
    %c0_114 = arith.constant 0 : index
    %c0_115 = arith.constant 0 : index
    %107 = vector.load %arg4[%c1_113, %c0_114, %c0_115] : memref<9x128x128xbf16, #tpu.memory_space<vmem>>, vector<1x128x128xbf16>
    %108 = vector.shape_cast %107 : vector<1x128x128xbf16> to vector<128x128xbf16>
    %cst_116 = arith.constant dense<0.000000e+00> : vector<256x128xf32>
    %109 = tpu.matmul %106, %108, %cst_116 {dimension_numbers = #tpu.dot_dimension_numbers<[1], [0], [0], [1], [0, 0, 1, 1], [], []>} : vector<256x128xbf16>, vector<128x128xbf16>, vector<256x128xf32> -> vector<256x128xf32>
    %110 = arith.addf %103, %109 : vector<256x128xf32>
    %c0_117 = arith.constant 0 : index
    %c0_118 = arith.constant 0 : index
    %c2_119 = arith.constant 2 : index
    %c0_120 = arith.constant 0 : index
    %111 = vector.load %arg11[%c0_117, %c0_118, %c2_119, %c0_120] : memref<1x18x18x128xf32, #tpu.memory_space<vmem>>, vector<1x16x16x128xf32>
    %112 = arith.truncf %111 : vector<1x16x16x128xf32> to vector<1x16x16x128xbf16>
    %113 = vector.shape_cast %112 : vector<1x16x16x128xbf16> to vector<256x128xbf16>
    %c2_121 = arith.constant 2 : index
    %c0_122 = arith.constant 0 : index
    %c0_123 = arith.constant 0 : index
    %114 = vector.load %arg4[%c2_121, %c0_122, %c0_123] : memref<9x128x128xbf16, #tpu.memory_space<vmem>>, vector<1x128x128xbf16>
    %115 = vector.shape_cast %114 : vector<1x128x128xbf16> to vector<128x128xbf16>
    %cst_124 = arith.constant dense<0.000000e+00> : vector<256x128xf32>
    %116 = tpu.matmul %113, %115, %cst_124 {dimension_numbers = #tpu.dot_dimension_numbers<[1], [0], [0], [1], [0, 0, 1, 1], [], []>} : vector<256x128xbf16>, vector<128x128xbf16>, vector<256x128xf32> -> vector<256x128xf32>
    %117 = arith.addf %110, %116 : vector<256x128xf32>
    %c0_125 = arith.constant 0 : index
    %c1_126 = arith.constant 1 : index
    %c0_127 = arith.constant 0 : index
    %c0_128 = arith.constant 0 : index
    %118 = vector.load %arg11[%c0_125, %c1_126, %c0_127, %c0_128] : memref<1x18x18x128xf32, #tpu.memory_space<vmem>>, vector<1x16x16x128xf32>
    %119 = arith.truncf %118 : vector<1x16x16x128xf32> to vector<1x16x16x128xbf16>
    %120 = vector.shape_cast %119 : vector<1x16x16x128xbf16> to vector<256x128xbf16>
    %c3_129 = arith.constant 3 : index
    %c0_130 = arith.constant 0 : index
    %c0_131 = arith.constant 0 : index
    %121 = vector.load %arg4[%c3_129, %c0_130, %c0_131] : memref<9x128x128xbf16, #tpu.memory_space<vmem>>, vector<1x128x128xbf16>
    %122 = vector.shape_cast %121 : vector<1x128x128xbf16> to vector<128x128xbf16>
    %cst_132 = arith.constant dense<0.000000e+00> : vector<256x128xf32>
    %123 = tpu.matmul %120, %122, %cst_132 {dimension_numbers = #tpu.dot_dimension_numbers<[1], [0], [0], [1], [0, 0, 1, 1], [], []>} : vector<256x128xbf16>, vector<128x128xbf16>, vector<256x128xf32> -> vector<256x128xf32>
    %124 = arith.addf %117, %123 : vector<256x128xf32>
    %c0_133 = arith.constant 0 : index
    %c1_134 = arith.constant 1 : index
    %c1_135 = arith.constant 1 : index
    %c0_136 = arith.constant 0 : index
    %125 = vector.load %arg11[%c0_133, %c1_134, %c1_135, %c0_136] : memref<1x18x18x128xf32, #tpu.memory_space<vmem>>, vector<1x16x16x128xf32>
    %126 = arith.truncf %125 : vector<1x16x16x128xf32> to vector<1x16x16x128xbf16>
    %127 = vector.shape_cast %126 : vector<1x16x16x128xbf16> to vector<256x128xbf16>
    %c4_137 = arith.constant 4 : index
    %c0_138 = arith.constant 0 : index
    %c0_139 = arith.constant 0 : index
    %128 = vector.load %arg4[%c4_137, %c0_138, %c0_139] : memref<9x128x128xbf16, #tpu.memory_space<vmem>>, vector<1x128x128xbf16>
    %129 = vector.shape_cast %128 : vector<1x128x128xbf16> to vector<128x128xbf16>
    %cst_140 = arith.constant dense<0.000000e+00> : vector<256x128xf32>
    %130 = tpu.matmul %127, %129, %cst_140 {dimension_numbers = #tpu.dot_dimension_numbers<[1], [0], [0], [1], [0, 0, 1, 1], [], []>} : vector<256x128xbf16>, vector<128x128xbf16>, vector<256x128xf32> -> vector<256x128xf32>
    %131 = arith.addf %124, %130 : vector<256x128xf32>
    %c0_141 = arith.constant 0 : index
    %c1_142 = arith.constant 1 : index
    %c2_143 = arith.constant 2 : index
    %c0_144 = arith.constant 0 : index
    %132 = vector.load %arg11[%c0_141, %c1_142, %c2_143, %c0_144] : memref<1x18x18x128xf32, #tpu.memory_space<vmem>>, vector<1x16x16x128xf32>
    %133 = arith.truncf %132 : vector<1x16x16x128xf32> to vector<1x16x16x128xbf16>
    %134 = vector.shape_cast %133 : vector<1x16x16x128xbf16> to vector<256x128xbf16>
    %c5_145 = arith.constant 5 : index
    %c0_146 = arith.constant 0 : index
    %c0_147 = arith.constant 0 : index
    %135 = vector.load %arg4[%c5_145, %c0_146, %c0_147] : memref<9x128x128xbf16, #tpu.memory_space<vmem>>, vector<1x128x128xbf16>
    %136 = vector.shape_cast %135 : vector<1x128x128xbf16> to vector<128x128xbf16>
    %cst_148 = arith.constant dense<0.000000e+00> : vector<256x128xf32>
    %137 = tpu.matmul %134, %136, %cst_148 {dimension_numbers = #tpu.dot_dimension_numbers<[1], [0], [0], [1], [0, 0, 1, 1], [], []>} : vector<256x128xbf16>, vector<128x128xbf16>, vector<256x128xf32> -> vector<256x128xf32>
    %138 = arith.addf %131, %137 : vector<256x128xf32>
    %c0_149 = arith.constant 0 : index
    %c2_150 = arith.constant 2 : index
    %c0_151 = arith.constant 0 : index
    %c0_152 = arith.constant 0 : index
    %139 = vector.load %arg11[%c0_149, %c2_150, %c0_151, %c0_152] : memref<1x18x18x128xf32, #tpu.memory_space<vmem>>, vector<1x16x16x128xf32>
    %140 = arith.truncf %139 : vector<1x16x16x128xf32> to vector<1x16x16x128xbf16>
    %141 = vector.shape_cast %140 : vector<1x16x16x128xbf16> to vector<256x128xbf16>
    %c6_153 = arith.constant 6 : index
    %c0_154 = arith.constant 0 : index
    %c0_155 = arith.constant 0 : index
    %142 = vector.load %arg4[%c6_153, %c0_154, %c0_155] : memref<9x128x128xbf16, #tpu.memory_space<vmem>>, vector<1x128x128xbf16>
    %143 = vector.shape_cast %142 : vector<1x128x128xbf16> to vector<128x128xbf16>
    %cst_156 = arith.constant dense<0.000000e+00> : vector<256x128xf32>
    %144 = tpu.matmul %141, %143, %cst_156 {dimension_numbers = #tpu.dot_dimension_numbers<[1], [0], [0], [1], [0, 0, 1, 1], [], []>} : vector<256x128xbf16>, vector<128x128xbf16>, vector<256x128xf32> -> vector<256x128xf32>
    %145 = arith.addf %138, %144 : vector<256x128xf32>
    %c0_157 = arith.constant 0 : index
    %c2_158 = arith.constant 2 : index
    %c1_159 = arith.constant 1 : index
    %c0_160 = arith.constant 0 : index
    %146 = vector.load %arg11[%c0_157, %c2_158, %c1_159, %c0_160] : memref<1x18x18x128xf32, #tpu.memory_space<vmem>>, vector<1x16x16x128xf32>
    %147 = arith.truncf %146 : vector<1x16x16x128xf32> to vector<1x16x16x128xbf16>
    %148 = vector.shape_cast %147 : vector<1x16x16x128xbf16> to vector<256x128xbf16>
    %c7_161 = arith.constant 7 : index
    %c0_162 = arith.constant 0 : index
    %c0_163 = arith.constant 0 : index
    %149 = vector.load %arg4[%c7_161, %c0_162, %c0_163] : memref<9x128x128xbf16, #tpu.memory_space<vmem>>, vector<1x128x128xbf16>
    %150 = vector.shape_cast %149 : vector<1x128x128xbf16> to vector<128x128xbf16>
    %cst_164 = arith.constant dense<0.000000e+00> : vector<256x128xf32>
    %151 = tpu.matmul %148, %150, %cst_164 {dimension_numbers = #tpu.dot_dimension_numbers<[1], [0], [0], [1], [0, 0, 1, 1], [], []>} : vector<256x128xbf16>, vector<128x128xbf16>, vector<256x128xf32> -> vector<256x128xf32>
    %152 = arith.addf %145, %151 : vector<256x128xf32>
    %c0_165 = arith.constant 0 : index
    %c2_166 = arith.constant 2 : index
    %c2_167 = arith.constant 2 : index
    %c0_168 = arith.constant 0 : index
    %153 = vector.load %arg11[%c0_165, %c2_166, %c2_167, %c0_168] : memref<1x18x18x128xf32, #tpu.memory_space<vmem>>, vector<1x16x16x128xf32>
    %154 = arith.truncf %153 : vector<1x16x16x128xf32> to vector<1x16x16x128xbf16>
    %155 = vector.shape_cast %154 : vector<1x16x16x128xbf16> to vector<256x128xbf16>
    %c8_169 = arith.constant 8 : index
    %c0_170 = arith.constant 0 : index
    %c0_171 = arith.constant 0 : index
    %156 = vector.load %arg4[%c8_169, %c0_170, %c0_171] : memref<9x128x128xbf16, #tpu.memory_space<vmem>>, vector<1x128x128xbf16>
    %157 = vector.shape_cast %156 : vector<1x128x128xbf16> to vector<128x128xbf16>
    %cst_172 = arith.constant dense<0.000000e+00> : vector<256x128xf32>
    %158 = tpu.matmul %155, %157, %cst_172 {dimension_numbers = #tpu.dot_dimension_numbers<[1], [0], [0], [1], [0, 0, 1, 1], [], []>} : vector<256x128xbf16>, vector<128x128xbf16>, vector<256x128xf32> -> vector<256x128xf32>
    %159 = arith.addf %152, %158 : vector<256x128xf32>
    %c0_173 = arith.constant 0 : index
    %c0_174 = arith.constant 0 : index
    %160 = vector.load %arg5[%c0_173, %c0_174] : memref<1x128xf32, #tpu.memory_space<vmem>>, vector<1x128xf32>
    %161 = vector.broadcast %160 : vector<1x128xf32> to vector<256x128xf32>
    %162 = arith.addf %159, %161 : vector<256x128xf32>
    %163 = vector.shape_cast %162 : vector<256x128xf32> to vector<1x256x128xf32>
    %cst_175 = arith.constant dense<0.000000e+00> : vector<1x128xf32>
    %164 = vector.multi_reduction <add>, %163, %cst_175 [1] : vector<1x256x128xf32> to vector<1x128xf32>
    %165 = vector.shape_cast %164 : vector<1x128xf32> to vector<1x1x128xf32>
    %cst_176 = arith.constant 2.560000e+02 : f32
    %166 = vector.broadcast %cst_176 : f32 to vector<1x1x128xf32>
    %167 = arith.divf %165, %166 : vector<1x1x128xf32>
    %168 = vector.broadcast %167 : vector<1x1x128xf32> to vector<1x256x128xf32>
    %169 = arith.subf %163, %168 : vector<1x256x128xf32>
    %170 = arith.mulf %169, %169 : vector<1x256x128xf32>
    %cst_177 = arith.constant dense<0.000000e+00> : vector<1x128xf32>
    %171 = vector.multi_reduction <add>, %170, %cst_177 [1] : vector<1x256x128xf32> to vector<1x128xf32>
    %172 = vector.shape_cast %171 : vector<1x128xf32> to vector<1x1x128xf32>
    %cst_178 = arith.constant 2.560000e+02 : f32
    %173 = vector.broadcast %cst_178 : f32 to vector<1x1x128xf32>
    %174 = arith.divf %172, %173 : vector<1x1x128xf32>
    %175 = vector.broadcast %167 : vector<1x1x128xf32> to vector<1x256x128xf32>
    %176 = arith.subf %163, %175 : vector<1x256x128xf32>
    %cst_179 = arith.constant 9.99999974E-6 : f32
    %177 = vector.broadcast %cst_179 : f32 to vector<1x1x128xf32>
    %178 = arith.addf %174, %177 : vector<1x1x128xf32>
    %179 = math.rsqrt %178 : vector<1x1x128xf32>
    %180 = vector.broadcast %179 : vector<1x1x128xf32> to vector<1x256x128xf32>
    %181 = arith.mulf %176, %180 : vector<1x256x128xf32>
    %cst_180 = arith.constant dense<0.000000e+00> : vector<1x128xf32>
    %182 = vector.multi_reduction <add>, %181, %cst_180 [1] : vector<1x256x128xf32> to vector<1x128xf32>
    %cst_181 = arith.constant 2.560000e+02 : f32
    %183 = vector.broadcast %cst_181 : f32 to vector<1x128xf32>
    %184 = arith.divf %182, %183 : vector<1x128xf32>
    %185 = vector.shape_cast %184 : vector<1x128xf32> to vector<1x1x128xf32>
    %c0_182 = arith.constant 0 : index
    %c0_183 = arith.constant 0 : index
    %186 = vector.load %arg6[%c0_182, %c0_183] : memref<8x128xf32, #tpu.memory_space<vmem>>, vector<8x128xf32>
    %187 = vector.shape_cast %186 : vector<8x128xf32> to vector<1x8x128xf32>
    %188 = vector.broadcast %185 : vector<1x1x128xf32> to vector<1x8x128xf32>
    %189 = arith.mulf %188, %187 : vector<1x8x128xf32>
    %cst_184 = arith.constant dense<0.000000e+00> : vector<1x8xf32>
    %190 = vector.multi_reduction <add>, %189, %cst_184 [2] : vector<1x8x128xf32> to vector<1x8xf32>
    %c0_185 = arith.constant 0 : index
    %c0_186 = arith.constant 0 : index
    %191 = vector.load %arg7[%c0_185, %c0_186] : memref<1x8xf32, #tpu.memory_space<vmem>>, vector<1x8xf32>
    %192 = arith.addf %190, %191 : vector<1x8xf32>
    %cst_187 = arith.constant 0.000000e+00 : f32
    %193 = vector.broadcast %cst_187 : f32 to vector<1x8xf32>
    %194 = arith.maximumf %192, %193 : vector<1x8xf32>
    %195 = vector.shape_cast %194 : vector<1x8xf32> to vector<1x8x1xf32>
    %c0_188 = arith.constant 0 : index
    %c0_189 = arith.constant 0 : index
    %196 = vector.load %arg8[%c0_188, %c0_189] : memref<8x128xf32, #tpu.memory_space<vmem>>, vector<8x128xf32>
    %197 = vector.shape_cast %196 : vector<8x128xf32> to vector<1x8x128xf32>
    %198 = vector.broadcast %195 : vector<1x8x1xf32> to vector<1x8x128xf32>
    %199 = arith.mulf %198, %197 : vector<1x8x128xf32>
    %cst_190 = arith.constant dense<0.000000e+00> : vector<1x128xf32>
    %200 = vector.multi_reduction <add>, %199, %cst_190 [1] : vector<1x8x128xf32> to vector<1x128xf32>
    %c0_191 = arith.constant 0 : index
    %c0_192 = arith.constant 0 : index
    %201 = vector.load %arg9[%c0_191, %c0_192] : memref<1x128xf32, #tpu.memory_space<vmem>>, vector<1x128xf32>
    %202 = arith.addf %200, %201 : vector<1x128xf32>
    %203 = arith.negf %202 : vector<1x128xf32>
    %204 = math.exp %203 : vector<1x128xf32>
    %cst_193 = arith.constant 1.000000e+00 : f32
    %205 = vector.broadcast %cst_193 : f32 to vector<1x128xf32>
    %206 = arith.addf %205, %204 : vector<1x128xf32>
    %207 = arith.divf %205, %206 : vector<1x128xf32>
    %208 = vector.shape_cast %207 : vector<1x128xf32> to vector<1x1x128xf32>
    %209 = vector.broadcast %208 : vector<1x1x128xf32> to vector<1x256x128xf32>
    %210 = arith.mulf %181, %209 : vector<1x256x128xf32>
    %211 = vector.shape_cast %8 : vector<1x16x16x128xf32> to vector<1x256x128xf32>
    %212 = arith.addf %210, %211 : vector<1x256x128xf32>
    %cst_194 = arith.constant 0.000000e+00 : f32
    %213 = vector.broadcast %cst_194 : f32 to vector<1x256x128xf32>
    %214 = arith.maximumf %212, %213 : vector<1x256x128xf32>
    %215 = vector.shape_cast %214 : vector<1x256x128xf32> to vector<1x16x16x128xf32>
    %c0_195 = arith.constant 0 : index
    %c0_196 = arith.constant 0 : index
    %c0_197 = arith.constant 0 : index
    %c0_198 = arith.constant 0 : index
    %216 = vector.load %arg10[%c0_195, %c0_196, %c0_197, %c0_198] : memref<1x16x16x128xf32, #tpu.memory_space<vmem>>, vector<1x16x16x128xf32>
    tpu.vector_store %arg10[%c0_195, %c0_196, %c0_197, %c0_198], %215 {strides = array<i32>} : memref<1x16x16x128xf32, #tpu.memory_space<vmem>>, vector<1x16x16x128xf32>,
    return
  }
  func.func @transform_0(%arg0: i32) -> (i32, i32, i32, i32) {
    %c0_i32 = arith.constant 0 : i32
    %c0_i32_0 = arith.constant 0 : i32
    %c0_i32_1 = arith.constant 0 : i32
    %c0_i32_2 = arith.constant 0 : i32
    return %arg0, %c0_i32, %c0_i32_0, %c0_i32_1 : i32, i32, i32, i32
  }
  func.func @transform_1(%arg0: i32) -> (i32, i32, i32) {
    %c0_i32 = arith.constant 0 : i32
    %c0_i32_0 = arith.constant 0 : i32
    %c0_i32_1 = arith.constant 0 : i32
    %c0_i32_2 = arith.constant 0 : i32
    return %c0_i32, %c0_i32_0, %c0_i32_1 : i32, i32, i32
  }
  func.func @transform_2(%arg0: i32) -> (i32, i32) {
    %c0_i32 = arith.constant 0 : i32
    %c0_i32_0 = arith.constant 0 : i32
    %c0_i32_1 = arith.constant 0 : i32
    return %c0_i32, %c0_i32_0 : i32, i32
  }
  func.func @transform_3(%arg0: i32) -> (i32, i32, i32) {
    %c0_i32 = arith.constant 0 : i32
    %c0_i32_0 = arith.constant 0 : i32
    %c0_i32_1 = arith.constant 0 : i32
    %c0_i32_2 = arith.constant 0 : i32
    return %c0_i32, %c0_i32_0, %c0_i32_1 : i32, i32, i32
  }
  func.func @transform_4(%arg0: i32) -> (i32, i32) {
    %c0_i32 = arith.constant 0 : i32
    %c0_i32_0 = arith.constant 0 : i32
    %c0_i32_1 = arith.constant 0 : i32
    return %c0_i32, %c0_i32_0 : i32, i32
  }
  func.func @transform_5(%arg0: i32) -> (i32, i32) {
    %c0_i32 = arith.constant 0 : i32
    %c0_i32_0 = arith.constant 0 : i32
    %c0_i32_1 = arith.constant 0 : i32
    return %c0_i32, %c0_i32_0 : i32, i32
  }
  func.func @transform_6(%arg0: i32) -> (i32, i32) {
    %c0_i32 = arith.constant 0 : i32
    %c0_i32_0 = arith.constant 0 : i32
    %c0_i32_1 = arith.constant 0 : i32
    return %c0_i32, %c0_i32_0 : i32, i32
  }
  func.func @transform_7(%arg0: i32) -> (i32, i32) {
    %c0_i32 = arith.constant 0 : i32
    %c0_i32_0 = arith.constant 0 : i32
    %c0_i32_1 = arith.constant 0 : i32
    return %c0_i32, %c0_i32_0 : i32, i32
  }
  func.func @transform_8(%arg0: i32) -> (i32, i32) {
    %c0_i32 = arith.constant 0 : i32
    %c0_i32_0 = arith.constant 0 : i32
    %c0_i32_1 = arith.constant 0 : i32
    return %c0_i32, %c0_i32_0 : i32, i32
  }
  func.func @transform_9(%arg0: i32) -> (i32, i32, i32, i32) {
    %c0_i32 = arith.constant 0 : i32
    %c0_i32_0 = arith.constant 0 : i32
    %c0_i32_1 = arith.constant 0 : i32
    %c0_i32_2 = arith.constant 0 : i32
    return %arg0, %c0_i32, %c0_i32_0, %c0_i32_1 : i32, i32, i32, i32
  }
}

</mosaic_0001>

<llo_original>
// kernel: se_block_conv_forward.1
$region0: #{se_block_conv_forward.1}
  #allocation0 [shape = 'u32[]', space=smem, size = 0x4, offset = 0x4, fixed_abs, tag = 'smem constant byte address 0x4 - core index']
  #allocation1 [shape = 'u32[144,128]{1,0:T(1,128)}', space=vmem, size = 0x12000, scoped, tag = 'internal scratch']
  #allocation2 [shape = 'f32[1,18,18,128]{3,2,1,0:T(8,128)}', space=vmem, size = 0x36000, scoped, tag = 'scratch operand']
  %s0 = inlined_call_operand.vmem [shape: f32[2,16,16,128], index: 0, kind: input, shape index: {}]
  %s1 = inlined_call_operand.vmem [shape: bf16[9,128,128], index: 1, kind: input, shape index: {}]
  %s2 = inlined_call_operand.vmem [shape: f32[1,128], index: 2, kind: input, shape index: {}]
  %s3 = inlined_call_operand.vmem [shape: bf16[9,128,128], index: 3, kind: input, shape index: {}]
  %s4 = inlined_call_operand.vmem [shape: f32[1,128], index: 4, kind: input, shape index: {}]
  %s5 = inlined_call_operand.vmem [shape: f32[8,128], index: 5, kind: input, shape index: {}]
  %s6 = inlined_call_operand.vmem [shape: f32[1,8], index: 6, kind: input, shape index: {}]
  %s7 = inlined_call_operand.vmem [shape: f32[8,128], index: 7, kind: input, shape index: {}]
  %s8 = inlined_call_operand.vmem [shape: f32[1,128], index: 8, kind: input, shape index: {}]
  %s9 = inlined_call_operand.vmem [shape: f32[2,16,16,128], index: 9, kind: output, shape index: {}]
  %s10 = sld [smem:[#allocation0]]
  $region69: #{se_block_conv_forward.1} parent=0
    _
  %s12 = ssub.s32 1, %s10
  %s13 = scalar_select 0, %s12, %s10
  loop: start=0, step=1, limit=4
  $region2: #{se_block_conv_forward.1} parent=0 // loop_pre_header
    _
  $region3: #{se_block_conv_forward.1} parent=0 // loop_header
    %s15 = sphi 0, %s19
    %p16 = scmp.ge.s32.totalorder %s15, 4
    %s25 = sphi 0, %s27
    %s28 = sphi 0, %s25
    %s29 = sphi 0, %s28
    %s45 = sphi 0, %s29
    %s49 = sphi 0, %s49
    %s51 = sphi 0, %s49
    %s52 = sphi 0, %s51
    %s66 = sphi 0, %s52
    %s70 = sphi 0, %s70
    %s72 = sphi 0, %s70
    %s73 = sphi 0, %s72
    %s87 = sphi 0, %s73
    %s91 = sphi 0, %s91
    %s93 = sphi 0, %s91
    %s94 = sphi 0, %s93
    %s108 = sphi 0, %s94
    %s112 = sphi 0, %s112
    %s114 = sphi 0, %s112
    %s115 = sphi 0, %s114
    %s129 = sphi 0, %s115
    %s133 = sphi 0, %s133
    %s135 = sphi 0, %s133
    %s136 = sphi 0, %s135
    %s150 = sphi 0, %s136
    %s154 = sphi 0, %s154
    %s156 = sphi 0, %s154
    %s157 = sphi 0, %s156
    %s171 = sphi 0, %s157
    %s175 = sphi 0, %s175
    %s177 = sphi 0, %s175
    %s178 = sphi 0, %s177
    %s192 = sphi 0, %s178
    %s196 = sphi 0, %s196
    %s198 = sphi 0, %s196
    %s199 = sphi 0, %s198
    %s213 = sphi 0, %s199
    %s219 = sphi 0, %s221
    %s222 = sphi 0, %s219
    %s223 = sphi 0, %s222
    %s239 = sphi 0, %s223
  $region4: #{se_block_conv_forward.1} parent=0 // loop_header_branch
    %18 = sbr.rel (%p16) target = $region8
  $region5: #{se_block_conv_forward.1} parent=0 // loop_body
    %s20 = ssub.s32 %s15, 1
    %s21 = ssub.s32 %s15, 2
    %s22 = sadd.s32 %s15, 1
    %s23 = ssub.s32 %s15, %s22
    %p24 = scmp.eq.s32.totalorder %s23, 0
    %s26 = sadd.s32 %s25, 1
    %s27 = scalar_select %p24, %s25, %s26
    %p30 = pneg %p24
    %p31 = scmp.eq.s32.totalorder %s15, 1
    %p32 = por %p30, %p31
    %p33 = scmp.ne.s32.totalorder %s25, %s28
    %p34 = scmp.eq.s32.totalorder %s15, 0
    %p35 = por %p33, %p34
    %p36 = scmp.ne.s32.totalorder %s25, %s28
    %p37 = scmp.eq.s32.totalorder %s20, 1
    %p38 = por %p36, %p37
    %p39 = scmp.ne.s32.totalorder %s28, %s29
    %p40 = scmp.eq.s32.totalorder %s20, 0
    %p41 = por %p39, %p40
    %p42 = scmp.ne.s32.totalorder %s28, %s29
    %p43 = scmp.eq.s32.totalorder %s21, 1
    %p44 = por %p42, %p43
    %p46 = scmp.ne.s32.totalorder %s29, %s45
    %p47 = scmp.eq.s32.totalorder %s21, 0
    %p48 = por %p46, %p47
    %s50 = sadd.s32 %s49, 1
    %p53 = scmp.eq.s32.totalorder %s15, 1
    %p54 = scmp.ne.s32.totalorder %s49, %s51
    %p55 = scmp.eq.s32.totalorder %s15, 0
    %p56 = por %p54, %p55
    %p57 = scmp.ne.s32.totalorder %s49, %s51
    %p58 = scmp.eq.s32.totalorder %s20, 1
    %p59 = por %p57, %p58
    %p60 = scmp.ne.s32.totalorder %s51, %s52
    %p61 = scmp.eq.s32.totalorder %s20, 0
    %p62 = por %p60, %p61
    %p63 = scmp.ne.s32.totalorder %s51, %s52
    %p64 = scmp.eq.s32.totalorder %s21, 1
    %p65 = por %p63, %p64
    %p67 = scmp.ne.s32.totalorder %s52, %s66
    %p68 = scmp.eq.s32.totalorder %s21, 0
    %p69 = por %p67, %p68
    %s71 = sadd.s32 %s70, 1
    %p74 = scmp.eq.s32.totalorder %s15, 1
    %p75 = scmp.ne.s32.totalorder %s70, %s72
    %p76 = scmp.eq.s32.totalorder %s15, 0
    %p77 = por %p75, %p76
    %p78 = scmp.ne.s32.totalorder %s70, %s72
    %p79 = scmp.eq.s32.totalorder %s20, 1
    %p80 = por %p78, %p79
    %p81 = scmp.ne.s32.totalorder %s72, %s73
    %p82 = scmp.eq.s32.totalorder %s20, 0
    %p83 = por %p81, %p82
    %p84 = scmp.ne.s32.totalorder %s72, %s73
    %p85 = scmp.eq.s32.totalorder %s21, 1
    %p86 = por %p84, %p85
    %p88 = scmp.ne.s32.totalorder %s73, %s87
    %p89 = scmp.eq.s32.totalorder %s21, 0
    %p90 = por %p88, %p89
    %s92 = sadd.s32 %s91, 1
    %p95 = scmp.eq.s32.totalorder %s15, 1
    %p96 = scmp.ne.s32.totalorder %s91, %s93
    %p97 = scmp.eq.s32.totalorder %s15, 0
    %p98 = por %p96, %p97
    %p99 = scmp.ne.s32.totalorder %s91, %s93
    %p100 = scmp.eq.s32.totalorder %s20, 1
    %p101 = por %p99, %p100
    %p102 = scmp.ne.s32.totalorder %s93, %s94
    %p103 = scmp.eq.s32.totalorder %s20, 0
    %p104 = por %p102, %p103
    %p105 = scmp.ne.s32.totalorder %s93, %s94
    %p106 = scmp.eq.s32.totalorder %s21, 1
    %p107 = por %p105, %p106
    %p109 = scmp.ne.s32.totalorder %s94, %s108
    %p110 = scmp.eq.s32.totalorder %s21, 0
    %p111 = por %p109, %p110
    %s113 = sadd.s32 %s112, 1
    %p116 = scmp.eq.s32.totalorder %s15, 1
    %p117 = scmp.ne.s32.totalorder %s112, %s114
    %p118 = scmp.eq.s32.totalorder %s15, 0
    %p119 = por %p117, %p118
    %p120 = scmp.ne.s32.totalorder %s112, %s114
    %p121 = scmp.eq.s32.totalorder %s20, 1
    %p122 = por %p120, %p121
    %p123 = scmp.ne.s32.totalorder %s114, %s115
    %p124 = scmp.eq.s32.totalorder %s20, 0
    %p125 = por %p123, %p124
    %p126 = scmp.ne.s32.totalorder %s114, %s115
    %p127 = scmp.eq.s32.totalorder %s21, 1
    %p128 = por %p126, %p127
    %p130 = scmp.ne.s32.totalorder %s115, %s129
    %p131 = scmp.eq.s32.totalorder %s21, 0
    %p132 = por %p130, %p131
    %s134 = sadd.s32 %s133, 1
    %p137 = scmp.eq.s32.totalorder %s15, 1
    %p138 = scmp.ne.s32.totalorder %s133, %s135
    %p139 = scmp.eq.s32.totalorder %s15, 0
    %p140 = por %p138, %p139
    %p141 = scmp.ne.s32.totalorder %s133, %s135
    %p142 = scmp.eq.s32.totalorder %s20, 1
    %p143 = por %p141, %p142
    %p144 = scmp.ne.s32.totalorder %s135, %s136
    %p145 = scmp.eq.s32.totalorder %s20, 0
    %p146 = por %p144, %p145
    %p147 = scmp.ne.s32.totalorder %s135, %s136
    %p148 = scmp.eq.s32.totalorder %s21, 1
    %p149 = por %p147, %p148
    %p151 = scmp.ne.s32.totalorder %s136, %s150
    %p152 = scmp.eq.s32.totalorder %s21, 0
    %p153 = por %p151, %p152
    %s155 = sadd.s32 %s154, 1
    %p158 = scmp.eq.s32.totalorder %s15, 1
    %p159 = scmp.ne.s32.totalorder %s154, %s156
    %p160 = scmp.eq.s32.totalorder %s15, 0
    %p161 = por %p159, %p160
    %p162 = scmp.ne.s32.totalorder %s154, %s156
    %p163 = scmp.eq.s32.totalorder %s20, 1
    %p164 = por %p162, %p163
    %p165 = scmp.ne.s32.totalorder %s156, %s157
    %p166 = scmp.eq.s32.totalorder %s20, 0
    %p167 = por %p165, %p166
    %p168 = scmp.ne.s32.totalorder %s156, %s157
    %p169 = scmp.eq.s32.totalorder %s21, 1
    %p170 = por %p168, %p169
    %p172 = scmp.ne.s32.totalorder %s157, %s171
    %p173 = scmp.eq.s32.totalorder %s21, 0
    %p174 = por %p172, %p173
    %s176 = sadd.s32 %s175, 1
    %p179 = scmp.eq.s32.totalorder %s15, 1
    %p180 = scmp.ne.s32.totalorder %s175, %s177
    %p181 = scmp.eq.s32.totalorder %s15, 0
    %p182 = por %p180, %p181
    %p183 = scmp.ne.s32.totalorder %s175, %s177
    %p184 = scmp.eq.s32.totalorder %s20, 1
    %p185 = por %p183, %p184
    %p186 = scmp.ne.s32.totalorder %s177, %s178
    %p187 = scmp.eq.s32.totalorder %s20, 0
    %p188 = por %p186, %p187
    %p189 = scmp.ne.s32.totalorder %s177, %s178
    %p190 = scmp.eq.s32.totalorder %s21, 1
    %p191 = por %p189, %p190
    %p193 = scmp.ne.s32.totalorder %s178, %s192
    %p194 = scmp.eq.s32.totalorder %s21, 0
    %p195 = por %p193, %p194
    %s197 = sadd.s32 %s196, 1
    %p200 = scmp.eq.s32.totalorder %s15, 1
    %p201 = scmp.ne.s32.totalorder %s196, %s198
    %p202 = scmp.eq.s32.totalorder %s15, 0
    %p203 = por %p201, %p202
    %p204 = scmp.ne.s32.totalorder %s196, %s198
    %p205 = scmp.eq.s32.totalorder %s20, 1
    %p206 = por %p204, %p205
    %p207 = scmp.ne.s32.totalorder %s198, %s199
    %p208 = scmp.eq.s32.totalorder %s20, 0
    %p209 = por %p207, %p208
    %p210 = scmp.ne.s32.totalorder %s198, %s199
    %p211 = scmp.eq.s32.totalorder %s21, 1
    %p212 = por %p210, %p211
    %p214 = scmp.ne.s32.totalorder %s199, %s213
    %p215 = scmp.eq.s32.totalorder %s21, 0
    %p216 = por %p214, %p215
    %s217 = ssub.s32 %s15, %s22
    %p218 = scmp.eq.s32.totalorder %s217, 0
    %s220 = sadd.s32 %s219, 1
    %s221 = scalar_select %p218, %s219, %s220
    %p224 = pneg %p218
    %p225 = scmp.eq.s32.totalorder %s15, 1
    %p226 = por %p224, %p225
    %p227 = scmp.ne.s32.totalorder %s219, %s222
    %p228 = scmp.eq.s32.totalorder %s15, 0
    %p229 = por %p227, %p228
    %p230 = scmp.ne.s32.totalorder %s219, %s222
    %p231 = scmp.eq.s32.totalorder %s20, 1
    %p232 = por %p230, %p231
    %p233 = scmp.ne.s32.totalorder %s222, %s223
    %p234 = scmp.eq.s32.totalorder %s20, 0
    %p235 = por %p233, %p234
    %p236 = scmp.ne.s32.totalorder %s222, %s223
    %p237 = scmp.eq.s32.totalorder %s21, 1
    %p238 = por %p236, %p237
    %p240 = scmp.ne.s32.totalorder %s223, %s239
    %p241 = scmp.eq.s32.totalorder %s21, 0
    %p242 = por %p240, %p241
    %p243 = scmp.le.s32.totalorder 1, %s15
    %p244 = scmp.lt.s32.totalorder %s15, 3
    %p245 = pnand %p243, %p244
    %p246 = pneg %p245
    // Predicated region
    $region9: #{se_block_conv_forward.1} parent=5 // pred_check
      _
    $region10: #{se_block_conv_forward.1} parent=5 // pred_check_branch
      %248 = sbr.rel (%p245) target = $region12
    $region11: #{se_block_conv_forward.1} parent=5 // pred_region
      %s249 = ssub.s32 %s15, 1
      // Predicated region
      $region13: #{se_block_conv_forward.1} parent=11 // pred_check
        %p250 = pneg %p62
      $region14: #{se_block_conv_forward.1} parent=11 // pred_check_branch
        %252 = sbr.rel (%p250) target = $region16
      $region15: #{se_block_conv_forward.1} parent=11 // pred_region
        _
      $region16: #{se_block_conv_forward.1} parent=11 // pred_fallthru
        _
      // Predicated region
      $region17: #{se_block_conv_forward.1} parent=11 // pred_check
        %p253 = pneg %p83
      $region18: #{se_block_conv_forward.1} parent=11 // pred_check_branch
        %255 = sbr.rel (%p253) target = $region20
      $region19: #{se_block_conv_forward.1} parent=11 // pred_region
        _
      $region20: #{se_block_conv_forward.1} parent=11 // pred_fallthru
        _
      // Predicated region
      $region21: #{se_block_conv_forward.1} parent=11 // pred_check
        %p256 = pneg %p104
      $region22: #{se_block_conv_forward.1} parent=11 // pred_check_branch
        %258 = sbr.rel (%p256) target = $region24
      $region23: #{se_block_conv_forward.1} parent=11 // pred_region
        _
      $region24: #{se_block_conv_forward.1} parent=11 // pred_fallthru
        _
      // Predicated region
      $region25: #{se_block_conv_forward.1} parent=11 // pred_check
        %p259 = pneg %p125
      $region26: #{se_block_conv_forward.1} parent=11 // pred_check_branch
        %261 = sbr.rel (%p259) target = $region28
      $region27: #{se_block_conv_forward.1} parent=11 // pred_region
        _
      $region28: #{se_block_conv_forward.1} parent=11 // pred_fallthru
        _
      // Predicated region
      $region29: #{se_block_conv_forward.1} parent=11 // pred_check
        %p262 = pneg %p146
      $region30: #{se_block_conv_forward.1} parent=11 // pred_check_branch
        %264 = sbr.rel (%p262) target = $region32
      $region31: #{se_block_conv_forward.1} parent=11 // pred_region
        _
      $region32: #{se_block_conv_forward.1} parent=11 // pred_fallthru
        _
      // Predicated region
      $region33: #{se_block_conv_forward.1} parent=11 // pred_check
        %p265 = pneg %p167
      $region34: #{se_block_conv_forward.1} parent=11 // pred_check_branch
        %267 = sbr.rel (%p265) target = $region36
      $region35: #{se_block_conv_forward.1} parent=11 // pred_region
        _
      $region36: #{se_block_conv_forward.1} parent=11 // pred_fallthru
        _
      // Predicated region
      $region37: #{se_block_conv_forward.1} parent=11 // pred_check
        %p268 = pneg %p188
      $region38: #{se_block_conv_forward.1} parent=11 // pred_check_branch
        %270 = sbr.rel (%p268) target = $region40
      $region39: #{se_block_conv_forward.1} parent=11 // pred_region
        _
      $region40: #{se_block_conv_forward.1} parent=11 // pred_fallthru
        _
      // Predicated region
      $region41: #{se_block_conv_forward.1} parent=11 // pred_check
        %p271 = pneg %p209
      $region42: #{se_block_conv_forward.1} parent=11 // pred_check_branch
        %273 = sbr.rel (%p271) target = $region44
      $region43: #{se_block_conv_forward.1} parent=11 // pred_region
        _
      $region44: #{se_block_conv_forward.1} parent=11 // pred_fallthru
        _
    $region12: #{se_block_conv_forward.1} parent=5 // pred_fallthru
      _
    %p274 = scmp.lt.s32.totalorder %s15, 2
    // Predicated region
    $region45: #{se_block_conv_forward.1} parent=5 // pred_check
      %p275 = pneg %p274
    $region46: #{se_block_conv_forward.1} parent=5 // pred_check_branch
      %277 = sbr.rel (%p275) target = $region48
    $region47: #{se_block_conv_forward.1} parent=5 // pred_region
      // Predicated region
      $region49: #{se_block_conv_forward.1} parent=47 // pred_check
        %p278 = pneg %p35
      $region50: #{se_block_conv_forward.1} parent=47 // pred_check_branch
        %280 = sbr.rel (%p278) target = $region52
      $region51: #{se_block_conv_forward.1} parent=47 // pred_region
        %p281 = scmp.lt.s32.totalorder %s15, 1
        %s282 = scalar_select %p281, %s15, 1
        %s283 = smul.addr %s282, 32
        %s284 = smul.addr %s283, 8
        %s285 = scalar_lea.vmem %s0, %s284
      $region52: #{se_block_conv_forward.1} parent=47 // pred_fallthru
        _
    $region48: #{se_block_conv_forward.1} parent=5 // pred_fallthru
      _
    %p286 = scmp.le.s32.totalorder 1, %s15
    %p287 = scmp.lt.s32.totalorder %s15, 3
    %p288 = pnand %p286, %p287
    %p289 = pneg %p288
    // Predicated region
    $region53: #{se_block_conv_forward.1} parent=5 // pred_check
      _
    $region54: #{se_block_conv_forward.1} parent=5 // pred_check_branch
      %291 = sbr.rel (%p288) target = $region56
    $region55: #{se_block_conv_forward.1} parent=5 // pred_region
      %s292 = ssub.s32 %s15, 1
      %p293 = scmp.lt.s32.totalorder %s20, 1
      %s294 = scalar_select %p293, %s20, 1
      %s295 = smul.addr %s294, 32
      %s296 = smul.addr %s295, 8
      %s297 = scalar_lea.vmem %s0, %s296
      %p298 = pneg %p41
      %p299 = pneg %p38
      %p300 = pneg %p62
      %p301 = pneg %p59
      %p302 = pneg %p83
      %p303 = pneg %p80
      %p304 = pneg %p104
      %p305 = pneg %p101
      %p306 = pneg %p125
      %p307 = pneg %p122
      %p308 = pneg %p146
      %p309 = pneg %p143
      %p310 = pneg %p167
      %p311 = pneg %p164
      %p312 = pneg %p188
      %p313 = pneg %p185
      %p314 = pneg %p209
      %p315 = pneg %p206
      %p316 = pneg %p235
      %p317 = pneg %p232
      %p318 = scmp.lt.s32.totalorder %s20, 1
      %s319 = scalar_select %p318, %s20, 1
      %s320 = smul.addr %s319, 32
      %s321 = smul.addr %s320, 8
      %s322 = scalar_lea.vmem %s9, %s321
      %p323 = scmp.lt.s32.totalorder %s20, 1
      %s324 = scalar_select %p323, %s20, 1
      %s325 = smul.addr %s324, 32
      %s326 = smul.addr %s325, 8
      %s327 = scalar_lea.vmem %s0, %s326
      %p328 = scmp.lt.s32.totalorder %s20, 1
      %s329 = scalar_select %p328, %s20, 1
      %s330 = smul.addr %s329, 32
      %s331 = smul.addr %s330, 8
      %s332 = scalar_lea.vmem %s9, %s331
      %334 = vst [vmem:[#allocation2] sm:$0xff] 0.0
      %335 = vst [vmem:[#allocation2 + $0x8] sm:$0xff] 0.0
      %336 = vst [vmem:[#allocation2 + $0x10] sm:$0x3] 0.0
      %s337 = scalar_lea.vmem [#allocation2], 408
      %338 = vst [vmem:[%s337] sm:$0xff] 0.0
      %339 = vst [vmem:[%s337 + $0x8] sm:$0xff] 0.0
      %340 = vst [vmem:[%s337 + $0x10] sm:$0x3] 0.0
      %341 = vst [vmem:[#allocation2] sm:$0x1] 0.0
      %342 = vst [vmem:[#allocation2 + $0x18] sm:$0x1] 0.0
      %343 = vst [vmem:[#allocation2 + $0x30] sm:$0x1] 0.0
      %344 = vst [vmem:[#allocation2 + $0x48] sm:$0x1] 0.0
      %345 = vst [vmem:[#allocation2 + $0x60] sm:$0x1] 0.0
      %346 = vst [vmem:[#allocation2 + $0x78] sm:$0x1] 0.0
      %347 = vst [vmem:[#allocation2 + $0x90] sm:$0x1] 0.0
      %348 = vst [vmem:[#allocation2 + $0xa8] sm:$0x1] 0.0
      %349 = vst [vmem:[#allocation2 + $0xc0] sm:$0x1] 0.0
      %350 = vst [vmem:[#allocation2 + $0xd8] sm:$0x1] 0.0
      %351 = vst [vmem:[#allocation2 + $0xf0] sm:$0x1] 0.0
      %352 = vst [vmem:[#allocation2 + $0x108] sm:$0x1] 0.0
      %353 = vst [vmem:[#allocation2 + $0x120] sm:$0x1] 0.0
      %354 = vst [vmem:[#allocation2 + $0x138] sm:$0x1] 0.0
      %355 = vst [vmem:[#allocation2 + $0x150] sm:$0x1] 0.0
      %356 = vst [vmem:[#allocation2 + $0x168] sm:$0x1] 0.0
      %357 = vst [vmem:[#allocation2 + $0x180] sm:$0x1] 0.0
      %358 = vst [vmem:[#allocation2 + $0x198] sm:$0x1] 0.0
      %359 = vst [vmem:[#allocation2 + $0x11] sm:$0x1] 0.0
      %360 = vst [vmem:[#allocation2 + $0x29] sm:$0x1] 0.0
      %361 = vst [vmem:[#allocation2 + $0x41] sm:$0x1] 0.0
      %362 = vst [vmem:[#allocation2 + $0x59] sm:$0x1] 0.0
      %363 = vst [vmem:[#allocation2 + $0x71] sm:$0x1] 0.0
      %364 = vst [vmem:[#allocation2 + $0x89] sm:$0x1] 0.0
      %365 = vst [vmem:[#allocation2 + $0xa1] sm:$0x1] 0.0
      %366 = vst [vmem:[#allocation2 + $0xb9] sm:$0x1] 0.0
      %367 = vst [vmem:[#allocation2 + $0xd1] sm:$0x1] 0.0
      %368 = vst [vmem:[#allocation2 + $0xe9] sm:$0x1] 0.0
      %369 = vst [vmem:[#allocation2 + $0x101] sm:$0x1] 0.0
      %370 = vst [vmem:[#allocation2 + $0x119] sm:$0x1] 0.0
      %371 = vst [vmem:[#allocation2 + $0x131] sm:$0x1] 0.0
      %372 = vst [vmem:[#allocation2 + $0x149] sm:$0x1] 0.0
      %373 = vst [vmem:[#allocation2 + $0x161] sm:$0x1] 0.0
      %374 = vst [vmem:[#allocation2 + $0x179] sm:$0x1] 0.0
      %375 = vst [vmem:[#allocation2 + $0x191] sm:$0x1] 0.0
      %376 = vst [vmem:[#allocation2 + $0x1a9] sm:$0x1] 0.0
      %v377 = vld [vmem:[%s327] sm:$0xff]
      %v378 = vld [vmem:[%s327 + $0x8] sm:$0xff]
      %v379 = vld [vmem:[%s327 + $0x10] sm:$0xff]
      %v380 = vld [vmem:[%s327 + $0x18] sm:$0xff]
      %v381 = vld [vmem:[%s327 + $0x20] sm:$0xff]
      %v382 = vld [vmem:[%s327 + $0x28] sm:$0xff]
      %v383 = vld [vmem:[%s327 + $0x30] sm:$0xff]
      %v384 = vld [vmem:[%s327 + $0x38] sm:$0xff]
      %v385 = vld [vmem:[%s327 + $0x40] sm:$0xff]
      %v386 = vld [vmem:[%s327 + $0x48] sm:$0xff]
      %v387 = vld [vmem:[%s327 + $0x50] sm:$0xff]
      %v388 = vld [vmem:[%s327 + $0x58] sm:$0xff]
      %v389 = vld [vmem:[%s327 + $0x60] sm:$0xff]
      %v390 = vld [vmem:[%s327 + $0x68] sm:$0xff]
      %v391 = vld [vmem:[%s327 + $0x70] sm:$0xff]
      %v392 = vld [vmem:[%s327 + $0x78] sm:$0xff]
      %v393 = vld [vmem:[%s327 + $0x80] sm:$0xff]
      %v394 = vld [vmem:[%s327 + $0x88] sm:$0xff]
      %v395 = vld [vmem:[%s327 + $0x90] sm:$0xff]
      %v396 = vld [vmem:[%s327 + $0x98] sm:$0xff]
      %v397 = vld [vmem:[%s327 + $0xa0] sm:$0xff]
      %v398 = vld [vmem:[%s327 + $0xa8] sm:$0xff]
      %v399 = vld [vmem:[%s327 + $0xb0] sm:$0xff]
      %v400 = vld [vmem:[%s327 + $0xb8] sm:$0xff]
      %v401 = vld [vmem:[%s327 + $0xc0] sm:$0xff]
      %v402 = vld [vmem:[%s327 + $0xc8] sm:$0xff]
      %v403 = vld [vmem:[%s327 + $0xd0] sm:$0xff]
      %v404 = vld [vmem:[%s327 + $0xd8] sm:$0xff]
      %v405 = vld [vmem:[%s327 + $0xe0] sm:$0xff]
      %v406 = vld [vmem:[%s327 + $0xe8] sm:$0xff]
      %v407 = vld [vmem:[%s327 + $0xf0] sm:$0xff]
      %v408 = vld [vmem:[%s327 + $0xf8] sm:$0xff]
      %s409 = scalar_lea.vmem [#allocation2], 24
      %410 = vst [vmem:[%s409 + $0x1] sm:$0xff] %v377
      %411 = vst [vmem:[%s409 + $0x9] sm:$0xff] %v378
      %412 = vst [vmem:[%s409 + $0x19] sm:$0xff] %v379
      %413 = vst [vmem:[%s409 + $0x21] sm:$0xff] %v380
      %414 = vst [vmem:[%s409 + $0x31] sm:$0xff] %v381
      %415 = vst [vmem:[%s409 + $0x39] sm:$0xff] %v382
      %416 = vst [vmem:[%s409 + $0x49] sm:$0xff] %v383
      %417 = vst [vmem:[%s409 + $0x51] sm:$0xff] %v384
      %418 = vst [vmem:[%s409 + $0x61] sm:$0xff] %v385
      %419 = vst [vmem:[%s409 + $0x69] sm:$0xff] %v386
      %420 = vst [vmem:[%s409 + $0x79] sm:$0xff] %v387
      %421 = vst [vmem:[%s409 + $0x81] sm:$0xff] %v388
      %422 = vst [vmem:[%s409 + $0x91] sm:$0xff] %v389
      %423 = vst [vmem:[%s409 + $0x99] sm:$0xff] %v390
      %424 = vst [vmem:[%s409 + $0xa9] sm:$0xff] %v391
      %425 = vst [vmem:[%s409 + $0xb1] sm:$0xff] %v392
      %426 = vst [vmem:[%s409 + $0xc1] sm:$0xff] %v393
      %427 = vst [vmem:[%s409 + $0xc9] sm:$0xff] %v394
      %428 = vst [vmem:[%s409 + $0xd9] sm:$0xff] %v395
      %429 = vst [vmem:[%s409 + $0xe1] sm:$0xff] %v396
      %430 = vst [vmem:[%s409 + $0xf1] sm:$0xff] %v397
      %431 = vst [vmem:[%s409 + $0xf9] sm:$0xff] %v398
      %432 = vst [vmem:[%s409 + $0x109] sm:$0xff] %v399
      %433 = vst [vmem:[%s409 + $0x111] sm:$0xff] %v400
      %434 = vst [vmem:[%s409 + $0x121] sm:$0xff] %v401
      %435 = vst [vmem:[%s409 + $0x129] sm:$0xff] %v402
      %436 = vst [vmem:[%s409 + $0x139] sm:$0xff] %v403
      %437 = vst [vmem:[%s409 + $0x141] sm:$0xff] %v404
      %438 = vst [vmem:[%s409 + $0x151] sm:$0xff] %v405
      %439 = vst [vmem:[%s409 + $0x159] sm:$0xff] %v406
      %440 = vst [vmem:[%s409 + $0x169] sm:$0xff] %v407
      %441 = vst [vmem:[%s409 + $0x171] sm:$0xff] %v408
      %v442 = vld [vmem:[#allocation2] sm:$0xff]
      %v443 = vld [vmem:[#allocation2 + $0x8] sm:$0xff]
      %v444 = vld [vmem:[#allocation2 + $0x18] sm:$0xff]
      %v445 = vld [vmem:[#allocation2 + $0x20] sm:$0xff]
      %v446 = vld [vmem:[#allocation2 + $0x30] sm:$0xff]
      %v447 = vld [vmem:[#allocation2 + $0x38] sm:$0xff]
      %v448 = vld [vmem:[#allocation2 + $0x48] sm:$0xff]
      %v449 = vld [vmem:[#allocation2 + $0x50] sm:$0xff]
      %v450 = vld [vmem:[#allocation2 + $0x60] sm:$0xff]
      %v451 = vld [vmem:[#allocation2 + $0x68] sm:$0xff]
      %v452 = vld [vmem:[#allocation2 + $0x78] sm:$0xff]
      %v453 = vld [vmem:[#allocation2 + $0x80] sm:$0xff]
      %v454 = vld [vmem:[#allocation2 + $0x90] sm:$0xff]
      %v455 = vld [vmem:[#allocation2 + $0x98] sm:$0xff]
      %v456 = vld [vmem:[#allocation2 + $0xa8] sm:$0xff]
      %v457 = vld [vmem:[#allocation2 + $0xb0] sm:$0xff]
      %v458 = vld [vmem:[#allocation2 + $0xc0] sm:$0xff]
      %v459 = vld [vmem:[#allocation2 + $0xc8] sm:$0xff]
      %v460 = vld [vmem:[#allocation2 + $0xd8] sm:$0xff]
      %v461 = vld [vmem:[#allocation2 + $0xe0] sm:$0xff]
      %v462 = vld [vmem:[#allocation2 + $0xf0] sm:$0xff]
      %v463 = vld [vmem:[#allocation2 + $0xf8] sm:$0xff]
      %v464 = vld [vmem:[#allocation2 + $0x108] sm:$0xff]
      %v465 = vld [vmem:[#allocation2 + $0x110] sm:$0xff]
      %v466 = vld [vmem:[#allocation2 + $0x120] sm:$0xff]
      %v467 = vld [vmem:[#allocation2 + $0x128] sm:$0xff]
      %v468 = vld [vmem:[#allocation2 + $0x138] sm:$0xff]
      %v469 = vld [vmem:[#allocation2 + $0x140] sm:$0xff]
      %v470 = vld [vmem:[#allocation2 + $0x150] sm:$0xff]
      %v471 = vld [vmem:[#allocation2 + $0x158] sm:$0xff]
      %v472 = vld [vmem:[#allocation2 + $0x168] sm:$0xff]
      %v473 = vld [vmem:[#allocation2 + $0x170] sm:$0xff]
      %v474 = vpack.c.bf16 %v443, %v442
      %v475 = vpack.c.bf16 %v445, %v444
      %v476 = vpack.c.bf16 %v447, %v446
      %v477 = vpack.c.bf16 %v449, %v448
      %v478 = vpack.c.bf16 %v451, %v450
      %v479 = vpack.c.bf16 %v453, %v452
      %v480 = vpack.c.bf16 %v455, %v454
      %v481 = vpack.c.bf16 %v457, %v456
      %v482 = vpack.c.bf16 %v459, %v458
      %v483 = vpack.c.bf16 %v461, %v460
      %v484 = vpack.c.bf16 %v463, %v462
      %v485 = vpack.c.bf16 %v465, %v464
      %v486 = vpack.c.bf16 %v467, %v466
      %v487 = vpack.c.bf16 %v469, %v468
      %v488 = vpack.c.bf16 %v471, %v470
      %v489 = vpack.c.bf16 %v473, %v472
      %v490 = vld [vmem:[%s1] sm:$0xf]
      %v491 = vld [vmem:[%s1 + $0x4] sm:$0xf]
      %v492 = vld [vmem:[%s1 + $0x8] sm:$0xf]
      %v493 = vld [vmem:[%s1 + $0xc] sm:$0xf]
      %v494 = vld [vmem:[%s1 + $0x10] sm:$0xf]
      %v495 = vld [vmem:[%s1 + $0x14] sm:$0xf]
      %v496 = vld [vmem:[%s1 + $0x18] sm:$0xf]
      %v497 = vld [vmem:[%s1 + $0x1c] sm:$0xf]
      %v498 = vld [vmem:[%s1 + $0x20] sm:$0xf]
      %v499 = vld [vmem:[%s1 + $0x24] sm:$0xf]
      %v500 = vld [vmem:[%s1 + $0x28] sm:$0xf]
      %v501 = vld [vmem:[%s1 + $0x2c] sm:$0xf]
      %v502 = vld [vmem:[%s1 + $0x30] sm:$0xf]
      %v503 = vld [vmem:[%s1 + $0x34] sm:$0xf]
      %v504 = vld [vmem:[%s1 + $0x38] sm:$0xf]
      %v505 = vld [vmem:[%s1 + $0x3c] sm:$0xf]
      %v506 = vld [vmem:[#allocation2 + $0x1] sm:$0xff]
      %v507 = vld [vmem:[#allocation2 + $0x9] sm:$0xff]
      %v508 = vld [vmem:[#allocation2 + $0x19] sm:$0xff]
      %v509 = vld [vmem:[#allocation2 + $0x21] sm:$0xff]
      %v510 = vld [vmem:[#allocation2 + $0x31] sm:$0xff]
      %v511 = vld [vmem:[#allocation2 + $0x39] sm:$0xff]
      %v512 = vld [vmem:[#allocation2 + $0x49] sm:$0xff]
      %v513 = vld [vmem:[#allocation2 + $0x51] sm:$0xff]
      %v514 = vld [vmem:[#allocation2 + $0x61] sm:$0xff]
      %v515 = vld [vmem:[#allocation2 + $0x69] sm:$0xff]
      %v516 = vld [vmem:[#allocation2 + $0x79] sm:$0xff]
      %v517 = vld [vmem:[#allocation2 + $0x81] sm:$0xff]
      %v518 = vld [vmem:[#allocation2 + $0x91] sm:$0xff]
      %v519 = vld [vmem:[#allocation2 + $0x99] sm:$0xff]
      %v520 = vld [vmem:[#allocation2 + $0xa9] sm:$0xff]
      %v521 = vld [vmem:[#allocation2 + $0xb1] sm:$0xff]
      %v522 = vld [vmem:[#allocation2 + $0xc1] sm:$0xff]
      %v523 = vld [vmem:[#allocation2 + $0xc9] sm:$0xff]
      %v524 = vld [vmem:[#allocation2 + $0xd9] sm:$0xff]
      %v525 = vld [vmem:[#allocation2 + $0xe1] sm:$0xff]
      %v526 = vld [vmem:[#allocation2 + $0xf1] sm:$0xff]
      %v527 = vld [vmem:[#allocation2 + $0xf9] sm:$0xff]
      %v528 = vld [vmem:[#allocation2 + $0x109] sm:$0xff]
      %v529 = vld [vmem:[#allocation2 + $0x111] sm:$0xff]
      %v530 = vld [vmem:[#allocation2 + $0x121] sm:$0xff]
      %v531 = vld [vmem:[#allocation2 + $0x129] sm:$0xff]
      %v532 = vld [vmem:[#allocation2 + $0x139] sm:$0xff]
      %v533 = vld [vmem:[#allocation2 + $0x141] sm:$0xff]
      %v534 = vld [vmem:[#allocation2 + $0x151] sm:$0xff]
      %v535 = vld [vmem:[#allocation2 + $0x159] sm:$0xff]
      %v536 = vld [vmem:[#allocation2 + $0x169] sm:$0xff]
      %v537 = vld [vmem:[#allocation2 + $0x171] sm:$0xff]
      %v538 = vpack.c.bf16 %v507, %v506
      %v539 = vpack.c.bf16 %v509, %v508
      %v540 = vpack.c.bf16 %v511, %v510
      %v541 = vpack.c.bf16 %v513, %v512
      %v542 = vpack.c.bf16 %v515, %v514
      %v543 = vpack.c.bf16 %v517, %v516
      %v544 = vpack.c.bf16 %v519, %v518
      %v545 = vpack.c.bf16 %v521, %v520
      %v546 = vpack.c.bf16 %v523, %v522
      %v547 = vpack.c.bf16 %v525, %v524
      %v548 = vpack.c.bf16 %v527, %v526
      %v549 = vpack.c.bf16 %v529, %v528
      %v550 = vpack.c.bf16 %v531, %v530
      %v551 = vpack.c.bf16 %v533, %v532
      %v552 = vpack.c.bf16 %v535, %v534
      %v553 = vpack.c.bf16 %v537, %v536
      %s554 = scalar_lea.vmem %s1, 64
      %v555 = vld [vmem:[%s554] sm:$0xf]
      %v556 = vld [vmem:[%s554 + $0x4] sm:$0xf]
      %v557 = vld [vmem:[%s554 + $0x8] sm:$0xf]
      %v558 = vld [vmem:[%s554 + $0xc] sm:$0xf]
      %v559 = vld [vmem:[%s554 + $0x10] sm:$0xf]
      %v560 = vld [vmem:[%s554 + $0x14] sm:$0xf]
      %v561 = vld [vmem:[%s554 + $0x18] sm:$0xf]
      %v562 = vld [vmem:[%s554 + $0x1c] sm:$0xf]
      %v563 = vld [vmem:[%s554 + $0x20] sm:$0xf]
      %v564 = vld [vmem:[%s554 + $0x24] sm:$0xf]
      %v565 = vld [vmem:[%s554 + $0x28] sm:$0xf]
      %v566 = vld [vmem:[%s554 + $0x2c] sm:$0xf]
      %v567 = vld [vmem:[%s554 + $0x30] sm:$0xf]
      %v568 = vld [vmem:[%s554 + $0x34] sm:$0xf]
      %v569 = vld [vmem:[%s554 + $0x38] sm:$0xf]
      %v570 = vld [vmem:[%s554 + $0x3c] sm:$0xf]
      %v587 = vunpack.c.l.b16 %v555
      %v588 = vunpack.c.l.b16 %v556
      %v589 = vunpack.c.l.b16 %v557
      %v590 = vunpack.c.l.b16 %v558
      %v591 = vunpack.c.l.b16 %v559
      %v592 = vunpack.c.l.b16 %v560
      %v593 = vunpack.c.l.b16 %v561
      %v594 = vunpack.c.l.b16 %v562
      %v595 = vunpack.c.l.b16 %v563
      %v596 = vunpack.c.l.b16 %v564
      %v597 = vunpack.c.l.b16 %v565
      %v598 = vunpack.c.l.b16 %v566
      %v599 = vunpack.c.l.b16 %v567
      %v600 = vunpack.c.l.b16 %v568
      %v601 = vunpack.c.l.b16 %v569
      %v602 = vunpack.c.l.b16 %v570
      %v603 = vpack.c.b16 %v588, %v587
      %v604 = vpack.c.b16 %v590, %v589
      %v605 = vpack.c.b16 %v592, %v591
      %v606 = vpack.c.b16 %v594, %v593
      %v607 = vpack.c.b16 %v596, %v595
      %v608 = vpack.c.b16 %v598, %v597
      %v609 = vpack.c.b16 %v600, %v599
      %v610 = vpack.c.b16 %v602, %v601
      %619 = vmatprep.subr.bf16.mxu0 0
      %620 = vmatpush1.bf16.msra.mxu0 %v603
      %621 = vmatprep.subr.bf16.mxu0 0
      %622 = vmatpush1.bf16.msra.mxu0 %v604
      %623 = vmatprep.subr.bf16.mxu0 0
      %624 = vmatpush1.bf16.msra.mxu0 %v605
      %625 = vmatprep.subr.bf16.mxu0 0
      %626 = vmatpush1.bf16.msra.mxu0 %v606
      %627 = vmatprep.subr.bf16.mxu0 0
      %628 = vmatpush1.bf16.msra.mxu0 %v607
      %629 = vmatprep.subr.bf16.mxu0 0
      %630 = vmatpush1.bf16.msra.mxu0 %v608
      %631 = vmatprep.subr.bf16.mxu0 0
      %632 = vmatpush1.bf16.msra.mxu0 %v609
      %633 = vmatprep.subr.bf16.mxu0 0
      %634 = vmatpush1.bf16.msra.mxu0 %v610
      %635 = vmatprep.subr.bf16.mxu0 0
      %636 = vmatpush1.bf16.msra.mxu0 0
      %637 = vmatprep.subr.bf16.mxu0 0
      %638 = vmatpush1.bf16.msra.mxu0 0
      %639 = vmatprep.subr.bf16.mxu0 0
      %640 = vmatpush1.bf16.msra.mxu0 0
      %641 = vmatprep.subr.bf16.mxu0 0
      %642 = vmatpush1.bf16.msra.mxu0 0
      %643 = vmatprep.subr.bf16.mxu0 0
      %644 = vmatpush1.bf16.msra.mxu0 0
      %645 = vmatprep.subr.bf16.mxu0 0
      %646 = vmatpush1.bf16.msra.mxu0 0
      %647 = vmatprep.subr.bf16.mxu0 0
      %648 = vmatpush1.bf16.msra.mxu0 0
      %649 = vmatprep.subr.bf16.mxu0 0
      %650 = vmatpush1.bf16.msra.mxu0 0
      %651 = vmatprep.mubr.bf16.mxu0 0
      %652 = vmatmul.mubr.bf16.gmra.mrb[0].mxu0 %v538
      %v653 = vpop.f32.mrb[0].mxu0
      %v654 = vadd.f32 0.0, %v653
      %v655 = vpop.f32.mrb[0].mxu0
      %v656 = vpop.f32.mrb[0].mxu0
      %v657 = vadd.f32 0.0, %v656
      %v658 = vpop.f32.mrb[0].mxu0
      %659 = vmatprep.mubr.bf16.mxu0 0
      %660 = vmatmul.mubr.bf16.gmra.mrb[0].mxu0 %v539
      %v661 = vpop.f32.mrb[0].mxu0
      %v662 = vadd.f32 0.0, %v661
      %v663 = vpop.f32.mrb[0].mxu0
      %v664 = vpop.f32.mrb[0].mxu0
      %v665 = vadd.f32 0.0, %v664
      %v666 = vpop.f32.mrb[0].mxu0
      %667 = vmatprep.mubr.bf16.mxu0 0
      %668 = vmatmul.mubr.bf16.gmra.mrb[0].mxu0 %v540
      %v669 = vpop.f32.mrb[0].mxu0
      %v670 = vadd.f32 0.0, %v669
      %v671 = vpop.f32.mrb[0].mxu0
      %v672 = vpop.f32.mrb[0].mxu0
      %v673 = vadd.f32 0.0, %v672
      %v674 = vpop.f32.mrb[0].mxu0
      %675 = vmatprep.mubr.bf16.mxu0 0
      %676 = vmatmul.mubr.bf16.gmra.mrb[0].mxu0 %v541
      %v677 = vpop.f32.mrb[0].mxu0
      %v678 = vadd.f32 0.0, %v677
      %v679 = vpop.f32.mrb[0].mxu0
      %v680 = vpop.f32.mrb[0].mxu0
      %v681 = vadd.f32 0.0, %v680
      %v682 = vpop.f32.mrb[0].mxu0
      %683 = vmatprep.mubr.bf16.mxu0 0
      %684 = vmatmul.mubr.bf16.gmra.mrb[0].mxu0 %v542
      %v685 = vpop.f32.mrb[0].mxu0
      %v686 = vadd.f32 0.0, %v685
      %v687 = vpop.f32.mrb[0].mxu0
      %v688 = vpop.f32.mrb[0].mxu0
      %v689 = vadd.f32 0.0, %v688
      %v690 = vpop.f32.mrb[0].mxu0
      %691 = vmatprep.mubr.bf16.mxu0 0
      %692 = vmatmul.mubr.bf16.gmra.mrb[0].mxu0 %v543
      %v693 = vpop.f32.mrb[0].mxu0
      %v694 = vadd.f32 0.0, %v693
      %v695 = vpop.f32.mrb[0].mxu0
      %v696 = vpop.f32.mrb[0].mxu0
      %v697 = vadd.f32 0.0, %v696
      %v698 = vpop.f32.mrb[0].mxu0
      %699 = vmatprep.mubr.bf16.mxu0 0
      %700 = vmatmul.mubr.bf16.gmra.mrb[0].mxu0 %v544
      %v701 = vpop.f32.mrb[0].mxu0
      %v702 = vadd.f32 0.0, %v701
      %v703 = vpop.f32.mrb[0].mxu0
      %v704 = vpop.f32.mrb[0].mxu0
      %v705 = vadd.f32 0.0, %v704
      %v706 = vpop.f32.mrb[0].mxu0
      %707 = vmatprep.mubr.bf16.mxu0 0
      %708 = vmatmul.mubr.bf16.gmra.mrb[0].mxu0 %v545
      %v709 = vpop.f32.mrb[0].mxu0
      %v710 = vadd.f32 0.0, %v709
      %v711 = vpop.f32.mrb[0].mxu0
      %v712 = vpop.f32.mrb[0].mxu0
      %v713 = vadd.f32 0.0, %v712
      %v714 = vpop.f32.mrb[0].mxu0
      %715 = vmatprep.mubr.bf16.mxu0 0
      %716 = vmatmul.mubr.bf16.gmra.mrb[0].mxu0 %v546
      %v717 = vpop.f32.mrb[0].mxu0
      %v718 = vadd.f32 0.0, %v717
      %v719 = vpop.f32.mrb[0].mxu0
      %v720 = vpop.f32.mrb[0].mxu0
      %v721 = vadd.f32 0.0, %v720
      %v722 = vpop.f32.mrb[0].mxu0
      %723 = vmatprep.mubr.bf16.mxu0 0
      %724 = vmatmul.mubr.bf16.gmra.mrb[0].mxu0 %v547
      %v725 = vpop.f32.mrb[0].mxu0
      %v726 = vadd.f32 0.0, %v725
      %v727 = vpop.f32.mrb[0].mxu0
      %v728 = vpop.f32.mrb[0].mxu0
      %v729 = vadd.f32 0.0, %v728
      %v730 = vpop.f32.mrb[0].mxu0
      %731 = vmatprep.mubr.bf16.mxu0 0
      %732 = vmatmul.mubr.bf16.gmra.mrb[0].mxu0 %v548
      %v733 = vpop.f32.mrb[0].mxu0
      %v734 = vadd.f32 0.0, %v733
      %v735 = vpop.f32.mrb[0].mxu0
      %v736 = vpop.f32.mrb[0].mxu0
      %v737 = vadd.f32 0.0, %v736
      %v738 = vpop.f32.mrb[0].mxu0
      %739 = vmatprep.mubr.bf16.mxu0 0
      %740 = vmatmul.mubr.bf16.gmra.mrb[0].mxu0 %v549
      %v741 = vpop.f32.mrb[0].mxu0
      %v742 = vadd.f32 0.0, %v741
      %v743 = vpop.f32.mrb[0].mxu0
      %v744 = vpop.f32.mrb[0].mxu0
      %v745 = vadd.f32 0.0, %v744
      %v746 = vpop.f32.mrb[0].mxu0
      %747 = vmatprep.mubr.bf16.mxu0 0
      %748 = vmatmul.mubr.bf16.gmra.mrb[0].mxu0 %v550
      %v749 = vpop.f32.mrb[0].mxu0
      %v750 = vadd.f32 0.0, %v749
      %v751 = vpop.f32.mrb[0].mxu0
      %v752 = vpop.f32.mrb[0].mxu0
      %v753 = vadd.f32 0.0, %v752
      %v754 = vpop.f32.mrb[0].mxu0
      %755 = vmatprep.mubr.bf16.mxu0 0
      %756 = vmatmul.mubr.bf16.gmra.mrb[0].mxu0 %v551
      %v757 = vpop.f32.mrb[0].mxu0
      %v758 = vadd.f32 0.0, %v757
      %v759 = vpop.f32.mrb[0].mxu0
      %v760 = vpop.f32.mrb[0].mxu0
      %v761 = vadd.f32 0.0, %v760
      %v762 = vpop.f32.mrb[0].mxu0
      %763 = vmatprep.mubr.bf16.mxu0 0
      %764 = vmatmul.mubr.bf16.gmra.mrb[0].mxu0 %v552
      %v765 = vpop.f32.mrb[0].mxu0
      %v766 = vadd.f32 0.0, %v765
      %v767 = vpop.f32.mrb[0].mxu0
      %v768 = vpop.f32.mrb[0].mxu0
      %v769 = vadd.f32 0.0, %v768
      %v770 = vpop.f32.mrb[0].mxu0
      %771 = vmatprep.mubr.bf16.mxu0 0
      %772 = vmatmul.mubr.bf16.gmra.mrb[0].mxu0 %v553
      %v773 = vpop.f32.mrb[0].mxu0
      %v774 = vadd.f32 0.0, %v773
      %v775 = vpop.f32.mrb[0].mxu0
      %v776 = vpop.f32.mrb[0].mxu0
      %v777 = vadd.f32 0.0, %v776
      %v778 = vpop.f32.mrb[0].mxu0
      %779 = vdwg.mxu0
      %v796 = vunpack.c.l.b16 %v490
      %v797 = vunpack.c.l.b16 %v491
      %v798 = vunpack.c.l.b16 %v492
      %v799 = vunpack.c.l.b16 %v493
      %v800 = vunpack.c.l.b16 %v494
      %v801 = vunpack.c.l.b16 %v495
      %v802 = vunpack.c.l.b16 %v496
      %v803 = vunpack.c.l.b16 %v497
      %v804 = vunpack.c.l.b16 %v498
      %v805 = vunpack.c.l.b16 %v499
      %v806 = vunpack.c.l.b16 %v500
      %v807 = vunpack.c.l.b16 %v501
      %v808 = vunpack.c.l.b16 %v502
      %v809 = vunpack.c.l.b16 %v503
      %v810 = vunpack.c.l.b16 %v504
      %v811 = vunpack.c.l.b16 %v505
      %v812 = vpack.c.b16 %v797, %v796
      %v813 = vpack.c.b16 %v799, %v798
      %v814 = vpack.c.b16 %v801, %v800
      %v815 = vpack.c.b16 %v803, %v802
      %v816 = vpack.c.b16 %v805, %v804
      %v817 = vpack.c.b16 %v807, %v806
      %v818 = vpack.c.b16 %v809, %v808
      %v819 = vpack.c.b16 %v811, %v810
      %828 = vmatprep.subr.bf16.mxu0 0
      %829 = vmatpush1.bf16.msra.mxu0 %v812
      %830 = vmatprep.subr.bf16.mxu0 0
      %831 = vmatpush1.bf16.msra.mxu0 %v813
      %832 = vmatprep.subr.bf16.mxu0 0
      %833 = vmatpush1.bf16.msra.mxu0 %v814
      %834 = vmatprep.subr.bf16.mxu0 0
      %835 = vmatpush1.bf16.msra.mxu0 %v815
      %836 = vmatprep.subr.bf16.mxu0 0
      %837 = vmatpush1.bf16.msra.mxu0 %v816
      %838 = vmatprep.subr.bf16.mxu0 0
      %839 = vmatpush1.bf16.msra.mxu0 %v817
      %840 = vmatprep.subr.bf16.mxu0 0
      %841 = vmatpush1.bf16.msra.mxu0 %v818
      %842 = vmatprep.subr.bf16.mxu0 0
      %843 = vmatpush1.bf16.msra.mxu0 %v819
      %844 = vmatprep.subr.bf16.mxu0 0
      %845 = vmatpush1.bf16.msra.mxu0 0
      %846 = vmatprep.subr.bf16.mxu0 0
      %847 = vmatpush1.bf16.msra.mxu0 0
      %848 = vmatprep.subr.bf16.mxu0 0
      %849 = vmatpush1.bf16.msra.mxu0 0
      %850 = vmatprep.subr.bf16.mxu0 0
      %851 = vmatpush1.bf16.msra.mxu0 0
      %852 = vmatprep.subr.bf16.mxu0 0
      %853 = vmatpush1.bf16.msra.mxu0 0
      %854 = vmatprep.subr.bf16.mxu0 0
      %855 = vmatpush1.bf16.msra.mxu0 0
      %856 = vmatprep.subr.bf16.mxu0 0
      %857 = vmatpush1.bf16.msra.mxu0 0
      %858 = vmatprep.subr.bf16.mxu0 0
      %859 = vmatpush1.bf16.msra.mxu0 0
      %860 = vmatprep.mubr.bf16.mxu0 0
      %861 = vmatmul.mubr.bf16.gmra.mrb[0].mxu0 %v474
      %v862 = vpop.f32.mrb[0].mxu0
      %v863 = vadd.f32 %v654, %v862
      %v864 = vpop.f32.mrb[0].mxu0
      %v865 = vpop.f32.mrb[0].mxu0
      %v866 = vadd.f32 %v657, %v865
      %v867 = vpop.f32.mrb[0].mxu0
      %868 = vmatprep.mubr.bf16.mxu0 0
      %869 = vmatmul.mubr.bf16.gmra.mrb[0].mxu0 %v475
      %v870 = vpop.f32.mrb[0].mxu0
      %v871 = vadd.f32 %v662, %v870
      %v872 = vpop.f32.mrb[0].mxu0
      %v873 = vpop.f32.mrb[0].mxu0
      %v874 = vadd.f32 %v665, %v873
      %v875 = vpop.f32.mrb[0].mxu0
      %876 = vmatprep.mubr.bf16.mxu0 0
      %877 = vmatmul.mubr.bf16.gmra.mrb[0].mxu0 %v476
      %v878 = vpop.f32.mrb[0].mxu0
      %v879 = vadd.f32 %v670, %v878
      %v880 = vpop.f32.mrb[0].mxu0
      %v881 = vpop.f32.mrb[0].mxu0
      %v882 = vadd.f32 %v673, %v881
      %v883 = vpop.f32.mrb[0].mxu0
      %884 = vmatprep.mubr.bf16.mxu0 0
      %885 = vmatmul.mubr.bf16.gmra.mrb[0].mxu0 %v477
      %v886 = vpop.f32.mrb[0].mxu0
      %v887 = vadd.f32 %v678, %v886
      %v888 = vpop.f32.mrb[0].mxu0
      %v889 = vpop.f32.mrb[0].mxu0
      %v890 = vadd.f32 %v681, %v889
      %v891 = vpop.f32.mrb[0].mxu0
      %892 = vmatprep.mubr.bf16.mxu0 0
      %893 = vmatmul.mubr.bf16.gmra.mrb[0].mxu0 %v478
      %v894 = vpop.f32.mrb[0].mxu0
      %v895 = vadd.f32 %v686, %v894
      %v896 = vpop.f32.mrb[0].mxu0
      %v897 = vpop.f32.mrb[0].mxu0
      %v898 = vadd.f32 %v689, %v897
      %v899 = vpop.f32.mrb[0].mxu0
      %900 = vmatprep.mubr.bf16.mxu0 0
      %901 = vmatmul.mubr.bf16.gmra.mrb[0].mxu0 %v479
      %v902 = vpop.f32.mrb[0].mxu0
      %v903 = vadd.f32 %v694, %v902
      %v904 = vpop.f32.mrb[0].mxu0
      %v905 = vpop.f32.mrb[0].mxu0
      %v906 = vadd.f32 %v697, %v905
      %v907 = vpop.f32.mrb[0].mxu0
      %908 = vmatprep.mubr.bf16.mxu0 0
      %909 = vmatmul.mubr.bf16.gmra.mrb[0].mxu0 %v480
      %v910 = vpop.f32.mrb[0].mxu0
      %v911 = vadd.f32 %v702, %v910
      %v912 = vpop.f32.mrb[0].mxu0
      %v913 = vpop.f32.mrb[0].mxu0
      %v914 = vadd.f32 %v705, %v913
      %v915 = vpop.f32.mrb[0].mxu0
      %916 = vmatprep.mubr.bf16.mxu0 0
      %917 = vmatmul.mubr.bf16.gmra.mrb[0].mxu0 %v481
      %v918 = vpop.f32.mrb[0].mxu0
      %v919 = vadd.f32 %v710, %v918
      %v920 = vpop.f32.mrb[0].mxu0
      %v921 = vpop.f32.mrb[0].mxu0
      %v922 = vadd.f32 %v713, %v921
      %v923 = vpop.f32.mrb[0].mxu0
      %924 = vmatprep.mubr.bf16.mxu0 0
      %925 = vmatmul.mubr.bf16.gmra.mrb[0].mxu0 %v482
      %v926 = vpop.f32.mrb[0].mxu0
      %v927 = vadd.f32 %v718, %v926
      %v928 = vpop.f32.mrb[0].mxu0
      %v929 = vpop.f32.mrb[0].mxu0
      %v930 = vadd.f32 %v721, %v929
      %v931 = vpop.f32.mrb[0].mxu0
      %932 = vmatprep.mubr.bf16.mxu0 0
      %933 = vmatmul.mubr.bf16.gmra.mrb[0].mxu0 %v483
      %v934 = vpop.f32.mrb[0].mxu0
      %v935 = vadd.f32 %v726, %v934
      %v936 = vpop.f32.mrb[0].mxu0
      %v937 = vpop.f32.mrb[0].mxu0
      %v938 = vadd.f32 %v729, %v937
      %v939 = vpop.f32.mrb[0].mxu0
      %940 = vmatprep.mubr.bf16.mxu0 0
      %941 = vmatmul.mubr.bf16.gmra.mrb[0].mxu0 %v484
      %v942 = vpop.f32.mrb[0].mxu0
      %v943 = vadd.f32 %v734, %v942
      %v944 = vpop.f32.mrb[0].mxu0
      %v945 = vpop.f32.mrb[0].mxu0
      %v946 = vadd.f32 %v737, %v945
      %v947 = vpop.f32.mrb[0].mxu0
      %948 = vmatprep.mubr.bf16.mxu0 0
      %949 = vmatmul.mubr.bf16.gmra.mrb[0].mxu0 %v485
      %v950 = vpop.f32.mrb[0].mxu0
      %v951 = vadd.f32 %v742, %v950
      %v952 = vpop.f32.mrb[0].mxu0
      %v953 = vpop.f32.mrb[0].mxu0
      %v954 = vadd.f32 %v745, %v953
      %v955 = vpop.f32.mrb[0].mxu0
      %956 = vmatprep.mubr.bf16.mxu0 0
      %957 = vmatmul.mubr.bf16.gmra.mrb[0].mxu0 %v486
      %v958 = vpop.f32.mrb[0].mxu0
      %v959 = vadd.f32 %v750, %v958
      %v960 = vpop.f32.mrb[0].mxu0
      %v961 = vpop.f32.mrb[0].mxu0
      %v962 = vadd.f32 %v753, %v961
      %v963 = vpop.f32.mrb[0].mxu0
      %964 = vmatprep.mubr.bf16.mxu0 0
      %965 = vmatmul.mubr.bf16.gmra.mrb[0].mxu0 %v487
      %v966 = vpop.f32.mrb[0].mxu0
      %v967 = vadd.f32 %v758, %v966
      %v968 = vpop.f32.mrb[0].mxu0
      %v969 = vpop.f32.mrb[0].mxu0
      %v970 = vadd.f32 %v761, %v969
      %v971 = vpop.f32.mrb[0].mxu0
      %972 = vmatprep.mubr.bf16.mxu0 0
      %973 = vmatmul.mubr.bf16.gmra.mrb[0].mxu0 %v488
      %v974 = vpop.f32.mrb[0].mxu0
      %v975 = vadd.f32 %v766, %v974
      %v976 = vpop.f32.mrb[0].mxu0
      %v977 = vpop.f32.mrb[0].mxu0
      %v978 = vadd.f32 %v769, %v977
      %v979 = vpop.f32.mrb[0].mxu0
      %980 = vmatprep.mubr.bf16.mxu0 0
      %981 = vmatmul.mubr.bf16.gmra.mrb[0].mxu0 %v489
      %v982 = vpop.f32.mrb[0].mxu0
      %v983 = vadd.f32 %v774, %v982
      %v984 = vpop.f32.mrb[0].mxu0
      %v985 = vpop.f32.mrb[0].mxu0
      %v986 = vadd.f32 %v777, %v985
      %v987 = vpop.f32.mrb[0].mxu0
      %988 = vdwg.mxu0
      %v989 = vld [vmem:[#allocation2 + $0x2] sm:$0xff]
      %v990 = vld [vmem:[#allocation2 + $0xa] sm:$0xff]
      %v991 = vld [vmem:[#allocation2 + $0x1a] sm:$0xff]
      %v992 = vld [vmem:[#allocation2 + $0x22] sm:$0xff]
      %v993 = vld [vmem:[#allocation2 + $0x32] sm:$0xff]
      %v994 = vld [vmem:[#allocation2 + $0x3a] sm:$0xff]
      %v995 = vld [vmem:[#allocation2 + $0x4a] sm:$0xff]
      %v996 = vld [vmem:[#allocation2 + $0x52] sm:$0xff]
      %v997 = vld [vmem:[#allocation2 + $0x62] sm:$0xff]
      %v998 = vld [vmem:[#allocation2 + $0x6a] sm:$0xff]
      %v999 = vld [vmem:[#allocation2 + $0x7a] sm:$0xff]
      %v1000 = vld [vmem:[#allocation2 + $0x82] sm:$0xff]
      %v1001 = vld [vmem:[#allocation2 + $0x92] sm:$0xff]
      %v1002 = vld [vmem:[#allocation2 + $0x9a] sm:$0xff]
      %v1003 = vld [vmem:[#allocation2 + $0xaa] sm:$0xff]
      %v1004 = vld [vmem:[#allocation2 + $0xb2] sm:$0xff]
      %v1005 = vld [vmem:[#allocation2 + $0xc2] sm:$0xff]
      %v1006 = vld [vmem:[#allocation2 + $0xca] sm:$0xff]
      %v1007 = vld [vmem:[#allocation2 + $0xda] sm:$0xff]
      %v1008 = vld [vmem:[#allocation2 + $0xe2] sm:$0xff]
      %v1009 = vld [vmem:[#allocation2 + $0xf2] sm:$0xff]
      %v1010 = vld [vmem:[#allocation2 + $0xfa] sm:$0xff]
      %v1011 = vld [vmem:[#allocation2 + $0x10a] sm:$0xff]
      %v1012 = vld [vmem:[#allocation2 + $0x112] sm:$0xff]
      %v1013 = vld [vmem:[#allocation2 + $0x122] sm:$0xff]
      %v1014 = vld [vmem:[#allocation2 + $0x12a] sm:$0xff]
      %v1015 = vld [vmem:[#allocation2 + $0x13a] sm:$0xff]
      %v1016 = vld [vmem:[#allocation2 + $0x142] sm:$0xff]
      %v1017 = vld [vmem:[#allocation2 + $0x152] sm:$0xff]
      %v1018 = vld [vmem:[#allocation2 + $0x15a] sm:$0xff]
      %v1019 = vld [vmem:[#allocation2 + $0x16a] sm:$0xff]
      %v1020 = vld [vmem:[#allocation2 + $0x172] sm:$0xff]
      %v1021 = vpack.c.bf16 %v990, %v989
      %v1022 = vpack.c.bf16 %v992, %v991
      %v1023 = vpack.c.bf16 %v994, %v993
      %v1024 = vpack.c.bf16 %v996, %v995
      %v1025 = vpack.c.bf16 %v998, %v997
      %v1026 = vpack.c.bf16 %v1000, %v999
      %v1027 = vpack.c.bf16 %v1002, %v1001
      %v1028 = vpack.c.bf16 %v1004, %v1003
      %v1029 = vpack.c.bf16 %v1006, %v1005
      %v1030 = vpack.c.bf16 %v1008, %v1007
      %v1031 = vpack.c.bf16 %v1010, %v1009
      %v1032 = vpack.c.bf16 %v1012, %v1011
      %v1033 = vpack.c.bf16 %v1014, %v1013
      %v1034 = vpack.c.bf16 %v1016, %v1015
      %v1035 = vpack.c.bf16 %v1018, %v1017
      %v1036 = vpack.c.bf16 %v1020, %v1019
      %s1037 = scalar_lea.vmem %s1, 128
      %v1038 = vld [vmem:[%s1037] sm:$0xf]
      %v1039 = vld [vmem:[%s1037 + $0x4] sm:$0xf]
      %v1040 = vld [vmem:[%s1037 + $0x8] sm:$0xf]
      %v1041 = vld [vmem:[%s1037 + $0xc] sm:$0xf]
      %v1042 = vld [vmem:[%s1037 + $0x10] sm:$0xf]
      %v1043 = vld [vmem:[%s1037 + $0x14] sm:$0xf]
      %v1044 = vld [vmem:[%s1037 + $0x18] sm:$0xf]
      %v1045 = vld [vmem:[%s1037 + $0x1c] sm:$0xf]
      %v1046 = vld [vmem:[%s1037 + $0x20] sm:$0xf]
      %v1047 = vld [vmem:[%s1037 + $0x24] sm:$0xf]
      %v1048 = vld [vmem:[%s1037 + $0x28] sm:$0xf]
      %v1049 = vld [vmem:[%s1037 + $0x2c] sm:$0xf]
      %v1050 = vld [vmem:[%s1037 + $0x30] sm:$0xf]
      %v1051 = vld [vmem:[%s1037 + $0x34] sm:$0xf]
      %v1052 = vld [vmem:[%s1037 + $0x38] sm:$0xf]
      %v1053 = vld [vmem:[%s1037 + $0x3c] sm:$0xf]
      %v1070 = vunpack.c.l.b16 %v1038
      %v1071 = vunpack.c.l.b16 %v1039
      %v1072 = vunpack.c.l.b16 %v1040
      %v1073 = vunpack.c.l.b16 %v1041
      %v1074 = vunpack.c.l.b16 %v1042
      %v1075 = vunpack.c.l.b16 %v1043
      %v1076 = vunpack.c.l.b16 %v1044
      %v1077 = vunpack.c.l.b16 %v1045
      %v1078 = vunpack.c.l.b16 %v1046
      %v1079 = vunpack.c.l.b16 %v1047
      %v1080 = vunpack.c.l.b16 %v1048
      %v1081 = vunpack.c.l.b16 %v1049
      %v1082 = vunpack.c.l.b16 %v1050
      %v1083 = vunpack.c.l.b16 %v1051
      %v1084 = vunpack.c.l.b16 %v1052
      %v1085 = vunpack.c.l.b16 %v1053
      %v1086 = vpack.c.b16 %v1071, %v1070
      %v1087 = vpack.c.b16 %v1073, %v1072
      %v1088 = vpack.c.b16 %v1075, %v1074
      %v1089 = vpack.c.b16 %v1077, %v1076
      %v1090 = vpack.c.b16 %v1079, %v1078
      %v1091 = vpack.c.b16 %v1081, %v1080
      %v1092 = vpack.c.b16 %v1083, %v1082
      %v1093 = vpack.c.b16 %v1085, %v1084
      %1102 = vmatprep.subr.bf16.mxu0 0
      %1103 = vmatpush1.bf16.msra.mxu0 %v1086
      %1104 = vmatprep.subr.bf16.mxu0 0
      %1105 = vmatpush1.bf16.msra.mxu0 %v1087
      %1106 = vmatprep.subr.bf16.mxu0 0
      %1107 = vmatpush1.bf16.msra.mxu0 %v1088
      %1108 = vmatprep.subr.bf16.mxu0 0
      %1109 = vmatpush1.bf16.msra.mxu0 %v1089
      %1110 = vmatprep.subr.bf16.mxu0 0
      %1111 = vmatpush1.bf16.msra.mxu0 %v1090
      %1112 = vmatprep.subr.bf16.mxu0 0
      %1113 = vmatpush1.bf16.msra.mxu0 %v1091
      %1114 = vmatprep.subr.bf16.mxu0 0
      %1115 = vmatpush1.bf16.msra.mxu0 %v1092
      %1116 = vmatprep.subr.bf16.mxu0 0
      %1117 = vmatpush1.bf16.msra.mxu0 %v1093
      %1118 = vmatprep.subr.bf16.mxu0 0
      %1119 = vmatpush1.bf16.msra.mxu0 0
      %1120 = vmatprep.subr.bf16.mxu0 0
      %1121 = vmatpush1.bf16.msra.mxu0 0
      %1122 = vmatprep.subr.bf16.mxu0 0
      %1123 = vmatpush1.bf16.msra.mxu0 0
      %1124 = vmatprep.subr.bf16.mxu0 0
      %1125 = vmatpush1.bf16.msra.mxu0 0
      %1126 = vmatprep.subr.bf16.mxu0 0
      %1127 = vmatpush1.bf16.msra.mxu0 0
      %1128 = vmatprep.subr.bf16.mxu0 0
      %1129 = vmatpush1.bf16.msra.mxu0 0
      %1130 = vmatprep.subr.bf16.mxu0 0
      %1131 = vmatpush1.bf16.msra.mxu0 0
      %1132 = vmatprep.subr.bf16.mxu0 0
      %1133 = vmatpush1.bf16.msra.mxu0 0
      %1134 = vmatprep.mubr.bf16.mxu0 0
      %1135 = vmatmul.mubr.bf16.gmra.mrb[0].mxu0 %v1021
      %v1136 = vpop.f32.mrb[0].mxu0
      %v1137 = vadd.f32 0.0, %v1136
      %v1138 = vpop.f32.mrb[0].mxu0
      %v1139 = vpop.f32.mrb[0].mxu0
      %v1140 = vadd.f32 0.0, %v1139
      %v1141 = vpop.f32.mrb[0].mxu0
      %1142 = vmatprep.mubr.bf16.mxu0 0
      %1143 = vmatmul.mubr.bf16.gmra.mrb[0].mxu0 %v1022
      %v1144 = vpop.f32.mrb[0].mxu0
      %v1145 = vadd.f32 0.0, %v1144
      %v1146 = vpop.f32.mrb[0].mxu0
      %v1147 = vpop.f32.mrb[0].mxu0
      %v1148 = vadd.f32 0.0, %v1147
      %v1149 = vpop.f32.mrb[0].mxu0
      %1150 = vmatprep.mubr.bf16.mxu0 0
      %1151 = vmatmul.mubr.bf16.gmra.mrb[0].mxu0 %v1023
      %v1152 = vpop.f32.mrb[0].mxu0
      %v1153 = vadd.f32 0.0, %v1152
      %v1154 = vpop.f32.mrb[0].mxu0
      %v1155 = vpop.f32.mrb[0].mxu0
      %v1156 = vadd.f32 0.0, %v1155
      %v1157 = vpop.f32.mrb[0].mxu0
      %1158 = vmatprep.mubr.bf16.mxu0 0
      %1159 = vmatmul.mubr.bf16.gmra.mrb[0].mxu0 %v1024
      %v1160 = vpop.f32.mrb[0].mxu0
      %v1161 = vadd.f32 0.0, %v1160
      %v1162 = vpop.f32.mrb[0].mxu0
      %v1163 = vpop.f32.mrb[0].mxu0
      %v1164 = vadd.f32 0.0, %v1163
      %v1165 = vpop.f32.mrb[0].mxu0
      %1166 = vmatprep.mubr.bf16.mxu0 0
      %1167 = vmatmul.mubr.bf16.gmra.mrb[0].mxu0 %v1025
      %v1168 = vpop.f32.mrb[0].mxu0
      %v1169 = vadd.f32 0.0, %v1168
      %v1170 = vpop.f32.mrb[0].mxu0
      %v1171 = vpop.f32.mrb[0].mxu0
      %v1172 = vadd.f32 0.0, %v1171
      %v1173 = vpop.f32.mrb[0].mxu0
      %1174 = vmatprep.mubr.bf16.mxu0 0
      %1175 = vmatmul.mubr.bf16.gmra.mrb[0].mxu0 %v1026
      %v1176 = vpop.f32.mrb[0].mxu0
      %v1177 = vadd.f32 0.0, %v1176
      %v1178 = vpop.f32.mrb[0].mxu0
      %v1179 = vpop.f32.mrb[0].mxu0
      %v1180 = vadd.f32 0.0, %v1179
      %v1181 = vpop.f32.mrb[0].mxu0
      %1182 = vmatprep.mubr.bf16.mxu0 0
      %1183 = vmatmul.mubr.bf16.gmra.mrb[0].mxu0 %v1027
      %v1184 = vpop.f32.mrb[0].mxu0
      %v1185 = vadd.f32 0.0, %v1184
      %v1186 = vpop.f32.mrb[0].mxu0
      %v1187 = vpop.f32.mrb[0].mxu0
      %v1188 = vadd.f32 0.0, %v1187
      %v1189 = vpop.f32.mrb[0].mxu0
      %1190 = vmatprep.mubr.bf16.mxu0 0
      %1191 = vmatmul.mubr.bf16.gmra.mrb[0].mxu0 %v1028
      %v1192 = vpop.f32.mrb[0].mxu0
      %v1193 = vadd.f32 0.0, %v1192
      %v1194 = vpop.f32.mrb[0].mxu0
      %v1195 = vpop.f32.mrb[0].mxu0
      %v1196 = vadd.f32 0.0, %v1195
      %v1197 = vpop.f32.mrb[0].mxu0
      %1198 = vmatprep.mubr.bf16.mxu0 0
      %1199 = vmatmul.mubr.bf16.gmra.mrb[0].mxu0 %v1029
      %v1200 = vpop.f32.mrb[0].mxu0
      %v1201 = vadd.f32 0.0, %v1200
      %v1202 = vpop.f32.mrb[0].mxu0
      %v1203 = vpop.f32.mrb[0].mxu0
      %v1204 = vadd.f32 0.0, %v1203
      %v1205 = vpop.f32.mrb[0].mxu0
      %1206 = vmatprep.mubr.bf16.mxu0 0
      %1207 = vmatmul.mubr.bf16.gmra.mrb[0].mxu0 %v1030
      %v1208 = vpop.f32.mrb[0].mxu0
      %v1209 = vadd.f32 0.0, %v1208
      %v1210 = vpop.f32.mrb[0].mxu0
      %v1211 = vpop.f32.mrb[0].mxu0
      %v1212 = vadd.f32 0.0, %v1211
      %v1213 = vpop.f32.mrb[0].mxu0
      %1214 = vmatprep.mubr.bf16.mxu0 0
      %1215 = vmatmul.mubr.bf16.gmra.mrb[0].mxu0 %v1031
      %v1216 = vpop.f32.mrb[0].mxu0
      %v1217 = vadd.f32 0.0, %v1216
      %v1218 = vpop.f32.mrb[0].mxu0
      %v1219 = vpop.f32.mrb[0].mxu0
      %v1220 = vadd.f32 0.0, %v1219
      %v1221 = vpop.f32.mrb[0].mxu0
      %1222 = vmatprep.mubr.bf16.mxu0 0
      %1223 = vmatmul.mubr.bf16.gmra.mrb[0].mxu0 %v1032
      %v1224 = vpop.f32.mrb[0].mxu0
      %v1225 = vadd.f32 0.0, %v1224
      %v1226 = vpop.f32.mrb[0].mxu0
      %v1227 = vpop.f32.mrb[0].mxu0
      %v1228 = vadd.f32 0.0, %v1227
      %v1229 = vpop.f32.mrb[0].mxu0
      %1230 = vmatprep.mubr.bf16.mxu0 0
      %1231 = vmatmul.mubr.bf16.gmra.mrb[0].mxu0 %v1033
      %v1232 = vpop.f32.mrb[0].mxu0
      %v1233 = vadd.f32 0.0, %v1232
      %v1234 = vpop.f32.mrb[0].mxu0
      %v1235 = vpop.f32.mrb[0].mxu0
      %v1236 = vadd.f32 0.0, %v1235
      %v1237 = vpop.f32.mrb[0].mxu0
      %1238 = vmatprep.mubr.bf16.mxu0 0
      %1239 = vmatmul.mubr.bf16.gmra.mrb[0].mxu0 %v1034
      %v1240 = vpop.f32.mrb[0].mxu0
      %v1241 = vadd.f32 0.0, %v1240
      %v1242 = vpop.f32.mrb[0].mxu0
      %v1243 = vpop.f32.mrb[0].mxu0
      %v1244 = vadd.f32 0.0, %v1243
      %v1245 = vpop.f32.mrb[0].mxu0
      %1246 = vmatprep.mubr.bf16.mxu0 0
      %1247 = vmatmul.mubr.bf16.gmra.mrb[0].mxu0 %v1035
      %v1248 = vpop.f32.mrb[0].mxu0
      %v1249 = vadd.f32 0.0, %v1248
      %v1250 = vpop.f32.mrb[0].mxu0
      %v1251 = vpop.f32.mrb[0].mxu0
      %v1252 = vadd.f32 0.0, %v1251
      %v1253 = vpop.f32.mrb[0].mxu0
      %1254 = vmatprep.mubr.bf16.mxu0 0
      %1255 = vmatmul.mubr.bf16.gmra.mrb[0].mxu0 %v1036
      %v1256 = vpop.f32.mrb[0].mxu0
      %v1257 = vadd.f32 0.0, %v1256
      %v1258 = vpop.f32.mrb[0].mxu0
      %v1259 = vpop.f32.mrb[0].mxu0
      %v1260 = vadd.f32 0.0, %v1259
      %v1261 = vpop.f32.mrb[0].mxu0
      %1262 = vdwg.mxu0
      %v1263 = vadd.f32 %v863, %v1137
      %v1264 = vadd.f32 %v866, %v1140
      %v1265 = vadd.f32 %v871, %v1145
      %v1266 = vadd.f32 %v874, %v1148
      %v1267 = vadd.f32 %v879, %v1153
      %v1268 = vadd.f32 %v882, %v1156
      %v1269 = vadd.f32 %v887, %v1161
      %v1270 = vadd.f32 %v890, %v1164
      %v1271 = vadd.f32 %v895, %v1169
      %v1272 = vadd.f32 %v898, %v1172
      %v1273 = vadd.f32 %v903, %v1177
      %v1274 = vadd.f32 %v906, %v1180
      %v1275 = vadd.f32 %v911, %v1185
      %v1276 = vadd.f32 %v914, %v1188
      %v1277 = vadd.f32 %v919, %v1193
      %v1278 = vadd.f32 %v922, %v1196
      %v1279 = vadd.f32 %v927, %v1201
      %v1280 = vadd.f32 %v930, %v1204
      %v1281 = vadd.f32 %v935, %v1209
      %v1282 = vadd.f32 %v938, %v1212
      %v1283 = vadd.f32 %v943, %v1217
      %v1284 = vadd.f32 %v946, %v1220
      %v1285 = vadd.f32 %v951, %v1225
      %v1286 = vadd.f32 %v954, %v1228
      %v1287 = vadd.f32 %v959, %v1233
      %v1288 = vadd.f32 %v962, %v1236
      %v1289 = vadd.f32 %v967, %v1241
      %v1290 = vadd.f32 %v970, %v1244
      %v1291 = vadd.f32 %v975, %v1249
      %v1292 = vadd.f32 %v978, %v1252
      %v1293 = vadd.f32 %v983, %v1257
      %v1294 = vadd.f32 %v986, %v1260
      %v1295 = vld [vmem:[%s409] sm:$0xff]
      %v1296 = vld [vmem:[%s409 + $0x8] sm:$0xff]
      %v1297 = vld [vmem:[%s409 + $0x18] sm:$0xff]
      %v1298 = vld [vmem:[%s409 + $0x20] sm:$0xff]
      %v1299 = vld [vmem:[%s409 + $0x30] sm:$0xff]
      %v1300 = vld [vmem:[%s409 + $0x38] sm:$0xff]
      %v1301 = vld [vmem:[%s409 + $0x48] sm:$0xff]
      %v1302 = vld [vmem:[%s409 + $0x50] sm:$0xff]
      %v1303 = vld [vmem:[%s409 + $0x60] sm:$0xff]
      %v1304 = vld [vmem:[%s409 + $0x68] sm:$0xff]
      %v1305 = vld [vmem:[%s409 + $0x78] sm:$0xff]
      %v1306 = vld [vmem:[%s409 + $0x80] sm:$0xff]
      %v1307 = vld [vmem:[%s409 + $0x90] sm:$0xff]
      %v1308 = vld [vmem:[%s409 + $0x98] sm:$0xff]
      %v1309 = vld [vmem:[%s409 + $0xa8] sm:$0xff]
      %v1310 = vld [vmem:[%s409 + $0xb0] sm:$0xff]
      %v1311 = vld [vmem:[%s409 + $0xc0] sm:$0xff]
      %v1312 = vld [vmem:[%s409 + $0xc8] sm:$0xff]
      %v1313 = vld [vmem:[%s409 + $0xd8] sm:$0xff]
      %v1314 = vld [vmem:[%s409 + $0xe0] sm:$0xff]
      %v1315 = vld [vmem:[%s409 + $0xf0] sm:$0xff]
      %v1316 = vld [vmem:[%s409 + $0xf8] sm:$0xff]
      %v1317 = vld [vmem:[%s409 + $0x108] sm:$0xff]
      %v1318 = vld [vmem:[%s409 + $0x110] sm:$0xff]
      %v1319 = vld [vmem:[%s409 + $0x120] sm:$0xff]
      %v1320 = vld [vmem:[%s409 + $0x128] sm:$0xff]
      %v1321 = vld [vmem:[%s409 + $0x138] sm:$0xff]
      %v1322 = vld [vmem:[%s409 + $0x140] sm:$0xff]
      %v1323 = vld [vmem:[%s409 + $0x150] sm:$0xff]
      %v1324 = vld [vmem:[%s409 + $0x158] sm:$0xff]
      %v1325 = vld [vmem:[%s409 + $0x168] sm:$0xff]
      %v1326 = vld [vmem:[%s409 + $0x170] sm:$0xff]
      %v1327 = vpack.c.bf16 %v1296, %v1295
      %v1328 = vpack.c.bf16 %v1298, %v1297
      %v1329 = vpack.c.bf16 %v1300, %v1299
      %v1330 = vpack.c.bf16 %v1302, %v1301
      %v1331 = vpack.c.bf16 %v1304, %v1303
      %v1332 = vpack.c.bf16 %v1306, %v1305
      %v1333 = vpack.c.bf16 %v1308, %v1307
      %v1334 = vpack.c.bf16 %v1310, %v1309
      %v1335 = vpack.c.bf16 %v1312, %v1311
      %v1336 = vpack.c.bf16 %v1314, %v1313
      %v1337 = vpack.c.bf16 %v1316, %v1315
      %v1338 = vpack.c.bf16 %v1318, %v1317
      %v1339 = vpack.c.bf16 %v1320, %v1319
      %v1340 = vpack.c.bf16 %v1322, %v1321
      %v1341 = vpack.c.bf16 %v1324, %v1323
      %v1342 = vpack.c.bf16 %v1326, %v1325
      %s1343 = scalar_lea.vmem %s1, 192
      %v1344 = vld [vmem:[%s1343] sm:$0xf]
      %v1345 = vld [vmem:[%s1343 + $0x4] sm:$0xf]
      %v1346 = vld [vmem:[%s1343 + $0x8] sm:$0xf]
      %v1347 = vld [vmem:[%s1343 + $0xc] sm:$0xf]
      %v1348 = vld [vmem:[%s1343 + $0x10] sm:$0xf]
      %v1349 = vld [vmem:[%s1343 + $0x14] sm:$0xf]
      %v1350 = vld [vmem:[%s1343 + $0x18] sm:$0xf]
      %v1351 = vld [vmem:[%s1343 + $0x1c] sm:$0xf]
      %v1352 = vld [vmem:[%s1343 + $0x20] sm:$0xf]
      %v1353 = vld [vmem:[%s1343 + $0x24] sm:$0xf]
      %v1354 = vld [vmem:[%s1343 + $0x28] sm:$0xf]
      %v1355 = vld [vmem:[%s1343 + $0x2c] sm:$0xf]
      %v1356 = vld [vmem:[%s1343 + $0x30] sm:$0xf]
      %v1357 = vld [vmem:[%s1343 + $0x34] sm:$0xf]
      %v1358 = vld [vmem:[%s1343 + $0x38] sm:$0xf]
      %v1359 = vld [vmem:[%s1343 + $0x3c] sm:$0xf]
      %v1376 = vunpack.c.l.b16 %v1344
      %v1377 = vunpack.c.l.b16 %v1345
      %v1378 = vunpack.c.l.b16 %v1346
      %v1379 = vunpack.c.l.b16 %v1347
      %v1380 = vunpack.c.l.b16 %v1348
      %v1381 = vunpack.c.l.b16 %v1349
      %v1382 = vunpack.c.l.b16 %v1350
      %v1383 = vunpack.c.l.b16 %v1351
      %v1384 = vunpack.c.l.b16 %v1352
      %v1385 = vunpack.c.l.b16 %v1353
      %v1386 = vunpack.c.l.b16 %v1354
      %v1387 = vunpack.c.l.b16 %v1355
      %v1388 = vunpack.c.l.b16 %v1356
      %v1389 = vunpack.c.l.b16 %v1357
      %v1390 = vunpack.c.l.b16 %v1358
      %v1391 = vunpack.c.l.b16 %v1359
      %v1392 = vpack.c.b16 %v1377, %v1376
      %v1393 = vpack.c.b16 %v1379, %v1378
      %v1394 = vpack.c.b16 %v1381, %v1380
      %v1395 = vpack.c.b16 %v1383, %v1382
      %v1396 = vpack.c.b16 %v1385, %v1384
      %v1397 = vpack.c.b16 %v1387, %v1386
      %v1398 = vpack.c.b16 %v1389, %v1388
      %v1399 = vpack.c.b16 %v1391, %v1390
      %1408 = vmatprep.subr.bf16.mxu0 0
      %1409 = vmatpush1.bf16.msra.mxu0 %v1392
      %1410 = vmatprep.subr.bf16.mxu0 0
      %1411 = vmatpush1.bf16.msra.mxu0 %v1393
      %1412 = vmatprep.subr.bf16.mxu0 0
      %1413 = vmatpush1.bf16.msra.mxu0 %v1394
      %1414 = vmatprep.subr.bf16.mxu0 0
      %1415 = vmatpush1.bf16.msra.mxu0 %v1395
      %1416 = vmatprep.subr.bf16.mxu0 0
      %1417 = vmatpush1.bf16.msra.mxu0 %v1396
      %1418 = vmatprep.subr.bf16.mxu0 0
      %1419 = vmatpush1.bf16.msra.mxu0 %v1397
      %1420 = vmatprep.subr.bf16.mxu0 0
      %1421 = vmatpush1.bf16.msra.mxu0 %v1398
      %1422 = vmatprep.subr.bf16.mxu0 0
      %1423 = vmatpush1.bf16.msra.mxu0 %v1399
      %1424 = vmatprep.subr.bf16.mxu0 0
      %1425 = vmatpush1.bf16.msra.mxu0 0
      %1426 = vmatprep.subr.bf16.mxu0 0
      %1427 = vmatpush1.bf16.msra.mxu0 0
      %1428 = vmatprep.subr.bf16.mxu0 0
      %1429 = vmatpush1.bf16.msra.mxu0 0
      %1430 = vmatprep.subr.bf16.mxu0 0
      %1431 = vmatpush1.bf16.msra.mxu0 0
      %1432 = vmatprep.subr.bf16.mxu0 0
      %1433 = vmatpush1.bf16.msra.mxu0 0
      %1434 = vmatprep.subr.bf16.mxu0 0
      %1435 = vmatpush1.bf16.msra.mxu0 0
      %1436 = vmatprep.subr.bf16.mxu0 0
      %1437 = vmatpush1.bf16.msra.mxu0 0
      %1438 = vmatprep.subr.bf16.mxu0 0
      %1439 = vmatpush1.bf16.msra.mxu0 0
      %1440 = vmatprep.mubr.bf16.mxu0 0
      %1441 = vmatmul.mubr.bf16.gmra.mrb[0].mxu0 %v1327
      %v1442 = vpop.f32.mrb[0].mxu0
      %v1443 = vadd.f32 0.0, %v1442
      %v1444 = vpop.f32.mrb[0].mxu0
      %v1445 = vpop.f32.mrb[0].mxu0
      %v1446 = vadd.f32 0.0, %v1445
      %v1447 = vpop.f32.mrb[0].mxu0
      %1448 = vmatprep.mubr.bf16.mxu0 0
      %1449 = vmatmul.mubr.bf16.gmra.mrb[0].mxu0 %v1328
      %v1450 = vpop.f32.mrb[0].mxu0
      %v1451 = vadd.f32 0.0, %v1450
      %v1452 = vpop.f32.mrb[0].mxu0
      %v1453 = vpop.f32.mrb[0].mxu0
      %v1454 = vadd.f32 0.0, %v1453
      %v1455 = vpop.f32.mrb[0].mxu0
      %1456 = vmatprep.mubr.bf16.mxu0 0
      %1457 = vmatmul.mubr.bf16.gmra.mrb[0].mxu0 %v1329
      %v1458 = vpop.f32.mrb[0].mxu0
      %v1459 = vadd.f32 0.0, %v1458
      %v1460 = vpop.f32.mrb[0].mxu0
      %v1461 = vpop.f32.mrb[0].mxu0
      %v1462 = vadd.f32 0.0, %v1461
      %v1463 = vpop.f32.mrb[0].mxu0
      %1464 = vmatprep.mubr.bf16.mxu0 0
      %1465 = vmatmul.mubr.bf16.gmra.mrb[0].mxu0 %v1330
      %v1466 = vpop.f32.mrb[0].mxu0
      %v1467 = vadd.f32 0.0, %v1466
      %v1468 = vpop.f32.mrb[0].mxu0
      %v1469 = vpop.f32.mrb[0].mxu0
      %v1470 = vadd.f32 0.0, %v1469
      %v1471 = vpop.f32.mrb[0].mxu0
      %1472 = vmatprep.mubr.bf16.mxu0 0
      %1473 = vmatmul.mubr.bf16.gmra.mrb[0].mxu0 %v1331
      %v1474 = vpop.f32.mrb[0].mxu0
      %v1475 = vadd.f32 0.0, %v1474
      %v1476 = vpop.f32.mrb[0].mxu0
      %v1477 = vpop.f32.mrb[0].mxu0
      %v1478 = vadd.f32 0.0, %v1477
      %v1479 = vpop.f32.mrb[0].mxu0
      %1480 = vmatprep.mubr.bf16.mxu0 0
      %1481 = vmatmul.mubr.bf16.gmra.mrb[0].mxu0 %v1332
      %v1482 = vpop.f32.mrb[0].mxu0
      %v1483 = vadd.f32 0.0, %v1482
      %v1484 = vpop.f32.mrb[0].mxu0
      %v1485 = vpop.f32.mrb[0].mxu0
      %v1486 = vadd.f32 0.0, %v1485
      %v1487 = vpop.f32.mrb[0].mxu0
      %1488 = vmatprep.mubr.bf16.mxu0 0
      %1489 = vmatmul.mubr.bf16.gmra.mrb[0].mxu0 %v1333
      %v1490 = vpop.f32.mrb[0].mxu0
      %v1491 = vadd.f32 0.0, %v1490
      %v1492 = vpop.f32.mrb[0].mxu0
      %v1493 = vpop.f32.mrb[0].mxu0
      %v1494 = vadd.f32 0.0, %v1493
      %v1495 = vpop.f32.mrb[0].mxu0
      %1496 = vmatprep.mubr.bf16.mxu0 0
      %1497 = vmatmul.mubr.bf16.gmra.mrb[0].mxu0 %v1334
      %v1498 = vpop.f32.mrb[0].mxu0
      %v1499 = vadd.f32 0.0, %v1498
      %v1500 = vpop.f32.mrb[0].mxu0
      %v1501 = vpop.f32.mrb[0].mxu0
      %v1502 = vadd.f32 0.0, %v1501
      %v1503 = vpop.f32.mrb[0].mxu0
      %1504 = vmatprep.mubr.bf16.mxu0 0
      %1505 = vmatmul.mubr.bf16.gmra.mrb[0].mxu0 %v1335
      %v1506 = vpop.f32.mrb[0].mxu0
      %v1507 = vadd.f32 0.0, %v1506
      %v1508 = vpop.f32.mrb[0].mxu0
      %v1509 = vpop.f32.mrb[0].mxu0
      %v1510 = vadd.f32 0.0, %v1509
      %v1511 = vpop.f32.mrb[0].mxu0
      %1512 = vmatprep.mubr.bf16.mxu0 0
      %1513 = vmatmul.mubr.bf16.gmra.mrb[0].mxu0 %v1336
      %v1514 = vpop.f32.mrb[0].mxu0
      %v1515 = vadd.f32 0.0, %v1514
      %v1516 = vpop.f32.mrb[0].mxu0
      %v1517 = vpop.f32.mrb[0].mxu0
      %v1518 = vadd.f32 0.0, %v1517
      %v1519 = vpop.f32.mrb[0].mxu0
      %1520 = vmatprep.mubr.bf16.mxu0 0
      %1521 = vmatmul.mubr.bf16.gmra.mrb[0].mxu0 %v1337
      %v1522 = vpop.f32.mrb[0].mxu0
      %v1523 = vadd.f32 0.0, %v1522
      %v1524 = vpop.f32.mrb[0].mxu0
      %v1525 = vpop.f32.mrb[0].mxu0
      %v1526 = vadd.f32 0.0, %v1525
      %v1527 = vpop.f32.mrb[0].mxu0
      %1528 = vmatprep.mubr.bf16.mxu0 0
      %1529 = vmatmul.mubr.bf16.gmra.mrb[0].mxu0 %v1338
      %v1530 = vpop.f32.mrb[0].mxu0
      %v1531 = vadd.f32 0.0, %v1530
      %v1532 = vpop.f32.mrb[0].mxu0
      %v1533 = vpop.f32.mrb[0].mxu0
      %v1534 = vadd.f32 0.0, %v1533
      %v1535 = vpop.f32.mrb[0].mxu0
      %1536 = vmatprep.mubr.bf16.mxu0 0
      %1537 = vmatmul.mubr.bf16.gmra.mrb[0].mxu0 %v1339
      %v1538 = vpop.f32.mrb[0].mxu0
      %v1539 = vadd.f32 0.0, %v1538
      %v1540 = vpop.f32.mrb[0].mxu0
      %v1541 = vpop.f32.mrb[0].mxu0
      %v1542 = vadd.f32 0.0, %v1541
      %v1543 = vpop.f32.mrb[0].mxu0
      %1544 = vmatprep.mubr.bf16.mxu0 0
      %1545 = vmatmul.mubr.bf16.gmra.mrb[0].mxu0 %v1340
      %v1546 = vpop.f32.mrb[0].mxu0
      %v1547 = vadd.f32 0.0, %v1546
      %v1548 = vpop.f32.mrb[0].mxu0
      %v1549 = vpop.f32.mrb[0].mxu0
      %v1550 = vadd.f32 0.0, %v1549
      %v1551 = vpop.f32.mrb[0].mxu0
      %1552 = vmatprep.mubr.bf16.mxu0 0
      %1553 = vmatmul.mubr.bf16.gmra.mrb[0].mxu0 %v1341
      %v1554 = vpop.f32.mrb[0].mxu0
      %v1555 = vadd.f32 0.0, %v1554
      %v1556 = vpop.f32.mrb[0].mxu0
      %v1557 = vpop.f32.mrb[0].mxu0
      %v1558 = vadd.f32 0.0, %v1557
      %v1559 = vpop.f32.mrb[0].mxu0
      %1560 = vmatprep.mubr.bf16.mxu0 0
      %1561 = vmatmul.mubr.bf16.gmra.mrb[0].mxu0 %v1342
      %v1562 = vpop.f32.mrb[0].mxu0
      %v1563 = vadd.f32 0.0, %v1562
      %v1564 = vpop.f32.mrb[0].mxu0
      %v1565 = vpop.f32.mrb[0].mxu0
      %v1566 = vadd.f32 0.0, %v1565
      %v1567 = vpop.f32.mrb[0].mxu0
      %1568 = vdwg.mxu0
      %v1569 = vadd.f32 %v1263, %v1443
      %v1570 = vadd.f32 %v1264, %v1446
      %v1571 = vadd.f32 %v1265, %v1451
      %v1572 = vadd.f32 %v1266, %v1454
      %v1573 = vadd.f32 %v1267, %v1459
      %v1574 = vadd.f32 %v1268, %v1462
      %v1575 = vadd.f32 %v1269, %v1467
      %v1576 = vadd.f32 %v1270, %v1470
      %v1577 = vadd.f32 %v1271, %v1475
      %v1578 = vadd.f32 %v1272, %v1478
      %v1579 = vadd.f32 %v1273, %v1483
      %v1580 = vadd.f32 %v1274, %v1486
      %v1581 = vadd.f32 %v1275, %v1491
      %v1582 = vadd.f32 %v1276, %v1494
      %v1583 = vadd.f32 %v1277, %v1499
      %v1584 = vadd.f32 %v1278, %v1502
      %v1585 = vadd.f32 %v1279, %v1507
      %v1586 = vadd.f32 %v1280, %v1510
      %v1587 = vadd.f32 %v1281, %v1515
      %v1588 = vadd.f32 %v1282, %v1518
      %v1589 = vadd.f32 %v1283, %v1523
      %v1590 = vadd.f32 %v1284, %v1526
      %v1591 = vadd.f32 %v1285, %v1531
      %v1592 = vadd.f32 %v1286, %v1534
      %v1593 = vadd.f32 %v1287, %v1539
      %v1594 = vadd.f32 %v1288, %v1542
      %v1595 = vadd.f32 %v1289, %v1547
      %v1596 = vadd.f32 %v1290, %v1550
      %v1597 = vadd.f32 %v1291, %v1555
      %v1598 = vadd.f32 %v1292, %v1558
      %v1599 = vadd.f32 %v1293, %v1563
      %v1600 = vadd.f32 %v1294, %v1566
      %v1601 = vld [vmem:[%s409 + $0x1] sm:$0xff]
      %v1602 = vld [vmem:[%s409 + $0x9] sm:$0xff]
      %v1603 = vld [vmem:[%s409 + $0x19] sm:$0xff]
      %v1604 = vld [vmem:[%s409 + $0x21] sm:$0xff]
      %v1605 = vld [vmem:[%s409 + $0x31] sm:$0xff]
      %v1606 = vld [vmem:[%s409 + $0x39] sm:$0xff]
      %v1607 = vld [vmem:[%s409 + $0x49] sm:$0xff]
      %v1608 = vld [vmem:[%s409 + $0x51] sm:$0xff]
      %v1609 = vld [vmem:[%s409 + $0x61] sm:$0xff]
      %v1610 = vld [vmem:[%s409 + $0x69] sm:$0xff]
      %v1611 = vld [vmem:[%s409 + $0x79] sm:$0xff]
      %v1612 = vld [vmem:[%s409 + $0x81] sm:$0xff]
      %v1613 = vld [vmem:[%s409 + $0x91] sm:$0xff]
      %v1614 = vld [vmem:[%s409 + $0x99] sm:$0xff]
      %v1615 = vld [vmem:[%s409 + $0xa9] sm:$0xff]
      %v1616 = vld [vmem:[%s409 + $0xb1] sm:$0xff]
      %v1617 = vld [vmem:[%s409 + $0xc1] sm:$0xff]
      %v1618 = vld [vmem:[%s409 + $0xc9] sm:$0xff]
      %v1619 = vld [vmem:[%s409 + $0xd9] sm:$0xff]
      %v1620 = vld [vmem:[%s409 + $0xe1] sm:$0xff]
      %v1621 = vld [vmem:[%s409 + $0xf1] sm:$0xff]
      %v1622 = vld [vmem:[%s409 + $0xf9] sm:$0xff]
      %v1623 = vld [vmem:[%s409 + $0x109] sm:$0xff]
      %v1624 = vld [vmem:[%s409 + $0x111] sm:$0xff]
      %v1625 = vld [vmem:[%s409 + $0x121] sm:$0xff]
      %v1626 = vld [vmem:[%s409 + $0x129] sm:$0xff]
      %v1627 = vld [vmem:[%s409 + $0x139] sm:$0xff]
      %v1628 = vld [vmem:[%s409 + $0x141] sm:$0xff]
      %v1629 = vld [vmem:[%s409 + $0x151] sm:$0xff]
      %v1630 = vld [vmem:[%s409 + $0x159] sm:$0xff]
      %v1631 = vld [vmem:[%s409 + $0x169] sm:$0xff]
      %v1632 = vld [vmem:[%s409 + $0x171] sm:$0xff]
      %v1633 = vpack.c.bf16 %v1602, %v1601
      %v1634 = vpack.c.bf16 %v1604, %v1603
      %v1635 = vpack.c.bf16 %v1606, %v1605
      %v1636 = vpack.c.bf16 %v1608, %v1607
      %v1637 = vpack.c.bf16 %v1610, %v1609
      %v1638 = vpack.c.bf16 %v1612, %v1611
      %v1639 = vpack.c.bf16 %v1614, %v1613
      %v1640 = vpack.c.bf16 %v1616, %v1615
      %v1641 = vpack.c.bf16 %v1618, %v1617
      %v1642 = vpack.c.bf16 %v1620, %v1619
      %v1643 = vpack.c.bf16 %v1622, %v1621
      %v1644 = vpack.c.bf16 %v1624, %v1623
      %v1645 = vpack.c.bf16 %v1626, %v1625
      %v1646 = vpack.c.bf16 %v1628, %v1627
      %v1647 = vpack.c.bf16 %v1630, %v1629
      %v1648 = vpack.c.bf16 %v1632, %v1631
      %s1649 = scalar_lea.vmem %s1, 256
      %v1650 = vld [vmem:[%s1649] sm:$0xf]
      %v1651 = vld [vmem:[%s1649 + $0x4] sm:$0xf]
      %v1652 = vld [vmem:[%s1649 + $0x8] sm:$0xf]
      %v1653 = vld [vmem:[%s1649 + $0xc] sm:$0xf]
      %v1654 = vld [vmem:[%s1649 + $0x10] sm:$0xf]
      %v1655 = vld [vmem:[%s1649 + $0x14] sm:$0xf]
      %v1656 = vld [vmem:[%s1649 + $0x18] sm:$0xf]
      %v1657 = vld [vmem:[%s1649 + $0x1c] sm:$0xf]
      %v1658 = vld [vmem:[%s1649 + $0x20] sm:$0xf]
      %v1659 = vld [vmem:[%s1649 + $0x24] sm:$0xf]
      %v1660 = vld [vmem:[%s1649 + $0x28] sm:$0xf]
      %v1661 = vld [vmem:[%s1649 + $0x2c] sm:$0xf]
      %v1662 = vld [vmem:[%s1649 + $0x30] sm:$0xf]
      %v1663 = vld [vmem:[%s1649 + $0x34] sm:$0xf]
      %v1664 = vld [vmem:[%s1649 + $0x38] sm:$0xf]
      %v1665 = vld [vmem:[%s1649 + $0x3c] sm:$0xf]
      %v1682 = vunpack.c.l.b16 %v1650
      %v1683 = vunpack.c.l.b16 %v1651
      %v1684 = vunpack.c.l.b16 %v1652
      %v1685 = vunpack.c.l.b16 %v1653
      %v1686 = vunpack.c.l.b16 %v1654
      %v1687 = vunpack.c.l.b16 %v1655
      %v1688 = vunpack.c.l.b16 %v1656
      %v1689 = vunpack.c.l.b16 %v1657
      %v1690 = vunpack.c.l.b16 %v1658
      %v1691 = vunpack.c.l.b16 %v1659
      %v1692 = vunpack.c.l.b16 %v1660
      %v1693 = vunpack.c.l.b16 %v1661
      %v1694 = vunpack.c.l.b16 %v1662
      %v1695 = vunpack.c.l.b16 %v1663
      %v1696 = vunpack.c.l.b16 %v1664
      %v1697 = vunpack.c.l.b16 %v1665
      %v1698 = vpack.c.b16 %v1683, %v1682
      %v1699 = vpack.c.b16 %v1685, %v1684
      %v1700 = vpack.c.b16 %v1687, %v1686
      %v1701 = vpack.c.b16 %v1689, %v1688
      %v1702 = vpack.c.b16 %v1691, %v1690
      %v1703 = vpack.c.b16 %v1693, %v1692
      %v1704 = vpack.c.b16 %v1695, %v1694
      %v1705 = vpack.c.b16 %v1697, %v1696
      %1714 = vmatprep.subr.bf16.mxu0 0
      %1715 = vmatpush1.bf16.msra.mxu0 %v1698
      %1716 = vmatprep.subr.bf16.mxu0 0
      %1717 = vmatpush1.bf16.msra.mxu0 %v1699
      %1718 = vmatprep.subr.bf16.mxu0 0
      %1719 = vmatpush1.bf16.msra.mxu0 %v1700
      %1720 = vmatprep.subr.bf16.mxu0 0
      %1721 = vmatpush1.bf16.msra.mxu0 %v1701
      %1722 = vmatprep.subr.bf16.mxu0 0
      %1723 = vmatpush1.bf16.msra.mxu0 %v1702
      %1724 = vmatprep.subr.bf16.mxu0 0
      %1725 = vmatpush1.bf16.msra.mxu0 %v1703
      %1726 = vmatprep.subr.bf16.mxu0 0
      %1727 = vmatpush1.bf16.msra.mxu0 %v1704
      %1728 = vmatprep.subr.bf16.mxu0 0
      %1729 = vmatpush1.bf16.msra.mxu0 %v1705
      %1730 = vmatprep.subr.bf16.mxu0 0
      %1731 = vmatpush1.bf16.msra.mxu0 0
      %1732 = vmatprep.subr.bf16.mxu0 0
      %1733 = vmatpush1.bf16.msra.mxu0 0
      %1734 = vmatprep.subr.bf16.mxu0 0
      %1735 = vmatpush1.bf16.msra.mxu0 0
      %1736 = vmatprep.subr.bf16.mxu0 0
      %1737 = vmatpush1.bf16.msra.mxu0 0
      %1738 = vmatprep.subr.bf16.mxu0 0
      %1739 = vmatpush1.bf16.msra.mxu0 0
      %1740 = vmatprep.subr.bf16.mxu0 0
      %1741 = vmatpush1.bf16.msra.mxu0 0
      %1742 = vmatprep.subr.bf16.mxu0 0
      %1743 = vmatpush1.bf16.msra.mxu0 0
      %1744 = vmatprep.subr.bf16.mxu0 0
      %1745 = vmatpush1.bf16.msra.mxu0 0
      %1746 = vmatprep.mubr.bf16.mxu0 0
      %1747 = vmatmul.mubr.bf16.gmra.mrb[0].mxu0 %v1633
      %v1748 = vpop.f32.mrb[0].mxu0
      %v1749 = vadd.f32 0.0, %v1748
      %v1750 = vpop.f32.mrb[0].mxu0
      %v1751 = vpop.f32.mrb[0].mxu0
      %v1752 = vadd.f32 0.0, %v1751
      %v1753 = vpop.f32.mrb[0].mxu0
      %1754 = vmatprep.mubr.bf16.mxu0 0
      %1755 = vmatmul.mubr.bf16.gmra.mrb[0].mxu0 %v1634
      %v1756 = vpop.f32.mrb[0].mxu0
      %v1757 = vadd.f32 0.0, %v1756
      %v1758 = vpop.f32.mrb[0].mxu0
      %v1759 = vpop.f32.mrb[0].mxu0
      %v1760 = vadd.f32 0.0, %v1759
      %v1761 = vpop.f32.mrb[0].mxu0
      %1762 = vmatprep.mubr.bf16.mxu0 0
      %1763 = vmatmul.mubr.bf16.gmra.mrb[0].mxu0 %v1635
      %v1764 = vpop.f32.mrb[0].mxu0
      %v1765 = vadd.f32 0.0, %v1764
      %v1766 = vpop.f32.mrb[0].mxu0
      %v1767 = vpop.f32.mrb[0].mxu0
      %v1768 = vadd.f32 0.0, %v1767
      %v1769 = vpop.f32.mrb[0].mxu0
      %1770 = vmatprep.mubr.bf16.mxu0 0
      %1771 = vmatmul.mubr.bf16.gmra.mrb[0].mxu0 %v1636
      %v1772 = vpop.f32.mrb[0].mxu0
      %v1773 = vadd.f32 0.0, %v1772
      %v1774 = vpop.f32.mrb[0].mxu0
      %v1775 = vpop.f32.mrb[0].mxu0
      %v1776 = vadd.f32 0.0, %v1775
      %v1777 = vpop.f32.mrb[0].mxu0
      %1778 = vmatprep.mubr.bf16.mxu0 0
      %1779 = vmatmul.mubr.bf16.gmra.mrb[0].mxu0 %v1637
      %v1780 = vpop.f32.mrb[0].mxu0
      %v1781 = vadd.f32 0.0, %v1780
      %v1782 = vpop.f32.mrb[0].mxu0
      %v1783 = vpop.f32.mrb[0].mxu0
      %v1784 = vadd.f32 0.0, %v1783
      %v1785 = vpop.f32.mrb[0].mxu0
      %1786 = vmatprep.mubr.bf16.mxu0 0
      %1787 = vmatmul.mubr.bf16.gmra.mrb[0].mxu0 %v1638
      %v1788 = vpop.f32.mrb[0].mxu0
      %v1789 = vadd.f32 0.0, %v1788
      %v1790 = vpop.f32.mrb[0].mxu0
      %v1791 = vpop.f32.mrb[0].mxu0
      %v1792 = vadd.f32 0.0, %v1791
      %v1793 = vpop.f32.mrb[0].mxu0
      %1794 = vmatprep.mubr.bf16.mxu0 0
      %1795 = vmatmul.mubr.bf16.gmra.mrb[0].mxu0 %v1639
      %v1796 = vpop.f32.mrb[0].mxu0
      %v1797 = vadd.f32 0.0, %v1796
      %v1798 = vpop.f32.mrb[0].mxu0
      %v1799 = vpop.f32.mrb[0].mxu0
      %v1800 = vadd.f32 0.0, %v1799
      %v1801 = vpop.f32.mrb[0].mxu0
      %1802 = vmatprep.mubr.bf16.mxu0 0
      %1803 = vmatmul.mubr.bf16.gmra.mrb[0].mxu0 %v1640
      %v1804 = vpop.f32.mrb[0].mxu0
      %v1805 = vadd.f32 0.0, %v1804
      %v1806 = vpop.f32.mrb[0].mxu0
      %v1807 = vpop.f32.mrb[0].mxu0
      %v1808 = vadd.f32 0.0, %v1807
      %v1809 = vpop.f32.mrb[0].mxu0
      %1810 = vmatprep.mubr.bf16.mxu0 0
      %1811 = vmatmul.mubr.bf16.gmra.mrb[0].mxu0 %v1641
      %v1812 = vpop.f32.mrb[0].mxu0
      %v1813 = vadd.f32 0.0, %v1812
      %v1814 = vpop.f32.mrb[0].mxu0
      %v1815 = vpop.f32.mrb[0].mxu0
      %v1816 = vadd.f32 0.0, %v1815
      %v1817 = vpop.f32.mrb[0].mxu0
      %1818 = vmatprep.mubr.bf16.mxu0 0
      %1819 = vmatmul.mubr.bf16.gmra.mrb[0].mxu0 %v1642
      %v1820 = vpop.f32.mrb[0].mxu0
      %v1821 = vadd.f32 0.0, %v1820
      %v1822 = vpop.f32.mrb[0].mxu0
      %v1823 = vpop.f32.mrb[0].mxu0
      %v1824 = vadd.f32 0.0, %v1823
      %v1825 = vpop.f32.mrb[0].mxu0
      %1826 = vmatprep.mubr.bf16.mxu0 0
      %1827 = vmatmul.mubr.bf16.gmra.mrb[0].mxu0 %v1643
      %v1828 = vpop.f32.mrb[0].mxu0
      %v1829 = vadd.f32 0.0, %v1828
      %v1830 = vpop.f32.mrb[0].mxu0
      %v1831 = vpop.f32.mrb[0].mxu0
      %v1832 = vadd.f32 0.0, %v1831
      %v1833 = vpop.f32.mrb[0].mxu0
      %1834 = vmatprep.mubr.bf16.mxu0 0
      %1835 = vmatmul.mubr.bf16.gmra.mrb[0].mxu0 %v1644
      %v1836 = vpop.f32.mrb[0].mxu0
      %v1837 = vadd.f32 0.0, %v1836
      %v1838 = vpop.f32.mrb[0].mxu0
      %v1839 = vpop.f32.mrb[0].mxu0
      %v1840 = vadd.f32 0.0, %v1839
      %v1841 = vpop.f32.mrb[0].mxu0
      %1842 = vmatprep.mubr.bf16.mxu0 0
      %1843 = vmatmul.mubr.bf16.gmra.mrb[0].mxu0 %v1645
      %v1844 = vpop.f32.mrb[0].mxu0
      %v1845 = vadd.f32 0.0, %v1844
      %v1846 = vpop.f32.mrb[0].mxu0
      %v1847 = vpop.f32.mrb[0].mxu0
      %v1848 = vadd.f32 0.0, %v1847
      %v1849 = vpop.f32.mrb[0].mxu0
      %1850 = vmatprep.mubr.bf16.mxu0 0
      %1851 = vmatmul.mubr.bf16.gmra.mrb[0].mxu0 %v1646
      %v1852 = vpop.f32.mrb[0].mxu0
      %v1853 = vadd.f32 0.0, %v1852
      %v1854 = vpop.f32.mrb[0].mxu0
      %v1855 = vpop.f32.mrb[0].mxu0
      %v1856 = vadd.f32 0.0, %v1855
      %v1857 = vpop.f32.mrb[0].mxu0
      %1858 = vmatprep.mubr.bf16.mxu0 0
      %1859 = vmatmul.mubr.bf16.gmra.mrb[0].mxu0 %v1647
      %v1860 = vpop.f32.mrb[0].mxu0
      %v1861 = vadd.f32 0.0, %v1860
      %v1862 = vpop.f32.mrb[0].mxu0
      %v1863 = vpop.f32.mrb[0].mxu0
      %v1864 = vadd.f32 0.0, %v1863
      %v1865 = vpop.f32.mrb[0].mxu0
      %1866 = vmatprep.mubr.bf16.mxu0 0
      %1867 = vmatmul.mubr.bf16.gmra.mrb[0].mxu0 %v1648
      %v1868 = vpop.f32.mrb[0].mxu0
      %v1869 = vadd.f32 0.0, %v1868
      %v1870 = vpop.f32.mrb[0].mxu0
      %v1871 = vpop.f32.mrb[0].mxu0
      %v1872 = vadd.f32 0.0, %v1871
      %v1873 = vpop.f32.mrb[0].mxu0
      %1874 = vdwg.mxu0
      %v1875 = vadd.f32 %v1569, %v1749
      %v1876 = vadd.f32 %v1570, %v1752
      %v1877 = vadd.f32 %v1571, %v1757
      %v1878 = vadd.f32 %v1572, %v1760
      %v1879 = vadd.f32 %v1573, %v1765
      %v1880 = vadd.f32 %v1574, %v1768
      %v1881 = vadd.f32 %v1575, %v1773
      %v1882 = vadd.f32 %v1576, %v1776
      %v1883 = vadd.f32 %v1577, %v1781
      %v1884 = vadd.f32 %v1578, %v1784
      %v1885 = vadd.f32 %v1579, %v1789
      %v1886 = vadd.f32 %v1580, %v1792
      %v1887 = vadd.f32 %v1581, %v1797
      %v1888 = vadd.f32 %v1582, %v1800
      %v1889 = vadd.f32 %v1583, %v1805
      %v1890 = vadd.f32 %v1584, %v1808
      %v1891 = vadd.f32 %v1585, %v1813
      %v1892 = vadd.f32 %v1586, %v1816
      %v1893 = vadd.f32 %v1587, %v1821
      %v1894 = vadd.f32 %v1588, %v1824
      %v1895 = vadd.f32 %v1589, %v1829
      %v1896 = vadd.f32 %v1590, %v1832
      %v1897 = vadd.f32 %v1591, %v1837
      %v1898 = vadd.f32 %v1592, %v1840
      %v1899 = vadd.f32 %v1593, %v1845
      %v1900 = vadd.f32 %v1594, %v1848
      %v1901 = vadd.f32 %v1595, %v1853
      %v1902 = vadd.f32 %v1596, %v1856
      %v1903 = vadd.f32 %v1597, %v1861
      %v1904 = vadd.f32 %v1598, %v1864
      %v1905 = vadd.f32 %v1599, %v1869
      %v1906 = vadd.f32 %v1600, %v1872
      %v1907 = vld [vmem:[%s409 + $0x2] sm:$0xff]
      %v1908 = vld [vmem:[%s409 + $0xa] sm:$0xff]
      %v1909 = vld [vmem:[%s409 + $0x1a] sm:$0xff]
      %v1910 = vld [vmem:[%s409 + $0x22] sm:$0xff]
      %v1911 = vld [vmem:[%s409 + $0x32] sm:$0xff]
      %v1912 = vld [vmem:[%s409 + $0x3a] sm:$0xff]
      %v1913 = vld [vmem:[%s409 + $0x4a] sm:$0xff]
      %v1914 = vld [vmem:[%s409 + $0x52] sm:$0xff]
      %v1915 = vld [vmem:[%s409 + $0x62] sm:$0xff]
      %v1916 = vld [vmem:[%s409 + $0x6a] sm:$0xff]
      %v1917 = vld [vmem:[%s409 + $0x7a] sm:$0xff]
      %v1918 = vld [vmem:[%s409 + $0x82] sm:$0xff]
      %v1919 = vld [vmem:[%s409 + $0x92] sm:$0xff]
      %v1920 = vld [vmem:[%s409 + $0x9a] sm:$0xff]
      %v1921 = vld [vmem:[%s409 + $0xaa] sm:$0xff]
      %v1922 = vld [vmem:[%s409 + $0xb2] sm:$0xff]
      %v1923 = vld [vmem:[%s409 + $0xc2] sm:$0xff]
      %v1924 = vld [vmem:[%s409 + $0xca] sm:$0xff]
      %v1925 = vld [vmem:[%s409 + $0xda] sm:$0xff]
      %v1926 = vld [vmem:[%s409 + $0xe2] sm:$0xff]
      %v1927 = vld [vmem:[%s409 + $0xf2] sm:$0xff]
      %v1928 = vld [vmem:[%s409 + $0xfa] sm:$0xff]
      %v1929 = vld [vmem:[%s409 + $0x10a] sm:$0xff]
      %v1930 = vld [vmem:[%s409 + $0x112] sm:$0xff]
      %v1931 = vld [vmem:[%s409 + $0x122] sm:$0xff]
      %v1932 = vld [vmem:[%s409 + $0x12a] sm:$0xff]
      %v1933 = vld [vmem:[%s409 + $0x13a] sm:$0xff]
      %v1934 = vld [vmem:[%s409 + $0x142] sm:$0xff]
      %v1935 = vld [vmem:[%s409 + $0x152] sm:$0xff]
      %v1936 = vld [vmem:[%s409 + $0x15a] sm:$0xff]
      %v1937 = vld [vmem:[%s409 + $0x16a] sm:$0xff]
      %v1938 = vld [vmem:[%s409 + $0x172] sm:$0xff]
      %v1939 = vpack.c.bf16 %v1908, %v1907
      %v1940 = vpack.c.bf16 %v1910, %v1909
      %v1941 = vpack.c.bf16 %v1912, %v1911
      %v1942 = vpack.c.bf16 %v1914, %v1913
      %v1943 = vpack.c.bf16 %v1916, %v1915
      %v1944 = vpack.c.bf16 %v1918, %v1917
      %v1945 = vpack.c.bf16 %v1920, %v1919
      %v1946 = vpack.c.bf16 %v1922, %v1921
      %v1947 = vpack.c.bf16 %v1924, %v1923
      %v1948 = vpack.c.bf16 %v1926, %v1925
      %v1949 = vpack.c.bf16 %v1928, %v1927
      %v1950 = vpack.c.bf16 %v1930, %v1929
      %v1951 = vpack.c.bf16 %v1932, %v1931
      %v1952 = vpack.c.bf16 %v1934, %v1933
      %v1953 = vpack.c.bf16 %v1936, %v1935
      %v1954 = vpack.c.bf16 %v1938, %v1937
      %s1955 = scalar_lea.vmem %s1, 320
      %v1956 = vld [vmem:[%s1955] sm:$0xf]
      %v1957 = vld [vmem:[%s1955 + $0x4] sm:$0xf]
      %v1958 = vld [vmem:[%s1955 + $0x8] sm:$0xf]
      %v1959 = vld [vmem:[%s1955 + $0xc] sm:$0xf]
      %v1960 = vld [vmem:[%s1955 + $0x10] sm:$0xf]
      %v1961 = vld [vmem:[%s1955 + $0x14] sm:$0xf]
      %v1962 = vld [vmem:[%s1955 + $0x18] sm:$0xf]
      %v1963 = vld [vmem:[%s1955 + $0x1c] sm:$0xf]
      %v1964 = vld [vmem:[%s1955 + $0x20] sm:$0xf]
      %v1965 = vld [vmem:[%s1955 + $0x24] sm:$0xf]
      %v1966 = vld [vmem:[%s1955 + $0x28] sm:$0xf]
      %v1967 = vld [vmem:[%s1955 + $0x2c] sm:$0xf]
      %v1968 = vld [vmem:[%s1955 + $0x30] sm:$0xf]
      %v1969 = vld [vmem:[%s1955 + $0x34] sm:$0xf]
      %v1970 = vld [vmem:[%s1955 + $0x38] sm:$0xf]
      %v1971 = vld [vmem:[%s1955 + $0x3c] sm:$0xf]
      %v1988 = vunpack.c.l.b16 %v1956
      %v1989 = vunpack.c.l.b16 %v1957
      %v1990 = vunpack.c.l.b16 %v1958
      %v1991 = vunpack.c.l.b16 %v1959
      %v1992 = vunpack.c.l.b16 %v1960
      %v1993 = vunpack.c.l.b16 %v1961
      %v1994 = vunpack.c.l.b16 %v1962
      %v1995 = vunpack.c.l.b16 %v1963
      %v1996 = vunpack.c.l.b16 %v1964
      %v1997 = vunpack.c.l.b16 %v1965
      %v1998 = vunpack.c.l.b16 %v1966
      %v1999 = vunpack.c.l.b16 %v1967
      %v2000 = vunpack.c.l.b16 %v1968
      %v2001 = vunpack.c.l.b16 %v1969
      %v2002 = vunpack.c.l.b16 %v1970
      %v2003 = vunpack.c.l.b16 %v1971
      %v2004 = vpack.c.b16 %v1989, %v1988
      %v2005 = vpack.c.b16 %v1991, %v1990
      %v2006 = vpack.c.b16 %v1993, %v1992
      %v2007 = vpack.c.b16 %v1995, %v1994
      %v2008 = vpack.c.b16 %v1997, %v1996
      %v2009 = vpack.c.b16 %v1999, %v1998
      %v2010 = vpack.c.b16 %v2001, %v2000
      %v2011 = vpack.c.b16 %v2003, %v2002
      %2020 = vmatprep.subr.bf16.mxu0 0
      %2021 = vmatpush1.bf16.msra.mxu0 %v2004
      %2022 = vmatprep.subr.bf16.mxu0 0
      %2023 = vmatpush1.bf16.msra.mxu0 %v2005
      %2024 = vmatprep.subr.bf16.mxu0 0
      %2025 = vmatpush1.bf16.msra.mxu0 %v2006
      %2026 = vmatprep.subr.bf16.mxu0 0
      %2027 = vmatpush1.bf16.msra.mxu0 %v2007
      %2028 = vmatprep.subr.bf16.mxu0 0
      %2029 = vmatpush1.bf16.msra.mxu0 %v2008
      %2030 = vmatprep.subr.bf16.mxu0 0
      %2031 = vmatpush1.bf16.msra.mxu0 %v2009
      %2032 = vmatprep.subr.bf16.mxu0 0
      %2033 = vmatpush1.bf16.msra.mxu0 %v2010
      %2034 = vmatprep.subr.bf16.mxu0 0
      %2035 = vmatpush1.bf16.msra.mxu0 %v2011
      %2036 = vmatprep.subr.bf16.mxu0 0
      %2037 = vmatpush1.bf16.msra.mxu0 0
      %2038 = vmatprep.subr.bf16.mxu0 0
      %2039 = vmatpush1.bf16.msra.mxu0 0
      %2040 = vmatprep.subr.bf16.mxu0 0
      %2041 = vmatpush1.bf16.msra.mxu0 0
      %2042 = vmatprep.subr.bf16.mxu0 0
      %2043 = vmatpush1.bf16.msra.mxu0 0
      %2044 = vmatprep.subr.bf16.mxu0 0
      %2045 = vmatpush1.bf16.msra.mxu0 0
      %2046 = vmatprep.subr.bf16.mxu0 0
      %2047 = vmatpush1.bf16.msra.mxu0 0
      %2048 = vmatprep.subr.bf16.mxu0 0
      %2049 = vmatpush1.bf16.msra.mxu0 0
      %2050 = vmatprep.subr.bf16.mxu0 0
      %2051 = vmatpush1.bf16.msra.mxu0 0
      %2052 = vmatprep.mubr.bf16.mxu0 0
      %2053 = vmatmul.mubr.bf16.gmra.mrb[0].mxu0 %v1939
      %v2054 = vpop.f32.mrb[0].mxu0
      %v2055 = vadd.f32 0.0, %v2054
      %v2056 = vpop.f32.mrb[0].mxu0
      %v2057 = vpop.f32.mrb[0].mxu0
      %v2058 = vadd.f32 0.0, %v2057
      %v2059 = vpop.f32.mrb[0].mxu0
      %2060 = vmatprep.mubr.bf16.mxu0 0
      %2061 = vmatmul.mubr.bf16.gmra.mrb[0].mxu0 %v1940
      %v2062 = vpop.f32.mrb[0].mxu0
      %v2063 = vadd.f32 0.0, %v2062
      %v2064 = vpop.f32.mrb[0].mxu0
      %v2065 = vpop.f32.mrb[0].mxu0
      %v2066 = vadd.f32 0.0, %v2065
      %v2067 = vpop.f32.mrb[0].mxu0
      %2068 = vmatprep.mubr.bf16.mxu0 0
      %2069 = vmatmul.mubr.bf16.gmra.mrb[0].mxu0 %v1941
      %v2070 = vpop.f32.mrb[0].mxu0
      %v2071 = vadd.f32 0.0, %v2070
      %v2072 = vpop.f32.mrb[0].mxu0
      %v2073 = vpop.f32.mrb[0].mxu0
      %v2074 = vadd.f32 0.0, %v2073
      %v2075 = vpop.f32.mrb[0].mxu0
      %2076 = vmatprep.mubr.bf16.mxu0 0
      %2077 = vmatmul.mubr.bf16.gmra.mrb[0].mxu0 %v1942
      %v2078 = vpop.f32.mrb[0].mxu0
      %v2079 = vadd.f32 0.0, %v2078
      %v2080 = vpop.f32.mrb[0].mxu0
      %v2081 = vpop.f32.mrb[0].mxu0
      %v2082 = vadd.f32 0.0, %v2081
      %v2083 = vpop.f32.mrb[0].mxu0
      %2084 = vmatprep.mubr.bf16.mxu0 0
      %2085 = vmatmul.mubr.bf16.gmra.mrb[0].mxu0 %v1943
      %v2086 = vpop.f32.mrb[0].mxu0
      %v2087 = vadd.f32 0.0, %v2086
      %v2088 = vpop.f32.mrb[0].mxu0
      %v2089 = vpop.f32.mrb[0].mxu0
      %v2090 = vadd.f32 0.0, %v2089
      %v2091 = vpop.f32.mrb[0].mxu0
      %2092 = vmatprep.mubr.bf16.mxu0 0
      %2093 = vmatmul.mubr.bf16.gmra.mrb[0].mxu0 %v1944
      %v2094 = vpop.f32.mrb[0].mxu0
      %v2095 = vadd.f32 0.0, %v2094
      %v2096 = vpop.f32.mrb[0].mxu0
      %v2097 = vpop.f32.mrb[0].mxu0
      %v2098 = vadd.f32 0.0, %v2097
      %v2099 = vpop.f32.mrb[0].mxu0
      %2100 = vmatprep.mubr.bf16.mxu0 0
      %2101 = vmatmul.mubr.bf16.gmra.mrb[0].mxu0 %v1945
      %v2102 = vpop.f32.mrb[0].mxu0
      %v2103 = vadd.f32 0.0, %v2102
      %v2104 = vpop.f32.mrb[0].mxu0
      %v2105 = vpop.f32.mrb[0].mxu0
      %v2106 = vadd.f32 0.0, %v2105
      %v2107 = vpop.f32.mrb[0].mxu0
      %2108 = vmatprep.mubr.bf16.mxu0 0
      %2109 = vmatmul.mubr.bf16.gmra.mrb[0].mxu0 %v1946
      %v2110 = vpop.f32.mrb[0].mxu0
      %v2111 = vadd.f32 0.0, %v2110
      %v2112 = vpop.f32.mrb[0].mxu0
      %v2113 = vpop.f32.mrb[0].mxu0
      %v2114 = vadd.f32 0.0, %v2113
      %v2115 = vpop.f32.mrb[0].mxu0
      %2116 = vmatprep.mubr.bf16.mxu0 0
      %2117 = vmatmul.mubr.bf16.gmra.mrb[0].mxu0 %v1947
      %v2118 = vpop.f32.mrb[0].mxu0
      %v2119 = vadd.f32 0.0, %v2118
      %v2120 = vpop.f32.mrb[0].mxu0
      %v2121 = vpop.f32.mrb[0].mxu0
      %v2122 = vadd.f32 0.0, %v2121
      %v2123 = vpop.f32.mrb[0].mxu0
      %2124 = vmatprep.mubr.bf16.mxu0 0
      %2125 = vmatmul.mubr.bf16.gmra.mrb[0].mxu0 %v1948
      %v2126 = vpop.f32.mrb[0].mxu0
      %v2127 = vadd.f32 0.0, %v2126
      %v2128 = vpop.f32.mrb[0].mxu0
      %v2129 = vpop.f32.mrb[0].mxu0
      %v2130 = vadd.f32 0.0, %v2129
      %v2131 = vpop.f32.mrb[0].mxu0
      %2132 = vmatprep.mubr.bf16.mxu0 0
      %2133 = vmatmul.mubr.bf16.gmra.mrb[0].mxu0 %v1949
      %v2134 = vpop.f32.mrb[0].mxu0
      %v2135 = vadd.f32 0.0, %v2134
      %v2136 = vpop.f32.mrb[0].mxu0
      %v2137 = vpop.f32.mrb[0].mxu0
      %v2138 = vadd.f32 0.0, %v2137
      %v2139 = vpop.f32.mrb[0].mxu0
      %2140 = vmatprep.mubr.bf16.mxu0 0
      %2141 = vmatmul.mubr.bf16.gmra.mrb[0].mxu0 %v1950
      %v2142 = vpop.f32.mrb[0].mxu0
      %v2143 = vadd.f32 0.0, %v2142
      %v2144 = vpop.f32.mrb[0].mxu0
      %v2145 = vpop.f32.mrb[0].mxu0
      %v2146 = vadd.f32 0.0, %v2145
      %v2147 = vpop.f32.mrb[0].mxu0
      %2148 = vmatprep.mubr.bf16.mxu0 0
      %2149 = vmatmul.mubr.bf16.gmra.mrb[0].mxu0 %v1951
      %v2150 = vpop.f32.mrb[0].mxu0
      %v2151 = vadd.f32 0.0, %v2150
      %v2152 = vpop.f32.mrb[0].mxu0
      %v2153 = vpop.f32.mrb[0].mxu0
      %v2154 = vadd.f32 0.0, %v2153
      %v2155 = vpop.f32.mrb[0].mxu0
      %2156 = vmatprep.mubr.bf16.mxu0 0
      %2157 = vmatmul.mubr.bf16.gmra.mrb[0].mxu0 %v1952
      %v2158 = vpop.f32.mrb[0].mxu0
      %v2159 = vadd.f32 0.0, %v2158
      %v2160 = vpop.f32.mrb[0].mxu0
      %v2161 = vpop.f32.mrb[0].mxu0
      %v2162 = vadd.f32 0.0, %v2161
      %v2163 = vpop.f32.mrb[0].mxu0
      %2164 = vmatprep.mubr.bf16.mxu0 0
      %2165 = vmatmul.mubr.bf16.gmra.mrb[0].mxu0 %v1953
      %v2166 = vpop.f32.mrb[0].mxu0
      %v2167 = vadd.f32 0.0, %v2166
      %v2168 = vpop.f32.mrb[0].mxu0
      %v2169 = vpop.f32.mrb[0].mxu0
      %v2170 = vadd.f32 0.0, %v2169
      %v2171 = vpop.f32.mrb[0].mxu0
      %2172 = vmatprep.mubr.bf16.mxu0 0
      %2173 = vmatmul.mubr.bf16.gmra.mrb[0].mxu0 %v1954
      %v2174 = vpop.f32.mrb[0].mxu0
      %v2175 = vadd.f32 0.0, %v2174
      %v2176 = vpop.f32.mrb[0].mxu0
      %v2177 = vpop.f32.mrb[0].mxu0
      %v2178 = vadd.f32 0.0, %v2177
      %v2179 = vpop.f32.mrb[0].mxu0
      %2180 = vdwg.mxu0
      %v2181 = vadd.f32 %v1875, %v2055
      %v2182 = vadd.f32 %v1876, %v2058
      %v2183 = vadd.f32 %v1877, %v2063
      %v2184 = vadd.f32 %v1878, %v2066
      %v2185 = vadd.f32 %v1879, %v2071
      %v2186 = vadd.f32 %v1880, %v2074
      %v2187 = vadd.f32 %v1881, %v2079
      %v2188 = vadd.f32 %v1882, %v2082
      %v2189 = vadd.f32 %v1883, %v2087
      %v2190 = vadd.f32 %v1884, %v2090
      %v2191 = vadd.f32 %v1885, %v2095
      %v2192 = vadd.f32 %v1886, %v2098
      %v2193 = vadd.f32 %v1887, %v2103
      %v2194 = vadd.f32 %v1888, %v2106
      %v2195 = vadd.f32 %v1889, %v2111
      %v2196 = vadd.f32 %v1890, %v2114
      %v2197 = vadd.f32 %v1891, %v2119
      %v2198 = vadd.f32 %v1892, %v2122
      %v2199 = vadd.f32 %v1893, %v2127
      %v2200 = vadd.f32 %v1894, %v2130
      %v2201 = vadd.f32 %v1895, %v2135
      %v2202 = vadd.f32 %v1896, %v2138
      %v2203 = vadd.f32 %v1897, %v2143
      %v2204 = vadd.f32 %v1898, %v2146
      %v2205 = vadd.f32 %v1899, %v2151
      %v2206 = vadd.f32 %v1900, %v2154
      %v2207 = vadd.f32 %v1901, %v2159
      %v2208 = vadd.f32 %v1902, %v2162
      %v2209 = vadd.f32 %v1903, %v2167
      %v2210 = vadd.f32 %v1904, %v2170
      %v2211 = vadd.f32 %v1905, %v2175
      %v2212 = vadd.f32 %v1906, %v2178
      %s2213 = scalar_lea.vmem [#allocation2], 48
      %v2214 = vld [vmem:[%s2213] sm:$0xff]
      %v2215 = vld [vmem:[%s2213 + $0x8] sm:$0xff]
      %v2216 = vld [vmem:[%s2213 + $0x18] sm:$0xff]
      %v2217 = vld [vmem:[%s2213 + $0x20] sm:$0xff]
      %v2218 = vld [vmem:[%s2213 + $0x30] sm:$0xff]
      %v2219 = vld [vmem:[%s2213 + $0x38] sm:$0xff]
      %v2220 = vld [vmem:[%s2213 + $0x48] sm:$0xff]
      %v2221 = vld [vmem:[%s2213 + $0x50] sm:$0xff]
      %v2222 = vld [vmem:[%s2213 + $0x60] sm:$0xff]
      %v2223 = vld [vmem:[%s2213 + $0x68] sm:$0xff]
      %v2224 = vld [vmem:[%s2213 + $0x78] sm:$0xff]
      %v2225 = vld [vmem:[%s2213 + $0x80] sm:$0xff]
      %v2226 = vld [vmem:[%s2213 + $0x90] sm:$0xff]
      %v2227 = vld [vmem:[%s2213 + $0x98] sm:$0xff]
      %v2228 = vld [vmem:[%s2213 + $0xa8] sm:$0xff]
      %v2229 = vld [vmem:[%s2213 + $0xb0] sm:$0xff]
      %v2230 = vld [vmem:[%s2213 + $0xc0] sm:$0xff]
      %v2231 = vld [vmem:[%s2213 + $0xc8] sm:$0xff]
      %v2232 = vld [vmem:[%s2213 + $0xd8] sm:$0xff]
      %v2233 = vld [vmem:[%s2213 + $0xe0] sm:$0xff]
      %v2234 = vld [vmem:[%s2213 + $0xf0] sm:$0xff]
      %v2235 = vld [vmem:[%s2213 + $0xf8] sm:$0xff]
      %v2236 = vld [vmem:[%s2213 + $0x108] sm:$0xff]
      %v2237 = vld [vmem:[%s2213 + $0x110] sm:$0xff]
      %v2238 = vld [vmem:[%s2213 + $0x120] sm:$0xff]
      %v2239 = vld [vmem:[%s2213 + $0x128] sm:$0xff]
      %v2240 = vld [vmem:[%s2213 + $0x138] sm:$0xff]
      %v2241 = vld [vmem:[%s2213 + $0x140] sm:$0xff]
      %v2242 = vld [vmem:[%s2213 + $0x150] sm:$0xff]
      %v2243 = vld [vmem:[%s2213 + $0x158] sm:$0xff]
      %v2244 = vld [vmem:[%s2213 + $0x168] sm:$0xff]
      %v2245 = vld [vmem:[%s2213 + $0x170] sm:$0xff]
      %v2246 = vpack.c.bf16 %v2215, %v2214
      %v2247 = vpack.c.bf16 %v2217, %v2216
      %v2248 = vpack.c.bf16 %v2219, %v2218
      %v2249 = vpack.c.bf16 %v2221, %v2220
      %v2250 = vpack.c.bf16 %v2223, %v2222
      %v2251 = vpack.c.bf16 %v2225, %v2224
      %v2252 = vpack.c.bf16 %v2227, %v2226
      %v2253 = vpack.c.bf16 %v2229, %v2228
      %v2254 = vpack.c.bf16 %v2231, %v2230
      %v2255 = vpack.c.bf16 %v2233, %v2232
      %v2256 = vpack.c.bf16 %v2235, %v2234
      %v2257 = vpack.c.bf16 %v2237, %v2236
      %v2258 = vpack.c.bf16 %v2239, %v2238
      %v2259 = vpack.c.bf16 %v2241, %v2240
      %v2260 = vpack.c.bf16 %v2243, %v2242
      %v2261 = vpack.c.bf16 %v2245, %v2244
      %s2262 = scalar_lea.vmem %s1, 384
      %v2263 = vld [vmem:[%s2262] sm:$0xf]
      %v2264 = vld [vmem:[%s2262 + $0x4] sm:$0xf]
      %v2265 = vld [vmem:[%s2262 + $0x8] sm:$0xf]
      %v2266 = vld [vmem:[%s2262 + $0xc] sm:$0xf]
      %v2267 = vld [vmem:[%s2262 + $0x10] sm:$0xf]
      %v2268 = vld [vmem:[%s2262 + $0x14] sm:$0xf]
      %v2269 = vld [vmem:[%s2262 + $0x18] sm:$0xf]
      %v2270 = vld [vmem:[%s2262 + $0x1c] sm:$0xf]
      %v2271 = vld [vmem:[%s2262 + $0x20] sm:$0xf]
      %v2272 = vld [vmem:[%s2262 + $0x24] sm:$0xf]
      %v2273 = vld [vmem:[%s2262 + $0x28] sm:$0xf]
      %v2274 = vld [vmem:[%s2262 + $0x2c] sm:$0xf]
      %v2275 = vld [vmem:[%s2262 + $0x30] sm:$0xf]
      %v2276 = vld [vmem:[%s2262 + $0x34] sm:$0xf]
      %v2277 = vld [vmem:[%s2262 + $0x38] sm:$0xf]
      %v2278 = vld [vmem:[%s2262 + $0x3c] sm:$0xf]
      %v2295 = vunpack.c.l.b16 %v2263
      %v2296 = vunpack.c.l.b16 %v2264
      %v2297 = vunpack.c.l.b16 %v2265
      %v2298 = vunpack.c.l.b16 %v2266
      %v2299 = vunpack.c.l.b16 %v2267
      %v2300 = vunpack.c.l.b16 %v2268
      %v2301 = vunpack.c.l.b16 %v2269
      %v2302 = vunpack.c.l.b16 %v2270
      %v2303 = vunpack.c.l.b16 %v2271
      %v2304 = vunpack.c.l.b16 %v2272
      %v2305 = vunpack.c.l.b16 %v2273
      %v2306 = vunpack.c.l.b16 %v2274
      %v2307 = vunpack.c.l.b16 %v2275
      %v2308 = vunpack.c.l.b16 %v2276
      %v2309 = vunpack.c.l.b16 %v2277
      %v2310 = vunpack.c.l.b16 %v2278
      %v2311 = vpack.c.b16 %v2296, %v2295
      %v2312 = vpack.c.b16 %v2298, %v2297
      %v2313 = vpack.c.b16 %v2300, %v2299
      %v2314 = vpack.c.b16 %v2302, %v2301
      %v2315 = vpack.c.b16 %v2304, %v2303
      %v2316 = vpack.c.b16 %v2306, %v2305
      %v2317 = vpack.c.b16 %v2308, %v2307
      %v2318 = vpack.c.b16 %v2310, %v2309
      %2327 = vmatprep.subr.bf16.mxu0 0
      %2328 = vmatpush1.bf16.msra.mxu0 %v2311
      %2329 = vmatprep.subr.bf16.mxu0 0
      %2330 = vmatpush1.bf16.msra.mxu0 %v2312
      %2331 = vmatprep.subr.bf16.mxu0 0
      %2332 = vmatpush1.bf16.msra.mxu0 %v2313
      %2333 = vmatprep.subr.bf16.mxu0 0
      %2334 = vmatpush1.bf16.msra.mxu0 %v2314
      %2335 = vmatprep.subr.bf16.mxu0 0
      %2336 = vmatpush1.bf16.msra.mxu0 %v2315
      %2337 = vmatprep.subr.bf16.mxu0 0
      %2338 = vmatpush1.bf16.msra.mxu0 %v2316
      %2339 = vmatprep.subr.bf16.mxu0 0
      %2340 = vmatpush1.bf16.msra.mxu0 %v2317
      %2341 = vmatprep.subr.bf16.mxu0 0
      %2342 = vmatpush1.bf16.msra.mxu0 %v2318
      %2343 = vmatprep.subr.bf16.mxu0 0
      %2344 = vmatpush1.bf16.msra.mxu0 0
      %2345 = vmatprep.subr.bf16.mxu0 0
      %2346 = vmatpush1.bf16.msra.mxu0 0
      %2347 = vmatprep.subr.bf16.mxu0 0
      %2348 = vmatpush1.bf16.msra.mxu0 0
      %2349 = vmatprep.subr.bf16.mxu0 0
      %2350 = vmatpush1.bf16.msra.mxu0 0
      %2351 = vmatprep.subr.bf16.mxu0 0
      %2352 = vmatpush1.bf16.msra.mxu0 0
      %2353 = vmatprep.subr.bf16.mxu0 0
      %2354 = vmatpush1.bf16.msra.mxu0 0
      %2355 = vmatprep.subr.bf16.mxu0 0
      %2356 = vmatpush1.bf16.msra.mxu0 0
      %2357 = vmatprep.subr.bf16.mxu0 0
      %2358 = vmatpush1.bf16.msra.mxu0 0
      %2359 = vmatprep.mubr.bf16.mxu0 0
      %2360 = vmatmul.mubr.bf16.gmra.mrb[0].mxu0 %v2246
      %v2361 = vpop.f32.mrb[0].mxu0
      %v2362 = vadd.f32 0.0, %v2361
      %v2363 = vpop.f32.mrb[0].mxu0
      %v2364 = vpop.f32.mrb[0].mxu0
      %v2365 = vadd.f32 0.0, %v2364
      %v2366 = vpop.f32.mrb[0].mxu0
      %2367 = vmatprep.mubr.bf16.mxu0 0
      %2368 = vmatmul.mubr.bf16.gmra.mrb[0].mxu0 %v2247
      %v2369 = vpop.f32.mrb[0].mxu0
      %v2370 = vadd.f32 0.0, %v2369
      %v2371 = vpop.f32.mrb[0].mxu0
      %v2372 = vpop.f32.mrb[0].mxu0
      %v2373 = vadd.f32 0.0, %v2372
      %v2374 = vpop.f32.mrb[0].mxu0
      %2375 = vmatprep.mubr.bf16.mxu0 0
      %2376 = vmatmul.mubr.bf16.gmra.mrb[0].mxu0 %v2248
      %v2377 = vpop.f32.mrb[0].mxu0
      %v2378 = vadd.f32 0.0, %v2377
      %v2379 = vpop.f32.mrb[0].mxu0
      %v2380 = vpop.f32.mrb[0].mxu0
      %v2381 = vadd.f32 0.0, %v2380
      %v2382 = vpop.f32.mrb[0].mxu0
      %2383 = vmatprep.mubr.bf16.mxu0 0
      %2384 = vmatmul.mubr.bf16.gmra.mrb[0].mxu0 %v2249
      %v2385 = vpop.f32.mrb[0].mxu0
      %v2386 = vadd.f32 0.0, %v2385
      %v2387 = vpop.f32.mrb[0].mxu0
      %v2388 = vpop.f32.mrb[0].mxu0
      %v2389 = vadd.f32 0.0, %v2388
      %v2390 = vpop.f32.mrb[0].mxu0
      %2391 = vmatprep.mubr.bf16.mxu0 0
      %2392 = vmatmul.mubr.bf16.gmra.mrb[0].mxu0 %v2250
      %v2393 = vpop.f32.mrb[0].mxu0
      %v2394 = vadd.f32 0.0, %v2393
      %v2395 = vpop.f32.mrb[0].mxu0
      %v2396 = vpop.f32.mrb[0].mxu0
      %v2397 = vadd.f32 0.0, %v2396
      %v2398 = vpop.f32.mrb[0].mxu0
      %2399 = vmatprep.mubr.bf16.mxu0 0
      %2400 = vmatmul.mubr.bf16.gmra.mrb[0].mxu0 %v2251
      %v2401 = vpop.f32.mrb[0].mxu0
      %v2402 = vadd.f32 0.0, %v2401
      %v2403 = vpop.f32.mrb[0].mxu0
      %v2404 = vpop.f32.mrb[0].mxu0
      %v2405 = vadd.f32 0.0, %v2404
      %v2406 = vpop.f32.mrb[0].mxu0
      %2407 = vmatprep.mubr.bf16.mxu0 0
      %2408 = vmatmul.mubr.bf16.gmra.mrb[0].mxu0 %v2252
      %v2409 = vpop.f32.mrb[0].mxu0
      %v2410 = vadd.f32 0.0, %v2409
      %v2411 = vpop.f32.mrb[0].mxu0
      %v2412 = vpop.f32.mrb[0].mxu0
      %v2413 = vadd.f32 0.0, %v2412
      %v2414 = vpop.f32.mrb[0].mxu0
      %2415 = vmatprep.mubr.bf16.mxu0 0
      %2416 = vmatmul.mubr.bf16.gmra.mrb[0].mxu0 %v2253
      %v2417 = vpop.f32.mrb[0].mxu0
      %v2418 = vadd.f32 0.0, %v2417
      %v2419 = vpop.f32.mrb[0].mxu0
      %v2420 = vpop.f32.mrb[0].mxu0
      %v2421 = vadd.f32 0.0, %v2420
      %v2422 = vpop.f32.mrb[0].mxu0
      %2423 = vmatprep.mubr.bf16.mxu0 0
      %2424 = vmatmul.mubr.bf16.gmra.mrb[0].mxu0 %v2254
      %v2425 = vpop.f32.mrb[0].mxu0
      %v2426 = vadd.f32 0.0, %v2425
      %v2427 = vpop.f32.mrb[0].mxu0
      %v2428 = vpop.f32.mrb[0].mxu0
      %v2429 = vadd.f32 0.0, %v2428
      %v2430 = vpop.f32.mrb[0].mxu0
      %2431 = vmatprep.mubr.bf16.mxu0 0
      %2432 = vmatmul.mubr.bf16.gmra.mrb[0].mxu0 %v2255
      %v2433 = vpop.f32.mrb[0].mxu0
      %v2434 = vadd.f32 0.0, %v2433
      %v2435 = vpop.f32.mrb[0].mxu0
      %v2436 = vpop.f32.mrb[0].mxu0
      %v2437 = vadd.f32 0.0, %v2436
      %v2438 = vpop.f32.mrb[0].mxu0
      %2439 = vmatprep.mubr.bf16.mxu0 0
      %2440 = vmatmul.mubr.bf16.gmra.mrb[0].mxu0 %v2256
      %v2441 = vpop.f32.mrb[0].mxu0
      %v2442 = vadd.f32 0.0, %v2441
      %v2443 = vpop.f32.mrb[0].mxu0
      %v2444 = vpop.f32.mrb[0].mxu0
      %v2445 = vadd.f32 0.0, %v2444
      %v2446 = vpop.f32.mrb[0].mxu0
      %2447 = vmatprep.mubr.bf16.mxu0 0
      %2448 = vmatmul.mubr.bf16.gmra.mrb[0].mxu0 %v2257
      %v2449 = vpop.f32.mrb[0].mxu0
      %v2450 = vadd.f32 0.0, %v2449
      %v2451 = vpop.f32.mrb[0].mxu0
      %v2452 = vpop.f32.mrb[0].mxu0
      %v2453 = vadd.f32 0.0, %v2452
      %v2454 = vpop.f32.mrb[0].mxu0
      %2455 = vmatprep.mubr.bf16.mxu0 0
      %2456 = vmatmul.mubr.bf16.gmra.mrb[0].mxu0 %v2258
      %v2457 = vpop.f32.mrb[0].mxu0
      %v2458 = vadd.f32 0.0, %v2457
      %v2459 = vpop.f32.mrb[0].mxu0
      %v2460 = vpop.f32.mrb[0].mxu0
      %v2461 = vadd.f32 0.0, %v2460
      %v2462 = vpop.f32.mrb[0].mxu0
      %2463 = vmatprep.mubr.bf16.mxu0 0
      %2464 = vmatmul.mubr.bf16.gmra.mrb[0].mxu0 %v2259
      %v2465 = vpop.f32.mrb[0].mxu0
      %v2466 = vadd.f32 0.0, %v2465
      %v2467 = vpop.f32.mrb[0].mxu0
      %v2468 = vpop.f32.mrb[0].mxu0
      %v2469 = vadd.f32 0.0, %v2468
      %v2470 = vpop.f32.mrb[0].mxu0
      %2471 = vmatprep.mubr.bf16.mxu0 0
      %2472 = vmatmul.mubr.bf16.gmra.mrb[0].mxu0 %v2260
      %v2473 = vpop.f32.mrb[0].mxu0
      %v2474 = vadd.f32 0.0, %v2473
      %v2475 = vpop.f32.mrb[0].mxu0
      %v2476 = vpop.f32.mrb[0].mxu0
      %v2477 = vadd.f32 0.0, %v2476
      %v2478 = vpop.f32.mrb[0].mxu0
      %2479 = vmatprep.mubr.bf16.mxu0 0
      %2480 = vmatmul.mubr.bf16.gmra.mrb[0].mxu0 %v2261
      %v2481 = vpop.f32.mrb[0].mxu0
      %v2482 = vadd.f32 0.0, %v2481
      %v2483 = vpop.f32.mrb[0].mxu0
      %v2484 = vpop.f32.mrb[0].mxu0
      %v2485 = vadd.f32 0.0, %v2484
      %v2486 = vpop.f32.mrb[0].mxu0
      %2487 = vdwg.mxu0
      %v2488 = vadd.f32 %v2181, %v2362
      %v2489 = vadd.f32 %v2182, %v2365
      %v2490 = vadd.f32 %v2183, %v2370
      %v2491 = vadd.f32 %v2184, %v2373
      %v2492 = vadd.f32 %v2185, %v2378
      %v2493 = vadd.f32 %v2186, %v2381
      %v2494 = vadd.f32 %v2187, %v2386
      %v2495 = vadd.f32 %v2188, %v2389
      %v2496 = vadd.f32 %v2189, %v2394
      %v2497 = vadd.f32 %v2190, %v2397
      %v2498 = vadd.f32 %v2191, %v2402
      %v2499 = vadd.f32 %v2192, %v2405
      %v2500 = vadd.f32 %v2193, %v2410
      %v2501 = vadd.f32 %v2194, %v2413
      %v2502 = vadd.f32 %v2195, %v2418
      %v2503 = vadd.f32 %v2196, %v2421
      %v2504 = vadd.f32 %v2197, %v2426
      %v2505 = vadd.f32 %v2198, %v2429
      %v2506 = vadd.f32 %v2199, %v2434
      %v2507 = vadd.f32 %v2200, %v2437
      %v2508 = vadd.f32 %v2201, %v2442
      %v2509 = vadd.f32 %v2202, %v2445
      %v2510 = vadd.f32 %v2203, %v2450
      %v2511 = vadd.f32 %v2204, %v2453
      %v2512 = vadd.f32 %v2205, %v2458
      %v2513 = vadd.f32 %v2206, %v2461
      %v2514 = vadd.f32 %v2207, %v2466
      %v2515 = vadd.f32 %v2208, %v2469
      %v2516 = vadd.f32 %v2209, %v2474
      %v2517 = vadd.f32 %v2210, %v2477
      %v2518 = vadd.f32 %v2211, %v2482
      %v2519 = vadd.f32 %v2212, %v2485
      %v2520 = vld [vmem:[%s2213 + $0x1] sm:$0xff]
      %v2521 = vld [vmem:[%s2213 + $0x9] sm:$0xff]
      %v2522 = vld [vmem:[%s2213 + $0x19] sm:$0xff]
      %v2523 = vld [vmem:[%s2213 + $0x21] sm:$0xff]
      %v2524 = vld [vmem:[%s2213 + $0x31] sm:$0xff]
      %v2525 = vld [vmem:[%s2213 + $0x39] sm:$0xff]
      %v2526 = vld [vmem:[%s2213 + $0x49] sm:$0xff]
      %v2527 = vld [vmem:[%s2213 + $0x51] sm:$0xff]
      %v2528 = vld [vmem:[%s2213 + $0x61] sm:$0xff]
      %v2529 = vld [vmem:[%s2213 + $0x69] sm:$0xff]
      %v2530 = vld [vmem:[%s2213 + $0x79] sm:$0xff]
      %v2531 = vld [vmem:[%s2213 + $0x81] sm:$0xff]
      %v2532 = vld [vmem:[%s2213 + $0x91] sm:$0xff]
      %v2533 = vld [vmem:[%s2213 + $0x99] sm:$0xff]
      %v2534 = vld [vmem:[%s2213 + $0xa9] sm:$0xff]
      %v2535 = vld [vmem:[%s2213 + $0xb1] sm:$0xff]
      %v2536 = vld [vmem:[%s2213 + $0xc1] sm:$0xff]
      %v2537 = vld [vmem:[%s2213 + $0xc9] sm:$0xff]
      %v2538 = vld [vmem:[%s2213 + $0xd9] sm:$0xff]
      %v2539 = vld [vmem:[%s2213 + $0xe1] sm:$0xff]
      %v2540 = vld [vmem:[%s2213 + $0xf1] sm:$0xff]
      %v2541 = vld [vmem:[%s2213 + $0xf9] sm:$0xff]
      %v2542 = vld [vmem:[%s2213 + $0x109] sm:$0xff]
      %v2543 = vld [vmem:[%s2213 + $0x111] sm:$0xff]
      %v2544 = vld [vmem:[%s2213 + $0x121] sm:$0xff]
      %v2545 = vld [vmem:[%s2213 + $0x129] sm:$0xff]
      %v2546 = vld [vmem:[%s2213 + $0x139] sm:$0xff]
      %v2547 = vld [vmem:[%s2213 + $0x141] sm:$0xff]
      %v2548 = vld [vmem:[%s2213 + $0x151] sm:$0xff]
      %v2549 = vld [vmem:[%s2213 + $0x159] sm:$0xff]
      %v2550 = vld [vmem:[%s2213 + $0x169] sm:$0xff]
      %v2551 = vld [vmem:[%s2213 + $0x171] sm:$0xff]
      %v2552 = vpack.c.bf16 %v2521, %v2520
      %v2553 = vpack.c.bf16 %v2523, %v2522
      %v2554 = vpack.c.bf16 %v2525, %v2524
      %v2555 = vpack.c.bf16 %v2527, %v2526
      %v2556 = vpack.c.bf16 %v2529, %v2528
      %v2557 = vpack.c.bf16 %v2531, %v2530
      %v2558 = vpack.c.bf16 %v2533, %v2532
      %v2559 = vpack.c.bf16 %v2535, %v2534
      %v2560 = vpack.c.bf16 %v2537, %v2536
      %v2561 = vpack.c.bf16 %v2539, %v2538
      %v2562 = vpack.c.bf16 %v2541, %v2540
      %v2563 = vpack.c.bf16 %v2543, %v2542
      %v2564 = vpack.c.bf16 %v2545, %v2544
      %v2565 = vpack.c.bf16 %v2547, %v2546
      %v2566 = vpack.c.bf16 %v2549, %v2548
      %v2567 = vpack.c.bf16 %v2551, %v2550
      %s2568 = scalar_lea.vmem %s1, 448
      %v2569 = vld [vmem:[%s2568] sm:$0xf]
      %v2570 = vld [vmem:[%s2568 + $0x4] sm:$0xf]
      %v2571 = vld [vmem:[%s2568 + $0x8] sm:$0xf]
      %v2572 = vld [vmem:[%s2568 + $0xc] sm:$0xf]
      %v2573 = vld [vmem:[%s2568 + $0x10] sm:$0xf]
      %v2574 = vld [vmem:[%s2568 + $0x14] sm:$0xf]
      %v2575 = vld [vmem:[%s2568 + $0x18] sm:$0xf]
      %v2576 = vld [vmem:[%s2568 + $0x1c] sm:$0xf]
      %v2577 = vld [vmem:[%s2568 + $0x20] sm:$0xf]
      %v2578 = vld [vmem:[%s2568 + $0x24] sm:$0xf]
      %v2579 = vld [vmem:[%s2568 + $0x28] sm:$0xf]
      %v2580 = vld [vmem:[%s2568 + $0x2c] sm:$0xf]
      %v2581 = vld [vmem:[%s2568 + $0x30] sm:$0xf]
      %v2582 = vld [vmem:[%s2568 + $0x34] sm:$0xf]
      %v2583 = vld [vmem:[%s2568 + $0x38] sm:$0xf]
      %v2584 = vld [vmem:[%s2568 + $0x3c] sm:$0xf]
      %v2601 = vunpack.c.l.b16 %v2569
      %v2602 = vunpack.c.l.b16 %v2570
      %v2603 = vunpack.c.l.b16 %v2571
      %v2604 = vunpack.c.l.b16 %v2572
      %v2605 = vunpack.c.l.b16 %v2573
      %v2606 = vunpack.c.l.b16 %v2574
      %v2607 = vunpack.c.l.b16 %v2575
      %v2608 = vunpack.c.l.b16 %v2576
      %v2609 = vunpack.c.l.b16 %v2577
      %v2610 = vunpack.c.l.b16 %v2578
      %v2611 = vunpack.c.l.b16 %v2579
      %v2612 = vunpack.c.l.b16 %v2580
      %v2613 = vunpack.c.l.b16 %v2581
      %v2614 = vunpack.c.l.b16 %v2582
      %v2615 = vunpack.c.l.b16 %v2583
      %v2616 = vunpack.c.l.b16 %v2584
      %v2617 = vpack.c.b16 %v2602, %v2601
      %v2618 = vpack.c.b16 %v2604, %v2603
      %v2619 = vpack.c.b16 %v2606, %v2605
      %v2620 = vpack.c.b16 %v2608, %v2607
      %v2621 = vpack.c.b16 %v2610, %v2609
      %v2622 = vpack.c.b16 %v2612, %v2611
      %v2623 = vpack.c.b16 %v2614, %v2613
      %v2624 = vpack.c.b16 %v2616, %v2615
      %2633 = vmatprep.subr.bf16.mxu0 0
      %2634 = vmatpush1.bf16.msra.mxu0 %v2617
      %2635 = vmatprep.subr.bf16.mxu0 0
      %2636 = vmatpush1.bf16.msra.mxu0 %v2618
      %2637 = vmatprep.subr.bf16.mxu0 0
      %2638 = vmatpush1.bf16.msra.mxu0 %v2619
      %2639 = vmatprep.subr.bf16.mxu0 0
      %2640 = vmatpush1.bf16.msra.mxu0 %v2620
      %2641 = vmatprep.subr.bf16.mxu0 0
      %2642 = vmatpush1.bf16.msra.mxu0 %v2621
      %2643 = vmatprep.subr.bf16.mxu0 0
      %2644 = vmatpush1.bf16.msra.mxu0 %v2622
      %2645 = vmatprep.subr.bf16.mxu0 0
      %2646 = vmatpush1.bf16.msra.mxu0 %v2623
      %2647 = vmatprep.subr.bf16.mxu0 0
      %2648 = vmatpush1.bf16.msra.mxu0 %v2624
      %2649 = vmatprep.subr.bf16.mxu0 0
      %2650 = vmatpush1.bf16.msra.mxu0 0
      %2651 = vmatprep.subr.bf16.mxu0 0
      %2652 = vmatpush1.bf16.msra.mxu0 0
      %2653 = vmatprep.subr.bf16.mxu0 0
      %2654 = vmatpush1.bf16.msra.mxu0 0
      %2655 = vmatprep.subr.bf16.mxu0 0
      %2656 = vmatpush1.bf16.msra.mxu0 0
      %2657 = vmatprep.subr.bf16.mxu0 0
      %2658 = vmatpush1.bf16.msra.mxu0 0
      %2659 = vmatprep.subr.bf16.mxu0 0
      %2660 = vmatpush1.bf16.msra.mxu0 0
      %2661 = vmatprep.subr.bf16.mxu0 0
      %2662 = vmatpush1.bf16.msra.mxu0 0
      %2663 = vmatprep.subr.bf16.mxu0 0
      %2664 = vmatpush1.bf16.msra.mxu0 0
      %2665 = vmatprep.mubr.bf16.mxu0 0
      %2666 = vmatmul.mubr.bf16.gmra.mrb[0].mxu0 %v2552
      %v2667 = vpop.f32.mrb[0].mxu0
      %v2668 = vadd.f32 0.0, %v2667
      %v2669 = vpop.f32.mrb[0].mxu0
      %v2670 = vpop.f32.mrb[0].mxu0
      %v2671 = vadd.f32 0.0, %v2670
      %v2672 = vpop.f32.mrb[0].mxu0
      %2673 = vmatprep.mubr.bf16.mxu0 0
      %2674 = vmatmul.mubr.bf16.gmra.mrb[0].mxu0 %v2553
      %v2675 = vpop.f32.mrb[0].mxu0
      %v2676 = vadd.f32 0.0, %v2675
      %v2677 = vpop.f32.mrb[0].mxu0
      %v2678 = vpop.f32.mrb[0].mxu0
      %v2679 = vadd.f32 0.0, %v2678
      %v2680 = vpop.f32.mrb[0].mxu0
      %2681 = vmatprep.mubr.bf16.mxu0 0
      %2682 = vmatmul.mubr.bf16.gmra.mrb[0].mxu0 %v2554
      %v2683 = vpop.f32.mrb[0].mxu0
      %v2684 = vadd.f32 0.0, %v2683
      %v2685 = vpop.f32.mrb[0].mxu0
      %v2686 = vpop.f32.mrb[0].mxu0
      %v2687 = vadd.f32 0.0, %v2686
      %v2688 = vpop.f32.mrb[0].mxu0
      %2689 = vmatprep.mubr.bf16.mxu0 0
      %2690 = vmatmul.mubr.bf16.gmra.mrb[0].mxu0 %v2555
      %v2691 = vpop.f32.mrb[0].mxu0
      %v2692 = vadd.f32 0.0, %v2691
      %v2693 = vpop.f32.mrb[0].mxu0
      %v2694 = vpop.f32.mrb[0].mxu0
      %v2695 = vadd.f32 0.0, %v2694
      %v2696 = vpop.f32.mrb[0].mxu0
      %2697 = vmatprep.mubr.bf16.mxu0 0
      %2698 = vmatmul.mubr.bf16.gmra.mrb[0].mxu0 %v2556
      %v2699 = vpop.f32.mrb[0].mxu0
      %v2700 = vadd.f32 0.0, %v2699
      %v2701 = vpop.f32.mrb[0].mxu0
      %v2702 = vpop.f32.mrb[0].mxu0
      %v2703 = vadd.f32 0.0, %v2702
      %v2704 = vpop.f32.mrb[0].mxu0
      %2705 = vmatprep.mubr.bf16.mxu0 0
      %2706 = vmatmul.mubr.bf16.gmra.mrb[0].mxu0 %v2557
      %v2707 = vpop.f32.mrb[0].mxu0
      %v2708 = vadd.f32 0.0, %v2707
      %v2709 = vpop.f32.mrb[0].mxu0
      %v2710 = vpop.f32.mrb[0].mxu0
      %v2711 = vadd.f32 0.0, %v2710
      %v2712 = vpop.f32.mrb[0].mxu0
      %2713 = vmatprep.mubr.bf16.mxu0 0
      %2714 = vmatmul.mubr.bf16.gmra.mrb[0].mxu0 %v2558
      %v2715 = vpop.f32.mrb[0].mxu0
      %v2716 = vadd.f32 0.0, %v2715
      %v2717 = vpop.f32.mrb[0].mxu0
      %v2718 = vpop.f32.mrb[0].mxu0
      %v2719 = vadd.f32 0.0, %v2718
      %v2720 = vpop.f32.mrb[0].mxu0
      %2721 = vmatprep.mubr.bf16.mxu0 0
      %2722 = vmatmul.mubr.bf16.gmra.mrb[0].mxu0 %v2559
      %v2723 = vpop.f32.mrb[0].mxu0
      %v2724 = vadd.f32 0.0, %v2723
      %v2725 = vpop.f32.mrb[0].mxu0
      %v2726 = vpop.f32.mrb[0].mxu0
      %v2727 = vadd.f32 0.0, %v2726
      %v2728 = vpop.f32.mrb[0].mxu0
      %2729 = vmatprep.mubr.bf16.mxu0 0
      %2730 = vmatmul.mubr.bf16.gmra.mrb[0].mxu0 %v2560
      %v2731 = vpop.f32.mrb[0].mxu0
      %v2732 = vadd.f32 0.0, %v2731
      %v2733 = vpop.f32.mrb[0].mxu0
      %v2734 = vpop.f32.mrb[0].mxu0
      %v2735 = vadd.f32 0.0, %v2734
      %v2736 = vpop.f32.mrb[0].mxu0
      %2737 = vmatprep.mubr.bf16.mxu0 0
      %2738 = vmatmul.mubr.bf16.gmra.mrb[0].mxu0 %v2561
      %v2739 = vpop.f32.mrb[0].mxu0
      %v2740 = vadd.f32 0.0, %v2739
      %v2741 = vpop.f32.mrb[0].mxu0
      %v2742 = vpop.f32.mrb[0].mxu0
      %v2743 = vadd.f32 0.0, %v2742
      %v2744 = vpop.f32.mrb[0].mxu0
      %2745 = vmatprep.mubr.bf16.mxu0 0
      %2746 = vmatmul.mubr.bf16.gmra.mrb[0].mxu0 %v2562
      %v2747 = vpop.f32.mrb[0].mxu0
      %v2748 = vadd.f32 0.0, %v2747
      %v2749 = vpop.f32.mrb[0].mxu0
      %v2750 = vpop.f32.mrb[0].mxu0
      %v2751 = vadd.f32 0.0, %v2750
      %v2752 = vpop.f32.mrb[0].mxu0
      %2753 = vmatprep.mubr.bf16.mxu0 0
      %2754 = vmatmul.mubr.bf16.gmra.mrb[0].mxu0 %v2563
      %v2755 = vpop.f32.mrb[0].mxu0
      %v2756 = vadd.f32 0.0, %v2755
      %v2757 = vpop.f32.mrb[0].mxu0
      %v2758 = vpop.f32.mrb[0].mxu0
      %v2759 = vadd.f32 0.0, %v2758
      %v2760 = vpop.f32.mrb[0].mxu0
      %2761 = vmatprep.mubr.bf16.mxu0 0
      %2762 = vmatmul.mubr.bf16.gmra.mrb[0].mxu0 %v2564
      %v2763 = vpop.f32.mrb[0].mxu0
      %v2764 = vadd.f32 0.0, %v2763
      %v2765 = vpop.f32.mrb[0].mxu0
      %v2766 = vpop.f32.mrb[0].mxu0
      %v2767 = vadd.f32 0.0, %v2766
      %v2768 = vpop.f32.mrb[0].mxu0
      %2769 = vmatprep.mubr.bf16.mxu0 0
      %2770 = vmatmul.mubr.bf16.gmra.mrb[0].mxu0 %v2565
      %v2771 = vpop.f32.mrb[0].mxu0
      %v2772 = vadd.f32 0.0, %v2771
      %v2773 = vpop.f32.mrb[0].mxu0
      %v2774 = vpop.f32.mrb[0].mxu0
      %v2775 = vadd.f32 0.0, %v2774
      %v2776 = vpop.f32.mrb[0].mxu0
      %2777 = vmatprep.mubr.bf16.mxu0 0
      %2778 = vmatmul.mubr.bf16.gmra.mrb[0].mxu0 %v2566
      %v2779 = vpop.f32.mrb[0].mxu0
      %v2780 = vadd.f32 0.0, %v2779
      %v2781 = vpop.f32.mrb[0].mxu0
      %v2782 = vpop.f32.mrb[0].mxu0
      %v2783 = vadd.f32 0.0, %v2782
      %v2784 = vpop.f32.mrb[0].mxu0
      %2785 = vmatprep.mubr.bf16.mxu0 0
      %2786 = vmatmul.mubr.bf16.gmra.mrb[0].mxu0 %v2567
      %v2787 = vpop.f32.mrb[0].mxu0
      %v2788 = vadd.f32 0.0, %v2787
      %v2789 = vpop.f32.mrb[0].mxu0
      %v2790 = vpop.f32.mrb[0].mxu0
      %v2791 = vadd.f32 0.0, %v2790
      %v2792 = vpop.f32.mrb[0].mxu0
      %2793 = vdwg.mxu0
      %v2794 = vadd.f32 %v2488, %v2668
      %v2795 = vadd.f32 %v2489, %v2671
      %v2796 = vadd.f32 %v2490, %v2676
      %v2797 = vadd.f32 %v2491, %v2679
      %v2798 = vadd.f32 %v2492, %v2684
      %v2799 = vadd.f32 %v2493, %v2687
      %v2800 = vadd.f32 %v2494, %v2692
      %v2801 = vadd.f32 %v2495, %v2695
      %v2802 = vadd.f32 %v2496, %v2700
      %v2803 = vadd.f32 %v2497, %v2703
      %v2804 = vadd.f32 %v2498, %v2708
      %v2805 = vadd.f32 %v2499, %v2711
      %v2806 = vadd.f32 %v2500, %v2716
      %v2807 = vadd.f32 %v2501, %v2719
      %v2808 = vadd.f32 %v2502, %v2724
      %v2809 = vadd.f32 %v2503, %v2727
      %v2810 = vadd.f32 %v2504, %v2732
      %v2811 = vadd.f32 %v2505, %v2735
      %v2812 = vadd.f32 %v2506, %v2740
      %v2813 = vadd.f32 %v2507, %v2743
      %v2814 = vadd.f32 %v2508, %v2748
      %v2815 = vadd.f32 %v2509, %v2751
      %v2816 = vadd.f32 %v2510, %v2756
      %v2817 = vadd.f32 %v2511, %v2759
      %v2818 = vadd.f32 %v2512, %v2764
      %v2819 = vadd.f32 %v2513, %v2767
      %v2820 = vadd.f32 %v2514, %v2772
      %v2821 = vadd.f32 %v2515, %v2775
      %v2822 = vadd.f32 %v2516, %v2780
      %v2823 = vadd.f32 %v2517, %v2783
      %v2824 = vadd.f32 %v2518, %v2788
      %v2825 = vadd.f32 %v2519, %v2791
      %v2826 = vld [vmem:[%s2213 + $0x2] sm:$0xff]
      %v2827 = vld [vmem:[%s2213 + $0xa] sm:$0xff]
      %v2828 = vld [vmem:[%s2213 + $0x1a] sm:$0xff]
      %v2829 = vld [vmem:[%s2213 + $0x22] sm:$0xff]
      %v2830 = vld [vmem:[%s2213 + $0x32] sm:$0xff]
      %v2831 = vld [vmem:[%s2213 + $0x3a] sm:$0xff]
      %v2832 = vld [vmem:[%s2213 + $0x4a] sm:$0xff]
      %v2833 = vld [vmem:[%s2213 + $0x52] sm:$0xff]
      %v2834 = vld [vmem:[%s2213 + $0x62] sm:$0xff]
      %v2835 = vld [vmem:[%s2213 + $0x6a] sm:$0xff]
      %v2836 = vld [vmem:[%s2213 + $0x7a] sm:$0xff]
      %v2837 = vld [vmem:[%s2213 + $0x82] sm:$0xff]
      %v2838 = vld [vmem:[%s2213 + $0x92] sm:$0xff]
      %v2839 = vld [vmem:[%s2213 + $0x9a] sm:$0xff]
      %v2840 = vld [vmem:[%s2213 + $0xaa] sm:$0xff]
      %v2841 = vld [vmem:[%s2213 + $0xb2] sm:$0xff]
      %v2842 = vld [vmem:[%s2213 + $0xc2] sm:$0xff]
      %v2843 = vld [vmem:[%s2213 + $0xca] sm:$0xff]
      %v2844 = vld [vmem:[%s2213 + $0xda] sm:$0xff]
      %v2845 = vld [vmem:[%s2213 + $0xe2] sm:$0xff]
      %v2846 = vld [vmem:[%s2213 + $0xf2] sm:$0xff]
      %v2847 = vld [vmem:[%s2213 + $0xfa] sm:$0xff]
      %v2848 = vld [vmem:[%s2213 + $0x10a] sm:$0xff]
      %v2849 = vld [vmem:[%s2213 + $0x112] sm:$0xff]
      %v2850 = vld [vmem:[%s2213 + $0x122] sm:$0xff]
      %v2851 = vld [vmem:[%s2213 + $0x12a] sm:$0xff]
      %v2852 = vld [vmem:[%s2213 + $0x13a] sm:$0xff]
      %v2853 = vld [vmem:[%s2213 + $0x142] sm:$0xff]
      %v2854 = vld [vmem:[%s2213 + $0x152] sm:$0xff]
      %v2855 = vld [vmem:[%s2213 + $0x15a] sm:$0xff]
      %v2856 = vld [vmem:[%s2213 + $0x16a] sm:$0xff]
      %v2857 = vld [vmem:[%s2213 + $0x172] sm:$0xff]
      %v2858 = vpack.c.bf16 %v2827, %v2826
      %v2859 = vpack.c.bf16 %v2829, %v2828
      %v2860 = vpack.c.bf16 %v2831, %v2830
      %v2861 = vpack.c.bf16 %v2833, %v2832
      %v2862 = vpack.c.bf16 %v2835, %v2834
      %v2863 = vpack.c.bf16 %v2837, %v2836
      %v2864 = vpack.c.bf16 %v2839, %v2838
      %v2865 = vpack.c.bf16 %v2841, %v2840
      %v2866 = vpack.c.bf16 %v2843, %v2842
      %v2867 = vpack.c.bf16 %v2845, %v2844
      %v2868 = vpack.c.bf16 %v2847, %v2846
      %v2869 = vpack.c.bf16 %v2849, %v2848
      %v2870 = vpack.c.bf16 %v2851, %v2850
      %v2871 = vpack.c.bf16 %v2853, %v2852
      %v2872 = vpack.c.bf16 %v2855, %v2854
      %v2873 = vpack.c.bf16 %v2857, %v2856
      %s2874 = scalar_lea.vmem %s1, 512
      %v2875 = vld [vmem:[%s2874] sm:$0xf]
      %v2876 = vld [vmem:[%s2874 + $0x4] sm:$0xf]
      %v2877 = vld [vmem:[%s2874 + $0x8] sm:$0xf]
      %v2878 = vld [vmem:[%s2874 + $0xc] sm:$0xf]
      %v2879 = vld [vmem:[%s2874 + $0x10] sm:$0xf]
      %v2880 = vld [vmem:[%s2874 + $0x14] sm:$0xf]
      %v2881 = vld [vmem:[%s2874 + $0x18] sm:$0xf]
      %v2882 = vld [vmem:[%s2874 + $0x1c] sm:$0xf]
      %v2883 = vld [vmem:[%s2874 + $0x20] sm:$0xf]
      %v2884 = vld [vmem:[%s2874 + $0x24] sm:$0xf]
      %v2885 = vld [vmem:[%s2874 + $0x28] sm:$0xf]
      %v2886 = vld [vmem:[%s2874 + $0x2c] sm:$0xf]
      %v2887 = vld [vmem:[%s2874 + $0x30] sm:$0xf]
      %v2888 = vld [vmem:[%s2874 + $0x34] sm:$0xf]
      %v2889 = vld [vmem:[%s2874 + $0x38] sm:$0xf]
      %v2890 = vld [vmem:[%s2874 + $0x3c] sm:$0xf]
      %v2907 = vunpack.c.l.b16 %v2875
      %v2908 = vunpack.c.l.b16 %v2876
      %v2909 = vunpack.c.l.b16 %v2877
      %v2910 = vunpack.c.l.b16 %v2878
      %v2911 = vunpack.c.l.b16 %v2879
      %v2912 = vunpack.c.l.b16 %v2880
      %v2913 = vunpack.c.l.b16 %v2881
      %v2914 = vunpack.c.l.b16 %v2882
      %v2915 = vunpack.c.l.b16 %v2883
      %v2916 = vunpack.c.l.b16 %v2884
      %v2917 = vunpack.c.l.b16 %v2885
      %v2918 = vunpack.c.l.b16 %v2886
      %v2919 = vunpack.c.l.b16 %v2887
      %v2920 = vunpack.c.l.b16 %v2888
      %v2921 = vunpack.c.l.b16 %v2889
      %v2922 = vunpack.c.l.b16 %v2890
      %v2923 = vpack.c.b16 %v2908, %v2907
      %v2924 = vpack.c.b16 %v2910, %v2909
      %v2925 = vpack.c.b16 %v2912, %v2911
      %v2926 = vpack.c.b16 %v2914, %v2913
      %v2927 = vpack.c.b16 %v2916, %v2915
      %v2928 = vpack.c.b16 %v2918, %v2917
      %v2929 = vpack.c.b16 %v2920, %v2919
      %v2930 = vpack.c.b16 %v2922, %v2921
      %2939 = vmatprep.subr.bf16.mxu0 0
      %2940 = vmatpush1.bf16.msra.mxu0 %v2923
      %2941 = vmatprep.subr.bf16.mxu0 0
      %2942 = vmatpush1.bf16.msra.mxu0 %v2924
      %2943 = vmatprep.subr.bf16.mxu0 0
      %2944 = vmatpush1.bf16.msra.mxu0 %v2925
      %2945 = vmatprep.subr.bf16.mxu0 0
      %2946 = vmatpush1.bf16.msra.mxu0 %v2926
      %2947 = vmatprep.subr.bf16.mxu0 0
      %2948 = vmatpush1.bf16.msra.mxu0 %v2927
      %2949 = vmatprep.subr.bf16.mxu0 0
      %2950 = vmatpush1.bf16.msra.mxu0 %v2928
      %2951 = vmatprep.subr.bf16.mxu0 0
      %2952 = vmatpush1.bf16.msra.mxu0 %v2929
      %2953 = vmatprep.subr.bf16.mxu0 0
      %2954 = vmatpush1.bf16.msra.mxu0 %v2930
      %2955 = vmatprep.subr.bf16.mxu0 0
      %2956 = vmatpush1.bf16.msra.mxu0 0
      %2957 = vmatprep.subr.bf16.mxu0 0
      %2958 = vmatpush1.bf16.msra.mxu0 0
      %2959 = vmatprep.subr.bf16.mxu0 0
      %2960 = vmatpush1.bf16.msra.mxu0 0
      %2961 = vmatprep.subr.bf16.mxu0 0
      %2962 = vmatpush1.bf16.msra.mxu0 0
      %2963 = vmatprep.subr.bf16.mxu0 0
      %2964 = vmatpush1.bf16.msra.mxu0 0
      %2965 = vmatprep.subr.bf16.mxu0 0
      %2966 = vmatpush1.bf16.msra.mxu0 0
      %2967 = vmatprep.subr.bf16.mxu0 0
      %2968 = vmatpush1.bf16.msra.mxu0 0
      %2969 = vmatprep.subr.bf16.mxu0 0
      %2970 = vmatpush1.bf16.msra.mxu0 0
      %2971 = vmatprep.mubr.bf16.mxu0 0
      %2972 = vmatmul.mubr.bf16.gmra.mrb[0].mxu0 %v2858
      %v2973 = vpop.f32.mrb[0].mxu0
      %v2974 = vadd.f32 0.0, %v2973
      %v2975 = vpop.f32.mrb[0].mxu0
      %v2976 = vpop.f32.mrb[0].mxu0
      %v2977 = vadd.f32 0.0, %v2976
      %v2978 = vpop.f32.mrb[0].mxu0
      %2979 = vmatprep.mubr.bf16.mxu0 0
      %2980 = vmatmul.mubr.bf16.gmra.mrb[0].mxu0 %v2859
      %v2981 = vpop.f32.mrb[0].mxu0
      %v2982 = vadd.f32 0.0, %v2981
      %v2983 = vpop.f32.mrb[0].mxu0
      %v2984 = vpop.f32.mrb[0].mxu0
      %v2985 = vadd.f32 0.0, %v2984
      %v2986 = vpop.f32.mrb[0].mxu0
      %2987 = vmatprep.mubr.bf16.mxu0 0
      %2988 = vmatmul.mubr.bf16.gmra.mrb[0].mxu0 %v2860
      %v2989 = vpop.f32.mrb[0].mxu0
      %v2990 = vadd.f32 0.0, %v2989
      %v2991 = vpop.f32.mrb[0].mxu0
      %v2992 = vpop.f32.mrb[0].mxu0
      %v2993 = vadd.f32 0.0, %v2992
      %v2994 = vpop.f32.mrb[0].mxu0
      %2995 = vmatprep.mubr.bf16.mxu0 0
      %2996 = vmatmul.mubr.bf16.gmra.mrb[0].mxu0 %v2861
      %v2997 = vpop.f32.mrb[0].mxu0
      %v2998 = vadd.f32 0.0, %v2997
      %v2999 = vpop.f32.mrb[0].mxu0
      %v3000 = vpop.f32.mrb[0].mxu0
      %v3001 = vadd.f32 0.0, %v3000
      %v3002 = vpop.f32.mrb[0].mxu0
      %3003 = vmatprep.mubr.bf16.mxu0 0
      %3004 = vmatmul.mubr.bf16.gmra.mrb[0].mxu0 %v2862
      %v3005 = vpop.f32.mrb[0].mxu0
      %v3006 = vadd.f32 0.0, %v3005
      %v3007 = vpop.f32.mrb[0].mxu0
      %v3008 = vpop.f32.mrb[0].mxu0
      %v3009 = vadd.f32 0.0, %v3008
      %v3010 = vpop.f32.mrb[0].mxu0
      %3011 = vmatprep.mubr.bf16.mxu0 0
      %3012 = vmatmul.mubr.bf16.gmra.mrb[0].mxu0 %v2863
      %v3013 = vpop.f32.mrb[0].mxu0
      %v3014 = vadd.f32 0.0, %v3013
      %v3015 = vpop.f32.mrb[0].mxu0
      %v3016 = vpop.f32.mrb[0].mxu0
      %v3017 = vadd.f32 0.0, %v3016
      %v3018 = vpop.f32.mrb[0].mxu0
      %3019 = vmatprep.mubr.bf16.mxu0 0
      %3020 = vmatmul.mubr.bf16.gmra.mrb[0].mxu0 %v2864
      %v3021 = vpop.f32.mrb[0].mxu0
      %v3022 = vadd.f32 0.0, %v3021
      %v3023 = vpop.f32.mrb[0].mxu0
      %v3024 = vpop.f32.mrb[0].mxu0
      %v3025 = vadd.f32 0.0, %v3024
      %v3026 = vpop.f32.mrb[0].mxu0
      %3027 = vmatprep.mubr.bf16.mxu0 0
      %3028 = vmatmul.mubr.bf16.gmra.mrb[0].mxu0 %v2865
      %v3029 = vpop.f32.mrb[0].mxu0
      %v3030 = vadd.f32 0.0, %v3029
      %v3031 = vpop.f32.mrb[0].mxu0
      %v3032 = vpop.f32.mrb[0].mxu0
      %v3033 = vadd.f32 0.0, %v3032
      %v3034 = vpop.f32.mrb[0].mxu0
      %3035 = vmatprep.mubr.bf16.mxu0 0
      %3036 = vmatmul.mubr.bf16.gmra.mrb[0].mxu0 %v2866
      %v3037 = vpop.f32.mrb[0].mxu0
      %v3038 = vadd.f32 0.0, %v3037
      %v3039 = vpop.f32.mrb[0].mxu0
      %v3040 = vpop.f32.mrb[0].mxu0
      %v3041 = vadd.f32 0.0, %v3040
      %v3042 = vpop.f32.mrb[0].mxu0
      %3043 = vmatprep.mubr.bf16.mxu0 0
      %3044 = vmatmul.mubr.bf16.gmra.mrb[0].mxu0 %v2867
      %v3045 = vpop.f32.mrb[0].mxu0
      %v3046 = vadd.f32 0.0, %v3045
      %v3047 = vpop.f32.mrb[0].mxu0
      %v3048 = vpop.f32.mrb[0].mxu0
      %v3049 = vadd.f32 0.0, %v3048
      %v3050 = vpop.f32.mrb[0].mxu0
      %3051 = vmatprep.mubr.bf16.mxu0 0
      %3052 = vmatmul.mubr.bf16.gmra.mrb[0].mxu0 %v2868
      %v3053 = vpop.f32.mrb[0].mxu0
      %v3054 = vadd.f32 0.0, %v3053
      %v3055 = vpop.f32.mrb[0].mxu0
      %v3056 = vpop.f32.mrb[0].mxu0
      %v3057 = vadd.f32 0.0, %v3056
      %v3058 = vpop.f32.mrb[0].mxu0
      %3059 = vmatprep.mubr.bf16.mxu0 0
      %3060 = vmatmul.mubr.bf16.gmra.mrb[0].mxu0 %v2869
      %v3061 = vpop.f32.mrb[0].mxu0
      %v3062 = vadd.f32 0.0, %v3061
      %v3063 = vpop.f32.mrb[0].mxu0
      %v3064 = vpop.f32.mrb[0].mxu0
      %v3065 = vadd.f32 0.0, %v3064
      %v3066 = vpop.f32.mrb[0].mxu0
      %3067 = vmatprep.mubr.bf16.mxu0 0
      %3068 = vmatmul.mubr.bf16.gmra.mrb[0].mxu0 %v2870
      %v3069 = vpop.f32.mrb[0].mxu0
      %v3070 = vadd.f32 0.0, %v3069
      %v3071 = vpop.f32.mrb[0].mxu0
      %v3072 = vpop.f32.mrb[0].mxu0
      %v3073 = vadd.f32 0.0, %v3072
      %v3074 = vpop.f32.mrb[0].mxu0
      %3075 = vmatprep.mubr.bf16.mxu0 0
      %3076 = vmatmul.mubr.bf16.gmra.mrb[0].mxu0 %v2871
      %v3077 = vpop.f32.mrb[0].mxu0
      %v3078 = vadd.f32 0.0, %v3077
      %v3079 = vpop.f32.mrb[0].mxu0
      %v3080 = vpop.f32.mrb[0].mxu0
      %v3081 = vadd.f32 0.0, %v3080
      %v3082 = vpop.f32.mrb[0].mxu0
      %3083 = vmatprep.mubr.bf16.mxu0 0
      %3084 = vmatmul.mubr.bf16.gmra.mrb[0].mxu0 %v2872
      %v3085 = vpop.f32.mrb[0].mxu0
      %v3086 = vadd.f32 0.0, %v3085
      %v3087 = vpop.f32.mrb[0].mxu0
      %v3088 = vpop.f32.mrb[0].mxu0
      %v3089 = vadd.f32 0.0, %v3088
      %v3090 = vpop.f32.mrb[0].mxu0
      %3091 = vmatprep.mubr.bf16.mxu0 0
      %3092 = vmatmul.mubr.bf16.gmra.mrb[0].mxu0 %v2873
      %v3093 = vpop.f32.mrb[0].mxu0
      %v3094 = vadd.f32 0.0, %v3093
      %v3095 = vpop.f32.mrb[0].mxu0
      %v3096 = vpop.f32.mrb[0].mxu0
      %v3097 = vadd.f32 0.0, %v3096
      %v3098 = vpop.f32.mrb[0].mxu0
      %3099 = vdwg.mxu0
      %v3100 = vadd.f32 %v2794, %v2974
      %v3101 = vadd.f32 %v2795, %v2977
      %v3102 = vadd.f32 %v2796, %v2982
      %v3103 = vadd.f32 %v2797, %v2985
      %v3104 = vadd.f32 %v2798, %v2990
      %v3105 = vadd.f32 %v2799, %v2993
      %v3106 = vadd.f32 %v2800, %v2998
      %v3107 = vadd.f32 %v2801, %v3001
      %v3108 = vadd.f32 %v2802, %v3006
      %v3109 = vadd.f32 %v2803, %v3009
      %v3110 = vadd.f32 %v2804, %v3014
      %v3111 = vadd.f32 %v2805, %v3017
      %v3112 = vadd.f32 %v2806, %v3022
      %v3113 = vadd.f32 %v2807, %v3025
      %v3114 = vadd.f32 %v2808, %v3030
      %v3115 = vadd.f32 %v2809, %v3033
      %v3116 = vadd.f32 %v2810, %v3038
      %v3117 = vadd.f32 %v2811, %v3041
      %v3118 = vadd.f32 %v2812, %v3046
      %v3119 = vadd.f32 %v2813, %v3049
      %v3120 = vadd.f32 %v2814, %v3054
      %v3121 = vadd.f32 %v2815, %v3057
      %v3122 = vadd.f32 %v2816, %v3062
      %v3123 = vadd.f32 %v2817, %v3065
      %v3124 = vadd.f32 %v2818, %v3070
      %v3125 = vadd.f32 %v2819, %v3073
      %v3126 = vadd.f32 %v2820, %v3078
      %v3127 = vadd.f32 %v2821, %v3081
      %v3128 = vadd.f32 %v2822, %v3086
      %v3129 = vadd.f32 %v2823, %v3089
      %v3130 = vadd.f32 %v2824, %v3094
      %v3131 = vadd.f32 %v2825, %v3097
      %v3132 = vld [vmem:[%s2] sm:$0x1]
      %v3134 = vlaneseq
      %v3135 = vshrl.u32 %v3134, 7
      %v3136 = vsub.s32 0, %v3135
      %v3137 = vrot.slane %v3132, %v3136
      %v3139 = vadd.f32 %v3100, %v3137
      %v3140 = vadd.f32 %v3101, %v3137
      %v3141 = vadd.f32 %v3102, %v3137
      %v3142 = vadd.f32 %v3103, %v3137
      %v3143 = vadd.f32 %v3104, %v3137
      %v3144 = vadd.f32 %v3105, %v3137
      %v3145 = vadd.f32 %v3106, %v3137
      %v3146 = vadd.f32 %v3107, %v3137
      %v3147 = vadd.f32 %v3108, %v3137
      %v3148 = vadd.f32 %v3109, %v3137
      %v3149 = vadd.f32 %v3110, %v3137
      %v3150 = vadd.f32 %v3111, %v3137
      %v3151 = vadd.f32 %v3112, %v3137
      %v3152 = vadd.f32 %v3113, %v3137
      %v3153 = vadd.f32 %v3114, %v3137
      %v3154 = vadd.f32 %v3115, %v3137
      %v3155 = vadd.f32 %v3116, %v3137
      %v3156 = vadd.f32 %v3117, %v3137
      %v3157 = vadd.f32 %v3118, %v3137
      %v3158 = vadd.f32 %v3119, %v3137
      %v3159 = vadd.f32 %v3120, %v3137
      %v3160 = vadd.f32 %v3121, %v3137
      %v3161 = vadd.f32 %v3122, %v3137
      %v3162 = vadd.f32 %v3123, %v3137
      %v3163 = vadd.f32 %v3124, %v3137
      %v3164 = vadd.f32 %v3125, %v3137
      %v3165 = vadd.f32 %v3126, %v3137
      %v3166 = vadd.f32 %v3127, %v3137
      %v3167 = vadd.f32 %v3128, %v3137
      %v3168 = vadd.f32 %v3129, %v3137
      %v3169 = vadd.f32 %v3130, %v3137
      %v3170 = vadd.f32 %v3131, %v3137
      %v3171 = vadd.f32 %v3139, %v3140
      %v3172 = vadd.f32 %v3171, %v3141
      %v3173 = vadd.f32 %v3172, %v3142
      %v3174 = vadd.f32 %v3173, %v3143
      %v3175 = vadd.f32 %v3174, %v3144
      %v3176 = vadd.f32 %v3175, %v3145
      %v3177 = vadd.f32 %v3176, %v3146
      %v3178 = vadd.f32 %v3177, %v3147
      %v3179 = vadd.f32 %v3178, %v3148
      %v3180 = vadd.f32 %v3179, %v3149
      %v3181 = vadd.f32 %v3180, %v3150
      %v3182 = vadd.f32 %v3181, %v3151
      %v3183 = vadd.f32 %v3182, %v3152
      %v3184 = vadd.f32 %v3183, %v3153
      %v3185 = vadd.f32 %v3184, %v3154
      %v3186 = vadd.f32 %v3185, %v3155
      %v3187 = vadd.f32 %v3186, %v3156
      %v3188 = vadd.f32 %v3187, %v3157
      %v3189 = vadd.f32 %v3188, %v3158
      %v3190 = vadd.f32 %v3189, %v3159
      %v3191 = vadd.f32 %v3190, %v3160
      %v3192 = vadd.f32 %v3191, %v3161
      %v3193 = vadd.f32 %v3192, %v3162
      %v3194 = vadd.f32 %v3193, %v3163
      %v3195 = vadd.f32 %v3194, %v3164
      %v3196 = vadd.f32 %v3195, %v3165
      %v3197 = vadd.f32 %v3196, %v3166
      %v3198 = vadd.f32 %v3197, %v3167
      %v3199 = vadd.f32 %v3198, %v3168
      %v3200 = vadd.f32 %v3199, %v3169
      %v3201 = vadd.f32 %v3200, %v3170
      %v3202 = vrot.slane %v3201, 4
      %v3203 = vadd.f32 %v3201, %v3202
      %v3204 = vrot.slane %v3203, 2
      %v3205 = vadd.f32 %v3203, %v3204
      %v3206 = vrot.slane %v3205, 1
      %v3207 = vadd.f32 %v3205, %v3206
      %v3208 = vrcp.pop 256.0
      %v3209 = vmul.f32 %v3207, %v3208
      %v3210 = vsub.f32 %v3139, %v3209
      %v3211 = vsub.f32 %v3140, %v3209
      %v3212 = vsub.f32 %v3141, %v3209
      %v3213 = vsub.f32 %v3142, %v3209
      %v3214 = vsub.f32 %v3143, %v3209
      %v3215 = vsub.f32 %v3144, %v3209
      %v3216 = vsub.f32 %v3145, %v3209
      %v3217 = vsub.f32 %v3146, %v3209
      %v3218 = vsub.f32 %v3147, %v3209
      %v3219 = vsub.f32 %v3148, %v3209
      %v3220 = vsub.f32 %v3149, %v3209
      %v3221 = vsub.f32 %v3150, %v3209
      %v3222 = vsub.f32 %v3151, %v3209
      %v3223 = vsub.f32 %v3152, %v3209
      %v3224 = vsub.f32 %v3153, %v3209
      %v3225 = vsub.f32 %v3154, %v3209
      %v3226 = vsub.f32 %v3155, %v3209
      %v3227 = vsub.f32 %v3156, %v3209
      %v3228 = vsub.f32 %v3157, %v3209
      %v3229 = vsub.f32 %v3158, %v3209
      %v3230 = vsub.f32 %v3159, %v3209
      %v3231 = vsub.f32 %v3160, %v3209
      %v3232 = vsub.f32 %v3161, %v3209
      %v3233 = vsub.f32 %v3162, %v3209
      %v3234 = vsub.f32 %v3163, %v3209
      %v3235 = vsub.f32 %v3164, %v3209
      %v3236 = vsub.f32 %v3165, %v3209
      %v3237 = vsub.f32 %v3166, %v3209
      %v3238 = vsub.f32 %v3167, %v3209
      %v3239 = vsub.f32 %v3168, %v3209
      %v3240 = vsub.f32 %v3169, %v3209
      %v3241 = vsub.f32 %v3170, %v3209
      %v3242 = vmul.f32 %v3210, %v3210
      %v3243 = vmul.f32 %v3211, %v3211
      %v3244 = vmul.f32 %v3212, %v3212
      %v3245 = vmul.f32 %v3213, %v3213
      %v3246 = vmul.f32 %v3214, %v3214
      %v3247 = vmul.f32 %v3215, %v3215
      %v3248 = vmul.f32 %v3216, %v3216
      %v3249 = vmul.f32 %v3217, %v3217
      %v3250 = vmul.f32 %v3218, %v3218
      %v3251 = vmul.f32 %v3219, %v3219
      %v3252 = vmul.f32 %v3220, %v3220
      %v3253 = vmul.f32 %v3221, %v3221
      %v3254 = vmul.f32 %v3222, %v3222
      %v3255 = vmul.f32 %v3223, %v3223
      %v3256 = vmul.f32 %v3224, %v3224
      %v3257 = vmul.f32 %v3225, %v3225
      %v3258 = vmul.f32 %v3226, %v3226
      %v3259 = vmul.f32 %v3227, %v3227
      %v3260 = vmul.f32 %v3228, %v3228
      %v3261 = vmul.f32 %v3229, %v3229
      %v3262 = vmul.f32 %v3230, %v3230
      %v3263 = vmul.f32 %v3231, %v3231
      %v3264 = vmul.f32 %v3232, %v3232
      %v3265 = vmul.f32 %v3233, %v3233
      %v3266 = vmul.f32 %v3234, %v3234
      %v3267 = vmul.f32 %v3235, %v3235
      %v3268 = vmul.f32 %v3236, %v3236
      %v3269 = vmul.f32 %v3237, %v3237
      %v3270 = vmul.f32 %v3238, %v3238
      %v3271 = vmul.f32 %v3239, %v3239
      %v3272 = vmul.f32 %v3240, %v3240
      %v3273 = vmul.f32 %v3241, %v3241
      %v3274 = vadd.f32 %v3242, %v3243
      %v3275 = vadd.f32 %v3274, %v3244
      %v3276 = vadd.f32 %v3275, %v3245
      %v3277 = vadd.f32 %v3276, %v3246
      %v3278 = vadd.f32 %v3277, %v3247
      %v3279 = vadd.f32 %v3278, %v3248
      %v3280 = vadd.f32 %v3279, %v3249
      %v3281 = vadd.f32 %v3280, %v3250
      %v3282 = vadd.f32 %v3281, %v3251
      %v3283 = vadd.f32 %v3282, %v3252
      %v3284 = vadd.f32 %v3283, %v3253
      %v3285 = vadd.f32 %v3284, %v3254
      %v3286 = vadd.f32 %v3285, %v3255
      %v3287 = vadd.f32 %v3286, %v3256
      %v3288 = vadd.f32 %v3287, %v3257
      %v3289 = vadd.f32 %v3288, %v3258
      %v3290 = vadd.f32 %v3289, %v3259
      %v3291 = vadd.f32 %v3290, %v3260
      %v3292 = vadd.f32 %v3291, %v3261
      %v3293 = vadd.f32 %v3292, %v3262
      %v3294 = vadd.f32 %v3293, %v3263
      %v3295 = vadd.f32 %v3294, %v3264
      %v3296 = vadd.f32 %v3295, %v3265
      %v3297 = vadd.f32 %v3296, %v3266
      %v3298 = vadd.f32 %v3297, %v3267
      %v3299 = vadd.f32 %v3298, %v3268
      %v3300 = vadd.f32 %v3299, %v3269
      %v3301 = vadd.f32 %v3300, %v3270
      %v3302 = vadd.f32 %v3301, %v3271
      %v3303 = vadd.f32 %v3302, %v3272
      %v3304 = vadd.f32 %v3303, %v3273
      %v3305 = vrot.slane %v3304, 4
      %v3306 = vadd.f32 %v3304, %v3305
      %v3307 = vrot.slane %v3306, 2
      %v3308 = vadd.f32 %v3306, %v3307
      %v3309 = vrot.slane %v3308, 1
      %v3310 = vadd.f32 %v3308, %v3309
      %v3311 = vmul.f32 %v3310, %v3208
      %v3312 = vadd.f32 %v3311, 1e-05
      %v3313 = vrsqrt.pop %v3312
      %v3314 = vmul.f32 %v3210, %v3313
      %v3315 = vmul.f32 %v3211, %v3313
      %v3316 = vmul.f32 %v3212, %v3313
      %v3317 = vmul.f32 %v3213, %v3313
      %v3318 = vmul.f32 %v3214, %v3313
      %v3319 = vmul.f32 %v3215, %v3313
      %v3320 = vmul.f32 %v3216, %v3313
      %v3321 = vmul.f32 %v3217, %v3313
      %v3322 = vmul.f32 %v3218, %v3313
      %v3323 = vmul.f32 %v3219, %v3313
      %v3324 = vmul.f32 %v3220, %v3313
      %v3325 = vmul.f32 %v3221, %v3313
      %v3326 = vmul.f32 %v3222, %v3313
      %v3327 = vmul.f32 %v3223, %v3313
      %v3328 = vmul.f32 %v3224, %v3313
      %v3329 = vmul.f32 %v3225, %v3313
      %v3330 = vmul.f32 %v3226, %v3313
      %v3331 = vmul.f32 %v3227, %v3313
      %v3332 = vmul.f32 %v3228, %v3313
      %v3333 = vmul.f32 %v3229, %v3313
      %v3334 = vmul.f32 %v3230, %v3313
      %v3335 = vmul.f32 %v3231, %v3313
      %v3336 = vmul.f32 %v3232, %v3313
      %v3337 = vmul.f32 %v3233, %v3313
      %v3338 = vmul.f32 %v3234, %v3313
      %v3339 = vmul.f32 %v3235, %v3313
      %v3340 = vmul.f32 %v3236, %v3313
      %v3341 = vmul.f32 %v3237, %v3313
      %v3342 = vmul.f32 %v3238, %v3313
      %v3343 = vmul.f32 %v3239, %v3313
      %v3344 = vmul.f32 %v3240, %v3313
      %v3345 = vmul.f32 %v3241, %v3313
      %v3346 = vmax.f32 %v3314, 0.0
      %v3347 = vmax.f32 %v3315, 0.0
      %v3348 = vmax.f32 %v3316, 0.0
      %v3349 = vmax.f32 %v3317, 0.0
      %v3350 = vmax.f32 %v3318, 0.0
      %v3351 = vmax.f32 %v3319, 0.0
      %v3352 = vmax.f32 %v3320, 0.0
      %v3353 = vmax.f32 %v3321, 0.0
      %v3354 = vmax.f32 %v3322, 0.0
      %v3355 = vmax.f32 %v3323, 0.0
      %v3356 = vmax.f32 %v3324, 0.0
      %v3357 = vmax.f32 %v3325, 0.0
      %v3358 = vmax.f32 %v3326, 0.0
      %v3359 = vmax.f32 %v3327, 0.0
      %v3360 = vmax.f32 %v3328, 0.0
      %v3361 = vmax.f32 %v3329, 0.0
      %v3362 = vmax.f32 %v3330, 0.0
      %v3363 = vmax.f32 %v3331, 0.0
      %v3364 = vmax.f32 %v3332, 0.0
      %v3365 = vmax.f32 %v3333, 0.0
      %v3366 = vmax.f32 %v3334, 0.0
      %v3367 = vmax.f32 %v3335, 0.0
      %v3368 = vmax.f32 %v3336, 0.0
      %v3369 = vmax.f32 %v3337, 0.0
      %v3370 = vmax.f32 %v3338, 0.0
      %v3371 = vmax.f32 %v3339, 0.0
      %v3372 = vmax.f32 %v3340, 0.0
      %v3373 = vmax.f32 %v3341, 0.0
      %v3374 = vmax.f32 %v3342, 0.0
      %v3375 = vmax.f32 %v3343, 0.0
      %v3376 = vmax.f32 %v3344, 0.0
      %v3377 = vmax.f32 %v3345, 0.0
      %3378 = vst [vmem:[%s409 + $0x1] sm:$0xff] %v3346
      %3379 = vst [vmem:[%s409 + $0x9] sm:$0xff] %v3347
      %3380 = vst [vmem:[%s409 + $0x19] sm:$0xff] %v3348
      %3381 = vst [vmem:[%s409 + $0x21] sm:$0xff] %v3349
      %3382 = vst [vmem:[%s409 + $0x31] sm:$0xff] %v3350
      %3383 = vst [vmem:[%s409 + $0x39] sm:$0xff] %v3351
      %3384 = vst [vmem:[%s409 + $0x49] sm:$0xff] %v3352
      %3385 = vst [vmem:[%s409 + $0x51] sm:$0xff] %v3353
      %3386 = vst [vmem:[%s409 + $0x61] sm:$0xff] %v3354
      %3387 = vst [vmem:[%s409 + $0x69] sm:$0xff] %v3355
      %3388 = vst [vmem:[%s409 + $0x79] sm:$0xff] %v3356
      %3389 = vst [vmem:[%s409 + $0x81] sm:$0xff] %v3357
      %3390 = vst [vmem:[%s409 + $0x91] sm:$0xff] %v3358
      %3391 = vst [vmem:[%s409 + $0x99] sm:$0xff] %v3359
      %3392 = vst [vmem:[%s409 + $0xa9] sm:$0xff] %v3360
      %3393 = vst [vmem:[%s409 + $0xb1] sm:$0xff] %v3361
      %3394 = vst [vmem:[%s409 + $0xc1] sm:$0xff] %v3362
      %3395 = vst [vmem:[%s409 + $0xc9] sm:$0xff] %v3363
      %3396 = vst [vmem:[%s409 + $0xd9] sm:$0xff] %v3364
      %3397 = vst [vmem:[%s409 + $0xe1] sm:$0xff] %v3365
      %3398 = vst [vmem:[%s409 + $0xf1] sm:$0xff] %v3366
      %3399 = vst [vmem:[%s409 + $0xf9] sm:$0xff] %v3367
      %3400 = vst [vmem:[%s409 + $0x109] sm:$0xff] %v3368
      %3401 = vst [vmem:[%s409 + $0x111] sm:$0xff] %v3369
      %3402 = vst [vmem:[%s409 + $0x121] sm:$0xff] %v3370
      %3403 = vst [vmem:[%s409 + $0x129] sm:$0xff] %v3371
      %3404 = vst [vmem:[%s409 + $0x139] sm:$0xff] %v3372
      %3405 = vst [vmem:[%s409 + $0x141] sm:$0xff] %v3373
      %3406 = vst [vmem:[%s409 + $0x151] sm:$0xff] %v3374
      %3407 = vst [vmem:[%s409 + $0x159] sm:$0xff] %v3375
      %3408 = vst [vmem:[%s409 + $0x169] sm:$0xff] %v3376
      %3409 = vst [vmem:[%s409 + $0x171] sm:$0xff] %v3377
      %v3410 = vld [vmem:[#allocation2] sm:$0xff]
      %v3411 = vld [vmem:[#allocation2 + $0x8] sm:$0xff]
      %v3412 = vld [vmem:[#allocation2 + $0x18] sm:$0xff]
      %v3413 = vld [vmem:[#allocation2 + $0x20] sm:$0xff]
      %v3414 = vld [vmem:[#allocation2 + $0x30] sm:$0xff]
      %v3415 = vld [vmem:[#allocation2 + $0x38] sm:$0xff]
      %v3416 = vld [vmem:[#allocation2 + $0x48] sm:$0xff]
      %v3417 = vld [vmem:[#allocation2 + $0x50] sm:$0xff]
      %v3418 = vld [vmem:[#allocation2 + $0x60] sm:$0xff]
      %v3419 = vld [vmem:[#allocation2 + $0x68] sm:$0xff]
      %v3420 = vld [vmem:[#allocation2 + $0x78] sm:$0xff]
      %v3421 = vld [vmem:[#allocation2 + $0x80] sm:$0xff]
      %v3422 = vld [vmem:[#allocation2 + $0x90] sm:$0xff]
      %v3423 = vld [vmem:[#allocation2 + $0x98] sm:$0xff]
      %v3424 = vld [vmem:[#allocation2 + $0xa8] sm:$0xff]
      %v3425 = vld [vmem:[#allocation2 + $0xb0] sm:$0xff]
      %v3426 = vld [vmem:[#allocation2 + $0xc0] sm:$0xff]
      %v3427 = vld [vmem:[#allocation2 + $0xc8] sm:$0xff]
      %v3428 = vld [vmem:[#allocation2 + $0xd8] sm:$0xff]
      %v3429 = vld [vmem:[#allocation2 + $0xe0] sm:$0xff]
      %v3430 = vld [vmem:[#allocation2 + $0xf0] sm:$0xff]
      %v3431 = vld [vmem:[#allocation2 + $0xf8] sm:$0xff]
      %v3432 = vld [vmem:[#allocation2 + $0x108] sm:$0xff]
      %v3433 = vld [vmem:[#allocation2 + $0x110] sm:$0xff]
      %v3434 = vld [vmem:[#allocation2 + $0x120] sm:$0xff]
      %v3435 = vld [vmem:[#allocation2 + $0x128] sm:$0xff]
      %v3436 = vld [vmem:[#allocation2 + $0x138] sm:$0xff]
      %v3437 = vld [vmem:[#allocation2 + $0x140] sm:$0xff]
      %v3438 = vld [vmem:[#allocation2 + $0x150] sm:$0xff]
      %v3439 = vld [vmem:[#allocation2 + $0x158] sm:$0xff]
      %v3440 = vld [vmem:[#allocation2 + $0x168] sm:$0xff]
      %v3441 = vld [vmem:[#allocation2 + $0x170] sm:$0xff]
      %v3442 = vpack.c.bf16 %v3411, %v3410
      %v3443 = vpack.c.bf16 %v3413, %v3412
      %v3444 = vpack.c.bf16 %v3415, %v3414
      %v3445 = vpack.c.bf16 %v3417, %v3416
      %v3446 = vpack.c.bf16 %v3419, %v3418
      %v3447 = vpack.c.bf16 %v3421, %v3420
      %v3448 = vpack.c.bf16 %v3423, %v3422
      %v3449 = vpack.c.bf16 %v3425, %v3424
      %v3450 = vpack.c.bf16 %v3427, %v3426
      %v3451 = vpack.c.bf16 %v3429, %v3428
      %v3452 = vpack.c.bf16 %v3431, %v3430
      %v3453 = vpack.c.bf16 %v3433, %v3432
      %v3454 = vpack.c.bf16 %v3435, %v3434
      %v3455 = vpack.c.bf16 %v3437, %v3436
      %v3456 = vpack.c.bf16 %v3439, %v3438
      %v3457 = vpack.c.bf16 %v3441, %v3440
      %v3458 = vld [vmem:[%s3] sm:$0xf]
      %v3459 = vld [vmem:[%s3 + $0x4] sm:$0xf]
      %v3460 = vld [vmem:[%s3 + $0x8] sm:$0xf]
      %v3461 = vld [vmem:[%s3 + $0xc] sm:$0xf]
      %v3462 = vld [vmem:[%s3 + $0x10] sm:$0xf]
      %v3463 = vld [vmem:[%s3 + $0x14] sm:$0xf]
      %v3464 = vld [vmem:[%s3 + $0x18] sm:$0xf]
      %v3465 = vld [vmem:[%s3 + $0x1c] sm:$0xf]
      %v3466 = vld [vmem:[%s3 + $0x20] sm:$0xf]
      %v3467 = vld [vmem:[%s3 + $0x24] sm:$0xf]
      %v3468 = vld [vmem:[%s3 + $0x28] sm:$0xf]
      %v3469 = vld [vmem:[%s3 + $0x2c] sm:$0xf]
      %v3470 = vld [vmem:[%s3 + $0x30] sm:$0xf]
      %v3471 = vld [vmem:[%s3 + $0x34] sm:$0xf]
      %v3472 = vld [vmem:[%s3 + $0x38] sm:$0xf]
      %v3473 = vld [vmem:[%s3 + $0x3c] sm:$0xf]
      %v3474 = vld [vmem:[#allocation2 + $0x1] sm:$0xff]
      %v3475 = vld [vmem:[#allocation2 + $0x9] sm:$0xff]
      %v3476 = vld [vmem:[#allocation2 + $0x19] sm:$0xff]
      %v3477 = vld [vmem:[#allocation2 + $0x21] sm:$0xff]
      %v3478 = vld [vmem:[#allocation2 + $0x31] sm:$0xff]
      %v3479 = vld [vmem:[#allocation2 + $0x39] sm:$0xff]
      %v3480 = vld [vmem:[#allocation2 + $0x49] sm:$0xff]
      %v3481 = vld [vmem:[#allocation2 + $0x51] sm:$0xff]
      %v3482 = vld [vmem:[#allocation2 + $0x61] sm:$0xff]
      %v3483 = vld [vmem:[#allocation2 + $0x69] sm:$0xff]
      %v3484 = vld [vmem:[#allocation2 + $0x79] sm:$0xff]
      %v3485 = vld [vmem:[#allocation2 + $0x81] sm:$0xff]
      %v3486 = vld [vmem:[#allocation2 + $0x91] sm:$0xff]
      %v3487 = vld [vmem:[#allocation2 + $0x99] sm:$0xff]
      %v3488 = vld [vmem:[#allocation2 + $0xa9] sm:$0xff]
      %v3489 = vld [vmem:[#allocation2 + $0xb1] sm:$0xff]
      %v3490 = vld [vmem:[#allocation2 + $0xc1] sm:$0xff]
      %v3491 = vld [vmem:[#allocation2 + $0xc9] sm:$0xff]
      %v3492 = vld [vmem:[#allocation2 + $0xd9] sm:$0xff]
      %v3493 = vld [vmem:[#allocation2 + $0xe1] sm:$0xff]
      %v3494 = vld [vmem:[#allocation2 + $0xf1] sm:$0xff]
      %v3495 = vld [vmem:[#allocation2 + $0xf9] sm:$0xff]
      %v3496 = vld [vmem:[#allocation2 + $0x109] sm:$0xff]
      %v3497 = vld [vmem:[#allocation2 + $0x111] sm:$0xff]
      %v3498 = vld [vmem:[#allocation2 + $0x121] sm:$0xff]
      %v3499 = vld [vmem:[#allocation2 + $0x129] sm:$0xff]
      %v3500 = vld [vmem:[#allocation2 + $0x139] sm:$0xff]
      %v3501 = vld [vmem:[#allocation2 + $0x141] sm:$0xff]
      %v3502 = vld [vmem:[#allocation2 + $0x151] sm:$0xff]
      %v3503 = vld [vmem:[#allocation2 + $0x159] sm:$0xff]
      %v3504 = vld [vmem:[#allocation2 + $0x169] sm:$0xff]
      %v3505 = vld [vmem:[#allocation2 + $0x171] sm:$0xff]
      %v3506 = vpack.c.bf16 %v3475, %v3474
      %v3507 = vpack.c.bf16 %v3477, %v3476
      %v3508 = vpack.c.bf16 %v3479, %v3478
      %v3509 = vpack.c.bf16 %v3481, %v3480
      %v3510 = vpack.c.bf16 %v3483, %v3482
      %v3511 = vpack.c.bf16 %v3485, %v3484
      %v3512 = vpack.c.bf16 %v3487, %v3486
      %v3513 = vpack.c.bf16 %v3489, %v3488
      %v3514 = vpack.c.bf16 %v3491, %v3490
      %v3515 = vpack.c.bf16 %v3493, %v3492
      %v3516 = vpack.c.bf16 %v3495, %v3494
      %v3517 = vpack.c.bf16 %v3497, %v3496
      %v3518 = vpack.c.bf16 %v3499, %v3498
      %v3519 = vpack.c.bf16 %v3501, %v3500
      %v3520 = vpack.c.bf16 %v3503, %v3502
      %v3521 = vpack.c.bf16 %v3505, %v3504
      %s3522 = scalar_lea.vmem %s3, 64
      %v3523 = vld [vmem:[%s3522] sm:$0xf]
      %v3524 = vld [vmem:[%s3522 + $0x4] sm:$0xf]
      %v3525 = vld [vmem:[%s3522 + $0x8] sm:$0xf]
      %v3526 = vld [vmem:[%s3522 + $0xc] sm:$0xf]
      %v3527 = vld [vmem:[%s3522 + $0x10] sm:$0xf]
      %v3528 = vld [vmem:[%s3522 + $0x14] sm:$0xf]
      %v3529 = vld [vmem:[%s3522 + $0x18] sm:$0xf]
      %v3530 = vld [vmem:[%s3522 + $0x1c] sm:$0xf]
      %v3531 = vld [vmem:[%s3522 + $0x20] sm:$0xf]
      %v3532 = vld [vmem:[%s3522 + $0x24] sm:$0xf]
      %v3533 = vld [vmem:[%s3522 + $0x28] sm:$0xf]
      %v3534 = vld [vmem:[%s3522 + $0x2c] sm:$0xf]
      %v3535 = vld [vmem:[%s3522 + $0x30] sm:$0xf]
      %v3536 = vld [vmem:[%s3522 + $0x34] sm:$0xf]
      %v3537 = vld [vmem:[%s3522 + $0x38] sm:$0xf]
      %v3538 = vld [vmem:[%s3522 + $0x3c] sm:$0xf]
      %v3555 = vunpack.c.l.b16 %v3523
      %v3556 = vunpack.c.l.b16 %v3524
      %v3557 = vunpack.c.l.b16 %v3525
      %v3558 = vunpack.c.l.b16 %v3526
      %v3559 = vunpack.c.l.b16 %v3527
      %v3560 = vunpack.c.l.b16 %v3528
      %v3561 = vunpack.c.l.b16 %v3529
      %v3562 = vunpack.c.l.b16 %v3530
      %v3563 = vunpack.c.l.b16 %v3531
      %v3564 = vunpack.c.l.b16 %v3532
      %v3565 = vunpack.c.l.b16 %v3533
      %v3566 = vunpack.c.l.b16 %v3534
      %v3567 = vunpack.c.l.b16 %v3535
      %v3568 = vunpack.c.l.b16 %v3536
      %v3569 = vunpack.c.l.b16 %v3537
      %v3570 = vunpack.c.l.b16 %v3538
      %v3571 = vpack.c.b16 %v3556, %v3555
      %v3572 = vpack.c.b16 %v3558, %v3557
      %v3573 = vpack.c.b16 %v3560, %v3559
      %v3574 = vpack.c.b16 %v3562, %v3561
      %v3575 = vpack.c.b16 %v3564, %v3563
      %v3576 = vpack.c.b16 %v3566, %v3565
      %v3577 = vpack.c.b16 %v3568, %v3567
      %v3578 = vpack.c.b16 %v3570, %v3569
      %3587 = vmatprep.subr.bf16.mxu0 0
      %3588 = vmatpush1.bf16.msra.mxu0 %v3571
      %3589 = vmatprep.subr.bf16.mxu0 0
      %3590 = vmatpush1.bf16.msra.mxu0 %v3572
      %3591 = vmatprep.subr.bf16.mxu0 0
      %3592 = vmatpush1.bf16.msra.mxu0 %v3573
      %3593 = vmatprep.subr.bf16.mxu0 0
      %3594 = vmatpush1.bf16.msra.mxu0 %v3574
      %3595 = vmatprep.subr.bf16.mxu0 0
      %3596 = vmatpush1.bf16.msra.mxu0 %v3575
      %3597 = vmatprep.subr.bf16.mxu0 0
      %3598 = vmatpush1.bf16.msra.mxu0 %v3576
      %3599 = vmatprep.subr.bf16.mxu0 0
      %3600 = vmatpush1.bf16.msra.mxu0 %v3577
      %3601 = vmatprep.subr.bf16.mxu0 0
      %3602 = vmatpush1.bf16.msra.mxu0 %v3578
      %3603 = vmatprep.subr.bf16.mxu0 0
      %3604 = vmatpush1.bf16.msra.mxu0 0
      %3605 = vmatprep.subr.bf16.mxu0 0
      %3606 = vmatpush1.bf16.msra.mxu0 0
      %3607 = vmatprep.subr.bf16.mxu0 0
      %3608 = vmatpush1.bf16.msra.mxu0 0
      %3609 = vmatprep.subr.bf16.mxu0 0
      %3610 = vmatpush1.bf16.msra.mxu0 0
      %3611 = vmatprep.subr.bf16.mxu0 0
      %3612 = vmatpush1.bf16.msra.mxu0 0
      %3613 = vmatprep.subr.bf16.mxu0 0
      %3614 = vmatpush1.bf16.msra.mxu0 0
      %3615 = vmatprep.subr.bf16.mxu0 0
      %3616 = vmatpush1.bf16.msra.mxu0 0
      %3617 = vmatprep.subr.bf16.mxu0 0
      %3618 = vmatpush1.bf16.msra.mxu0 0
      %3619 = vmatprep.mubr.bf16.mxu0 0
      %3620 = vmatmul.mubr.bf16.gmra.mrb[0].mxu0 %v3506
      %v3621 = vpop.f32.mrb[0].mxu0
      %v3622 = vadd.f32 0.0, %v3621
      %v3623 = vpop.f32.mrb[0].mxu0
      %v3624 = vpop.f32.mrb[0].mxu0
      %v3625 = vadd.f32 0.0, %v3624
      %v3626 = vpop.f32.mrb[0].mxu0
      %3627 = vmatprep.mubr.bf16.mxu0 0
      %3628 = vmatmul.mubr.bf16.gmra.mrb[0].mxu0 %v3507
      %v3629 = vpop.f32.mrb[0].mxu0
      %v3630 = vadd.f32 0.0, %v3629
      %v3631 = vpop.f32.mrb[0].mxu0
      %v3632 = vpop.f32.mrb[0].mxu0
      %v3633 = vadd.f32 0.0, %v3632
      %v3634 = vpop.f32.mrb[0].mxu0
      %3635 = vmatprep.mubr.bf16.mxu0 0
      %3636 = vmatmul.mubr.bf16.gmra.mrb[0].mxu0 %v3508
      %v3637 = vpop.f32.mrb[0].mxu0
      %v3638 = vadd.f32 0.0, %v3637
      %v3639 = vpop.f32.mrb[0].mxu0
      %v3640 = vpop.f32.mrb[0].mxu0
      %v3641 = vadd.f32 0.0, %v3640
      %v3642 = vpop.f32.mrb[0].mxu0
      %3643 = vmatprep.mubr.bf16.mxu0 0
      %3644 = vmatmul.mubr.bf16.gmra.mrb[0].mxu0 %v3509
      %v3645 = vpop.f32.mrb[0].mxu0
      %v3646 = vadd.f32 0.0, %v3645
      %v3647 = vpop.f32.mrb[0].mxu0
      %v3648 = vpop.f32.mrb[0].mxu0
      %v3649 = vadd.f32 0.0, %v3648
      %v3650 = vpop.f32.mrb[0].mxu0
      %3651 = vmatprep.mubr.bf16.mxu0 0
      %3652 = vmatmul.mubr.bf16.gmra.mrb[0].mxu0 %v3510
      %v3653 = vpop.f32.mrb[0].mxu0
      %v3654 = vadd.f32 0.0, %v3653
      %v3655 = vpop.f32.mrb[0].mxu0
      %v3656 = vpop.f32.mrb[0].mxu0
      %v3657 = vadd.f32 0.0, %v3656
      %v3658 = vpop.f32.mrb[0].mxu0
      %3659 = vmatprep.mubr.bf16.mxu0 0
      %3660 = vmatmul.mubr.bf16.gmra.mrb[0].mxu0 %v3511
      %v3661 = vpop.f32.mrb[0].mxu0
      %v3662 = vadd.f32 0.0, %v3661
      %v3663 = vpop.f32.mrb[0].mxu0
      %v3664 = vpop.f32.mrb[0].mxu0
      %v3665 = vadd.f32 0.0, %v3664
      %v3666 = vpop.f32.mrb[0].mxu0
      %3667 = vmatprep.mubr.bf16.mxu0 0
      %3668 = vmatmul.mubr.bf16.gmra.mrb[0].mxu0 %v3512
      %v3669 = vpop.f32.mrb[0].mxu0
      %v3670 = vadd.f32 0.0, %v3669
      %v3671 = vpop.f32.mrb[0].mxu0
      %v3672 = vpop.f32.mrb[0].mxu0
      %v3673 = vadd.f32 0.0, %v3672
      %v3674 = vpop.f32.mrb[0].mxu0
      %3675 = vmatprep.mubr.bf16.mxu0 0
      %3676 = vmatmul.mubr.bf16.gmra.mrb[0].mxu0 %v3513
      %v3677 = vpop.f32.mrb[0].mxu0
      %v3678 = vadd.f32 0.0, %v3677
      %v3679 = vpop.f32.mrb[0].mxu0
      %v3680 = vpop.f32.mrb[0].mxu0
      %v3681 = vadd.f32 0.0, %v3680
      %v3682 = vpop.f32.mrb[0].mxu0
      %3683 = vmatprep.mubr.bf16.mxu0 0
      %3684 = vmatmul.mubr.bf16.gmra.mrb[0].mxu0 %v3514
      %v3685 = vpop.f32.mrb[0].mxu0
      %v3686 = vadd.f32 0.0, %v3685
      %v3687 = vpop.f32.mrb[0].mxu0
      %v3688 = vpop.f32.mrb[0].mxu0
      %v3689 = vadd.f32 0.0, %v3688
      %v3690 = vpop.f32.mrb[0].mxu0
      %3691 = vmatprep.mubr.bf16.mxu0 0
      %3692 = vmatmul.mubr.bf16.gmra.mrb[0].mxu0 %v3515
      %v3693 = vpop.f32.mrb[0].mxu0
      %v3694 = vadd.f32 0.0, %v3693
      %v3695 = vpop.f32.mrb[0].mxu0
      %v3696 = vpop.f32.mrb[0].mxu0
      %v3697 = vadd.f32 0.0, %v3696
      %v3698 = vpop.f32.mrb[0].mxu0
      %3699 = vmatprep.mubr.bf16.mxu0 0
      %3700 = vmatmul.mubr.bf16.gmra.mrb[0].mxu0 %v3516
      %v3701 = vpop.f32.mrb[0].mxu0
      %v3702 = vadd.f32 0.0, %v3701
      %v3703 = vpop.f32.mrb[0].mxu0
      %v3704 = vpop.f32.mrb[0].mxu0
      %v3705 = vadd.f32 0.0, %v3704
      %v3706 = vpop.f32.mrb[0].mxu0
      %3707 = vmatprep.mubr.bf16.mxu0 0
      %3708 = vmatmul.mubr.bf16.gmra.mrb[0].mxu0 %v3517
      %v3709 = vpop.f32.mrb[0].mxu0
      %v3710 = vadd.f32 0.0, %v3709
      %v3711 = vpop.f32.mrb[0].mxu0
      %v3712 = vpop.f32.mrb[0].mxu0
      %v3713 = vadd.f32 0.0, %v3712
      %v3714 = vpop.f32.mrb[0].mxu0
      %3715 = vmatprep.mubr.bf16.mxu0 0
      %3716 = vmatmul.mubr.bf16.gmra.mrb[0].mxu0 %v3518
      %v3717 = vpop.f32.mrb[0].mxu0
      %v3718 = vadd.f32 0.0, %v3717
      %v3719 = vpop.f32.mrb[0].mxu0
      %v3720 = vpop.f32.mrb[0].mxu0
      %v3721 = vadd.f32 0.0, %v3720
      %v3722 = vpop.f32.mrb[0].mxu0
      %3723 = vmatprep.mubr.bf16.mxu0 0
      %3724 = vmatmul.mubr.bf16.gmra.mrb[0].mxu0 %v3519
      %v3725 = vpop.f32.mrb[0].mxu0
      %v3726 = vadd.f32 0.0, %v3725
      %v3727 = vpop.f32.mrb[0].mxu0
      %v3728 = vpop.f32.mrb[0].mxu0
      %v3729 = vadd.f32 0.0, %v3728
      %v3730 = vpop.f32.mrb[0].mxu0
      %3731 = vmatprep.mubr.bf16.mxu0 0
      %3732 = vmatmul.mubr.bf16.gmra.mrb[0].mxu0 %v3520
      %v3733 = vpop.f32.mrb[0].mxu0
      %v3734 = vadd.f32 0.0, %v3733
      %v3735 = vpop.f32.mrb[0].mxu0
      %v3736 = vpop.f32.mrb[0].mxu0
      %v3737 = vadd.f32 0.0, %v3736
      %v3738 = vpop.f32.mrb[0].mxu0
      %3739 = vmatprep.mubr.bf16.mxu0 0
      %3740 = vmatmul.mubr.bf16.gmra.mrb[0].mxu0 %v3521
      %v3741 = vpop.f32.mrb[0].mxu0
      %v3742 = vadd.f32 0.0, %v3741
      %v3743 = vpop.f32.mrb[0].mxu0
      %v3744 = vpop.f32.mrb[0].mxu0
      %v3745 = vadd.f32 0.0, %v3744
      %v3746 = vpop.f32.mrb[0].mxu0
      %3747 = vdwg.mxu0
      %v3764 = vunpack.c.l.b16 %v3458
      %v3765 = vunpack.c.l.b16 %v3459
      %v3766 = vunpack.c.l.b16 %v3460
      %v3767 = vunpack.c.l.b16 %v3461
      %v3768 = vunpack.c.l.b16 %v3462
      %v3769 = vunpack.c.l.b16 %v3463
      %v3770 = vunpack.c.l.b16 %v3464
      %v3771 = vunpack.c.l.b16 %v3465
      %v3772 = vunpack.c.l.b16 %v3466
      %v3773 = vunpack.c.l.b16 %v3467
      %v3774 = vunpack.c.l.b16 %v3468
      %v3775 = vunpack.c.l.b16 %v3469
      %v3776 = vunpack.c.l.b16 %v3470
      %v3777 = vunpack.c.l.b16 %v3471
      %v3778 = vunpack.c.l.b16 %v3472
      %v3779 = vunpack.c.l.b16 %v3473
      %v3780 = vpack.c.b16 %v3765, %v3764
      %v3781 = vpack.c.b16 %v3767, %v3766
      %v3782 = vpack.c.b16 %v3769, %v3768
      %v3783 = vpack.c.b16 %v3771, %v3770
      %v3784 = vpack.c.b16 %v3773, %v3772
      %v3785 = vpack.c.b16 %v3775, %v3774
      %v3786 = vpack.c.b16 %v3777, %v3776
      %v3787 = vpack.c.b16 %v3779, %v3778
      %3796 = vmatprep.subr.bf16.mxu0 0
      %3797 = vmatpush1.bf16.msra.mxu0 %v3780
      %3798 = vmatprep.subr.bf16.mxu0 0
      %3799 = vmatpush1.bf16.msra.mxu0 %v3781
      %3800 = vmatprep.subr.bf16.mxu0 0
      %3801 = vmatpush1.bf16.msra.mxu0 %v3782
      %3802 = vmatprep.subr.bf16.mxu0 0
      %3803 = vmatpush1.bf16.msra.mxu0 %v3783
      %3804 = vmatprep.subr.bf16.mxu0 0
      %3805 = vmatpush1.bf16.msra.mxu0 %v3784
      %3806 = vmatprep.subr.bf16.mxu0 0
      %3807 = vmatpush1.bf16.msra.mxu0 %v3785
      %3808 = vmatprep.subr.bf16.mxu0 0
      %3809 = vmatpush1.bf16.msra.mxu0 %v3786
      %3810 = vmatprep.subr.bf16.mxu0 0
      %3811 = vmatpush1.bf16.msra.mxu0 %v3787
      %3812 = vmatprep.subr.bf16.mxu0 0
      %3813 = vmatpush1.bf16.msra.mxu0 0
      %3814 = vmatprep.subr.bf16.mxu0 0
      %3815 = vmatpush1.bf16.msra.mxu0 0
      %3816 = vmatprep.subr.bf16.mxu0 0
      %3817 = vmatpush1.bf16.msra.mxu0 0
      %3818 = vmatprep.subr.bf16.mxu0 0
      %3819 = vmatpush1.bf16.msra.mxu0 0
      %3820 = vmatprep.subr.bf16.mxu0 0
      %3821 = vmatpush1.bf16.msra.mxu0 0
      %3822 = vmatprep.subr.bf16.mxu0 0
      %3823 = vmatpush1.bf16.msra.mxu0 0
      %3824 = vmatprep.subr.bf16.mxu0 0
      %3825 = vmatpush1.bf16.msra.mxu0 0
      %3826 = vmatprep.subr.bf16.mxu0 0
      %3827 = vmatpush1.bf16.msra.mxu0 0
      %3828 = vmatprep.mubr.bf16.mxu0 0
      %3829 = vmatmul.mubr.bf16.gmra.mrb[0].mxu0 %v3442
      %v3830 = vpop.f32.mrb[0].mxu0
      %v3831 = vadd.f32 %v3622, %v3830
      %v3832 = vpop.f32.mrb[0].mxu0
      %v3833 = vpop.f32.mrb[0].mxu0
      %v3834 = vadd.f32 %v3625, %v3833
      %v3835 = vpop.f32.mrb[0].mxu0
      %3836 = vmatprep.mubr.bf16.mxu0 0
      %3837 = vmatmul.mubr.bf16.gmra.mrb[0].mxu0 %v3443
      %v3838 = vpop.f32.mrb[0].mxu0
      %v3839 = vadd.f32 %v3630, %v3838
      %v3840 = vpop.f32.mrb[0].mxu0
      %v3841 = vpop.f32.mrb[0].mxu0
      %v3842 = vadd.f32 %v3633, %v3841
      %v3843 = vpop.f32.mrb[0].mxu0
      %3844 = vmatprep.mubr.bf16.mxu0 0
      %3845 = vmatmul.mubr.bf16.gmra.mrb[0].mxu0 %v3444
      %v3846 = vpop.f32.mrb[0].mxu0
      %v3847 = vadd.f32 %v3638, %v3846
      %v3848 = vpop.f32.mrb[0].mxu0
      %v3849 = vpop.f32.mrb[0].mxu0
      %v3850 = vadd.f32 %v3641, %v3849
      %v3851 = vpop.f32.mrb[0].mxu0
      %3852 = vmatprep.mubr.bf16.mxu0 0
      %3853 = vmatmul.mubr.bf16.gmra.mrb[0].mxu0 %v3445
      %v3854 = vpop.f32.mrb[0].mxu0
      %v3855 = vadd.f32 %v3646, %v3854
      %v3856 = vpop.f32.mrb[0].mxu0
      %v3857 = vpop.f32.mrb[0].mxu0
      %v3858 = vadd.f32 %v3649, %v3857
      %v3859 = vpop.f32.mrb[0].mxu0
      %3860 = vmatprep.mubr.bf16.mxu0 0
      %3861 = vmatmul.mubr.bf16.gmra.mrb[0].mxu0 %v3446
      %v3862 = vpop.f32.mrb[0].mxu0
      %v3863 = vadd.f32 %v3654, %v3862
      %v3864 = vpop.f32.mrb[0].mxu0
      %v3865 = vpop.f32.mrb[0].mxu0
      %v3866 = vadd.f32 %v3657, %v3865
      %v3867 = vpop.f32.mrb[0].mxu0
      %3868 = vmatprep.mubr.bf16.mxu0 0
      %3869 = vmatmul.mubr.bf16.gmra.mrb[0].mxu0 %v3447
      %v3870 = vpop.f32.mrb[0].mxu0
      %v3871 = vadd.f32 %v3662, %v3870
      %v3872 = vpop.f32.mrb[0].mxu0
      %v3873 = vpop.f32.mrb[0].mxu0
      %v3874 = vadd.f32 %v3665, %v3873
      %v3875 = vpop.f32.mrb[0].mxu0
      %3876 = vmatprep.mubr.bf16.mxu0 0
      %3877 = vmatmul.mubr.bf16.gmra.mrb[0].mxu0 %v3448
      %v3878 = vpop.f32.mrb[0].mxu0
      %v3879 = vadd.f32 %v3670, %v3878
      %v3880 = vpop.f32.mrb[0].mxu0
      %v3881 = vpop.f32.mrb[0].mxu0
      %v3882 = vadd.f32 %v3673, %v3881
      %v3883 = vpop.f32.mrb[0].mxu0
      %3884 = vmatprep.mubr.bf16.mxu0 0
      %3885 = vmatmul.mubr.bf16.gmra.mrb[0].mxu0 %v3449
      %v3886 = vpop.f32.mrb[0].mxu0
      %v3887 = vadd.f32 %v3678, %v3886
      %v3888 = vpop.f32.mrb[0].mxu0
      %v3889 = vpop.f32.mrb[0].mxu0
      %v3890 = vadd.f32 %v3681, %v3889
      %v3891 = vpop.f32.mrb[0].mxu0
      %3892 = vmatprep.mubr.bf16.mxu0 0
      %3893 = vmatmul.mubr.bf16.gmra.mrb[0].mxu0 %v3450
      %v3894 = vpop.f32.mrb[0].mxu0
      %v3895 = vadd.f32 %v3686, %v3894
      %v3896 = vpop.f32.mrb[0].mxu0
      %v3897 = vpop.f32.mrb[0].mxu0
      %v3898 = vadd.f32 %v3689, %v3897
      %v3899 = vpop.f32.mrb[0].mxu0
      %3900 = vmatprep.mubr.bf16.mxu0 0
      %3901 = vmatmul.mubr.bf16.gmra.mrb[0].mxu0 %v3451
      %v3902 = vpop.f32.mrb[0].mxu0
      %v3903 = vadd.f32 %v3694, %v3902
      %v3904 = vpop.f32.mrb[0].mxu0
      %v3905 = vpop.f32.mrb[0].mxu0
      %v3906 = vadd.f32 %v3697, %v3905
      %v3907 = vpop.f32.mrb[0].mxu0
      %3908 = vmatprep.mubr.bf16.mxu0 0
      %3909 = vmatmul.mubr.bf16.gmra.mrb[0].mxu0 %v3452
      %v3910 = vpop.f32.mrb[0].mxu0
      %v3911 = vadd.f32 %v3702, %v3910
      %v3912 = vpop.f32.mrb[0].mxu0
      %v3913 = vpop.f32.mrb[0].mxu0
      %v3914 = vadd.f32 %v3705, %v3913
      %v3915 = vpop.f32.mrb[0].mxu0
      %3916 = vmatprep.mubr.bf16.mxu0 0
      %3917 = vmatmul.mubr.bf16.gmra.mrb[0].mxu0 %v3453
      %v3918 = vpop.f32.mrb[0].mxu0
      %v3919 = vadd.f32 %v3710, %v3918
      %v3920 = vpop.f32.mrb[0].mxu0
      %v3921 = vpop.f32.mrb[0].mxu0
      %v3922 = vadd.f32 %v3713, %v3921
      %v3923 = vpop.f32.mrb[0].mxu0
      %3924 = vmatprep.mubr.bf16.mxu0 0
      %3925 = vmatmul.mubr.bf16.gmra.mrb[0].mxu0 %v3454
      %v3926 = vpop.f32.mrb[0].mxu0
      %v3927 = vadd.f32 %v3718, %v3926
      %v3928 = vpop.f32.mrb[0].mxu0
      %v3929 = vpop.f32.mrb[0].mxu0
      %v3930 = vadd.f32 %v3721, %v3929
      %v3931 = vpop.f32.mrb[0].mxu0
      %3932 = vmatprep.mubr.bf16.mxu0 0
      %3933 = vmatmul.mubr.bf16.gmra.mrb[0].mxu0 %v3455
      %v3934 = vpop.f32.mrb[0].mxu0
      %v3935 = vadd.f32 %v3726, %v3934
      %v3936 = vpop.f32.mrb[0].mxu0
      %v3937 = vpop.f32.mrb[0].mxu0
      %v3938 = vadd.f32 %v3729, %v3937
      %v3939 = vpop.f32.mrb[0].mxu0
      %3940 = vmatprep.mubr.bf16.mxu0 0
      %3941 = vmatmul.mubr.bf16.gmra.mrb[0].mxu0 %v3456
      %v3942 = vpop.f32.mrb[0].mxu0
      %v3943 = vadd.f32 %v3734, %v3942
      %v3944 = vpop.f32.mrb[0].mxu0
      %v3945 = vpop.f32.mrb[0].mxu0
      %v3946 = vadd.f32 %v3737, %v3945
      %v3947 = vpop.f32.mrb[0].mxu0
      %3948 = vmatprep.mubr.bf16.mxu0 0
      %3949 = vmatmul.mubr.bf16.gmra.mrb[0].mxu0 %v3457
      %v3950 = vpop.f32.mrb[0].mxu0
      %v3951 = vadd.f32 %v3742, %v3950
      %v3952 = vpop.f32.mrb[0].mxu0
      %v3953 = vpop.f32.mrb[0].mxu0
      %v3954 = vadd.f32 %v3745, %v3953
      %v3955 = vpop.f32.mrb[0].mxu0
      %3956 = vdwg.mxu0
      %v3957 = vld [vmem:[#allocation2 + $0x2] sm:$0xff]
      %v3958 = vld [vmem:[#allocation2 + $0xa] sm:$0xff]
      %v3959 = vld [vmem:[#allocation2 + $0x1a] sm:$0xff]
      %v3960 = vld [vmem:[#allocation2 + $0x22] sm:$0xff]
      %v3961 = vld [vmem:[#allocation2 + $0x32] sm:$0xff]
      %v3962 = vld [vmem:[#allocation2 + $0x3a] sm:$0xff]
      %v3963 = vld [vmem:[#allocation2 + $0x4a] sm:$0xff]
      %v3964 = vld [vmem:[#allocation2 + $0x52] sm:$0xff]
      %v3965 = vld [vmem:[#allocation2 + $0x62] sm:$0xff]
      %v3966 = vld [vmem:[#allocation2 + $0x6a] sm:$0xff]
      %v3967 = vld [vmem:[#allocation2 + $0x7a] sm:$0xff]
      %v3968 = vld [vmem:[#allocation2 + $0x82] sm:$0xff]
      %v3969 = vld [vmem:[#allocation2 + $0x92] sm:$0xff]
      %v3970 = vld [vmem:[#allocation2 + $0x9a] sm:$0xff]
      %v3971 = vld [vmem:[#allocation2 + $0xaa] sm:$0xff]
      %v3972 = vld [vmem:[#allocation2 + $0xb2] sm:$0xff]
      %v3973 = vld [vmem:[#allocation2 + $0xc2] sm:$0xff]
      %v3974 = vld [vmem:[#allocation2 + $0xca] sm:$0xff]
      %v3975 = vld [vmem:[#allocation2 + $0xda] sm:$0xff]
      %v3976 = vld [vmem:[#allocation2 + $0xe2] sm:$0xff]
      %v3977 = vld [vmem:[#allocation2 + $0xf2] sm:$0xff]
      %v3978 = vld [vmem:[#allocation2 + $0xfa] sm:$0xff]
      %v3979 = vld [vmem:[#allocation2 + $0x10a] sm:$0xff]
      %v3980 = vld [vmem:[#allocation2 + $0x112] sm:$0xff]
      %v3981 = vld [vmem:[#allocation2 + $0x122] sm:$0xff]
      %v3982 = vld [vmem:[#allocation2 + $0x12a] sm:$0xff]
      %v3983 = vld [vmem:[#allocation2 + $0x13a] sm:$0xff]
      %v3984 = vld [vmem:[#allocation2 + $0x142] sm:$0xff]
      %v3985 = vld [vmem:[#allocation2 + $0x152] sm:$0xff]
      %v3986 = vld [vmem:[#allocation2 + $0x15a] sm:$0xff]
      %v3987 = vld [vmem:[#allocation2 + $0x16a] sm:$0xff]
      %v3988 = vld [vmem:[#allocation2 + $0x172] sm:$0xff]
      %v3989 = vpack.c.bf16 %v3958, %v3957
      %v3990 = vpack.c.bf16 %v3960, %v3959
      %v3991 = vpack.c.bf16 %v3962, %v3961
      %v3992 = vpack.c.bf16 %v3964, %v3963
      %v3993 = vpack.c.bf16 %v3966, %v3965
      %v3994 = vpack.c.bf16 %v3968, %v3967
      %v3995 = vpack.c.bf16 %v3970, %v3969
      %v3996 = vpack.c.bf16 %v3972, %v3971
      %v3997 = vpack.c.bf16 %v3974, %v3973
      %v3998 = vpack.c.bf16 %v3976, %v3975
      %v3999 = vpack.c.bf16 %v3978, %v3977
      %v4000 = vpack.c.bf16 %v3980, %v3979
      %v4001 = vpack.c.bf16 %v3982, %v3981
      %v4002 = vpack.c.bf16 %v3984, %v3983
      %v4003 = vpack.c.bf16 %v3986, %v3985
      %v4004 = vpack.c.bf16 %v3988, %v3987
      %s4005 = scalar_lea.vmem %s3, 128
      %v4006 = vld [vmem:[%s4005] sm:$0xf]
      %v4007 = vld [vmem:[%s4005 + $0x4] sm:$0xf]
      %v4008 = vld [vmem:[%s4005 + $0x8] sm:$0xf]
      %v4009 = vld [vmem:[%s4005 + $0xc] sm:$0xf]
      %v4010 = vld [vmem:[%s4005 + $0x10] sm:$0xf]
      %v4011 = vld [vmem:[%s4005 + $0x14] sm:$0xf]
      %v4012 = vld [vmem:[%s4005 + $0x18] sm:$0xf]
      %v4013 = vld [vmem:[%s4005 + $0x1c] sm:$0xf]
      %v4014 = vld [vmem:[%s4005 + $0x20] sm:$0xf]
      %v4015 = vld [vmem:[%s4005 + $0x24] sm:$0xf]
      %v4016 = vld [vmem:[%s4005 + $0x28] sm:$0xf]
      %v4017 = vld [vmem:[%s4005 + $0x2c] sm:$0xf]
      %v4018 = vld [vmem:[%s4005 + $0x30] sm:$0xf]
      %v4019 = vld [vmem:[%s4005 + $0x34] sm:$0xf]
      %v4020 = vld [vmem:[%s4005 + $0x38] sm:$0xf]
      %v4021 = vld [vmem:[%s4005 + $0x3c] sm:$0xf]
      %v4038 = vunpack.c.l.b16 %v4006
      %v4039 = vunpack.c.l.b16 %v4007
      %v4040 = vunpack.c.l.b16 %v4008
      %v4041 = vunpack.c.l.b16 %v4009
      %v4042 = vunpack.c.l.b16 %v4010
      %v4043 = vunpack.c.l.b16 %v4011
      %v4044 = vunpack.c.l.b16 %v4012
      %v4045 = vunpack.c.l.b16 %v4013
      %v4046 = vunpack.c.l.b16 %v4014
      %v4047 = vunpack.c.l.b16 %v4015
      %v4048 = vunpack.c.l.b16 %v4016
      %v4049 = vunpack.c.l.b16 %v4017
      %v4050 = vunpack.c.l.b16 %v4018
      %v4051 = vunpack.c.l.b16 %v4019
      %v4052 = vunpack.c.l.b16 %v4020
      %v4053 = vunpack.c.l.b16 %v4021
      %v4054 = vpack.c.b16 %v4039, %v4038
      %v4055 = vpack.c.b16 %v4041, %v4040
      %v4056 = vpack.c.b16 %v4043, %v4042
      %v4057 = vpack.c.b16 %v4045, %v4044
      %v4058 = vpack.c.b16 %v4047, %v4046
      %v4059 = vpack.c.b16 %v4049, %v4048
      %v4060 = vpack.c.b16 %v4051, %v4050
      %v4061 = vpack.c.b16 %v4053, %v4052
      %4070 = vmatprep.subr.bf16.mxu0 0
      %4071 = vmatpush1.bf16.msra.mxu0 %v4054
      %4072 = vmatprep.subr.bf16.mxu0 0
      %4073 = vmatpush1.bf16.msra.mxu0 %v4055
      %4074 = vmatprep.subr.bf16.mxu0 0
      %4075 = vmatpush1.bf16.msra.mxu0 %v4056
      %4076 = vmatprep.subr.bf16.mxu0 0
      %4077 = vmatpush1.bf16.msra.mxu0 %v4057
      %4078 = vmatprep.subr.bf16.mxu0 0
      %4079 = vmatpush1.bf16.msra.mxu0 %v4058
      %4080 = vmatprep.subr.bf16.mxu0 0
      %4081 = vmatpush1.bf16.msra.mxu0 %v4059
      %4082 = vmatprep.subr.bf16.mxu0 0
      %4083 = vmatpush1.bf16.msra.mxu0 %v4060
      %4084 = vmatprep.subr.bf16.mxu0 0
      %4085 = vmatpush1.bf16.msra.mxu0 %v4061
      %4086 = vmatprep.subr.bf16.mxu0 0
      %4087 = vmatpush1.bf16.msra.mxu0 0
      %4088 = vmatprep.subr.bf16.mxu0 0
      %4089 = vmatpush1.bf16.msra.mxu0 0
      %4090 = vmatprep.subr.bf16.mxu0 0
      %4091 = vmatpush1.bf16.msra.mxu0 0
      %4092 = vmatprep.subr.bf16.mxu0 0
      %4093 = vmatpush1.bf16.msra.mxu0 0
      %4094 = vmatprep.subr.bf16.mxu0 0
      %4095 = vmatpush1.bf16.msra.mxu0 0
      %4096 = vmatprep.subr.bf16.mxu0 0
      %4097 = vmatpush1.bf16.msra.mxu0 0
      %4098 = vmatprep.subr.bf16.mxu0 0
      %4099 = vmatpush1.bf16.msra.mxu0 0
      %4100 = vmatprep.subr.bf16.mxu0 0
      %4101 = vmatpush1.bf16.msra.mxu0 0
      %4102 = vmatprep.mubr.bf16.mxu0 0
      %4103 = vmatmul.mubr.bf16.gmra.mrb[0].mxu0 %v3989
      %v4104 = vpop.f32.mrb[0].mxu0
      %v4105 = vadd.f32 0.0, %v4104
      %v4106 = vpop.f32.mrb[0].mxu0
      %v4107 = vpop.f32.mrb[0].mxu0
      %v4108 = vadd.f32 0.0, %v4107
      %v4109 = vpop.f32.mrb[0].mxu0
      %4110 = vmatprep.mubr.bf16.mxu0 0
      %4111 = vmatmul.mubr.bf16.gmra.mrb[0].mxu0 %v3990
      %v4112 = vpop.f32.mrb[0].mxu0
      %v4113 = vadd.f32 0.0, %v4112
      %v4114 = vpop.f32.mrb[0].mxu0
      %v4115 = vpop.f32.mrb[0].mxu0
      %v4116 = vadd.f32 0.0, %v4115
      %v4117 = vpop.f32.mrb[0].mxu0
      %4118 = vmatprep.mubr.bf16.mxu0 0
      %4119 = vmatmul.mubr.bf16.gmra.mrb[0].mxu0 %v3991
      %v4120 = vpop.f32.mrb[0].mxu0
      %v4121 = vadd.f32 0.0, %v4120
      %v4122 = vpop.f32.mrb[0].mxu0
      %v4123 = vpop.f32.mrb[0].mxu0
      %v4124 = vadd.f32 0.0, %v4123
      %v4125 = vpop.f32.mrb[0].mxu0
      %4126 = vmatprep.mubr.bf16.mxu0 0
      %4127 = vmatmul.mubr.bf16.gmra.mrb[0].mxu0 %v3992
      %v4128 = vpop.f32.mrb[0].mxu0
      %v4129 = vadd.f32 0.0, %v4128
      %v4130 = vpop.f32.mrb[0].mxu0
      %v4131 = vpop.f32.mrb[0].mxu0
      %v4132 = vadd.f32 0.0, %v4131
      %v4133 = vpop.f32.mrb[0].mxu0
      %4134 = vmatprep.mubr.bf16.mxu0 0
      %4135 = vmatmul.mubr.bf16.gmra.mrb[0].mxu0 %v3993
      %v4136 = vpop.f32.mrb[0].mxu0
      %v4137 = vadd.f32 0.0, %v4136
      %v4138 = vpop.f32.mrb[0].mxu0
      %v4139 = vpop.f32.mrb[0].mxu0
      %v4140 = vadd.f32 0.0, %v4139
      %v4141 = vpop.f32.mrb[0].mxu0
      %4142 = vmatprep.mubr.bf16.mxu0 0
      %4143 = vmatmul.mubr.bf16.gmra.mrb[0].mxu0 %v3994
      %v4144 = vpop.f32.mrb[0].mxu0
      %v4145 = vadd.f32 0.0, %v4144
      %v4146 = vpop.f32.mrb[0].mxu0
      %v4147 = vpop.f32.mrb[0].mxu0
      %v4148 = vadd.f32 0.0, %v4147
      %v4149 = vpop.f32.mrb[0].mxu0
      %4150 = vmatprep.mubr.bf16.mxu0 0
      %4151 = vmatmul.mubr.bf16.gmra.mrb[0].mxu0 %v3995
      %v4152 = vpop.f32.mrb[0].mxu0
      %v4153 = vadd.f32 0.0, %v4152
      %v4154 = vpop.f32.mrb[0].mxu0
      %v4155 = vpop.f32.mrb[0].mxu0
      %v4156 = vadd.f32 0.0, %v4155
      %v4157 = vpop.f32.mrb[0].mxu0
      %4158 = vmatprep.mubr.bf16.mxu0 0
      %4159 = vmatmul.mubr.bf16.gmra.mrb[0].mxu0 %v3996
      %v4160 = vpop.f32.mrb[0].mxu0
      %v4161 = vadd.f32 0.0, %v4160
      %v4162 = vpop.f32.mrb[0].mxu0
      %v4163 = vpop.f32.mrb[0].mxu0
      %v4164 = vadd.f32 0.0, %v4163
      %v4165 = vpop.f32.mrb[0].mxu0
      %4166 = vmatprep.mubr.bf16.mxu0 0
      %4167 = vmatmul.mubr.bf16.gmra.mrb[0].mxu0 %v3997
      %v4168 = vpop.f32.mrb[0].mxu0
      %v4169 = vadd.f32 0.0, %v4168
      %v4170 = vpop.f32.mrb[0].mxu0
      %v4171 = vpop.f32.mrb[0].mxu0
      %v4172 = vadd.f32 0.0, %v4171
      %v4173 = vpop.f32.mrb[0].mxu0
      %4174 = vmatprep.mubr.bf16.mxu0 0
      %4175 = vmatmul.mubr.bf16.gmra.mrb[0].mxu0 %v3998
      %v4176 = vpop.f32.mrb[0].mxu0
      %v4177 = vadd.f32 0.0, %v4176
      %v4178 = vpop.f32.mrb[0].mxu0
      %v4179 = vpop.f32.mrb[0].mxu0
      %v4180 = vadd.f32 0.0, %v4179
      %v4181 = vpop.f32.mrb[0].mxu0
      %4182 = vmatprep.mubr.bf16.mxu0 0
      %4183 = vmatmul.mubr.bf16.gmra.mrb[0].mxu0 %v3999
      %v4184 = vpop.f32.mrb[0].mxu0
      %v4185 = vadd.f32 0.0, %v4184
      %v4186 = vpop.f32.mrb[0].mxu0
      %v4187 = vpop.f32.mrb[0].mxu0
      %v4188 = vadd.f32 0.0, %v4187
      %v4189 = vpop.f32.mrb[0].mxu0
      %4190 = vmatprep.mubr.bf16.mxu0 0
      %4191 = vmatmul.mubr.bf16.gmra.mrb[0].mxu0 %v4000
      %v4192 = vpop.f32.mrb[0].mxu0
      %v4193 = vadd.f32 0.0, %v4192
      %v4194 = vpop.f32.mrb[0].mxu0
      %v4195 = vpop.f32.mrb[0].mxu0
      %v4196 = vadd.f32 0.0, %v4195
      %v4197 = vpop.f32.mrb[0].mxu0
      %4198 = vmatprep.mubr.bf16.mxu0 0
      %4199 = vmatmul.mubr.bf16.gmra.mrb[0].mxu0 %v4001
      %v4200 = vpop.f32.mrb[0].mxu0
      %v4201 = vadd.f32 0.0, %v4200
      %v4202 = vpop.f32.mrb[0].mxu0
      %v4203 = vpop.f32.mrb[0].mxu0
      %v4204 = vadd.f32 0.0, %v4203
      %v4205 = vpop.f32.mrb[0].mxu0
      %4206 = vmatprep.mubr.bf16.mxu0 0
      %4207 = vmatmul.mubr.bf16.gmra.mrb[0].mxu0 %v4002
      %v4208 = vpop.f32.mrb[0].mxu0
      %v4209 = vadd.f32 0.0, %v4208
      %v4210 = vpop.f32.mrb[0].mxu0
      %v4211 = vpop.f32.mrb[0].mxu0
      %v4212 = vadd.f32 0.0, %v4211
      %v4213 = vpop.f32.mrb[0].mxu0
      %4214 = vmatprep.mubr.bf16.mxu0 0
      %4215 = vmatmul.mubr.bf16.gmra.mrb[0].mxu0 %v4003
      %v4216 = vpop.f32.mrb[0].mxu0
      %v4217 = vadd.f32 0.0, %v4216
      %v4218 = vpop.f32.mrb[0].mxu0
      %v4219 = vpop.f32.mrb[0].mxu0
      %v4220 = vadd.f32 0.0, %v4219
      %v4221 = vpop.f32.mrb[0].mxu0
      %4222 = vmatprep.mubr.bf16.mxu0 0
      %4223 = vmatmul.mubr.bf16.gmra.mrb[0].mxu0 %v4004
      %v4224 = vpop.f32.mrb[0].mxu0
      %v4225 = vadd.f32 0.0, %v4224
      %v4226 = vpop.f32.mrb[0].mxu0
      %v4227 = vpop.f32.mrb[0].mxu0
      %v4228 = vadd.f32 0.0, %v4227
      %v4229 = vpop.f32.mrb[0].mxu0
      %4230 = vdwg.mxu0
      %v4231 = vadd.f32 %v3831, %v4105
      %v4232 = vadd.f32 %v3834, %v4108
      %v4233 = vadd.f32 %v3839, %v4113
      %v4234 = vadd.f32 %v3842, %v4116
      %v4235 = vadd.f32 %v3847, %v4121
      %v4236 = vadd.f32 %v3850, %v4124
      %v4237 = vadd.f32 %v3855, %v4129
      %v4238 = vadd.f32 %v3858, %v4132
      %v4239 = vadd.f32 %v3863, %v4137
      %v4240 = vadd.f32 %v3866, %v4140
      %v4241 = vadd.f32 %v3871, %v4145
      %v4242 = vadd.f32 %v3874, %v4148
      %v4243 = vadd.f32 %v3879, %v4153
      %v4244 = vadd.f32 %v3882, %v4156
      %v4245 = vadd.f32 %v3887, %v4161
      %v4246 = vadd.f32 %v3890, %v4164
      %v4247 = vadd.f32 %v3895, %v4169
      %v4248 = vadd.f32 %v3898, %v4172
      %v4249 = vadd.f32 %v3903, %v4177
      %v4250 = vadd.f32 %v3906, %v4180
      %v4251 = vadd.f32 %v3911, %v4185
      %v4252 = vadd.f32 %v3914, %v4188
      %v4253 = vadd.f32 %v3919, %v4193
      %v4254 = vadd.f32 %v3922, %v4196
      %v4255 = vadd.f32 %v3927, %v4201
      %v4256 = vadd.f32 %v3930, %v4204
      %v4257 = vadd.f32 %v3935, %v4209
      %v4258 = vadd.f32 %v3938, %v4212
      %v4259 = vadd.f32 %v3943, %v4217
      %v4260 = vadd.f32 %v3946, %v4220
      %v4261 = vadd.f32 %v3951, %v4225
      %v4262 = vadd.f32 %v3954, %v4228
      %v4263 = vld [vmem:[%s409] sm:$0xff]
      %v4264 = vld [vmem:[%s409 + $0x8] sm:$0xff]
      %v4265 = vld [vmem:[%s409 + $0x18] sm:$0xff]
      %v4266 = vld [vmem:[%s409 + $0x20] sm:$0xff]
      %v4267 = vld [vmem:[%s409 + $0x30] sm:$0xff]
      %v4268 = vld [vmem:[%s409 + $0x38] sm:$0xff]
      %v4269 = vld [vmem:[%s409 + $0x48] sm:$0xff]
      %v4270 = vld [vmem:[%s409 + $0x50] sm:$0xff]
      %v4271 = vld [vmem:[%s409 + $0x60] sm:$0xff]
      %v4272 = vld [vmem:[%s409 + $0x68] sm:$0xff]
      %v4273 = vld [vmem:[%s409 + $0x78] sm:$0xff]
      %v4274 = vld [vmem:[%s409 + $0x80] sm:$0xff]
      %v4275 = vld [vmem:[%s409 + $0x90] sm:$0xff]
      %v4276 = vld [vmem:[%s409 + $0x98] sm:$0xff]
      %v4277 = vld [vmem:[%s409 + $0xa8] sm:$0xff]
      %v4278 = vld [vmem:[%s409 + $0xb0] sm:$0xff]
      %v4279 = vld [vmem:[%s409 + $0xc0] sm:$0xff]
      %v4280 = vld [vmem:[%s409 + $0xc8] sm:$0xff]
      %v4281 = vld [vmem:[%s409 + $0xd8] sm:$0xff]
      %v4282 = vld [vmem:[%s409 + $0xe0] sm:$0xff]
      %v4283 = vld [vmem:[%s409 + $0xf0] sm:$0xff]
      %v4284 = vld [vmem:[%s409 + $0xf8] sm:$0xff]
      %v4285 = vld [vmem:[%s409 + $0x108] sm:$0xff]
      %v4286 = vld [vmem:[%s409 + $0x110] sm:$0xff]
      %v4287 = vld [vmem:[%s409 + $0x120] sm:$0xff]
      %v4288 = vld [vmem:[%s409 + $0x128] sm:$0xff]
      %v4289 = vld [vmem:[%s409 + $0x138] sm:$0xff]
      %v4290 = vld [vmem:[%s409 + $0x140] sm:$0xff]
      %v4291 = vld [vmem:[%s409 + $0x150] sm:$0xff]
      %v4292 = vld [vmem:[%s409 + $0x158] sm:$0xff]
      %v4293 = vld [vmem:[%s409 + $0x168] sm:$0xff]
      %v4294 = vld [vmem:[%s409 + $0x170] sm:$0xff]
      %v4295 = vpack.c.bf16 %v4264, %v4263
      %v4296 = vpack.c.bf16 %v4266, %v4265
      %v4297 = vpack.c.bf16 %v4268, %v4267
      %v4298 = vpack.c.bf16 %v4270, %v4269
      %v4299 = vpack.c.bf16 %v4272, %v4271
      %v4300 = vpack.c.bf16 %v4274, %v4273
      %v4301 = vpack.c.bf16 %v4276, %v4275
      %v4302 = vpack.c.bf16 %v4278, %v4277
      %v4303 = vpack.c.bf16 %v4280, %v4279
      %v4304 = vpack.c.bf16 %v4282, %v4281
      %v4305 = vpack.c.bf16 %v4284, %v4283
      %v4306 = vpack.c.bf16 %v4286, %v4285
      %v4307 = vpack.c.bf16 %v4288, %v4287
      %v4308 = vpack.c.bf16 %v4290, %v4289
      %v4309 = vpack.c.bf16 %v4292, %v4291
      %v4310 = vpack.c.bf16 %v4294, %v4293
      %s4311 = scalar_lea.vmem %s3, 192
      %v4312 = vld [vmem:[%s4311] sm:$0xf]
      %v4313 = vld [vmem:[%s4311 + $0x4] sm:$0xf]
      %v4314 = vld [vmem:[%s4311 + $0x8] sm:$0xf]
      %v4315 = vld [vmem:[%s4311 + $0xc] sm:$0xf]
      %v4316 = vld [vmem:[%s4311 + $0x10] sm:$0xf]
      %v4317 = vld [vmem:[%s4311 + $0x14] sm:$0xf]
      %v4318 = vld [vmem:[%s4311 + $0x18] sm:$0xf]
      %v4319 = vld [vmem:[%s4311 + $0x1c] sm:$0xf]
      %v4320 = vld [vmem:[%s4311 + $0x20] sm:$0xf]
      %v4321 = vld [vmem:[%s4311 + $0x24] sm:$0xf]
      %v4322 = vld [vmem:[%s4311 + $0x28] sm:$0xf]
      %v4323 = vld [vmem:[%s4311 + $0x2c] sm:$0xf]
      %v4324 = vld [vmem:[%s4311 + $0x30] sm:$0xf]
      %v4325 = vld [vmem:[%s4311 + $0x34] sm:$0xf]
      %v4326 = vld [vmem:[%s4311 + $0x38] sm:$0xf]
      %v4327 = vld [vmem:[%s4311 + $0x3c] sm:$0xf]
      %v4344 = vunpack.c.l.b16 %v4312
      %v4345 = vunpack.c.l.b16 %v4313
      %v4346 = vunpack.c.l.b16 %v4314
      %v4347 = vunpack.c.l.b16 %v4315
      %v4348 = vunpack.c.l.b16 %v4316
      %v4349 = vunpack.c.l.b16 %v4317
      %v4350 = vunpack.c.l.b16 %v4318
      %v4351 = vunpack.c.l.b16 %v4319
      %v4352 = vunpack.c.l.b16 %v4320
      %v4353 = vunpack.c.l.b16 %v4321
      %v4354 = vunpack.c.l.b16 %v4322
      %v4355 = vunpack.c.l.b16 %v4323
      %v4356 = vunpack.c.l.b16 %v4324
      %v4357 = vunpack.c.l.b16 %v4325
      %v4358 = vunpack.c.l.b16 %v4326
      %v4359 = vunpack.c.l.b16 %v4327
      %v4360 = vpack.c.b16 %v4345, %v4344
      %v4361 = vpack.c.b16 %v4347, %v4346
      %v4362 = vpack.c.b16 %v4349, %v4348
      %v4363 = vpack.c.b16 %v4351, %v4350
      %v4364 = vpack.c.b16 %v4353, %v4352
      %v4365 = vpack.c.b16 %v4355, %v4354
      %v4366 = vpack.c.b16 %v4357, %v4356
      %v4367 = vpack.c.b16 %v4359, %v4358
      %4376 = vmatprep.subr.bf16.mxu0 0
      %4377 = vmatpush1.bf16.msra.mxu0 %v4360
      %4378 = vmatprep.subr.bf16.mxu0 0
      %4379 = vmatpush1.bf16.msra.mxu0 %v4361
      %4380 = vmatprep.subr.bf16.mxu0 0
      %4381 = vmatpush1.bf16.msra.mxu0 %v4362
      %4382 = vmatprep.subr.bf16.mxu0 0
      %4383 = vmatpush1.bf16.msra.mxu0 %v4363
      %4384 = vmatprep.subr.bf16.mxu0 0
      %4385 = vmatpush1.bf16.msra.mxu0 %v4364
      %4386 = vmatprep.subr.bf16.mxu0 0
      %4387 = vmatpush1.bf16.msra.mxu0 %v4365
      %4388 = vmatprep.subr.bf16.mxu0 0
      %4389 = vmatpush1.bf16.msra.mxu0 %v4366
      %4390 = vmatprep.subr.bf16.mxu0 0
      %4391 = vmatpush1.bf16.msra.mxu0 %v4367
      %4392 = vmatprep.subr.bf16.mxu0 0
      %4393 = vmatpush1.bf16.msra.mxu0 0
      %4394 = vmatprep.subr.bf16.mxu0 0
      %4395 = vmatpush1.bf16.msra.mxu0 0
      %4396 = vmatprep.subr.bf16.mxu0 0
      %4397 = vmatpush1.bf16.msra.mxu0 0
      %4398 = vmatprep.subr.bf16.mxu0 0
      %4399 = vmatpush1.bf16.msra.mxu0 0
      %4400 = vmatprep.subr.bf16.mxu0 0
      %4401 = vmatpush1.bf16.msra.mxu0 0
      %4402 = vmatprep.subr.bf16.mxu0 0
      %4403 = vmatpush1.bf16.msra.mxu0 0
      %4404 = vmatprep.subr.bf16.mxu0 0
      %4405 = vmatpush1.bf16.msra.mxu0 0
      %4406 = vmatprep.subr.bf16.mxu0 0
      %4407 = vmatpush1.bf16.msra.mxu0 0
      %4408 = vmatprep.mubr.bf16.mxu0 0
      %4409 = vmatmul.mubr.bf16.gmra.mrb[0].mxu0 %v4295
      %v4410 = vpop.f32.mrb[0].mxu0
      %v4411 = vadd.f32 0.0, %v4410
      %v4412 = vpop.f32.mrb[0].mxu0
      %v4413 = vpop.f32.mrb[0].mxu0
      %v4414 = vadd.f32 0.0, %v4413
      %v4415 = vpop.f32.mrb[0].mxu0
      %4416 = vmatprep.mubr.bf16.mxu0 0
      %4417 = vmatmul.mubr.bf16.gmra.mrb[0].mxu0 %v4296
      %v4418 = vpop.f32.mrb[0].mxu0
      %v4419 = vadd.f32 0.0, %v4418
      %v4420 = vpop.f32.mrb[0].mxu0
      %v4421 = vpop.f32.mrb[0].mxu0
      %v4422 = vadd.f32 0.0, %v4421
      %v4423 = vpop.f32.mrb[0].mxu0
      %4424 = vmatprep.mubr.bf16.mxu0 0
      %4425 = vmatmul.mubr.bf16.gmra.mrb[0].mxu0 %v4297
      %v4426 = vpop.f32.mrb[0].mxu0
      %v4427 = vadd.f32 0.0, %v4426
      %v4428 = vpop.f32.mrb[0].mxu0
      %v4429 = vpop.f32.mrb[0].mxu0
      %v4430 = vadd.f32 0.0, %v4429
      %v4431 = vpop.f32.mrb[0].mxu0
      %4432 = vmatprep.mubr.bf16.mxu0 0
      %4433 = vmatmul.mubr.bf16.gmra.mrb[0].mxu0 %v4298
      %v4434 = vpop.f32.mrb[0].mxu0
      %v4435 = vadd.f32 0.0, %v4434
      %v4436 = vpop.f32.mrb[0].mxu0
      %v4437 = vpop.f32.mrb[0].mxu0
      %v4438 = vadd.f32 0.0, %v4437
      %v4439 = vpop.f32.mrb[0].mxu0
      %4440 = vmatprep.mubr.bf16.mxu0 0
      %4441 = vmatmul.mubr.bf16.gmra.mrb[0].mxu0 %v4299
      %v4442 = vpop.f32.mrb[0].mxu0
      %v4443 = vadd.f32 0.0, %v4442
      %v4444 = vpop.f32.mrb[0].mxu0
      %v4445 = vpop.f32.mrb[0].mxu0
      %v4446 = vadd.f32 0.0, %v4445
      %v4447 = vpop.f32.mrb[0].mxu0
      %4448 = vmatprep.mubr.bf16.mxu0 0
      %4449 = vmatmul.mubr.bf16.gmra.mrb[0].mxu0 %v4300
      %v4450 = vpop.f32.mrb[0].mxu0
      %v4451 = vadd.f32 0.0, %v4450
      %v4452 = vpop.f32.mrb[0].mxu0
      %v4453 = vpop.f32.mrb[0].mxu0
      %v4454 = vadd.f32 0.0, %v4453
      %v4455 = vpop.f32.mrb[0].mxu0
      %4456 = vmatprep.mubr.bf16.mxu0 0
      %4457 = vmatmul.mubr.bf16.gmra.mrb[0].mxu0 %v4301
      %v4458 = vpop.f32.mrb[0].mxu0
      %v4459 = vadd.f32 0.0, %v4458
      %v4460 = vpop.f32.mrb[0].mxu0
      %v4461 = vpop.f32.mrb[0].mxu0
      %v4462 = vadd.f32 0.0, %v4461
      %v4463 = vpop.f32.mrb[0].mxu0
      %4464 = vmatprep.mubr.bf16.mxu0 0
      %4465 = vmatmul.mubr.bf16.gmra.mrb[0].mxu0 %v4302
      %v4466 = vpop.f32.mrb[0].mxu0
      %v4467 = vadd.f32 0.0, %v4466
      %v4468 = vpop.f32.mrb[0].mxu0
      %v4469 = vpop.f32.mrb[0].mxu0
      %v4470 = vadd.f32 0.0, %v4469
      %v4471 = vpop.f32.mrb[0].mxu0
      %4472 = vmatprep.mubr.bf16.mxu0 0
      %4473 = vmatmul.mubr.bf16.gmra.mrb[0].mxu0 %v4303
      %v4474 = vpop.f32.mrb[0].mxu0
      %v4475 = vadd.f32 0.0, %v4474
      %v4476 = vpop.f32.mrb[0].mxu0
      %v4477 = vpop.f32.mrb[0].mxu0
      %v4478 = vadd.f32 0.0, %v4477
      %v4479 = vpop.f32.mrb[0].mxu0
      %4480 = vmatprep.mubr.bf16.mxu0 0
      %4481 = vmatmul.mubr.bf16.gmra.mrb[0].mxu0 %v4304
      %v4482 = vpop.f32.mrb[0].mxu0
      %v4483 = vadd.f32 0.0, %v4482
      %v4484 = vpop.f32.mrb[0].mxu0
      %v4485 = vpop.f32.mrb[0].mxu0
      %v4486 = vadd.f32 0.0, %v4485
      %v4487 = vpop.f32.mrb[0].mxu0
      %4488 = vmatprep.mubr.bf16.mxu0 0
      %4489 = vmatmul.mubr.bf16.gmra.mrb[0].mxu0 %v4305
      %v4490 = vpop.f32.mrb[0].mxu0
      %v4491 = vadd.f32 0.0, %v4490
      %v4492 = vpop.f32.mrb[0].mxu0
      %v4493 = vpop.f32.mrb[0].mxu0
      %v4494 = vadd.f32 0.0, %v4493
      %v4495 = vpop.f32.mrb[0].mxu0
      %4496 = vmatprep.mubr.bf16.mxu0 0
      %4497 = vmatmul.mubr.bf16.gmra.mrb[0].mxu0 %v4306
      %v4498 = vpop.f32.mrb[0].mxu0
      %v4499 = vadd.f32 0.0, %v4498
      %v4500 = vpop.f32.mrb[0].mxu0
      %v4501 = vpop.f32.mrb[0].mxu0
      %v4502 = vadd.f32 0.0, %v4501
      %v4503 = vpop.f32.mrb[0].mxu0
      %4504 = vmatprep.mubr.bf16.mxu0 0
      %4505 = vmatmul.mubr.bf16.gmra.mrb[0].mxu0 %v4307
      %v4506 = vpop.f32.mrb[0].mxu0
      %v4507 = vadd.f32 0.0, %v4506
      %v4508 = vpop.f32.mrb[0].mxu0
      %v4509 = vpop.f32.mrb[0].mxu0
      %v4510 = vadd.f32 0.0, %v4509
      %v4511 = vpop.f32.mrb[0].mxu0
      %4512 = vmatprep.mubr.bf16.mxu0 0
      %4513 = vmatmul.mubr.bf16.gmra.mrb[0].mxu0 %v4308
      %v4514 = vpop.f32.mrb[0].mxu0
      %v4515 = vadd.f32 0.0, %v4514
      %v4516 = vpop.f32.mrb[0].mxu0
      %v4517 = vpop.f32.mrb[0].mxu0
      %v4518 = vadd.f32 0.0, %v4517
      %v4519 = vpop.f32.mrb[0].mxu0
      %4520 = vmatprep.mubr.bf16.mxu0 0
      %4521 = vmatmul.mubr.bf16.gmra.mrb[0].mxu0 %v4309
      %v4522 = vpop.f32.mrb[0].mxu0
      %v4523 = vadd.f32 0.0, %v4522
      %v4524 = vpop.f32.mrb[0].mxu0
      %v4525 = vpop.f32.mrb[0].mxu0
      %v4526 = vadd.f32 0.0, %v4525
      %v4527 = vpop.f32.mrb[0].mxu0
      %4528 = vmatprep.mubr.bf16.mxu0 0
      %4529 = vmatmul.mubr.bf16.gmra.mrb[0].mxu0 %v4310
      %v4530 = vpop.f32.mrb[0].mxu0
      %v4531 = vadd.f32 0.0, %v4530
      %v4532 = vpop.f32.mrb[0].mxu0
      %v4533 = vpop.f32.mrb[0].mxu0
      %v4534 = vadd.f32 0.0, %v4533
      %v4535 = vpop.f32.mrb[0].mxu0
      %4536 = vdwg.mxu0
      %v4537 = vadd.f32 %v4231, %v4411
      %v4538 = vadd.f32 %v4232, %v4414
      %v4539 = vadd.f32 %v4233, %v4419
      %v4540 = vadd.f32 %v4234, %v4422
      %v4541 = vadd.f32 %v4235, %v4427
      %v4542 = vadd.f32 %v4236, %v4430
      %v4543 = vadd.f32 %v4237, %v4435
      %v4544 = vadd.f32 %v4238, %v4438
      %v4545 = vadd.f32 %v4239, %v4443
      %v4546 = vadd.f32 %v4240, %v4446
      %v4547 = vadd.f32 %v4241, %v4451
      %v4548 = vadd.f32 %v4242, %v4454
      %v4549 = vadd.f32 %v4243, %v4459
      %v4550 = vadd.f32 %v4244, %v4462
      %v4551 = vadd.f32 %v4245, %v4467
      %v4552 = vadd.f32 %v4246, %v4470
      %v4553 = vadd.f32 %v4247, %v4475
      %v4554 = vadd.f32 %v4248, %v4478
      %v4555 = vadd.f32 %v4249, %v4483
      %v4556 = vadd.f32 %v4250, %v4486
      %v4557 = vadd.f32 %v4251, %v4491
      %v4558 = vadd.f32 %v4252, %v4494
      %v4559 = vadd.f32 %v4253, %v4499
      %v4560 = vadd.f32 %v4254, %v4502
      %v4561 = vadd.f32 %v4255, %v4507
      %v4562 = vadd.f32 %v4256, %v4510
      %v4563 = vadd.f32 %v4257, %v4515
      %v4564 = vadd.f32 %v4258, %v4518
      %v4565 = vadd.f32 %v4259, %v4523
      %v4566 = vadd.f32 %v4260, %v4526
      %v4567 = vadd.f32 %v4261, %v4531
      %v4568 = vadd.f32 %v4262, %v4534
      %v4569 = vld [vmem:[%s409 + $0x1] sm:$0xff]
      %v4570 = vld [vmem:[%s409 + $0x9] sm:$0xff]
      %v4571 = vld [vmem:[%s409 + $0x19] sm:$0xff]
      %v4572 = vld [vmem:[%s409 + $0x21] sm:$0xff]
      %v4573 = vld [vmem:[%s409 + $0x31] sm:$0xff]
      %v4574 = vld [vmem:[%s409 + $0x39] sm:$0xff]
      %v4575 = vld [vmem:[%s409 + $0x49] sm:$0xff]
      %v4576 = vld [vmem:[%s409 + $0x51] sm:$0xff]
      %v4577 = vld [vmem:[%s409 + $0x61] sm:$0xff]
      %v4578 = vld [vmem:[%s409 + $0x69] sm:$0xff]
      %v4579 = vld [vmem:[%s409 + $0x79] sm:$0xff]
      %v4580 = vld [vmem:[%s409 + $0x81] sm:$0xff]
      %v4581 = vld [vmem:[%s409 + $0x91] sm:$0xff]
      %v4582 = vld [vmem:[%s409 + $0x99] sm:$0xff]
      %v4583 = vld [vmem:[%s409 + $0xa9] sm:$0xff]
      %v4584 = vld [vmem:[%s409 + $0xb1] sm:$0xff]
      %v4585 = vld [vmem:[%s409 + $0xc1] sm:$0xff]
      %v4586 = vld [vmem:[%s409 + $0xc9] sm:$0xff]
      %v4587 = vld [vmem:[%s409 + $0xd9] sm:$0xff]
      %v4588 = vld [vmem:[%s409 + $0xe1] sm:$0xff]
      %v4589 = vld [vmem:[%s409 + $0xf1] sm:$0xff]
      %v4590 = vld [vmem:[%s409 + $0xf9] sm:$0xff]
      %v4591 = vld [vmem:[%s409 + $0x109] sm:$0xff]
      %v4592 = vld [vmem:[%s409 + $0x111] sm:$0xff]
      %v4593 = vld [vmem:[%s409 + $0x121] sm:$0xff]
      %v4594 = vld [vmem:[%s409 + $0x129] sm:$0xff]
      %v4595 = vld [vmem:[%s409 + $0x139] sm:$0xff]
      %v4596 = vld [vmem:[%s409 + $0x141] sm:$0xff]
      %v4597 = vld [vmem:[%s409 + $0x151] sm:$0xff]
      %v4598 = vld [vmem:[%s409 + $0x159] sm:$0xff]
      %v4599 = vld [vmem:[%s409 + $0x169] sm:$0xff]
      %v4600 = vld [vmem:[%s409 + $0x171] sm:$0xff]
      %v4601 = vpack.c.bf16 %v4570, %v4569
      %v4602 = vpack.c.bf16 %v4572, %v4571
      %v4603 = vpack.c.bf16 %v4574, %v4573
      %v4604 = vpack.c.bf16 %v4576, %v4575
      %v4605 = vpack.c.bf16 %v4578, %v4577
      %v4606 = vpack.c.bf16 %v4580, %v4579
      %v4607 = vpack.c.bf16 %v4582, %v4581
      %v4608 = vpack.c.bf16 %v4584, %v4583
      %v4609 = vpack.c.bf16 %v4586, %v4585
      %v4610 = vpack.c.bf16 %v4588, %v4587
      %v4611 = vpack.c.bf16 %v4590, %v4589
      %v4612 = vpack.c.bf16 %v4592, %v4591
      %v4613 = vpack.c.bf16 %v4594, %v4593
      %v4614 = vpack.c.bf16 %v4596, %v4595
      %v4615 = vpack.c.bf16 %v4598, %v4597
      %v4616 = vpack.c.bf16 %v4600, %v4599
      %s4617 = scalar_lea.vmem %s3, 256
      %v4618 = vld [vmem:[%s4617] sm:$0xf]
      %v4619 = vld [vmem:[%s4617 + $0x4] sm:$0xf]
      %v4620 = vld [vmem:[%s4617 + $0x8] sm:$0xf]
      %v4621 = vld [vmem:[%s4617 + $0xc] sm:$0xf]
      %v4622 = vld [vmem:[%s4617 + $0x10] sm:$0xf]
      %v4623 = vld [vmem:[%s4617 + $0x14] sm:$0xf]
      %v4624 = vld [vmem:[%s4617 + $0x18] sm:$0xf]
      %v4625 = vld [vmem:[%s4617 + $0x1c] sm:$0xf]
      %v4626 = vld [vmem:[%s4617 + $0x20] sm:$0xf]
      %v4627 = vld [vmem:[%s4617 + $0x24] sm:$0xf]
      %v4628 = vld [vmem:[%s4617 + $0x28] sm:$0xf]
      %v4629 = vld [vmem:[%s4617 + $0x2c] sm:$0xf]
      %v4630 = vld [vmem:[%s4617 + $0x30] sm:$0xf]
      %v4631 = vld [vmem:[%s4617 + $0x34] sm:$0xf]
      %v4632 = vld [vmem:[%s4617 + $0x38] sm:$0xf]
      %v4633 = vld [vmem:[%s4617 + $0x3c] sm:$0xf]
      %v4650 = vunpack.c.l.b16 %v4618
      %v4651 = vunpack.c.l.b16 %v4619
      %v4652 = vunpack.c.l.b16 %v4620
      %v4653 = vunpack.c.l.b16 %v4621
      %v4654 = vunpack.c.l.b16 %v4622
      %v4655 = vunpack.c.l.b16 %v4623
      %v4656 = vunpack.c.l.b16 %v4624
      %v4657 = vunpack.c.l.b16 %v4625
      %v4658 = vunpack.c.l.b16 %v4626
      %v4659 = vunpack.c.l.b16 %v4627
      %v4660 = vunpack.c.l.b16 %v4628
      %v4661 = vunpack.c.l.b16 %v4629
      %v4662 = vunpack.c.l.b16 %v4630
      %v4663 = vunpack.c.l.b16 %v4631
      %v4664 = vunpack.c.l.b16 %v4632
      %v4665 = vunpack.c.l.b16 %v4633
      %v4666 = vpack.c.b16 %v4651, %v4650
      %v4667 = vpack.c.b16 %v4653, %v4652
      %v4668 = vpack.c.b16 %v4655, %v4654
      %v4669 = vpack.c.b16 %v4657, %v4656
      %v4670 = vpack.c.b16 %v4659, %v4658
      %v4671 = vpack.c.b16 %v4661, %v4660
      %v4672 = vpack.c.b16 %v4663, %v4662
      %v4673 = vpack.c.b16 %v4665, %v4664
      %4682 = vmatprep.subr.bf16.mxu0 0
      %4683 = vmatpush1.bf16.msra.mxu0 %v4666
      %4684 = vmatprep.subr.bf16.mxu0 0
      %4685 = vmatpush1.bf16.msra.mxu0 %v4667
      %4686 = vmatprep.subr.bf16.mxu0 0
      %4687 = vmatpush1.bf16.msra.mxu0 %v4668
      %4688 = vmatprep.subr.bf16.mxu0 0
      %4689 = vmatpush1.bf16.msra.mxu0 %v4669
      %4690 = vmatprep.subr.bf16.mxu0 0
      %4691 = vmatpush1.bf16.msra.mxu0 %v4670
      %4692 = vmatprep.subr.bf16.mxu0 0
      %4693 = vmatpush1.bf16.msra.mxu0 %v4671
      %4694 = vmatprep.subr.bf16.mxu0 0
      %4695 = vmatpush1.bf16.msra.mxu0 %v4672
      %4696 = vmatprep.subr.bf16.mxu0 0
      %4697 = vmatpush1.bf16.msra.mxu0 %v4673
      %4698 = vmatprep.subr.bf16.mxu0 0
      %4699 = vmatpush1.bf16.msra.mxu0 0
      %4700 = vmatprep.subr.bf16.mxu0 0
      %4701 = vmatpush1.bf16.msra.mxu0 0
      %4702 = vmatprep.subr.bf16.mxu0 0
      %4703 = vmatpush1.bf16.msra.mxu0 0
      %4704 = vmatprep.subr.bf16.mxu0 0
      %4705 = vmatpush1.bf16.msra.mxu0 0
      %4706 = vmatprep.subr.bf16.mxu0 0
      %4707 = vmatpush1.bf16.msra.mxu0 0
      %4708 = vmatprep.subr.bf16.mxu0 0
      %4709 = vmatpush1.bf16.msra.mxu0 0
      %4710 = vmatprep.subr.bf16.mxu0 0
      %4711 = vmatpush1.bf16.msra.mxu0 0
      %4712 = vmatprep.subr.bf16.mxu0 0
      %4713 = vmatpush1.bf16.msra.mxu0 0
      %4714 = vmatprep.mubr.bf16.mxu0 0
      %4715 = vmatmul.mubr.bf16.gmra.mrb[0].mxu0 %v4601
      %v4716 = vpop.f32.mrb[0].mxu0
      %v4717 = vadd.f32 0.0, %v4716
      %v4718 = vpop.f32.mrb[0].mxu0
      %v4719 = vpop.f32.mrb[0].mxu0
      %v4720 = vadd.f32 0.0, %v4719
      %v4721 = vpop.f32.mrb[0].mxu0
      %4722 = vmatprep.mubr.bf16.mxu0 0
      %4723 = vmatmul.mubr.bf16.gmra.mrb[0].mxu0 %v4602
      %v4724 = vpop.f32.mrb[0].mxu0
      %v4725 = vadd.f32 0.0, %v4724
      %v4726 = vpop.f32.mrb[0].mxu0
      %v4727 = vpop.f32.mrb[0].mxu0
      %v4728 = vadd.f32 0.0, %v4727
      %v4729 = vpop.f32.mrb[0].mxu0
      %4730 = vmatprep.mubr.bf16.mxu0 0
      %4731 = vmatmul.mubr.bf16.gmra.mrb[0].mxu0 %v4603
      %v4732 = vpop.f32.mrb[0].mxu0
      %v4733 = vadd.f32 0.0, %v4732
      %v4734 = vpop.f32.mrb[0].mxu0
      %v4735 = vpop.f32.mrb[0].mxu0
      %v4736 = vadd.f32 0.0, %v4735
      %v4737 = vpop.f32.mrb[0].mxu0
      %4738 = vmatprep.mubr.bf16.mxu0 0
      %4739 = vmatmul.mubr.bf16.gmra.mrb[0].mxu0 %v4604
      %v4740 = vpop.f32.mrb[0].mxu0
      %v4741 = vadd.f32 0.0, %v4740
      %v4742 = vpop.f32.mrb[0].mxu0
      %v4743 = vpop.f32.mrb[0].mxu0
      %v4744 = vadd.f32 0.0, %v4743
      %v4745 = vpop.f32.mrb[0].mxu0
      %4746 = vmatprep.mubr.bf16.mxu0 0
      %4747 = vmatmul.mubr.bf16.gmra.mrb[0].mxu0 %v4605
      %v4748 = vpop.f32.mrb[0].mxu0
      %v4749 = vadd.f32 0.0, %v4748
      %v4750 = vpop.f32.mrb[0].mxu0
      %v4751 = vpop.f32.mrb[0].mxu0
      %v4752 = vadd.f32 0.0, %v4751
      %v4753 = vpop.f32.mrb[0].mxu0
      %4754 = vmatprep.mubr.bf16.mxu0 0
      %4755 = vmatmul.mubr.bf16.gmra.mrb[0].mxu0 %v4606
      %v4756 = vpop.f32.mrb[0].mxu0
      %v4757 = vadd.f32 0.0, %v4756
      %v4758 = vpop.f32.mrb[0].mxu0
      %v4759 = vpop.f32.mrb[0].mxu0
      %v4760 = vadd.f32 0.0, %v4759
      %v4761 = vpop.f32.mrb[0].mxu0
      %4762 = vmatprep.mubr.bf16.mxu0 0
      %4763 = vmatmul.mubr.bf16.gmra.mrb[0].mxu0 %v4607
      %v4764 = vpop.f32.mrb[0].mxu0
      %v4765 = vadd.f32 0.0, %v4764
      %v4766 = vpop.f32.mrb[0].mxu0
      %v4767 = vpop.f32.mrb[0].mxu0
      %v4768 = vadd.f32 0.0, %v4767
      %v4769 = vpop.f32.mrb[0].mxu0
      %4770 = vmatprep.mubr.bf16.mxu0 0
      %4771 = vmatmul.mubr.bf16.gmra.mrb[0].mxu0 %v4608
      %v4772 = vpop.f32.mrb[0].mxu0
      %v4773 = vadd.f32 0.0, %v4772
      %v4774 = vpop.f32.mrb[0].mxu0
      %v4775 = vpop.f32.mrb[0].mxu0
      %v4776 = vadd.f32 0.0, %v4775
      %v4777 = vpop.f32.mrb[0].mxu0
      %4778 = vmatprep.mubr.bf16.mxu0 0
      %4779 = vmatmul.mubr.bf16.gmra.mrb[0].mxu0 %v4609
      %v4780 = vpop.f32.mrb[0].mxu0
      %v4781 = vadd.f32 0.0, %v4780
      %v4782 = vpop.f32.mrb[0].mxu0
      %v4783 = vpop.f32.mrb[0].mxu0
      %v4784 = vadd.f32 0.0, %v4783
      %v4785 = vpop.f32.mrb[0].mxu0
      %4786 = vmatprep.mubr.bf16.mxu0 0
      %4787 = vmatmul.mubr.bf16.gmra.mrb[0].mxu0 %v4610
      %v4788 = vpop.f32.mrb[0].mxu0
      %v4789 = vadd.f32 0.0, %v4788
      %v4790 = vpop.f32.mrb[0].mxu0
      %v4791 = vpop.f32.mrb[0].mxu0
      %v4792 = vadd.f32 0.0, %v4791
      %v4793 = vpop.f32.mrb[0].mxu0
      %4794 = vmatprep.mubr.bf16.mxu0 0
      %4795 = vmatmul.mubr.bf16.gmra.mrb[0].mxu0 %v4611
      %v4796 = vpop.f32.mrb[0].mxu0
      %v4797 = vadd.f32 0.0, %v4796
      %v4798 = vpop.f32.mrb[0].mxu0
      %v4799 = vpop.f32.mrb[0].mxu0
      %v4800 = vadd.f32 0.0, %v4799
      %v4801 = vpop.f32.mrb[0].mxu0
      %4802 = vmatprep.mubr.bf16.mxu0 0
      %4803 = vmatmul.mubr.bf16.gmra.mrb[0].mxu0 %v4612
      %v4804 = vpop.f32.mrb[0].mxu0
      %v4805 = vadd.f32 0.0, %v4804
      %v4806 = vpop.f32.mrb[0].mxu0
      %v4807 = vpop.f32.mrb[0].mxu0
      %v4808 = vadd.f32 0.0, %v4807
      %v4809 = vpop.f32.mrb[0].mxu0
      %4810 = vmatprep.mubr.bf16.mxu0 0
      %4811 = vmatmul.mubr.bf16.gmra.mrb[0].mxu0 %v4613
      %v4812 = vpop.f32.mrb[0].mxu0
      %v4813 = vadd.f32 0.0, %v4812
      %v4814 = vpop.f32.mrb[0].mxu0
      %v4815 = vpop.f32.mrb[0].mxu0
      %v4816 = vadd.f32 0.0, %v4815
      %v4817 = vpop.f32.mrb[0].mxu0
      %4818 = vmatprep.mubr.bf16.mxu0 0
      %4819 = vmatmul.mubr.bf16.gmra.mrb[0].mxu0 %v4614
      %v4820 = vpop.f32.mrb[0].mxu0
      %v4821 = vadd.f32 0.0, %v4820
      %v4822 = vpop.f32.mrb[0].mxu0
      %v4823 = vpop.f32.mrb[0].mxu0
      %v4824 = vadd.f32 0.0, %v4823
      %v4825 = vpop.f32.mrb[0].mxu0
      %4826 = vmatprep.mubr.bf16.mxu0 0
      %4827 = vmatmul.mubr.bf16.gmra.mrb[0].mxu0 %v4615
      %v4828 = vpop.f32.mrb[0].mxu0
      %v4829 = vadd.f32 0.0, %v4828
      %v4830 = vpop.f32.mrb[0].mxu0
      %v4831 = vpop.f32.mrb[0].mxu0
      %v4832 = vadd.f32 0.0, %v4831
      %v4833 = vpop.f32.mrb[0].mxu0
      %4834 = vmatprep.mubr.bf16.mxu0 0
      %4835 = vmatmul.mubr.bf16.gmra.mrb[0].mxu0 %v4616
      %v4836 = vpop.f32.mrb[0].mxu0
      %v4837 = vadd.f32 0.0, %v4836
      %v4838 = vpop.f32.mrb[0].mxu0
      %v4839 = vpop.f32.mrb[0].mxu0
      %v4840 = vadd.f32 0.0, %v4839
      %v4841 = vpop.f32.mrb[0].mxu0
      %4842 = vdwg.mxu0
      %v4843 = vadd.f32 %v4537, %v4717
      %v4844 = vadd.f32 %v4538, %v4720
      %v4845 = vadd.f32 %v4539, %v4725
      %v4846 = vadd.f32 %v4540, %v4728
      %v4847 = vadd.f32 %v4541, %v4733
      %v4848 = vadd.f32 %v4542, %v4736
      %v4849 = vadd.f32 %v4543, %v4741
      %v4850 = vadd.f32 %v4544, %v4744
      %v4851 = vadd.f32 %v4545, %v4749
      %v4852 = vadd.f32 %v4546, %v4752
      %v4853 = vadd.f32 %v4547, %v4757
      %v4854 = vadd.f32 %v4548, %v4760
      %v4855 = vadd.f32 %v4549, %v4765
      %v4856 = vadd.f32 %v4550, %v4768
      %v4857 = vadd.f32 %v4551, %v4773
      %v4858 = vadd.f32 %v4552, %v4776
      %v4859 = vadd.f32 %v4553, %v4781
      %v4860 = vadd.f32 %v4554, %v4784
      %v4861 = vadd.f32 %v4555, %v4789
      %v4862 = vadd.f32 %v4556, %v4792
      %v4863 = vadd.f32 %v4557, %v4797
      %v4864 = vadd.f32 %v4558, %v4800
      %v4865 = vadd.f32 %v4559, %v4805
      %v4866 = vadd.f32 %v4560, %v4808
      %v4867 = vadd.f32 %v4561, %v4813
      %v4868 = vadd.f32 %v4562, %v4816
      %v4869 = vadd.f32 %v4563, %v4821
      %v4870 = vadd.f32 %v4564, %v4824
      %v4871 = vadd.f32 %v4565, %v4829
      %v4872 = vadd.f32 %v4566, %v4832
      %v4873 = vadd.f32 %v4567, %v4837
      %v4874 = vadd.f32 %v4568, %v4840
      %v4875 = vld [vmem:[%s409 + $0x2] sm:$0xff]
      %v4876 = vld [vmem:[%s409 + $0xa] sm:$0xff]
      %v4877 = vld [vmem:[%s409 + $0x1a] sm:$0xff]
      %v4878 = vld [vmem:[%s409 + $0x22] sm:$0xff]
      %v4879 = vld [vmem:[%s409 + $0x32] sm:$0xff]
      %v4880 = vld [vmem:[%s409 + $0x3a] sm:$0xff]
      %v4881 = vld [vmem:[%s409 + $0x4a] sm:$0xff]
      %v4882 = vld [vmem:[%s409 + $0x52] sm:$0xff]
      %v4883 = vld [vmem:[%s409 + $0x62] sm:$0xff]
      %v4884 = vld [vmem:[%s409 + $0x6a] sm:$0xff]
      %v4885 = vld [vmem:[%s409 + $0x7a] sm:$0xff]
      %v4886 = vld [vmem:[%s409 + $0x82] sm:$0xff]
      %v4887 = vld [vmem:[%s409 + $0x92] sm:$0xff]
      %v4888 = vld [vmem:[%s409 + $0x9a] sm:$0xff]
      %v4889 = vld [vmem:[%s409 + $0xaa] sm:$0xff]
      %v4890 = vld [vmem:[%s409 + $0xb2] sm:$0xff]
      %v4891 = vld [vmem:[%s409 + $0xc2] sm:$0xff]
      %v4892 = vld [vmem:[%s409 + $0xca] sm:$0xff]
      %v4893 = vld [vmem:[%s409 + $0xda] sm:$0xff]
      %v4894 = vld [vmem:[%s409 + $0xe2] sm:$0xff]
      %v4895 = vld [vmem:[%s409 + $0xf2] sm:$0xff]
      %v4896 = vld [vmem:[%s409 + $0xfa] sm:$0xff]
      %v4897 = vld [vmem:[%s409 + $0x10a] sm:$0xff]
      %v4898 = vld [vmem:[%s409 + $0x112] sm:$0xff]
      %v4899 = vld [vmem:[%s409 + $0x122] sm:$0xff]
      %v4900 = vld [vmem:[%s409 + $0x12a] sm:$0xff]
      %v4901 = vld [vmem:[%s409 + $0x13a] sm:$0xff]
      %v4902 = vld [vmem:[%s409 + $0x142] sm:$0xff]
      %v4903 = vld [vmem:[%s409 + $0x152] sm:$0xff]
      %v4904 = vld [vmem:[%s409 + $0x15a] sm:$0xff]
      %v4905 = vld [vmem:[%s409 + $0x16a] sm:$0xff]
      %v4906 = vld [vmem:[%s409 + $0x172] sm:$0xff]
      %v4907 = vpack.c.bf16 %v4876, %v4875
      %v4908 = vpack.c.bf16 %v4878, %v4877
      %v4909 = vpack.c.bf16 %v4880, %v4879
      %v4910 = vpack.c.bf16 %v4882, %v4881
      %v4911 = vpack.c.bf16 %v4884, %v4883
      %v4912 = vpack.c.bf16 %v4886, %v4885
      %v4913 = vpack.c.bf16 %v4888, %v4887
      %v4914 = vpack.c.bf16 %v4890, %v4889
      %v4915 = vpack.c.bf16 %v4892, %v4891
      %v4916 = vpack.c.bf16 %v4894, %v4893
      %v4917 = vpack.c.bf16 %v4896, %v4895
      %v4918 = vpack.c.bf16 %v4898, %v4897
      %v4919 = vpack.c.bf16 %v4900, %v4899
      %v4920 = vpack.c.bf16 %v4902, %v4901
      %v4921 = vpack.c.bf16 %v4904, %v4903
      %v4922 = vpack.c.bf16 %v4906, %v4905
      %s4923 = scalar_lea.vmem %s3, 320
      %v4924 = vld [vmem:[%s4923] sm:$0xf]
      %v4925 = vld [vmem:[%s4923 + $0x4] sm:$0xf]
      %v4926 = vld [vmem:[%s4923 + $0x8] sm:$0xf]
      %v4927 = vld [vmem:[%s4923 + $0xc] sm:$0xf]
      %v4928 = vld [vmem:[%s4923 + $0x10] sm:$0xf]
      %v4929 = vld [vmem:[%s4923 + $0x14] sm:$0xf]
      %v4930 = vld [vmem:[%s4923 + $0x18] sm:$0xf]
      %v4931 = vld [vmem:[%s4923 + $0x1c] sm:$0xf]
      %v4932 = vld [vmem:[%s4923 + $0x20] sm:$0xf]
      %v4933 = vld [vmem:[%s4923 + $0x24] sm:$0xf]
      %v4934 = vld [vmem:[%s4923 + $0x28] sm:$0xf]
      %v4935 = vld [vmem:[%s4923 + $0x2c] sm:$0xf]
      %v4936 = vld [vmem:[%s4923 + $0x30] sm:$0xf]
      %v4937 = vld [vmem:[%s4923 + $0x34] sm:$0xf]
      %v4938 = vld [vmem:[%s4923 + $0x38] sm:$0xf]
      %v4939 = vld [vmem:[%s4923 + $0x3c] sm:$0xf]
      %v4956 = vunpack.c.l.b16 %v4924
      %v4957 = vunpack.c.l.b16 %v4925
      %v4958 = vunpack.c.l.b16 %v4926
      %v4959 = vunpack.c.l.b16 %v4927
      %v4960 = vunpack.c.l.b16 %v4928
      %v4961 = vunpack.c.l.b16 %v4929
      %v4962 = vunpack.c.l.b16 %v4930
      %v4963 = vunpack.c.l.b16 %v4931
      %v4964 = vunpack.c.l.b16 %v4932
      %v4965 = vunpack.c.l.b16 %v4933
      %v4966 = vunpack.c.l.b16 %v4934
      %v4967 = vunpack.c.l.b16 %v4935
      %v4968 = vunpack.c.l.b16 %v4936
      %v4969 = vunpack.c.l.b16 %v4937
      %v4970 = vunpack.c.l.b16 %v4938
      %v4971 = vunpack.c.l.b16 %v4939
      %v4972 = vpack.c.b16 %v4957, %v4956
      %v4973 = vpack.c.b16 %v4959, %v4958
      %v4974 = vpack.c.b16 %v4961, %v4960
      %v4975 = vpack.c.b16 %v4963, %v4962
      %v4976 = vpack.c.b16 %v4965, %v4964
      %v4977 = vpack.c.b16 %v4967, %v4966
      %v4978 = vpack.c.b16 %v4969, %v4968
      %v4979 = vpack.c.b16 %v4971, %v4970
      %4988 = vmatprep.subr.bf16.mxu0 0
      %4989 = vmatpush1.bf16.msra.mxu0 %v4972
      %4990 = vmatprep.subr.bf16.mxu0 0
      %4991 = vmatpush1.bf16.msra.mxu0 %v4973
      %4992 = vmatprep.subr.bf16.mxu0 0
      %4993 = vmatpush1.bf16.msra.mxu0 %v4974
      %4994 = vmatprep.subr.bf16.mxu0 0
      %4995 = vmatpush1.bf16.msra.mxu0 %v4975
      %4996 = vmatprep.subr.bf16.mxu0 0
      %4997 = vmatpush1.bf16.msra.mxu0 %v4976
      %4998 = vmatprep.subr.bf16.mxu0 0
      %4999 = vmatpush1.bf16.msra.mxu0 %v4977
      %5000 = vmatprep.subr.bf16.mxu0 0
      %5001 = vmatpush1.bf16.msra.mxu0 %v4978
      %5002 = vmatprep.subr.bf16.mxu0 0
      %5003 = vmatpush1.bf16.msra.mxu0 %v4979
      %5004 = vmatprep.subr.bf16.mxu0 0
      %5005 = vmatpush1.bf16.msra.mxu0 0
      %5006 = vmatprep.subr.bf16.mxu0 0
      %5007 = vmatpush1.bf16.msra.mxu0 0
      %5008 = vmatprep.subr.bf16.mxu0 0
      %5009 = vmatpush1.bf16.msra.mxu0 0
      %5010 = vmatprep.subr.bf16.mxu0 0
      %5011 = vmatpush1.bf16.msra.mxu0 0
      %5012 = vmatprep.subr.bf16.mxu0 0
      %5013 = vmatpush1.bf16.msra.mxu0 0
      %5014 = vmatprep.subr.bf16.mxu0 0
      %5015 = vmatpush1.bf16.msra.mxu0 0
      %5016 = vmatprep.subr.bf16.mxu0 0
      %5017 = vmatpush1.bf16.msra.mxu0 0
      %5018 = vmatprep.subr.bf16.mxu0 0
      %5019 = vmatpush1.bf16.msra.mxu0 0
      %5020 = vmatprep.mubr.bf16.mxu0 0
      %5021 = vmatmul.mubr.bf16.gmra.mrb[0].mxu0 %v4907
      %v5022 = vpop.f32.mrb[0].mxu0
      %v5023 = vadd.f32 0.0, %v5022
      %v5024 = vpop.f32.mrb[0].mxu0
      %v5025 = vpop.f32.mrb[0].mxu0
      %v5026 = vadd.f32 0.0, %v5025
      %v5027 = vpop.f32.mrb[0].mxu0
      %5028 = vmatprep.mubr.bf16.mxu0 0
      %5029 = vmatmul.mubr.bf16.gmra.mrb[0].mxu0 %v4908
      %v5030 = vpop.f32.mrb[0].mxu0
      %v5031 = vadd.f32 0.0, %v5030
      %v5032 = vpop.f32.mrb[0].mxu0
      %v5033 = vpop.f32.mrb[0].mxu0
      %v5034 = vadd.f32 0.0, %v5033
      %v5035 = vpop.f32.mrb[0].mxu0
      %5036 = vmatprep.mubr.bf16.mxu0 0
      %5037 = vmatmul.mubr.bf16.gmra.mrb[0].mxu0 %v4909
      %v5038 = vpop.f32.mrb[0].mxu0
      %v5039 = vadd.f32 0.0, %v5038
      %v5040 = vpop.f32.mrb[0].mxu0
      %v5041 = vpop.f32.mrb[0].mxu0
      %v5042 = vadd.f32 0.0, %v5041
      %v5043 = vpop.f32.mrb[0].mxu0
      %5044 = vmatprep.mubr.bf16.mxu0 0
      %5045 = vmatmul.mubr.bf16.gmra.mrb[0].mxu0 %v4910
      %v5046 = vpop.f32.mrb[0].mxu0
      %v5047 = vadd.f32 0.0, %v5046
      %v5048 = vpop.f32.mrb[0].mxu0
      %v5049 = vpop.f32.mrb[0].mxu0
      %v5050 = vadd.f32 0.0, %v5049
      %v5051 = vpop.f32.mrb[0].mxu0
      %5052 = vmatprep.mubr.bf16.mxu0 0
      %5053 = vmatmul.mubr.bf16.gmra.mrb[0].mxu0 %v4911
      %v5054 = vpop.f32.mrb[0].mxu0
      %v5055 = vadd.f32 0.0, %v5054
      %v5056 = vpop.f32.mrb[0].mxu0
      %v5057 = vpop.f32.mrb[0].mxu0
      %v5058 = vadd.f32 0.0, %v5057
      %v5059 = vpop.f32.mrb[0].mxu0
      %5060 = vmatprep.mubr.bf16.mxu0 0
      %5061 = vmatmul.mubr.bf16.gmra.mrb[0].mxu0 %v4912
      %v5062 = vpop.f32.mrb[0].mxu0
      %v5063 = vadd.f32 0.0, %v5062
      %v5064 = vpop.f32.mrb[0].mxu0
      %v5065 = vpop.f32.mrb[0].mxu0
      %v5066 = vadd.f32 0.0, %v5065
      %v5067 = vpop.f32.mrb[0].mxu0
      %5068 = vmatprep.mubr.bf16.mxu0 0
      %5069 = vmatmul.mubr.bf16.gmra.mrb[0].mxu0 %v4913
      %v5070 = vpop.f32.mrb[0].mxu0
      %v5071 = vadd.f32 0.0, %v5070
      %v5072 = vpop.f32.mrb[0].mxu0
      %v5073 = vpop.f32.mrb[0].mxu0
      %v5074 = vadd.f32 0.0, %v5073
      %v5075 = vpop.f32.mrb[0].mxu0
      %5076 = vmatprep.mubr.bf16.mxu0 0
      %5077 = vmatmul.mubr.bf16.gmra.mrb[0].mxu0 %v4914
      %v5078 = vpop.f32.mrb[0].mxu0
      %v5079 = vadd.f32 0.0, %v5078
      %v5080 = vpop.f32.mrb[0].mxu0
      %v5081 = vpop.f32.mrb[0].mxu0
      %v5082 = vadd.f32 0.0, %v5081
      %v5083 = vpop.f32.mrb[0].mxu0
      %5084 = vmatprep.mubr.bf16.mxu0 0
      %5085 = vmatmul.mubr.bf16.gmra.mrb[0].mxu0 %v4915
      %v5086 = vpop.f32.mrb[0].mxu0
      %v5087 = vadd.f32 0.0, %v5086
      %v5088 = vpop.f32.mrb[0].mxu0
      %v5089 = vpop.f32.mrb[0].mxu0
      %v5090 = vadd.f32 0.0, %v5089
      %v5091 = vpop.f32.mrb[0].mxu0
      %5092 = vmatprep.mubr.bf16.mxu0 0
      %5093 = vmatmul.mubr.bf16.gmra.mrb[0].mxu0 %v4916
      %v5094 = vpop.f32.mrb[0].mxu0
      %v5095 = vadd.f32 0.0, %v5094
      %v5096 = vpop.f32.mrb[0].mxu0
      %v5097 = vpop.f32.mrb[0].mxu0
      %v5098 = vadd.f32 0.0, %v5097
      %v5099 = vpop.f32.mrb[0].mxu0
      %5100 = vmatprep.mubr.bf16.mxu0 0
      %5101 = vmatmul.mubr.bf16.gmra.mrb[0].mxu0 %v4917
      %v5102 = vpop.f32.mrb[0].mxu0
      %v5103 = vadd.f32 0.0, %v5102
      %v5104 = vpop.f32.mrb[0].mxu0
      %v5105 = vpop.f32.mrb[0].mxu0
      %v5106 = vadd.f32 0.0, %v5105
      %v5107 = vpop.f32.mrb[0].mxu0
      %5108 = vmatprep.mubr.bf16.mxu0 0
      %5109 = vmatmul.mubr.bf16.gmra.mrb[0].mxu0 %v4918
      %v5110 = vpop.f32.mrb[0].mxu0
      %v5111 = vadd.f32 0.0, %v5110
      %v5112 = vpop.f32.mrb[0].mxu0
      %v5113 = vpop.f32.mrb[0].mxu0
      %v5114 = vadd.f32 0.0, %v5113
      %v5115 = vpop.f32.mrb[0].mxu0
      %5116 = vmatprep.mubr.bf16.mxu0 0
      %5117 = vmatmul.mubr.bf16.gmra.mrb[0].mxu0 %v4919
      %v5118 = vpop.f32.mrb[0].mxu0
      %v5119 = vadd.f32 0.0, %v5118
      %v5120 = vpop.f32.mrb[0].mxu0
      %v5121 = vpop.f32.mrb[0].mxu0
      %v5122 = vadd.f32 0.0, %v5121
      %v5123 = vpop.f32.mrb[0].mxu0
      %5124 = vmatprep.mubr.bf16.mxu0 0
      %5125 = vmatmul.mubr.bf16.gmra.mrb[0].mxu0 %v4920
      %v5126 = vpop.f32.mrb[0].mxu0
      %v5127 = vadd.f32 0.0, %v5126
      %v5128 = vpop.f32.mrb[0].mxu0
      %v5129 = vpop.f32.mrb[0].mxu0
      %v5130 = vadd.f32 0.0, %v5129
      %v5131 = vpop.f32.mrb[0].mxu0
      %5132 = vmatprep.mubr.bf16.mxu0 0
      %5133 = vmatmul.mubr.bf16.gmra.mrb[0].mxu0 %v4921
      %v5134 = vpop.f32.mrb[0].mxu0
      %v5135 = vadd.f32 0.0, %v5134
      %v5136 = vpop.f32.mrb[0].mxu0
      %v5137 = vpop.f32.mrb[0].mxu0
      %v5138 = vadd.f32 0.0, %v5137
      %v5139 = vpop.f32.mrb[0].mxu0
      %5140 = vmatprep.mubr.bf16.mxu0 0
      %5141 = vmatmul.mubr.bf16.gmra.mrb[0].mxu0 %v4922
      %v5142 = vpop.f32.mrb[0].mxu0
      %v5143 = vadd.f32 0.0, %v5142
      %v5144 = vpop.f32.mrb[0].mxu0
      %v5145 = vpop.f32.mrb[0].mxu0
      %v5146 = vadd.f32 0.0, %v5145
      %v5147 = vpop.f32.mrb[0].mxu0
      %5148 = vdwg.mxu0
      %v5149 = vadd.f32 %v4843, %v5023
      %v5150 = vadd.f32 %v4844, %v5026
      %v5151 = vadd.f32 %v4845, %v5031
      %v5152 = vadd.f32 %v4846, %v5034
      %v5153 = vadd.f32 %v4847, %v5039
      %v5154 = vadd.f32 %v4848, %v5042
      %v5155 = vadd.f32 %v4849, %v5047
      %v5156 = vadd.f32 %v4850, %v5050
      %v5157 = vadd.f32 %v4851, %v5055
      %v5158 = vadd.f32 %v4852, %v5058
      %v5159 = vadd.f32 %v4853, %v5063
      %v5160 = vadd.f32 %v4854, %v5066
      %v5161 = vadd.f32 %v4855, %v5071
      %v5162 = vadd.f32 %v4856, %v5074
      %v5163 = vadd.f32 %v4857, %v5079
      %v5164 = vadd.f32 %v4858, %v5082
      %v5165 = vadd.f32 %v4859, %v5087
      %v5166 = vadd.f32 %v4860, %v5090
      %v5167 = vadd.f32 %v4861, %v5095
      %v5168 = vadd.f32 %v4862, %v5098
      %v5169 = vadd.f32 %v4863, %v5103
      %v5170 = vadd.f32 %v4864, %v5106
      %v5171 = vadd.f32 %v4865, %v5111
      %v5172 = vadd.f32 %v4866, %v5114
      %v5173 = vadd.f32 %v4867, %v5119
      %v5174 = vadd.f32 %v4868, %v5122
      %v5175 = vadd.f32 %v4869, %v5127
      %v5176 = vadd.f32 %v4870, %v5130
      %v5177 = vadd.f32 %v4871, %v5135
      %v5178 = vadd.f32 %v4872, %v5138
      %v5179 = vadd.f32 %v4873, %v5143
      %v5180 = vadd.f32 %v4874, %v5146
      %v5181 = vld [vmem:[%s2213] sm:$0xff]
      %v5182 = vld [vmem:[%s2213 + $0x8] sm:$0xff]
      %v5183 = vld [vmem:[%s2213 + $0x18] sm:$0xff]
      %v5184 = vld [vmem:[%s2213 + $0x20] sm:$0xff]
      %v5185 = vld [vmem:[%s2213 + $0x30] sm:$0xff]
      %v5186 = vld [vmem:[%s2213 + $0x38] sm:$0xff]
      %v5187 = vld [vmem:[%s2213 + $0x48] sm:$0xff]
      %v5188 = vld [vmem:[%s2213 + $0x50] sm:$0xff]
      %v5189 = vld [vmem:[%s2213 + $0x60] sm:$0xff]
      %v5190 = vld [vmem:[%s2213 + $0x68] sm:$0xff]
      %v5191 = vld [vmem:[%s2213 + $0x78] sm:$0xff]
      %v5192 = vld [vmem:[%s2213 + $0x80] sm:$0xff]
      %v5193 = vld [vmem:[%s2213 + $0x90] sm:$0xff]
      %v5194 = vld [vmem:[%s2213 + $0x98] sm:$0xff]
      %v5195 = vld [vmem:[%s2213 + $0xa8] sm:$0xff]
      %v5196 = vld [vmem:[%s2213 + $0xb0] sm:$0xff]
      %v5197 = vld [vmem:[%s2213 + $0xc0] sm:$0xff]
      %v5198 = vld [vmem:[%s2213 + $0xc8] sm:$0xff]
      %v5199 = vld [vmem:[%s2213 + $0xd8] sm:$0xff]
      %v5200 = vld [vmem:[%s2213 + $0xe0] sm:$0xff]
      %v5201 = vld [vmem:[%s2213 + $0xf0] sm:$0xff]
      %v5202 = vld [vmem:[%s2213 + $0xf8] sm:$0xff]
      %v5203 = vld [vmem:[%s2213 + $0x108] sm:$0xff]
      %v5204 = vld [vmem:[%s2213 + $0x110] sm:$0xff]
      %v5205 = vld [vmem:[%s2213 + $0x120] sm:$0xff]
      %v5206 = vld [vmem:[%s2213 + $0x128] sm:$0xff]
      %v5207 = vld [vmem:[%s2213 + $0x138] sm:$0xff]
      %v5208 = vld [vmem:[%s2213 + $0x140] sm:$0xff]
      %v5209 = vld [vmem:[%s2213 + $0x150] sm:$0xff]
      %v5210 = vld [vmem:[%s2213 + $0x158] sm:$0xff]
      %v5211 = vld [vmem:[%s2213 + $0x168] sm:$0xff]
      %v5212 = vld [vmem:[%s2213 + $0x170] sm:$0xff]
      %v5213 = vpack.c.bf16 %v5182, %v5181
      %v5214 = vpack.c.bf16 %v5184, %v5183
      %v5215 = vpack.c.bf16 %v5186, %v5185
      %v5216 = vpack.c.bf16 %v5188, %v5187
      %v5217 = vpack.c.bf16 %v5190, %v5189
      %v5218 = vpack.c.bf16 %v5192, %v5191
      %v5219 = vpack.c.bf16 %v5194, %v5193
      %v5220 = vpack.c.bf16 %v5196, %v5195
      %v5221 = vpack.c.bf16 %v5198, %v5197
      %v5222 = vpack.c.bf16 %v5200, %v5199
      %v5223 = vpack.c.bf16 %v5202, %v5201
      %v5224 = vpack.c.bf16 %v5204, %v5203
      %v5225 = vpack.c.bf16 %v5206, %v5205
      %v5226 = vpack.c.bf16 %v5208, %v5207
      %v5227 = vpack.c.bf16 %v5210, %v5209
      %v5228 = vpack.c.bf16 %v5212, %v5211
      %s5229 = scalar_lea.vmem %s3, 384
      %v5230 = vld [vmem:[%s5229] sm:$0xf]
      %v5231 = vld [vmem:[%s5229 + $0x4] sm:$0xf]
      %v5232 = vld [vmem:[%s5229 + $0x8] sm:$0xf]
      %v5233 = vld [vmem:[%s5229 + $0xc] sm:$0xf]
      %v5234 = vld [vmem:[%s5229 + $0x10] sm:$0xf]
      %v5235 = vld [vmem:[%s5229 + $0x14] sm:$0xf]
      %v5236 = vld [vmem:[%s5229 + $0x18] sm:$0xf]
      %v5237 = vld [vmem:[%s5229 + $0x1c] sm:$0xf]
      %v5238 = vld [vmem:[%s5229 + $0x20] sm:$0xf]
      %v5239 = vld [vmem:[%s5229 + $0x24] sm:$0xf]
      %v5240 = vld [vmem:[%s5229 + $0x28] sm:$0xf]
      %v5241 = vld [vmem:[%s5229 + $0x2c] sm:$0xf]
      %v5242 = vld [vmem:[%s5229 + $0x30] sm:$0xf]
      %v5243 = vld [vmem:[%s5229 + $0x34] sm:$0xf]
      %v5244 = vld [vmem:[%s5229 + $0x38] sm:$0xf]
      %v5245 = vld [vmem:[%s5229 + $0x3c] sm:$0xf]
      %v5262 = vunpack.c.l.b16 %v5230
      %v5263 = vunpack.c.l.b16 %v5231
      %v5264 = vunpack.c.l.b16 %v5232
      %v5265 = vunpack.c.l.b16 %v5233
      %v5266 = vunpack.c.l.b16 %v5234
      %v5267 = vunpack.c.l.b16 %v5235
      %v5268 = vunpack.c.l.b16 %v5236
      %v5269 = vunpack.c.l.b16 %v5237
      %v5270 = vunpack.c.l.b16 %v5238
      %v5271 = vunpack.c.l.b16 %v5239
      %v5272 = vunpack.c.l.b16 %v5240
      %v5273 = vunpack.c.l.b16 %v5241
      %v5274 = vunpack.c.l.b16 %v5242
      %v5275 = vunpack.c.l.b16 %v5243
      %v5276 = vunpack.c.l.b16 %v5244
      %v5277 = vunpack.c.l.b16 %v5245
      %v5278 = vpack.c.b16 %v5263, %v5262
      %v5279 = vpack.c.b16 %v5265, %v5264
      %v5280 = vpack.c.b16 %v5267, %v5266
      %v5281 = vpack.c.b16 %v5269, %v5268
      %v5282 = vpack.c.b16 %v5271, %v5270
      %v5283 = vpack.c.b16 %v5273, %v5272
      %v5284 = vpack.c.b16 %v5275, %v5274
      %v5285 = vpack.c.b16 %v5277, %v5276
      %5294 = vmatprep.subr.bf16.mxu0 0
      %5295 = vmatpush1.bf16.msra.mxu0 %v5278
      %5296 = vmatprep.subr.bf16.mxu0 0
      %5297 = vmatpush1.bf16.msra.mxu0 %v5279
      %5298 = vmatprep.subr.bf16.mxu0 0
      %5299 = vmatpush1.bf16.msra.mxu0 %v5280
      %5300 = vmatprep.subr.bf16.mxu0 0
      %5301 = vmatpush1.bf16.msra.mxu0 %v5281
      %5302 = vmatprep.subr.bf16.mxu0 0
      %5303 = vmatpush1.bf16.msra.mxu0 %v5282
      %5304 = vmatprep.subr.bf16.mxu0 0
      %5305 = vmatpush1.bf16.msra.mxu0 %v5283
      %5306 = vmatprep.subr.bf16.mxu0 0
      %5307 = vmatpush1.bf16.msra.mxu0 %v5284
      %5308 = vmatprep.subr.bf16.mxu0 0
      %5309 = vmatpush1.bf16.msra.mxu0 %v5285
      %5310 = vmatprep.subr.bf16.mxu0 0
      %5311 = vmatpush1.bf16.msra.mxu0 0
      %5312 = vmatprep.subr.bf16.mxu0 0
      %5313 = vmatpush1.bf16.msra.mxu0 0
      %5314 = vmatprep.subr.bf16.mxu0 0
      %5315 = vmatpush1.bf16.msra.mxu0 0
      %5316 = vmatprep.subr.bf16.mxu0 0
      %5317 = vmatpush1.bf16.msra.mxu0 0
      %5318 = vmatprep.subr.bf16.mxu0 0
      %5319 = vmatpush1.bf16.msra.mxu0 0
      %5320 = vmatprep.subr.bf16.mxu0 0
      %5321 = vmatpush1.bf16.msra.mxu0 0
      %5322 = vmatprep.subr.bf16.mxu0 0
      %5323 = vmatpush1.bf16.msra.mxu0 0
      %5324 = vmatprep.subr.bf16.mxu0 0
      %5325 = vmatpush1.bf16.msra.mxu0 0
      %5326 = vmatprep.mubr.bf16.mxu0 0
      %5327 = vmatmul.mubr.bf16.gmra.mrb[0].mxu0 %v5213
      %v5328 = vpop.f32.mrb[0].mxu0
      %v5329 = vadd.f32 0.0, %v5328
      %v5330 = vpop.f32.mrb[0].mxu0
      %v5331 = vpop.f32.mrb[0].mxu0
      %v5332 = vadd.f32 0.0, %v5331
      %v5333 = vpop.f32.mrb[0].mxu0
      %5334 = vmatprep.mubr.bf16.mxu0 0
      %5335 = vmatmul.mubr.bf16.gmra.mrb[0].mxu0 %v5214
      %v5336 = vpop.f32.mrb[0].mxu0
      %v5337 = vadd.f32 0.0, %v5336
      %v5338 = vpop.f32.mrb[0].mxu0
      %v5339 = vpop.f32.mrb[0].mxu0
      %v5340 = vadd.f32 0.0, %v5339
      %v5341 = vpop.f32.mrb[0].mxu0
      %5342 = vmatprep.mubr.bf16.mxu0 0
      %5343 = vmatmul.mubr.bf16.gmra.mrb[0].mxu0 %v5215
      %v5344 = vpop.f32.mrb[0].mxu0
      %v5345 = vadd.f32 0.0, %v5344
      %v5346 = vpop.f32.mrb[0].mxu0
      %v5347 = vpop.f32.mrb[0].mxu0
      %v5348 = vadd.f32 0.0, %v5347
      %v5349 = vpop.f32.mrb[0].mxu0
      %5350 = vmatprep.mubr.bf16.mxu0 0
      %5351 = vmatmul.mubr.bf16.gmra.mrb[0].mxu0 %v5216
      %v5352 = vpop.f32.mrb[0].mxu0
      %v5353 = vadd.f32 0.0, %v5352
      %v5354 = vpop.f32.mrb[0].mxu0
      %v5355 = vpop.f32.mrb[0].mxu0
      %v5356 = vadd.f32 0.0, %v5355
      %v5357 = vpop.f32.mrb[0].mxu0
      %5358 = vmatprep.mubr.bf16.mxu0 0
      %5359 = vmatmul.mubr.bf16.gmra.mrb[0].mxu0 %v5217
      %v5360 = vpop.f32.mrb[0].mxu0
      %v5361 = vadd.f32 0.0, %v5360
      %v5362 = vpop.f32.mrb[0].mxu0
      %v5363 = vpop.f32.mrb[0].mxu0
      %v5364 = vadd.f32 0.0, %v5363
      %v5365 = vpop.f32.mrb[0].mxu0
      %5366 = vmatprep.mubr.bf16.mxu0 0
      %5367 = vmatmul.mubr.bf16.gmra.mrb[0].mxu0 %v5218
      %v5368 = vpop.f32.mrb[0].mxu0
      %v5369 = vadd.f32 0.0, %v5368
      %v5370 = vpop.f32.mrb[0].mxu0
      %v5371 = vpop.f32.mrb[0].mxu0
      %v5372 = vadd.f32 0.0, %v5371
      %v5373 = vpop.f32.mrb[0].mxu0
      %5374 = vmatprep.mubr.bf16.mxu0 0
      %5375 = vmatmul.mubr.bf16.gmra.mrb[0].mxu0 %v5219
      %v5376 = vpop.f32.mrb[0].mxu0
      %v5377 = vadd.f32 0.0, %v5376
      %v5378 = vpop.f32.mrb[0].mxu0
      %v5379 = vpop.f32.mrb[0].mxu0
      %v5380 = vadd.f32 0.0, %v5379
      %v5381 = vpop.f32.mrb[0].mxu0
      %5382 = vmatprep.mubr.bf16.mxu0 0
      %5383 = vmatmul.mubr.bf16.gmra.mrb[0].mxu0 %v5220
      %v5384 = vpop.f32.mrb[0].mxu0
      %v5385 = vadd.f32 0.0, %v5384
      %v5386 = vpop.f32.mrb[0].mxu0
      %v5387 = vpop.f32.mrb[0].mxu0
      %v5388 = vadd.f32 0.0, %v5387
      %v5389 = vpop.f32.mrb[0].mxu0
      %5390 = vmatprep.mubr.bf16.mxu0 0
      %5391 = vmatmul.mubr.bf16.gmra.mrb[0].mxu0 %v5221
      %v5392 = vpop.f32.mrb[0].mxu0
      %v5393 = vadd.f32 0.0, %v5392
      %v5394 = vpop.f32.mrb[0].mxu0
      %v5395 = vpop.f32.mrb[0].mxu0
      %v5396 = vadd.f32 0.0, %v5395
      %v5397 = vpop.f32.mrb[0].mxu0
      %5398 = vmatprep.mubr.bf16.mxu0 0
      %5399 = vmatmul.mubr.bf16.gmra.mrb[0].mxu0 %v5222
      %v5400 = vpop.f32.mrb[0].mxu0
      %v5401 = vadd.f32 0.0, %v5400
      %v5402 = vpop.f32.mrb[0].mxu0
      %v5403 = vpop.f32.mrb[0].mxu0
      %v5404 = vadd.f32 0.0, %v5403
      %v5405 = vpop.f32.mrb[0].mxu0
      %5406 = vmatprep.mubr.bf16.mxu0 0
      %5407 = vmatmul.mubr.bf16.gmra.mrb[0].mxu0 %v5223
      %v5408 = vpop.f32.mrb[0].mxu0
      %v5409 = vadd.f32 0.0, %v5408
      %v5410 = vpop.f32.mrb[0].mxu0
      %v5411 = vpop.f32.mrb[0].mxu0
      %v5412 = vadd.f32 0.0, %v5411
      %v5413 = vpop.f32.mrb[0].mxu0
      %5414 = vmatprep.mubr.bf16.mxu0 0
      %5415 = vmatmul.mubr.bf16.gmra.mrb[0].mxu0 %v5224
      %v5416 = vpop.f32.mrb[0].mxu0
      %v5417 = vadd.f32 0.0, %v5416
      %v5418 = vpop.f32.mrb[0].mxu0
      %v5419 = vpop.f32.mrb[0].mxu0
      %v5420 = vadd.f32 0.0, %v5419
      %v5421 = vpop.f32.mrb[0].mxu0
      %5422 = vmatprep.mubr.bf16.mxu0 0
      %5423 = vmatmul.mubr.bf16.gmra.mrb[0].mxu0 %v5225
      %v5424 = vpop.f32.mrb[0].mxu0
      %v5425 = vadd.f32 0.0, %v5424
      %v5426 = vpop.f32.mrb[0].mxu0
      %v5427 = vpop.f32.mrb[0].mxu0
      %v5428 = vadd.f32 0.0, %v5427
      %v5429 = vpop.f32.mrb[0].mxu0
      %5430 = vmatprep.mubr.bf16.mxu0 0
      %5431 = vmatmul.mubr.bf16.gmra.mrb[0].mxu0 %v5226
      %v5432 = vpop.f32.mrb[0].mxu0
      %v5433 = vadd.f32 0.0, %v5432
      %v5434 = vpop.f32.mrb[0].mxu0
      %v5435 = vpop.f32.mrb[0].mxu0
      %v5436 = vadd.f32 0.0, %v5435
      %v5437 = vpop.f32.mrb[0].mxu0
      %5438 = vmatprep.mubr.bf16.mxu0 0
      %5439 = vmatmul.mubr.bf16.gmra.mrb[0].mxu0 %v5227
      %v5440 = vpop.f32.mrb[0].mxu0
      %v5441 = vadd.f32 0.0, %v5440
      %v5442 = vpop.f32.mrb[0].mxu0
      %v5443 = vpop.f32.mrb[0].mxu0
      %v5444 = vadd.f32 0.0, %v5443
      %v5445 = vpop.f32.mrb[0].mxu0
      %5446 = vmatprep.mubr.bf16.mxu0 0
      %5447 = vmatmul.mubr.bf16.gmra.mrb[0].mxu0 %v5228
      %v5448 = vpop.f32.mrb[0].mxu0
      %v5449 = vadd.f32 0.0, %v5448
      %v5450 = vpop.f32.mrb[0].mxu0
      %v5451 = vpop.f32.mrb[0].mxu0
      %v5452 = vadd.f32 0.0, %v5451
      %v5453 = vpop.f32.mrb[0].mxu0
      %5454 = vdwg.mxu0
      %v5455 = vadd.f32 %v5149, %v5329
      %v5456 = vadd.f32 %v5150, %v5332
      %v5457 = vadd.f32 %v5151, %v5337
      %v5458 = vadd.f32 %v5152, %v5340
      %v5459 = vadd.f32 %v5153, %v5345
      %v5460 = vadd.f32 %v5154, %v5348
      %v5461 = vadd.f32 %v5155, %v5353
      %v5462 = vadd.f32 %v5156, %v5356
      %v5463 = vadd.f32 %v5157, %v5361
      %v5464 = vadd.f32 %v5158, %v5364
      %v5465 = vadd.f32 %v5159, %v5369
      %v5466 = vadd.f32 %v5160, %v5372
      %v5467 = vadd.f32 %v5161, %v5377
      %v5468 = vadd.f32 %v5162, %v5380
      %v5469 = vadd.f32 %v5163, %v5385
      %v5470 = vadd.f32 %v5164, %v5388
      %v5471 = vadd.f32 %v5165, %v5393
      %v5472 = vadd.f32 %v5166, %v5396
      %v5473 = vadd.f32 %v5167, %v5401
      %v5474 = vadd.f32 %v5168, %v5404
      %v5475 = vadd.f32 %v5169, %v5409
      %v5476 = vadd.f32 %v5170, %v5412
      %v5477 = vadd.f32 %v5171, %v5417
      %v5478 = vadd.f32 %v5172, %v5420
      %v5479 = vadd.f32 %v5173, %v5425
      %v5480 = vadd.f32 %v5174, %v5428
      %v5481 = vadd.f32 %v5175, %v5433
      %v5482 = vadd.f32 %v5176, %v5436
      %v5483 = vadd.f32 %v5177, %v5441
      %v5484 = vadd.f32 %v5178, %v5444
      %v5485 = vadd.f32 %v5179, %v5449
      %v5486 = vadd.f32 %v5180, %v5452
      %v5487 = vld [vmem:[%s2213 + $0x1] sm:$0xff]
      %v5488 = vld [vmem:[%s2213 + $0x9] sm:$0xff]
      %v5489 = vld [vmem:[%s2213 + $0x19] sm:$0xff]
      %v5490 = vld [vmem:[%s2213 + $0x21] sm:$0xff]
      %v5491 = vld [vmem:[%s2213 + $0x31] sm:$0xff]
      %v5492 = vld [vmem:[%s2213 + $0x39] sm:$0xff]
      %v5493 = vld [vmem:[%s2213 + $0x49] sm:$0xff]
      %v5494 = vld [vmem:[%s2213 + $0x51] sm:$0xff]
      %v5495 = vld [vmem:[%s2213 + $0x61] sm:$0xff]
      %v5496 = vld [vmem:[%s2213 + $0x69] sm:$0xff]
      %v5497 = vld [vmem:[%s2213 + $0x79] sm:$0xff]
      %v5498 = vld [vmem:[%s2213 + $0x81] sm:$0xff]
      %v5499 = vld [vmem:[%s2213 + $0x91] sm:$0xff]
      %v5500 = vld [vmem:[%s2213 + $0x99] sm:$0xff]
      %v5501 = vld [vmem:[%s2213 + $0xa9] sm:$0xff]
      %v5502 = vld [vmem:[%s2213 + $0xb1] sm:$0xff]
      %v5503 = vld [vmem:[%s2213 + $0xc1] sm:$0xff]
      %v5504 = vld [vmem:[%s2213 + $0xc9] sm:$0xff]
      %v5505 = vld [vmem:[%s2213 + $0xd9] sm:$0xff]
      %v5506 = vld [vmem:[%s2213 + $0xe1] sm:$0xff]
      %v5507 = vld [vmem:[%s2213 + $0xf1] sm:$0xff]
      %v5508 = vld [vmem:[%s2213 + $0xf9] sm:$0xff]
      %v5509 = vld [vmem:[%s2213 + $0x109] sm:$0xff]
      %v5510 = vld [vmem:[%s2213 + $0x111] sm:$0xff]
      %v5511 = vld [vmem:[%s2213 + $0x121] sm:$0xff]
      %v5512 = vld [vmem:[%s2213 + $0x129] sm:$0xff]
      %v5513 = vld [vmem:[%s2213 + $0x139] sm:$0xff]
      %v5514 = vld [vmem:[%s2213 + $0x141] sm:$0xff]
      %v5515 = vld [vmem:[%s2213 + $0x151] sm:$0xff]
      %v5516 = vld [vmem:[%s2213 + $0x159] sm:$0xff]
      %v5517 = vld [vmem:[%s2213 + $0x169] sm:$0xff]
      %v5518 = vld [vmem:[%s2213 + $0x171] sm:$0xff]
      %v5519 = vpack.c.bf16 %v5488, %v5487
      %v5520 = vpack.c.bf16 %v5490, %v5489
      %v5521 = vpack.c.bf16 %v5492, %v5491
      %v5522 = vpack.c.bf16 %v5494, %v5493
      %v5523 = vpack.c.bf16 %v5496, %v5495
      %v5524 = vpack.c.bf16 %v5498, %v5497
      %v5525 = vpack.c.bf16 %v5500, %v5499
      %v5526 = vpack.c.bf16 %v5502, %v5501
      %v5527 = vpack.c.bf16 %v5504, %v5503
      %v5528 = vpack.c.bf16 %v5506, %v5505
      %v5529 = vpack.c.bf16 %v5508, %v5507
      %v5530 = vpack.c.bf16 %v5510, %v5509
      %v5531 = vpack.c.bf16 %v5512, %v5511
      %v5532 = vpack.c.bf16 %v5514, %v5513
      %v5533 = vpack.c.bf16 %v5516, %v5515
      %v5534 = vpack.c.bf16 %v5518, %v5517
      %s5535 = scalar_lea.vmem %s3, 448
      %v5536 = vld [vmem:[%s5535] sm:$0xf]
      %v5537 = vld [vmem:[%s5535 + $0x4] sm:$0xf]
      %v5538 = vld [vmem:[%s5535 + $0x8] sm:$0xf]
      %v5539 = vld [vmem:[%s5535 + $0xc] sm:$0xf]
      %v5540 = vld [vmem:[%s5535 + $0x10] sm:$0xf]
      %v5541 = vld [vmem:[%s5535 + $0x14] sm:$0xf]
      %v5542 = vld [vmem:[%s5535 + $0x18] sm:$0xf]
      %v5543 = vld [vmem:[%s5535 + $0x1c] sm:$0xf]
      %v5544 = vld [vmem:[%s5535 + $0x20] sm:$0xf]
      %v5545 = vld [vmem:[%s5535 + $0x24] sm:$0xf]
      %v5546 = vld [vmem:[%s5535 + $0x28] sm:$0xf]
      %v5547 = vld [vmem:[%s5535 + $0x2c] sm:$0xf]
      %v5548 = vld [vmem:[%s5535 + $0x30] sm:$0xf]
      %v5549 = vld [vmem:[%s5535 + $0x34] sm:$0xf]
      %v5550 = vld [vmem:[%s5535 + $0x38] sm:$0xf]
      %v5551 = vld [vmem:[%s5535 + $0x3c] sm:$0xf]
      %v5568 = vunpack.c.l.b16 %v5536
      %v5569 = vunpack.c.l.b16 %v5537
      %v5570 = vunpack.c.l.b16 %v5538
      %v5571 = vunpack.c.l.b16 %v5539
      %v5572 = vunpack.c.l.b16 %v5540
      %v5573 = vunpack.c.l.b16 %v5541
      %v5574 = vunpack.c.l.b16 %v5542
      %v5575 = vunpack.c.l.b16 %v5543
      %v5576 = vunpack.c.l.b16 %v5544
      %v5577 = vunpack.c.l.b16 %v5545
      %v5578 = vunpack.c.l.b16 %v5546
      %v5579 = vunpack.c.l.b16 %v5547
      %v5580 = vunpack.c.l.b16 %v5548
      %v5581 = vunpack.c.l.b16 %v5549
      %v5582 = vunpack.c.l.b16 %v5550
      %v5583 = vunpack.c.l.b16 %v5551
      %v5584 = vpack.c.b16 %v5569, %v5568
      %v5585 = vpack.c.b16 %v5571, %v5570
      %v5586 = vpack.c.b16 %v5573, %v5572
      %v5587 = vpack.c.b16 %v5575, %v5574
      %v5588 = vpack.c.b16 %v5577, %v5576
      %v5589 = vpack.c.b16 %v5579, %v5578
      %v5590 = vpack.c.b16 %v5581, %v5580
      %v5591 = vpack.c.b16 %v5583, %v5582
      %5600 = vmatprep.subr.bf16.mxu0 0
      %5601 = vmatpush1.bf16.msra.mxu0 %v5584
      %5602 = vmatprep.subr.bf16.mxu0 0
      %5603 = vmatpush1.bf16.msra.mxu0 %v5585
      %5604 = vmatprep.subr.bf16.mxu0 0
      %5605 = vmatpush1.bf16.msra.mxu0 %v5586
      %5606 = vmatprep.subr.bf16.mxu0 0
      %5607 = vmatpush1.bf16.msra.mxu0 %v5587
      %5608 = vmatprep.subr.bf16.mxu0 0
      %5609 = vmatpush1.bf16.msra.mxu0 %v5588
      %5610 = vmatprep.subr.bf16.mxu0 0
      %5611 = vmatpush1.bf16.msra.mxu0 %v5589
      %5612 = vmatprep.subr.bf16.mxu0 0
      %5613 = vmatpush1.bf16.msra.mxu0 %v5590
      %5614 = vmatprep.subr.bf16.mxu0 0
      %5615 = vmatpush1.bf16.msra.mxu0 %v5591
      %5616 = vmatprep.subr.bf16.mxu0 0
      %5617 = vmatpush1.bf16.msra.mxu0 0
      %5618 = vmatprep.subr.bf16.mxu0 0
      %5619 = vmatpush1.bf16.msra.mxu0 0
      %5620 = vmatprep.subr.bf16.mxu0 0
      %5621 = vmatpush1.bf16.msra.mxu0 0
      %5622 = vmatprep.subr.bf16.mxu0 0
      %5623 = vmatpush1.bf16.msra.mxu0 0
      %5624 = vmatprep.subr.bf16.mxu0 0
      %5625 = vmatpush1.bf16.msra.mxu0 0
      %5626 = vmatprep.subr.bf16.mxu0 0
      %5627 = vmatpush1.bf16.msra.mxu0 0
      %5628 = vmatprep.subr.bf16.mxu0 0
      %5629 = vmatpush1.bf16.msra.mxu0 0
      %5630 = vmatprep.subr.bf16.mxu0 0
      %5631 = vmatpush1.bf16.msra.mxu0 0
      %5632 = vmatprep.mubr.bf16.mxu0 0
      %5633 = vmatmul.mubr.bf16.gmra.mrb[0].mxu0 %v5519
      %v5634 = vpop.f32.mrb[0].mxu0
      %v5635 = vadd.f32 0.0, %v5634
      %v5636 = vpop.f32.mrb[0].mxu0
      %v5637 = vpop.f32.mrb[0].mxu0
      %v5638 = vadd.f32 0.0, %v5637
      %v5639 = vpop.f32.mrb[0].mxu0
      %5640 = vmatprep.mubr.bf16.mxu0 0
      %5641 = vmatmul.mubr.bf16.gmra.mrb[0].mxu0 %v5520
      %v5642 = vpop.f32.mrb[0].mxu0
      %v5643 = vadd.f32 0.0, %v5642
      %v5644 = vpop.f32.mrb[0].mxu0
      %v5645 = vpop.f32.mrb[0].mxu0
      %v5646 = vadd.f32 0.0, %v5645
      %v5647 = vpop.f32.mrb[0].mxu0
      %5648 = vmatprep.mubr.bf16.mxu0 0
      %5649 = vmatmul.mubr.bf16.gmra.mrb[0].mxu0 %v5521
      %v5650 = vpop.f32.mrb[0].mxu0
      %v5651 = vadd.f32 0.0, %v5650
      %v5652 = vpop.f32.mrb[0].mxu0
      %v5653 = vpop.f32.mrb[0].mxu0
      %v5654 = vadd.f32 0.0, %v5653
      %v5655 = vpop.f32.mrb[0].mxu0
      %5656 = vmatprep.mubr.bf16.mxu0 0
      %5657 = vmatmul.mubr.bf16.gmra.mrb[0].mxu0 %v5522
      %v5658 = vpop.f32.mrb[0].mxu0
      %v5659 = vadd.f32 0.0, %v5658
      %v5660 = vpop.f32.mrb[0].mxu0
      %v5661 = vpop.f32.mrb[0].mxu0
      %v5662 = vadd.f32 0.0, %v5661
      %v5663 = vpop.f32.mrb[0].mxu0
      %5664 = vmatprep.mubr.bf16.mxu0 0
      %5665 = vmatmul.mubr.bf16.gmra.mrb[0].mxu0 %v5523
      %v5666 = vpop.f32.mrb[0].mxu0
      %v5667 = vadd.f32 0.0, %v5666
      %v5668 = vpop.f32.mrb[0].mxu0
      %v5669 = vpop.f32.mrb[0].mxu0
      %v5670 = vadd.f32 0.0, %v5669
      %v5671 = vpop.f32.mrb[0].mxu0
      %5672 = vmatprep.mubr.bf16.mxu0 0
      %5673 = vmatmul.mubr.bf16.gmra.mrb[0].mxu0 %v5524
      %v5674 = vpop.f32.mrb[0].mxu0
      %v5675 = vadd.f32 0.0, %v5674
      %v5676 = vpop.f32.mrb[0].mxu0
      %v5677 = vpop.f32.mrb[0].mxu0
      %v5678 = vadd.f32 0.0, %v5677
      %v5679 = vpop.f32.mrb[0].mxu0
      %5680 = vmatprep.mubr.bf16.mxu0 0
      %5681 = vmatmul.mubr.bf16.gmra.mrb[0].mxu0 %v5525
      %v5682 = vpop.f32.mrb[0].mxu0
      %v5683 = vadd.f32 0.0, %v5682
      %v5684 = vpop.f32.mrb[0].mxu0
      %v5685 = vpop.f32.mrb[0].mxu0
      %v5686 = vadd.f32 0.0, %v5685
      %v5687 = vpop.f32.mrb[0].mxu0
      %5688 = vmatprep.mubr.bf16.mxu0 0
      %5689 = vmatmul.mubr.bf16.gmra.mrb[0].mxu0 %v5526
      %v5690 = vpop.f32.mrb[0].mxu0
      %v5691 = vadd.f32 0.0, %v5690
      %v5692 = vpop.f32.mrb[0].mxu0
      %v5693 = vpop.f32.mrb[0].mxu0
      %v5694 = vadd.f32 0.0, %v5693
      %v5695 = vpop.f32.mrb[0].mxu0
      %5696 = vmatprep.mubr.bf16.mxu0 0
      %5697 = vmatmul.mubr.bf16.gmra.mrb[0].mxu0 %v5527
      %v5698 = vpop.f32.mrb[0].mxu0
      %v5699 = vadd.f32 0.0, %v5698
      %v5700 = vpop.f32.mrb[0].mxu0
      %v5701 = vpop.f32.mrb[0].mxu0
      %v5702 = vadd.f32 0.0, %v5701
      %v5703 = vpop.f32.mrb[0].mxu0
      %5704 = vmatprep.mubr.bf16.mxu0 0
      %5705 = vmatmul.mubr.bf16.gmra.mrb[0].mxu0 %v5528
      %v5706 = vpop.f32.mrb[0].mxu0
      %v5707 = vadd.f32 0.0, %v5706
      %v5708 = vpop.f32.mrb[0].mxu0
      %v5709 = vpop.f32.mrb[0].mxu0
      %v5710 = vadd.f32 0.0, %v5709
      %v5711 = vpop.f32.mrb[0].mxu0
      %5712 = vmatprep.mubr.bf16.mxu0 0
      %5713 = vmatmul.mubr.bf16.gmra.mrb[0].mxu0 %v5529
      %v5714 = vpop.f32.mrb[0].mxu0
      %v5715 = vadd.f32 0.0, %v5714
      %v5716 = vpop.f32.mrb[0].mxu0
      %v5717 = vpop.f32.mrb[0].mxu0
      %v5718 = vadd.f32 0.0, %v5717
      %v5719 = vpop.f32.mrb[0].mxu0
      %5720 = vmatprep.mubr.bf16.mxu0 0
      %5721 = vmatmul.mubr.bf16.gmra.mrb[0].mxu0 %v5530
      %v5722 = vpop.f32.mrb[0].mxu0
      %v5723 = vadd.f32 0.0, %v5722
      %v5724 = vpop.f32.mrb[0].mxu0
      %v5725 = vpop.f32.mrb[0].mxu0
      %v5726 = vadd.f32 0.0, %v5725
      %v5727 = vpop.f32.mrb[0].mxu0
      %5728 = vmatprep.mubr.bf16.mxu0 0
      %5729 = vmatmul.mubr.bf16.gmra.mrb[0].mxu0 %v5531
      %v5730 = vpop.f32.mrb[0].mxu0
      %v5731 = vadd.f32 0.0, %v5730
      %v5732 = vpop.f32.mrb[0].mxu0
      %v5733 = vpop.f32.mrb[0].mxu0
      %v5734 = vadd.f32 0.0, %v5733
      %v5735 = vpop.f32.mrb[0].mxu0
      %5736 = vmatprep.mubr.bf16.mxu0 0
      %5737 = vmatmul.mubr.bf16.gmra.mrb[0].mxu0 %v5532
      %v5738 = vpop.f32.mrb[0].mxu0
      %v5739 = vadd.f32 0.0, %v5738
      %v5740 = vpop.f32.mrb[0].mxu0
      %v5741 = vpop.f32.mrb[0].mxu0
      %v5742 = vadd.f32 0.0, %v5741
      %v5743 = vpop.f32.mrb[0].mxu0
      %5744 = vmatprep.mubr.bf16.mxu0 0
      %5745 = vmatmul.mubr.bf16.gmra.mrb[0].mxu0 %v5533
      %v5746 = vpop.f32.mrb[0].mxu0
      %v5747 = vadd.f32 0.0, %v5746
      %v5748 = vpop.f32.mrb[0].mxu0
      %v5749 = vpop.f32.mrb[0].mxu0
      %v5750 = vadd.f32 0.0, %v5749
      %v5751 = vpop.f32.mrb[0].mxu0
      %5752 = vmatprep.mubr.bf16.mxu0 0
      %5753 = vmatmul.mubr.bf16.gmra.mrb[0].mxu0 %v5534
      %v5754 = vpop.f32.mrb[0].mxu0
      %v5755 = vadd.f32 0.0, %v5754
      %v5756 = vpop.f32.mrb[0].mxu0
      %v5757 = vpop.f32.mrb[0].mxu0
      %v5758 = vadd.f32 0.0, %v5757
      %v5759 = vpop.f32.mrb[0].mxu0
      %5760 = vdwg.mxu0
      %v5761 = vadd.f32 %v5455, %v5635
      %v5762 = vadd.f32 %v5456, %v5638
      %v5763 = vadd.f32 %v5457, %v5643
      %v5764 = vadd.f32 %v5458, %v5646
      %v5765 = vadd.f32 %v5459, %v5651
      %v5766 = vadd.f32 %v5460, %v5654
      %v5767 = vadd.f32 %v5461, %v5659
      %v5768 = vadd.f32 %v5462, %v5662
      %v5769 = vadd.f32 %v5463, %v5667
      %v5770 = vadd.f32 %v5464, %v5670
      %v5771 = vadd.f32 %v5465, %v5675
      %v5772 = vadd.f32 %v5466, %v5678
      %v5773 = vadd.f32 %v5467, %v5683
      %v5774 = vadd.f32 %v5468, %v5686
      %v5775 = vadd.f32 %v5469, %v5691
      %v5776 = vadd.f32 %v5470, %v5694
      %v5777 = vadd.f32 %v5471, %v5699
      %v5778 = vadd.f32 %v5472, %v5702
      %v5779 = vadd.f32 %v5473, %v5707
      %v5780 = vadd.f32 %v5474, %v5710
      %v5781 = vadd.f32 %v5475, %v5715
      %v5782 = vadd.f32 %v5476, %v5718
      %v5783 = vadd.f32 %v5477, %v5723
      %v5784 = vadd.f32 %v5478, %v5726
      %v5785 = vadd.f32 %v5479, %v5731
      %v5786 = vadd.f32 %v5480, %v5734
      %v5787 = vadd.f32 %v5481, %v5739
      %v5788 = vadd.f32 %v5482, %v5742
      %v5789 = vadd.f32 %v5483, %v5747
      %v5790 = vadd.f32 %v5484, %v5750
      %v5791 = vadd.f32 %v5485, %v5755
      %v5792 = vadd.f32 %v5486, %v5758
      %v5793 = vld [vmem:[%s2213 + $0x2] sm:$0xff]
      %v5794 = vld [vmem:[%s2213 + $0xa] sm:$0xff]
      %v5795 = vld [vmem:[%s2213 + $0x1a] sm:$0xff]
      %v5796 = vld [vmem:[%s2213 + $0x22] sm:$0xff]
      %v5797 = vld [vmem:[%s2213 + $0x32] sm:$0xff]
      %v5798 = vld [vmem:[%s2213 + $0x3a] sm:$0xff]
      %v5799 = vld [vmem:[%s2213 + $0x4a] sm:$0xff]
      %v5800 = vld [vmem:[%s2213 + $0x52] sm:$0xff]
      %v5801 = vld [vmem:[%s2213 + $0x62] sm:$0xff]
      %v5802 = vld [vmem:[%s2213 + $0x6a] sm:$0xff]
      %v5803 = vld [vmem:[%s2213 + $0x7a] sm:$0xff]
      %v5804 = vld [vmem:[%s2213 + $0x82] sm:$0xff]
      %v5805 = vld [vmem:[%s2213 + $0x92] sm:$0xff]
      %v5806 = vld [vmem:[%s2213 + $0x9a] sm:$0xff]
      %v5807 = vld [vmem:[%s2213 + $0xaa] sm:$0xff]
      %v5808 = vld [vmem:[%s2213 + $0xb2] sm:$0xff]
      %v5809 = vld [vmem:[%s2213 + $0xc2] sm:$0xff]
      %v5810 = vld [vmem:[%s2213 + $0xca] sm:$0xff]
      %v5811 = vld [vmem:[%s2213 + $0xda] sm:$0xff]
      %v5812 = vld [vmem:[%s2213 + $0xe2] sm:$0xff]
      %v5813 = vld [vmem:[%s2213 + $0xf2] sm:$0xff]
      %v5814 = vld [vmem:[%s2213 + $0xfa] sm:$0xff]
      %v5815 = vld [vmem:[%s2213 + $0x10a] sm:$0xff]
      %v5816 = vld [vmem:[%s2213 + $0x112] sm:$0xff]
      %v5817 = vld [vmem:[%s2213 + $0x122] sm:$0xff]
      %v5818 = vld [vmem:[%s2213 + $0x12a] sm:$0xff]
      %v5819 = vld [vmem:[%s2213 + $0x13a] sm:$0xff]
      %v5820 = vld [vmem:[%s2213 + $0x142] sm:$0xff]
      %v5821 = vld [vmem:[%s2213 + $0x152] sm:$0xff]
      %v5822 = vld [vmem:[%s2213 + $0x15a] sm:$0xff]
      %v5823 = vld [vmem:[%s2213 + $0x16a] sm:$0xff]
      %v5824 = vld [vmem:[%s2213 + $0x172] sm:$0xff]
      %v5825 = vpack.c.bf16 %v5794, %v5793
      %v5826 = vpack.c.bf16 %v5796, %v5795
      %v5827 = vpack.c.bf16 %v5798, %v5797
      %v5828 = vpack.c.bf16 %v5800, %v5799
      %v5829 = vpack.c.bf16 %v5802, %v5801
      %v5830 = vpack.c.bf16 %v5804, %v5803
      %v5831 = vpack.c.bf16 %v5806, %v5805
      %v5832 = vpack.c.bf16 %v5808, %v5807
      %v5833 = vpack.c.bf16 %v5810, %v5809
      %v5834 = vpack.c.bf16 %v5812, %v5811
      %v5835 = vpack.c.bf16 %v5814, %v5813
      %v5836 = vpack.c.bf16 %v5816, %v5815
      %v5837 = vpack.c.bf16 %v5818, %v5817
      %v5838 = vpack.c.bf16 %v5820, %v5819
      %v5839 = vpack.c.bf16 %v5822, %v5821
      %v5840 = vpack.c.bf16 %v5824, %v5823
      %s5841 = scalar_lea.vmem %s3, 512
      %v5842 = vld [vmem:[%s5841] sm:$0xf]
      %v5843 = vld [vmem:[%s5841 + $0x4] sm:$0xf]
      %v5844 = vld [vmem:[%s5841 + $0x8] sm:$0xf]
      %v5845 = vld [vmem:[%s5841 + $0xc] sm:$0xf]
      %v5846 = vld [vmem:[%s5841 + $0x10] sm:$0xf]
      %v5847 = vld [vmem:[%s5841 + $0x14] sm:$0xf]
      %v5848 = vld [vmem:[%s5841 + $0x18] sm:$0xf]
      %v5849 = vld [vmem:[%s5841 + $0x1c] sm:$0xf]
      %v5850 = vld [vmem:[%s5841 + $0x20] sm:$0xf]
      %v5851 = vld [vmem:[%s5841 + $0x24] sm:$0xf]
      %v5852 = vld [vmem:[%s5841 + $0x28] sm:$0xf]
      %v5853 = vld [vmem:[%s5841 + $0x2c] sm:$0xf]
      %v5854 = vld [vmem:[%s5841 + $0x30] sm:$0xf]
      %v5855 = vld [vmem:[%s5841 + $0x34] sm:$0xf]
      %v5856 = vld [vmem:[%s5841 + $0x38] sm:$0xf]
      %v5857 = vld [vmem:[%s5841 + $0x3c] sm:$0xf]
      %v5874 = vunpack.c.l.b16 %v5842
      %v5875 = vunpack.c.l.b16 %v5843
      %v5876 = vunpack.c.l.b16 %v5844
      %v5877 = vunpack.c.l.b16 %v5845
      %v5878 = vunpack.c.l.b16 %v5846
      %v5879 = vunpack.c.l.b16 %v5847
      %v5880 = vunpack.c.l.b16 %v5848
      %v5881 = vunpack.c.l.b16 %v5849
      %v5882 = vunpack.c.l.b16 %v5850
      %v5883 = vunpack.c.l.b16 %v5851
      %v5884 = vunpack.c.l.b16 %v5852
      %v5885 = vunpack.c.l.b16 %v5853
      %v5886 = vunpack.c.l.b16 %v5854
      %v5887 = vunpack.c.l.b16 %v5855
      %v5888 = vunpack.c.l.b16 %v5856
      %v5889 = vunpack.c.l.b16 %v5857
      %v5890 = vpack.c.b16 %v5875, %v5874
      %v5891 = vpack.c.b16 %v5877, %v5876
      %v5892 = vpack.c.b16 %v5879, %v5878
      %v5893 = vpack.c.b16 %v5881, %v5880
      %v5894 = vpack.c.b16 %v5883, %v5882
      %v5895 = vpack.c.b16 %v5885, %v5884
      %v5896 = vpack.c.b16 %v5887, %v5886
      %v5897 = vpack.c.b16 %v5889, %v5888
      %5906 = vmatprep.subr.bf16.mxu0 0
      %5907 = vmatpush1.bf16.msra.mxu0 %v5890
      %5908 = vmatprep.subr.bf16.mxu0 0
      %5909 = vmatpush1.bf16.msra.mxu0 %v5891
      %5910 = vmatprep.subr.bf16.mxu0 0
      %5911 = vmatpush1.bf16.msra.mxu0 %v5892
      %5912 = vmatprep.subr.bf16.mxu0 0
      %5913 = vmatpush1.bf16.msra.mxu0 %v5893
      %5914 = vmatprep.subr.bf16.mxu0 0
      %5915 = vmatpush1.bf16.msra.mxu0 %v5894
      %5916 = vmatprep.subr.bf16.mxu0 0
      %5917 = vmatpush1.bf16.msra.mxu0 %v5895
      %5918 = vmatprep.subr.bf16.mxu0 0
      %5919 = vmatpush1.bf16.msra.mxu0 %v5896
      %5920 = vmatprep.subr.bf16.mxu0 0
      %5921 = vmatpush1.bf16.msra.mxu0 %v5897
      %5922 = vmatprep.subr.bf16.mxu0 0
      %5923 = vmatpush1.bf16.msra.mxu0 0
      %5924 = vmatprep.subr.bf16.mxu0 0
      %5925 = vmatpush1.bf16.msra.mxu0 0
      %5926 = vmatprep.subr.bf16.mxu0 0
      %5927 = vmatpush1.bf16.msra.mxu0 0
      %5928 = vmatprep.subr.bf16.mxu0 0
      %5929 = vmatpush1.bf16.msra.mxu0 0
      %5930 = vmatprep.subr.bf16.mxu0 0
      %5931 = vmatpush1.bf16.msra.mxu0 0
      %5932 = vmatprep.subr.bf16.mxu0 0
      %5933 = vmatpush1.bf16.msra.mxu0 0
      %5934 = vmatprep.subr.bf16.mxu0 0
      %5935 = vmatpush1.bf16.msra.mxu0 0
      %5936 = vmatprep.subr.bf16.mxu0 0
      %5937 = vmatpush1.bf16.msra.mxu0 0
      %5938 = vmatprep.mubr.bf16.mxu0 0
      %5939 = vmatmul.mubr.bf16.gmra.mrb[0].mxu0 %v5825
      %v5940 = vpop.f32.mrb[0].mxu0
      %v5941 = vadd.f32 0.0, %v5940
      %v5942 = vpop.f32.mrb[0].mxu0
      %v5943 = vpop.f32.mrb[0].mxu0
      %v5944 = vadd.f32 0.0, %v5943
      %v5945 = vpop.f32.mrb[0].mxu0
      %5946 = vmatprep.mubr.bf16.mxu0 0
      %5947 = vmatmul.mubr.bf16.gmra.mrb[0].mxu0 %v5826
      %v5948 = vpop.f32.mrb[0].mxu0
      %v5949 = vadd.f32 0.0, %v5948
      %v5950 = vpop.f32.mrb[0].mxu0
      %v5951 = vpop.f32.mrb[0].mxu0
      %v5952 = vadd.f32 0.0, %v5951
      %v5953 = vpop.f32.mrb[0].mxu0
      %5954 = vmatprep.mubr.bf16.mxu0 0
      %5955 = vmatmul.mubr.bf16.gmra.mrb[0].mxu0 %v5827
      %v5956 = vpop.f32.mrb[0].mxu0
      %v5957 = vadd.f32 0.0, %v5956
      %v5958 = vpop.f32.mrb[0].mxu0
      %v5959 = vpop.f32.mrb[0].mxu0
      %v5960 = vadd.f32 0.0, %v5959
      %v5961 = vpop.f32.mrb[0].mxu0
      %5962 = vmatprep.mubr.bf16.mxu0 0
      %5963 = vmatmul.mubr.bf16.gmra.mrb[0].mxu0 %v5828
      %v5964 = vpop.f32.mrb[0].mxu0
      %v5965 = vadd.f32 0.0, %v5964
      %v5966 = vpop.f32.mrb[0].mxu0
      %v5967 = vpop.f32.mrb[0].mxu0
      %v5968 = vadd.f32 0.0, %v5967
      %v5969 = vpop.f32.mrb[0].mxu0
      %5970 = vmatprep.mubr.bf16.mxu0 0
      %5971 = vmatmul.mubr.bf16.gmra.mrb[0].mxu0 %v5829
      %v5972 = vpop.f32.mrb[0].mxu0
      %v5973 = vadd.f32 0.0, %v5972
      %v5974 = vpop.f32.mrb[0].mxu0
      %v5975 = vpop.f32.mrb[0].mxu0
      %v5976 = vadd.f32 0.0, %v5975
      %v5977 = vpop.f32.mrb[0].mxu0
      %5978 = vmatprep.mubr.bf16.mxu0 0
      %5979 = vmatmul.mubr.bf16.gmra.mrb[0].mxu0 %v5830
      %v5980 = vpop.f32.mrb[0].mxu0
      %v5981 = vadd.f32 0.0, %v5980
      %v5982 = vpop.f32.mrb[0].mxu0
      %v5983 = vpop.f32.mrb[0].mxu0
      %v5984 = vadd.f32 0.0, %v5983
      %v5985 = vpop.f32.mrb[0].mxu0
      %5986 = vmatprep.mubr.bf16.mxu0 0
      %5987 = vmatmul.mubr.bf16.gmra.mrb[0].mxu0 %v5831
      %v5988 = vpop.f32.mrb[0].mxu0
      %v5989 = vadd.f32 0.0, %v5988
      %v5990 = vpop.f32.mrb[0].mxu0
      %v5991 = vpop.f32.mrb[0].mxu0
      %v5992 = vadd.f32 0.0, %v5991
      %v5993 = vpop.f32.mrb[0].mxu0
      %5994 = vmatprep.mubr.bf16.mxu0 0
      %5995 = vmatmul.mubr.bf16.gmra.mrb[0].mxu0 %v5832
      %v5996 = vpop.f32.mrb[0].mxu0
      %v5997 = vadd.f32 0.0, %v5996
      %v5998 = vpop.f32.mrb[0].mxu0
      %v5999 = vpop.f32.mrb[0].mxu0
      %v6000 = vadd.f32 0.0, %v5999
      %v6001 = vpop.f32.mrb[0].mxu0
      %6002 = vmatprep.mubr.bf16.mxu0 0
      %6003 = vmatmul.mubr.bf16.gmra.mrb[0].mxu0 %v5833
      %v6004 = vpop.f32.mrb[0].mxu0
      %v6005 = vadd.f32 0.0, %v6004
      %v6006 = vpop.f32.mrb[0].mxu0
      %v6007 = vpop.f32.mrb[0].mxu0
      %v6008 = vadd.f32 0.0, %v6007
      %v6009 = vpop.f32.mrb[0].mxu0
      %6010 = vmatprep.mubr.bf16.mxu0 0
      %6011 = vmatmul.mubr.bf16.gmra.mrb[0].mxu0 %v5834
      %v6012 = vpop.f32.mrb[0].mxu0
      %v6013 = vadd.f32 0.0, %v6012
      %v6014 = vpop.f32.mrb[0].mxu0
      %v6015 = vpop.f32.mrb[0].mxu0
      %v6016 = vadd.f32 0.0, %v6015
      %v6017 = vpop.f32.mrb[0].mxu0
      %6018 = vmatprep.mubr.bf16.mxu0 0
      %6019 = vmatmul.mubr.bf16.gmra.mrb[0].mxu0 %v5835
      %v6020 = vpop.f32.mrb[0].mxu0
      %v6021 = vadd.f32 0.0, %v6020
      %v6022 = vpop.f32.mrb[0].mxu0
      %v6023 = vpop.f32.mrb[0].mxu0
      %v6024 = vadd.f32 0.0, %v6023
      %v6025 = vpop.f32.mrb[0].mxu0
      %6026 = vmatprep.mubr.bf16.mxu0 0
      %6027 = vmatmul.mubr.bf16.gmra.mrb[0].mxu0 %v5836
      %v6028 = vpop.f32.mrb[0].mxu0
      %v6029 = vadd.f32 0.0, %v6028
      %v6030 = vpop.f32.mrb[0].mxu0
      %v6031 = vpop.f32.mrb[0].mxu0
      %v6032 = vadd.f32 0.0, %v6031
      %v6033 = vpop.f32.mrb[0].mxu0
      %6034 = vmatprep.mubr.bf16.mxu0 0
      %6035 = vmatmul.mubr.bf16.gmra.mrb[0].mxu0 %v5837
      %v6036 = vpop.f32.mrb[0].mxu0
      %v6037 = vadd.f32 0.0, %v6036
      %v6038 = vpop.f32.mrb[0].mxu0
      %v6039 = vpop.f32.mrb[0].mxu0
      %v6040 = vadd.f32 0.0, %v6039
      %v6041 = vpop.f32.mrb[0].mxu0
      %6042 = vmatprep.mubr.bf16.mxu0 0
      %6043 = vmatmul.mubr.bf16.gmra.mrb[0].mxu0 %v5838
      %v6044 = vpop.f32.mrb[0].mxu0
      %v6045 = vadd.f32 0.0, %v6044
      %v6046 = vpop.f32.mrb[0].mxu0
      %v6047 = vpop.f32.mrb[0].mxu0
      %v6048 = vadd.f32 0.0, %v6047
      %v6049 = vpop.f32.mrb[0].mxu0
      %6050 = vmatprep.mubr.bf16.mxu0 0
      %6051 = vmatmul.mubr.bf16.gmra.mrb[0].mxu0 %v5839
      %v6052 = vpop.f32.mrb[0].mxu0
      %v6053 = vadd.f32 0.0, %v6052
      %v6054 = vpop.f32.mrb[0].mxu0
      %v6055 = vpop.f32.mrb[0].mxu0
      %v6056 = vadd.f32 0.0, %v6055
      %v6057 = vpop.f32.mrb[0].mxu0
      %6058 = vmatprep.mubr.bf16.mxu0 0
      %6059 = vmatmul.mubr.bf16.gmra.mrb[0].mxu0 %v5840
      %v6060 = vpop.f32.mrb[0].mxu0
      %v6061 = vadd.f32 0.0, %v6060
      %v6062 = vpop.f32.mrb[0].mxu0
      %v6063 = vpop.f32.mrb[0].mxu0
      %v6064 = vadd.f32 0.0, %v6063
      %v6065 = vpop.f32.mrb[0].mxu0
      %6066 = vdwg.mxu0
      %v6067 = vadd.f32 %v5761, %v5941
      %v6068 = vadd.f32 %v5762, %v5944
      %v6069 = vadd.f32 %v5763, %v5949
      %v6070 = vadd.f32 %v5764, %v5952
      %v6071 = vadd.f32 %v5765, %v5957
      %v6072 = vadd.f32 %v5766, %v5960
      %v6073 = vadd.f32 %v5767, %v5965
      %v6074 = vadd.f32 %v5768, %v5968
      %v6075 = vadd.f32 %v5769, %v5973
      %v6076 = vadd.f32 %v5770, %v5976
      %v6077 = vadd.f32 %v5771, %v5981
      %v6078 = vadd.f32 %v5772, %v5984
      %v6079 = vadd.f32 %v5773, %v5989
      %v6080 = vadd.f32 %v5774, %v5992
      %v6081 = vadd.f32 %v5775, %v5997
      %v6082 = vadd.f32 %v5776, %v6000
      %v6083 = vadd.f32 %v5777, %v6005
      %v6084 = vadd.f32 %v5778, %v6008
      %v6085 = vadd.f32 %v5779, %v6013
      %v6086 = vadd.f32 %v5780, %v6016
      %v6087 = vadd.f32 %v5781, %v6021
      %v6088 = vadd.f32 %v5782, %v6024
      %v6089 = vadd.f32 %v5783, %v6029
      %v6090 = vadd.f32 %v5784, %v6032
      %v6091 = vadd.f32 %v5785, %v6037
      %v6092 = vadd.f32 %v5786, %v6040
      %v6093 = vadd.f32 %v5787, %v6045
      %v6094 = vadd.f32 %v5788, %v6048
      %v6095 = vadd.f32 %v5789, %v6053
      %v6096 = vadd.f32 %v5790, %v6056
      %v6097 = vadd.f32 %v5791, %v6061
      %v6098 = vadd.f32 %v5792, %v6064
      %v6099 = vld [vmem:[%s4] sm:$0x1]
      %v6101 = vlaneseq
      %v6102 = vshrl.u32 %v6101, 7
      %v6103 = vsub.s32 0, %v6102
      %v6104 = vrot.slane %v6099, %v6103
      %v6106 = vadd.f32 %v6067, %v6104
      %v6107 = vadd.f32 %v6068, %v6104
      %v6108 = vadd.f32 %v6069, %v6104
      %v6109 = vadd.f32 %v6070, %v6104
      %v6110 = vadd.f32 %v6071, %v6104
      %v6111 = vadd.f32 %v6072, %v6104
      %v6112 = vadd.f32 %v6073, %v6104
      %v6113 = vadd.f32 %v6074, %v6104
      %v6114 = vadd.f32 %v6075, %v6104
      %v6115 = vadd.f32 %v6076, %v6104
      %v6116 = vadd.f32 %v6077, %v6104
      %v6117 = vadd.f32 %v6078, %v6104
      %v6118 = vadd.f32 %v6079, %v6104
      %v6119 = vadd.f32 %v6080, %v6104
      %v6120 = vadd.f32 %v6081, %v6104
      %v6121 = vadd.f32 %v6082, %v6104
      %v6122 = vadd.f32 %v6083, %v6104
      %v6123 = vadd.f32 %v6084, %v6104
      %v6124 = vadd.f32 %v6085, %v6104
      %v6125 = vadd.f32 %v6086, %v6104
      %v6126 = vadd.f32 %v6087, %v6104
      %v6127 = vadd.f32 %v6088, %v6104
      %v6128 = vadd.f32 %v6089, %v6104
      %v6129 = vadd.f32 %v6090, %v6104
      %v6130 = vadd.f32 %v6091, %v6104
      %v6131 = vadd.f32 %v6092, %v6104
      %v6132 = vadd.f32 %v6093, %v6104
      %v6133 = vadd.f32 %v6094, %v6104
      %v6134 = vadd.f32 %v6095, %v6104
      %v6135 = vadd.f32 %v6096, %v6104
      %v6136 = vadd.f32 %v6097, %v6104
      %v6137 = vadd.f32 %v6098, %v6104
      %v6138 = vadd.f32 %v6106, %v6107
      %v6139 = vadd.f32 %v6138, %v6108
      %v6140 = vadd.f32 %v6139, %v6109
      %v6141 = vadd.f32 %v6140, %v6110
      %v6142 = vadd.f32 %v6141, %v6111
      %v6143 = vadd.f32 %v6142, %v6112
      %v6144 = vadd.f32 %v6143, %v6113
      %v6145 = vadd.f32 %v6144, %v6114
      %v6146 = vadd.f32 %v6145, %v6115
      %v6147 = vadd.f32 %v6146, %v6116
      %v6148 = vadd.f32 %v6147, %v6117
      %v6149 = vadd.f32 %v6148, %v6118
      %v6150 = vadd.f32 %v6149, %v6119
      %v6151 = vadd.f32 %v6150, %v6120
      %v6152 = vadd.f32 %v6151, %v6121
      %v6153 = vadd.f32 %v6152, %v6122
      %v6154 = vadd.f32 %v6153, %v6123
      %v6155 = vadd.f32 %v6154, %v6124
      %v6156 = vadd.f32 %v6155, %v6125
      %v6157 = vadd.f32 %v6156, %v6126
      %v6158 = vadd.f32 %v6157, %v6127
      %v6159 = vadd.f32 %v6158, %v6128
      %v6160 = vadd.f32 %v6159, %v6129
      %v6161 = vadd.f32 %v6160, %v6130
      %v6162 = vadd.f32 %v6161, %v6131
      %v6163 = vadd.f32 %v6162, %v6132
      %v6164 = vadd.f32 %v6163, %v6133
      %v6165 = vadd.f32 %v6164, %v6134
      %v6166 = vadd.f32 %v6165, %v6135
      %v6167 = vadd.f32 %v6166, %v6136
      %v6168 = vadd.f32 %v6167, %v6137
      %v6169 = vrot.slane %v6168, 4
      %v6170 = vadd.f32 %v6168, %v6169
      %v6171 = vrot.slane %v6170, 2
      %v6172 = vadd.f32 %v6170, %v6171
      %v6173 = vrot.slane %v6172, 1
      %v6174 = vadd.f32 %v6172, %v6173
      %v6175 = vmul.f32 %v6174, %v3208
      %v6176 = vsub.f32 %v6106, %v6175
      %v6177 = vsub.f32 %v6107, %v6175
      %v6178 = vsub.f32 %v6108, %v6175
      %v6179 = vsub.f32 %v6109, %v6175
      %v6180 = vsub.f32 %v6110, %v6175
      %v6181 = vsub.f32 %v6111, %v6175
      %v6182 = vsub.f32 %v6112, %v6175
      %v6183 = vsub.f32 %v6113, %v6175
      %v6184 = vsub.f32 %v6114, %v6175
      %v6185 = vsub.f32 %v6115, %v6175
      %v6186 = vsub.f32 %v6116, %v6175
      %v6187 = vsub.f32 %v6117, %v6175
      %v6188 = vsub.f32 %v6118, %v6175
      %v6189 = vsub.f32 %v6119, %v6175
      %v6190 = vsub.f32 %v6120, %v6175
      %v6191 = vsub.f32 %v6121, %v6175
      %v6192 = vsub.f32 %v6122, %v6175
      %v6193 = vsub.f32 %v6123, %v6175
      %v6194 = vsub.f32 %v6124, %v6175
      %v6195 = vsub.f32 %v6125, %v6175
      %v6196 = vsub.f32 %v6126, %v6175
      %v6197 = vsub.f32 %v6127, %v6175
      %v6198 = vsub.f32 %v6128, %v6175
      %v6199 = vsub.f32 %v6129, %v6175
      %v6200 = vsub.f32 %v6130, %v6175
      %v6201 = vsub.f32 %v6131, %v6175
      %v6202 = vsub.f32 %v6132, %v6175
      %v6203 = vsub.f32 %v6133, %v6175
      %v6204 = vsub.f32 %v6134, %v6175
      %v6205 = vsub.f32 %v6135, %v6175
      %v6206 = vsub.f32 %v6136, %v6175
      %v6207 = vsub.f32 %v6137, %v6175
      %v6208 = vmul.f32 %v6176, %v6176
      %v6209 = vmul.f32 %v6177, %v6177
      %v6210 = vmul.f32 %v6178, %v6178
      %v6211 = vmul.f32 %v6179, %v6179
      %v6212 = vmul.f32 %v6180, %v6180
      %v6213 = vmul.f32 %v6181, %v6181
      %v6214 = vmul.f32 %v6182, %v6182
      %v6215 = vmul.f32 %v6183, %v6183
      %v6216 = vmul.f32 %v6184, %v6184
      %v6217 = vmul.f32 %v6185, %v6185
      %v6218 = vmul.f32 %v6186, %v6186
      %v6219 = vmul.f32 %v6187, %v6187
      %v6220 = vmul.f32 %v6188, %v6188
      %v6221 = vmul.f32 %v6189, %v6189
      %v6222 = vmul.f32 %v6190, %v6190
      %v6223 = vmul.f32 %v6191, %v6191
      %v6224 = vmul.f32 %v6192, %v6192
      %v6225 = vmul.f32 %v6193, %v6193
      %v6226 = vmul.f32 %v6194, %v6194
      %v6227 = vmul.f32 %v6195, %v6195
      %v6228 = vmul.f32 %v6196, %v6196
      %v6229 = vmul.f32 %v6197, %v6197
      %v6230 = vmul.f32 %v6198, %v6198
      %v6231 = vmul.f32 %v6199, %v6199
      %v6232 = vmul.f32 %v6200, %v6200
      %v6233 = vmul.f32 %v6201, %v6201
      %v6234 = vmul.f32 %v6202, %v6202
      %v6235 = vmul.f32 %v6203, %v6203
      %v6236 = vmul.f32 %v6204, %v6204
      %v6237 = vmul.f32 %v6205, %v6205
      %v6238 = vmul.f32 %v6206, %v6206
      %v6239 = vmul.f32 %v6207, %v6207
      %v6240 = vadd.f32 %v6208, %v6209
      %v6241 = vadd.f32 %v6240, %v6210
      %v6242 = vadd.f32 %v6241, %v6211
      %v6243 = vadd.f32 %v6242, %v6212
      %v6244 = vadd.f32 %v6243, %v6213
      %v6245 = vadd.f32 %v6244, %v6214
      %v6246 = vadd.f32 %v6245, %v6215
      %v6247 = vadd.f32 %v6246, %v6216
      %v6248 = vadd.f32 %v6247, %v6217
      %v6249 = vadd.f32 %v6248, %v6218
      %v6250 = vadd.f32 %v6249, %v6219
      %v6251 = vadd.f32 %v6250, %v6220
      %v6252 = vadd.f32 %v6251, %v6221
      %v6253 = vadd.f32 %v6252, %v6222
      %v6254 = vadd.f32 %v6253, %v6223
      %v6255 = vadd.f32 %v6254, %v6224
      %v6256 = vadd.f32 %v6255, %v6225
      %v6257 = vadd.f32 %v6256, %v6226
      %v6258 = vadd.f32 %v6257, %v6227
      %v6259 = vadd.f32 %v6258, %v6228
      %v6260 = vadd.f32 %v6259, %v6229
      %v6261 = vadd.f32 %v6260, %v6230
      %v6262 = vadd.f32 %v6261, %v6231
      %v6263 = vadd.f32 %v6262, %v6232
      %v6264 = vadd.f32 %v6263, %v6233
      %v6265 = vadd.f32 %v6264, %v6234
      %v6266 = vadd.f32 %v6265, %v6235
      %v6267 = vadd.f32 %v6266, %v6236
      %v6268 = vadd.f32 %v6267, %v6237
      %v6269 = vadd.f32 %v6268, %v6238
      %v6270 = vadd.f32 %v6269, %v6239
      %v6271 = vrot.slane %v6270, 4
      %v6272 = vadd.f32 %v6270, %v6271
      %v6273 = vrot.slane %v6272, 2
      %v6274 = vadd.f32 %v6272, %v6273
      %v6275 = vrot.slane %v6274, 1
      %v6276 = vadd.f32 %v6274, %v6275
      %v6277 = vmul.f32 %v6276, %v3208
      %v6278 = vadd.f32 %v6277, 1e-05
      %v6279 = vrsqrt.pop %v6278
      %v6280 = vmul.f32 %v6176, %v6279
      %v6281 = vmul.f32 %v6177, %v6279
      %v6282 = vmul.f32 %v6178, %v6279
      %v6283 = vmul.f32 %v6179, %v6279
      %v6284 = vmul.f32 %v6180, %v6279
      %v6285 = vmul.f32 %v6181, %v6279
      %v6286 = vmul.f32 %v6182, %v6279
      %v6287 = vmul.f32 %v6183, %v6279
      %v6288 = vmul.f32 %v6184, %v6279
      %v6289 = vmul.f32 %v6185, %v6279
      %v6290 = vmul.f32 %v6186, %v6279
      %v6291 = vmul.f32 %v6187, %v6279
      %v6292 = vmul.f32 %v6188, %v6279
      %v6293 = vmul.f32 %v6189, %v6279
      %v6294 = vmul.f32 %v6190, %v6279
      %v6295 = vmul.f32 %v6191, %v6279
      %v6296 = vmul.f32 %v6192, %v6279
      %v6297 = vmul.f32 %v6193, %v6279
      %v6298 = vmul.f32 %v6194, %v6279
      %v6299 = vmul.f32 %v6195, %v6279
      %v6300 = vmul.f32 %v6196, %v6279
      %v6301 = vmul.f32 %v6197, %v6279
      %v6302 = vmul.f32 %v6198, %v6279
      %v6303 = vmul.f32 %v6199, %v6279
      %v6304 = vmul.f32 %v6200, %v6279
      %v6305 = vmul.f32 %v6201, %v6279
      %v6306 = vmul.f32 %v6202, %v6279
      %v6307 = vmul.f32 %v6203, %v6279
      %v6308 = vmul.f32 %v6204, %v6279
      %v6309 = vmul.f32 %v6205, %v6279
      %v6310 = vmul.f32 %v6206, %v6279
      %v6311 = vmul.f32 %v6207, %v6279
      %v6312 = vadd.f32 %v6280, %v6281
      %v6313 = vadd.f32 %v6312, %v6282
      %v6314 = vadd.f32 %v6313, %v6283
      %v6315 = vadd.f32 %v6314, %v6284
      %v6316 = vadd.f32 %v6315, %v6285
      %v6317 = vadd.f32 %v6316, %v6286
      %v6318 = vadd.f32 %v6317, %v6287
      %v6319 = vadd.f32 %v6318, %v6288
      %v6320 = vadd.f32 %v6319, %v6289
      %v6321 = vadd.f32 %v6320, %v6290
      %v6322 = vadd.f32 %v6321, %v6291
      %v6323 = vadd.f32 %v6322, %v6292
      %v6324 = vadd.f32 %v6323, %v6293
      %v6325 = vadd.f32 %v6324, %v6294
      %v6326 = vadd.f32 %v6325, %v6295
      %v6327 = vadd.f32 %v6326, %v6296
      %v6328 = vadd.f32 %v6327, %v6297
      %v6329 = vadd.f32 %v6328, %v6298
      %v6330 = vadd.f32 %v6329, %v6299
      %v6331 = vadd.f32 %v6330, %v6300
      %v6332 = vadd.f32 %v6331, %v6301
      %v6333 = vadd.f32 %v6332, %v6302
      %v6334 = vadd.f32 %v6333, %v6303
      %v6335 = vadd.f32 %v6334, %v6304
      %v6336 = vadd.f32 %v6335, %v6305
      %v6337 = vadd.f32 %v6336, %v6306
      %v6338 = vadd.f32 %v6337, %v6307
      %v6339 = vadd.f32 %v6338, %v6308
      %v6340 = vadd.f32 %v6339, %v6309
      %v6341 = vadd.f32 %v6340, %v6310
      %v6342 = vadd.f32 %v6341, %v6311
      %v6343 = vrot.slane %v6342, 4
      %v6344 = vadd.f32 %v6342, %v6343
      %v6345 = vrot.slane %v6344, 2
      %v6346 = vadd.f32 %v6344, %v6345
      %v6347 = vrot.slane %v6346, 1
      %v6348 = vadd.f32 %v6346, %v6347
      %v6349 = vmul.f32 %v6348, %v3208
      %v6350 = vld [vmem:[%s5] sm:$0xff]
      %v6351 = vmul.f32 %v6349, %v6350
      %6352 = vadd.xlane.f32.xlu0 %v6351
      %v6353 = vpop.xlane.xlu0 %6352
      %v6354 = vld [vmem:[%s6] sm:$0x1]
      %v6356 = vlaneseq
      %v6357 = vshrl.u32 %v6356, 7
      %v6358 = vsub.s32 0, %v6357
      %v6359 = vrot.slane %v6354, %v6358
      %6361 = vbcast.lane.b32.xlu0 %v6359, 256
      %v6362 = vpop.permute.xlu0 %6361
      %v6364 = vadd.f32 %v6353, %v6362
      %v6365 = vmax.f32 %v6364, 0.0
      %v6366 = vld [vmem:[%s7] sm:$0xff]
      %6368 = vset.pattern.permute.xlu0 0
      %6369 = vperm.xlu0 %6368, %v6365
      %v6370 = vpop.permute.xlu0 %6369
      %v6372 = vmul.f32 %v6370, %v6366
      %v6373 = vrot.slane %v6372, 4
      %v6374 = vadd.f32 %v6372, %v6373
      %v6375 = vrot.slane %v6374, 2
      %v6376 = vadd.f32 %v6374, %v6375
      %v6377 = vrot.slane %v6376, 1
      %v6378 = vadd.f32 %v6376, %v6377
      %v6379 = vld [vmem:[%s8] sm:$0x1]
      %v6380 = vadd.f32 %v6378, %v6379
      %v6381 = vxor.u32 %v6380, 2147483648
      %v6382 = vmul.f32 %v6381, 1.442695
      %v6383 = vpow.pop %v6382
      %v6384 = vadd.f32 %v6383, 1.0
      %v6385 = vrcp.pop %v6384
      %v6386 = vmul.f32 1.0, %v6385
      %v6387 = vlaneseq
      %v6388 = vshrl.u32 %v6387, 7
      %v6389 = vsub.s32 0, %v6388
      %v6390 = vrot.slane %v6386, %v6389
      %v6391 = vmul.f32 %v6280, %v6390
      %v6392 = vmul.f32 %v6281, %v6390
      %v6393 = vmul.f32 %v6282, %v6390
      %v6394 = vmul.f32 %v6283, %v6390
      %v6395 = vmul.f32 %v6284, %v6390
      %v6396 = vmul.f32 %v6285, %v6390
      %v6397 = vmul.f32 %v6286, %v6390
      %v6398 = vmul.f32 %v6287, %v6390
      %v6399 = vmul.f32 %v6288, %v6390
      %v6400 = vmul.f32 %v6289, %v6390
      %v6401 = vmul.f32 %v6290, %v6390
      %v6402 = vmul.f32 %v6291, %v6390
      %v6403 = vmul.f32 %v6292, %v6390
      %v6404 = vmul.f32 %v6293, %v6390
      %v6405 = vmul.f32 %v6294, %v6390
      %v6406 = vmul.f32 %v6295, %v6390
      %v6407 = vmul.f32 %v6296, %v6390
      %v6408 = vmul.f32 %v6297, %v6390
      %v6409 = vmul.f32 %v6298, %v6390
      %v6410 = vmul.f32 %v6299, %v6390
      %v6411 = vmul.f32 %v6300, %v6390
      %v6412 = vmul.f32 %v6301, %v6390
      %v6413 = vmul.f32 %v6302, %v6390
      %v6414 = vmul.f32 %v6303, %v6390
      %v6415 = vmul.f32 %v6304, %v6390
      %v6416 = vmul.f32 %v6305, %v6390
      %v6417 = vmul.f32 %v6306, %v6390
      %v6418 = vmul.f32 %v6307, %v6390
      %v6419 = vmul.f32 %v6308, %v6390
      %v6420 = vmul.f32 %v6309, %v6390
      %v6421 = vmul.f32 %v6310, %v6390
      %v6422 = vmul.f32 %v6311, %v6390
      %v6423 = vadd.f32 %v6391, %v377
      %v6424 = vadd.f32 %v6392, %v378
      %v6425 = vadd.f32 %v6393, %v379
      %v6426 = vadd.f32 %v6394, %v380
      %v6427 = vadd.f32 %v6395, %v381
      %v6428 = vadd.f32 %v6396, %v382
      %v6429 = vadd.f32 %v6397, %v383
      %v6430 = vadd.f32 %v6398, %v384
      %v6431 = vadd.f32 %v6399, %v385
      %v6432 = vadd.f32 %v6400, %v386
      %v6433 = vadd.f32 %v6401, %v387
      %v6434 = vadd.f32 %v6402, %v388
      %v6435 = vadd.f32 %v6403, %v389
      %v6436 = vadd.f32 %v6404, %v390
      %v6437 = vadd.f32 %v6405, %v391
      %v6438 = vadd.f32 %v6406, %v392
      %v6439 = vadd.f32 %v6407, %v393
      %v6440 = vadd.f32 %v6408, %v394
      %v6441 = vadd.f32 %v6409, %v395
      %v6442 = vadd.f32 %v6410, %v396
      %v6443 = vadd.f32 %v6411, %v397
      %v6444 = vadd.f32 %v6412, %v398
      %v6445 = vadd.f32 %v6413, %v399
      %v6446 = vadd.f32 %v6414, %v400
      %v6447 = vadd.f32 %v6415, %v401
      %v6448 = vadd.f32 %v6416, %v402
      %v6449 = vadd.f32 %v6417, %v403
      %v6450 = vadd.f32 %v6418, %v404
      %v6451 = vadd.f32 %v6419, %v405
      %v6452 = vadd.f32 %v6420, %v406
      %v6453 = vadd.f32 %v6421, %v407
      %v6454 = vadd.f32 %v6422, %v408
      %v6455 = vmax.f32 %v6423, 0.0
      %v6456 = vmax.f32 %v6424, 0.0
      %v6457 = vmax.f32 %v6425, 0.0
      %v6458 = vmax.f32 %v6426, 0.0
      %v6459 = vmax.f32 %v6427, 0.0
      %v6460 = vmax.f32 %v6428, 0.0
      %v6461 = vmax.f32 %v6429, 0.0
      %v6462 = vmax.f32 %v6430, 0.0
      %v6463 = vmax.f32 %v6431, 0.0
      %v6464 = vmax.f32 %v6432, 0.0
      %v6465 = vmax.f32 %v6433, 0.0
      %v6466 = vmax.f32 %v6434, 0.0
      %v6467 = vmax.f32 %v6435, 0.0
      %v6468 = vmax.f32 %v6436, 0.0
      %v6469 = vmax.f32 %v6437, 0.0
      %v6470 = vmax.f32 %v6438, 0.0
      %v6471 = vmax.f32 %v6439, 0.0
      %v6472 = vmax.f32 %v6440, 0.0
      %v6473 = vmax.f32 %v6441, 0.0
      %v6474 = vmax.f32 %v6442, 0.0
      %v6475 = vmax.f32 %v6443, 0.0
      %v6476 = vmax.f32 %v6444, 0.0
      %v6477 = vmax.f32 %v6445, 0.0
      %v6478 = vmax.f32 %v6446, 0.0
      %v6479 = vmax.f32 %v6447, 0.0
      %v6480 = vmax.f32 %v6448, 0.0
      %v6481 = vmax.f32 %v6449, 0.0
      %v6482 = vmax.f32 %v6450, 0.0
      %v6483 = vmax.f32 %v6451, 0.0
      %v6484 = vmax.f32 %v6452, 0.0
      %v6485 = vmax.f32 %v6453, 0.0
      %v6486 = vmax.f32 %v6454, 0.0
      %6487 = vst [vmem:[%s332] sm:$0xff] %v6455
      %6488 = vst [vmem:[%s332 + $0x8] sm:$0xff] %v6456
      %6489 = vst [vmem:[%s332 + $0x10] sm:$0xff] %v6457
      %6490 = vst [vmem:[%s332 + $0x18] sm:$0xff] %v6458
      %6491 = vst [vmem:[%s332 + $0x20] sm:$0xff] %v6459
      %6492 = vst [vmem:[%s332 + $0x28] sm:$0xff] %v6460
      %6493 = vst [vmem:[%s332 + $0x30] sm:$0xff] %v6461
      %6494 = vst [vmem:[%s332 + $0x38] sm:$0xff] %v6462
      %6495 = vst [vmem:[%s332 + $0x40] sm:$0xff] %v6463
      %6496 = vst [vmem:[%s332 + $0x48] sm:$0xff] %v6464
      %6497 = vst [vmem:[%s332 + $0x50] sm:$0xff] %v6465
      %6498 = vst [vmem:[%s332 + $0x58] sm:$0xff] %v6466
      %6499 = vst [vmem:[%s332 + $0x60] sm:$0xff] %v6467
      %6500 = vst [vmem:[%s332 + $0x68] sm:$0xff] %v6468
      %6501 = vst [vmem:[%s332 + $0x70] sm:$0xff] %v6469
      %6502 = vst [vmem:[%s332 + $0x78] sm:$0xff] %v6470
      %6503 = vst [vmem:[%s332 + $0x80] sm:$0xff] %v6471
      %6504 = vst [vmem:[%s332 + $0x88] sm:$0xff] %v6472
      %6505 = vst [vmem:[%s332 + $0x90] sm:$0xff] %v6473
      %6506 = vst [vmem:[%s332 + $0x98] sm:$0xff] %v6474
      %6507 = vst [vmem:[%s332 + $0xa0] sm:$0xff] %v6475
      %6508 = vst [vmem:[%s332 + $0xa8] sm:$0xff] %v6476
      %6509 = vst [vmem:[%s332 + $0xb0] sm:$0xff] %v6477
      %6510 = vst [vmem:[%s332 + $0xb8] sm:$0xff] %v6478
      %6511 = vst [vmem:[%s332 + $0xc0] sm:$0xff] %v6479
      %6512 = vst [vmem:[%s332 + $0xc8] sm:$0xff] %v6480
      %6513 = vst [vmem:[%s332 + $0xd0] sm:$0xff] %v6481
      %6514 = vst [vmem:[%s332 + $0xd8] sm:$0xff] %v6482
      %6515 = vst [vmem:[%s332 + $0xe0] sm:$0xff] %v6483
      %6516 = vst [vmem:[%s332 + $0xe8] sm:$0xff] %v6484
      %6517 = vst [vmem:[%s332 + $0xf0] sm:$0xff] %v6485
      %6518 = vst [vmem:[%s332 + $0xf8] sm:$0xff] %v6486
      %p6519 = scmp.lt.s32.totalorder %s20, 1
      %s6520 = scalar_select %p6519, %s20, 1
      %s6521 = smul.addr %s6520, 32
      %s6522 = smul.addr %s6521, 8
      %s6523 = scalar_lea.vmem %s9, %s6522
      // Predicated region
      $region57: #{se_block_conv_forward.1} parent=55 // pred_check
        %p6524 = pneg %p232
      $region58: #{se_block_conv_forward.1} parent=55 // pred_check_branch
        %6526 = sbr.rel (%p6524) target = $region60
      $region59: #{se_block_conv_forward.1} parent=55 // pred_region
        _
      $region60: #{se_block_conv_forward.1} parent=55 // pred_fallthru
        _
    $region56: #{se_block_conv_forward.1} parent=5 // pred_fallthru
      _
    %p6527 = scmp.le.s32.totalorder 2, %s15
    // Predicated region
    $region61: #{se_block_conv_forward.1} parent=5 // pred_check
      %p6528 = pneg %p6527
    $region62: #{se_block_conv_forward.1} parent=5 // pred_check_branch
      %6530 = sbr.rel (%p6528) target = $region64
    $region63: #{se_block_conv_forward.1} parent=5 // pred_region
      %s6531 = ssub.s32 %s15, 2
      // Predicated region
      $region65: #{se_block_conv_forward.1} parent=63 // pred_check
        %p6532 = pneg %p238
      $region66: #{se_block_conv_forward.1} parent=63 // pred_check_branch
        %6534 = sbr.rel (%p6532) target = $region68
      $region67: #{se_block_conv_forward.1} parent=63 // pred_region
        %p6535 = scmp.lt.s32.totalorder %s21, 1
        %s6536 = scalar_select %p6535, %s21, 1
        %s6537 = smul.addr %s6536, 32
        %s6538 = smul.addr %s6537, 8
        %s6539 = scalar_lea.vmem %s9, %s6538
      $region68: #{se_block_conv_forward.1} parent=63 // pred_fallthru
        _
    $region64: #{se_block_conv_forward.1} parent=5 // pred_fallthru
      _
  $region6: #{se_block_conv_forward.1} parent=0 // loop_footer
    %s19 = sadd.s32 1, %s15
  $region7: #{se_block_conv_forward.1} parent=0 // loop_footer_branch
    %14 = sbr.rel target = $region3
  $region8: #{se_block_conv_forward.1} parent=0 // loop_exit
    _

</llo_original>
